<compile_context>
chip_gen: v5e
topology: v5e:2x2
jax: 0.10.0
libtpu: 0.0.40
codegen_flags: <defaults>
</compile_context>

<pallas_src>
import math

import jax
import jax.numpy as jnp
from jax import lax
from jax.experimental import pallas as pl
from jax.experimental.pallas import tpu as pltpu


def encoder_kernel(x_ref, len_ref,
                   wih_ref, bih_ref,      # combined fwd|bwd input proj: [E, 6H] bf16, [1, 6H] f32
                   whh_ref, bhh_ref,      # block-diag recurrent weights: [2H, 6H] bf16, [1, 6H] f32
                   fcw_ref, fcb_ref,      # [2H, D] f32, [1, D] f32
                   out_ref, hid_ref,      # [T, B, 2H] f32, [B, D] f32
                   gi_ref):               # VMEM scratch [T, B, 6H] f32
    T, B, E = x_ref.shape
    H = whh_ref.shape[0] // 2
    H3 = 3 * H
    lens = len_ref[...]                   # [B, 1] int32

    # ---- Hoisted input projection for BOTH directions & all timesteps: one bf16 MXU matmul.
    #      (x cast to bf16 after the known-good f32 reshape; accumulation stays f32.)
    x2 = x_ref[...].reshape(T * B, E).astype(jnp.bfloat16)
    gi_all = jnp.dot(x2, wih_ref[...], preferred_element_type=jnp.float32) + bih_ref[...]
    gi_ref[...] = gi_all.reshape(T, B, 6 * H)
    # TODO(synk): store gi as bf16 at real sizes to halve the scratch (v7x 64 MiB VMEM budget).

    def gates(gi, gh, h):
        # PyTorch GRU cell; h' = n + z*(h - n) == (1-z)*n + z*h.  All f32 on VPU/EUP.
        r = jax.nn.sigmoid(gi[:, 0:H] + gh[:, 0:H])
        z = jax.nn.sigmoid(gi[:, H:2 * H] + gh[:, H:2 * H])
        n = jnp.tanh(gi[:, 2 * H:H3] + r * gh[:, 2 * H:H3])
        return n + z * (h - n)

    # ---- Fused fwd/bwd recurrence: step t (forward) and T-1-t (backward) per iteration,
    #      with a SINGLE [B,2H] x [2H,6H] recurrent matmul per step (block-diagonal whh).
    def body(t, carry):
        hf, hb = carry                    # f32 [B, H] each
        tb = T - 1 - t

        # Single recurrent matmul for both directions.  Weights/bias are re-read from their
        # VMEM refs every step (never held live across the unrolled loop -> no spill pressure).
        h_cat = jnp.concatenate([hf, hb], axis=1).astype(jnp.bfloat16)       # [B, 2H] bf16 LHS
        gh = (jnp.dot(h_cat, whh_ref[...], preferred_element_type=jnp.float32)
              + bhh_ref[...])                                                # [B, 6H] f32

        # Ref-sliced gi loads (starts 0 and 3H are 128-lane aligned): only the needed half.
        gi_f = gi_ref[t, :, 0:H3]         # [B, 3H] fwd gates at time t
        gi_b = gi_ref[tb, :, H3:2 * H3]   # [B, 3H] bwd gates at time T-1-t

        hf_new = gates(gi_f, gh[:, 0:H3], hf)
        hb_new = gates(gi_b, gh[:, H3:2 * H3], hb)

        mask_f = lens > t                 # [B, 1] valid timestep (forward)
        mask_b = lens > tb                # [B, 1] valid timestep (backward)

        out_ref[t, :, 0:H] = jnp.where(mask_f, hf_new, 0.0)
        out_ref[tb, :, H:2 * H] = jnp.where(mask_b, hb_new, 0.0)

        hf = jnp.where(mask_f, hf_new, hf)    # hold state across padded steps
        hb = jnp.where(mask_b, hb_new, hb)
        return (hf, hb)

    h0 = jnp.zeros((B, H), jnp.float32)
    # TODO(synk): switch to unroll=2-4 once T grows beyond a few dozen steps (icache / live ranges).
    hf, hb = lax.fori_loop(0, T, body, (h0, h0), unroll=True)

    # ---- hidden = tanh(fc(cat(hf, hb))): one [B,2H] x [2H,D] MXU call (K = 2H = 256).
    h_cat = jnp.concatenate([hf, hb], axis=1)
    pre = jnp.dot(h_cat, fcw_ref[...], preferred_element_type=jnp.float32) + fcb_ref[...]
    hid_ref[...] = jnp.tanh(pre)


def encoder_forward(src, srclen, params):
    T, B = src.shape
    E = params["embed"].shape[1]
    H = params["whh_f"].shape[0]
    D = params["fcb"].shape[1]

    # Embedding lookup (gather) stays in plain JAX.
    # TODO(synk): nn.Dropout(0.5) in training mode is stochastic; eval-mode (identity) semantics used.
    x = jnp.take(params["embed"], src, axis=0).astype(jnp.float32)      # [T, B, E]
    lens2d = srclen.astype(jnp.int32).reshape(B, 1)

    # Combined fwd|bwd input projection: one [T*B,E] x [E,6H] in-kernel matmul (bf16 MXU operands).
    wih = jnp.concatenate([params["wih_f"], params["wih_b"]], axis=1).astype(jnp.bfloat16)
    bih = jnp.concatenate([params["bih_f"], params["bih_b"]], axis=1)   # f32 [1, 6H]

    # Block-diagonal recurrent weight: [hf|hb] @ whh_blk == [hf@whh_f | hb@whh_b] in ONE dot.
    zero = jnp.zeros((H, 3 * H), jnp.float32)
    whh = jnp.concatenate([
        jnp.concatenate([params["whh_f"], zero], axis=1),
        jnp.concatenate([zero, params["whh_b"]], axis=1),
    ], axis=0).astype(jnp.bfloat16)                                     # [2H, 6H] bf16
    bhh = jnp.concatenate([params["bhh_f"], params["bhh_b"]], axis=1)   # f32 [1, 6H]

    # Shape-derived VMEM budget (all operands + outputs + gi scratch, 2x slack), capped at 48 MiB
    # so it stays portable to v7x (64 MiB physical per TensorCore).
    def nbytes(shape, dtype):
        return math.prod(shape) * jnp.dtype(dtype).itemsize
    footprint = (nbytes((T, B, E), jnp.float32) + nbytes((B, 1), jnp.int32)
                 + nbytes((E, 6 * H), jnp.bfloat16) + nbytes((2 * H, 6 * H), jnp.bfloat16)
                 + 2 * nbytes((1, 6 * H), jnp.float32)
                 + nbytes((2 * H, D), jnp.float32) + nbytes((1, D), jnp.float32)
                 + nbytes((T, B, 2 * H), jnp.float32) + nbytes((B, D), jnp.float32)
                 + nbytes((T, B, 6 * H), jnp.float32))
    vmem_limit = int(min(max(2 * footprint + (2 << 20), 4 << 20), 48 << 20))

    out, hid = pl.pallas_call(
        encoder_kernel,
        out_shape=(
            jax.ShapeDtypeStruct((T, B, 2 * H), jnp.float32),
            jax.ShapeDtypeStruct((B, D), jnp.float32),
        ),
        in_specs=[pl.BlockSpec(memory_space=pltpu.MemorySpace.VMEM)] * 8,
        out_specs=(pl.BlockSpec(memory_space=pltpu.MemorySpace.VMEM),) * 2,
        scratch_shapes=[pltpu.VMEM((T, B, 6 * H), jnp.float32)],
        compiler_params=pltpu.CompilerParams(vmem_limit_bytes=vmem_limit),
    )(x, lens2d, wih, bih, whh, bhh, params["fcw"], params["fcb"])

    hidden = hid[None, :, :]                                            # [1, B, D]
    return out, hidden


def init_params(key, input_dim, emb_dim, hid_dim, dec_hid):
    ks = jax.random.split(key, 11)
    s = 1.0 / float(jnp.sqrt(jnp.float32(hid_dim)))
    u = lambda k, shp: jax.random.uniform(k, shp, jnp.float32, -s, s)
    return dict(
        embed=jax.random.normal(ks[0], (input_dim, emb_dim), jnp.float32),
        # GRU weights stored pre-transposed: wih = weight_ih.T -> [E, 3H], whh = weight_hh.T -> [H, 3H]
        wih_f=u(ks[1], (emb_dim, 3 * hid_dim)),
        whh_f=u(ks[2], (hid_dim, 3 * hid_dim)),
        bih_f=u(ks[3], (1, 3 * hid_dim)),
        bhh_f=u(ks[4], (1, 3 * hid_dim)),
        wih_b=u(ks[5], (emb_dim, 3 * hid_dim)),
        whh_b=u(ks[6], (hid_dim, 3 * hid_dim)),
        bih_b=u(ks[7], (1, 3 * hid_dim)),
        bhh_b=u(ks[8], (1, 3 * hid_dim)),
        fcw=u(ks[9], (2 * hid_dim, dec_hid)),
        fcb=u(ks[10], (1, dec_hid)),
    )


def encoder_reference(src, srclen, params):
    """Pure-JAX f32 reference mirroring PyTorch packed bidirectional GRU + fc/tanh."""
    T, B = src.shape
    H = params["whh_f"].shape[0]
    x = jnp.take(params["embed"], src, axis=0).astype(jnp.float32)

    def step(x_t, h, wih, whh, bih, bhh):
        gi = x_t @ wih + bih
        gh = h @ whh + bhh
        r = jax.nn.sigmoid(gi[:, :H] + gh[:, :H])
        z = jax.nn.sigmoid(gi[:, H:2 * H] + gh[:, H:2 * H])
        n = jnp.tanh(gi[:, 2 * H:] + r * gh[:, 2 * H:])
        return (1 - z) * n + z * h

    lens = srclen.astype(jnp.int32)[:, None]
    hf = jnp.zeros((B, H), jnp.float32)
    hb = jnp.zeros((B, H), jnp.float32)
    outf, outb = [], [None] * T
    for t in range(T):
        hn = step(x[t], hf, params["wih_f"], params["whh_f"], params["bih_f"], params["bhh_f"])
        m = lens > t
        hf = jnp.where(m, hn, hf)
        outf.append(jnp.where(m, hn, 0.0))
    for t in range(T - 1, -1, -1):
        hn = step(x[t], hb, params["wih_b"], params["whh_b"], params["bih_b"], params["bhh_b"])
        m = lens > t
        hb = jnp.where(m, hn, hb)
        outb[t] = jnp.where(m, hn, 0.0)
    outputs = jnp.concatenate([jnp.stack(outf), jnp.stack(outb)], axis=-1)
    hidden = jnp.tanh(jnp.concatenate([hf, hb], axis=1) @ params["fcw"] + params["fcb"])[None]
    return outputs, hidden


if __name__ == "__main__":
    key = jax.random.PRNGKey(0)
    # Demo dims: H, D multiples of 128 (lane-aligned output halves), B multiple of 8 (sublanes).
    V, E, H, D = 50, 64, 128, 128     # input_dim, emb_dim, hid_dim, dec_hid
    T, B = 10, 8                      # seq length, batch

    kp, ks = jax.random.split(key)
    params = init_params(kp, V, E, H, D)
    src = jax.random.randint(ks, (T, B), 0, V, dtype=jnp.int32)
    # pack_padded_sequence expects lengths sorted descending, max == T.
    srclen = jnp.array([10, 9, 8, 7, 6, 5, 4, 3], dtype=jnp.int32)

    outputs, hidden = encoder_forward(src, srclen, params)
    jax.block_until_ready((outputs, hidden))

    ref_out, ref_hid = encoder_reference(src, srclen, params)
    assert outputs.shape == (T, B, 2 * H) and hidden.shape == (1, B, D)
    # Kernel uses bf16 MXU operands with f32 accumulation + f32 gate math; vs the pure-f32
    # reference that is ~2^-8 relative error per matmul, compounding mildly over T steps,
    # so verify at a bf16-appropriate tolerance.
    assert jnp.allclose(outputs, ref_out, atol=2e-2, rtol=2e-2)
    assert jnp.allclose(hidden, ref_hid, atol=2e-2, rtol=2e-2)
    print("KERNEL_OK")
</pallas_src>

<mosaic_0001>
module attributes {stable_mosaic.version = 11 : i64} {
  func.func @encoder_kernel(%arg0: memref<10x8x64xf32, #tpu.memory_space<vmem>>, %arg1: memref<8x1xi32, #tpu.memory_space<vmem>>, %arg2: memref<64x768xbf16, #tpu.memory_space<vmem>>, %arg3: memref<1x768xf32, #tpu.memory_space<vmem>>, %arg4: memref<256x768xbf16, #tpu.memory_space<vmem>>, %arg5: memref<1x768xf32, #tpu.memory_space<vmem>>, %arg6: memref<256x128xf32, #tpu.memory_space<vmem>>, %arg7: memref<1x128xf32, #tpu.memory_space<vmem>>, %arg8: memref<10x8x256xf32, #tpu.memory_space<vmem>>, %arg9: memref<8x128xf32, #tpu.memory_space<vmem>>, %arg10: memref<10x8x768xf32, #tpu.memory_space<vmem>>) attributes {dimension_semantics = [], scalar_prefetch = 0 : i64, scratch_operands = 1 : i64, tpu.core_type = #tpu.core_type<tc>} {
    %c0 = arith.constant 0 : index
    %c0_0 = arith.constant 0 : index
    %0 = vector.load %arg1[%c0, %c0_0] : memref<8x1xi32, #tpu.memory_space<vmem>>, vector<8x1xi32>
    %c0_1 = arith.constant 0 : index
    %c0_2 = arith.constant 0 : index
    %c0_3 = arith.constant 0 : index
    %1 = vector.load %arg0[%c0_1, %c0_2, %c0_3] : memref<10x8x64xf32, #tpu.memory_space<vmem>>, vector<10x8x64xf32>
    %2 = vector.shape_cast %1 : vector<10x8x64xf32> to vector<80x64xf32>
    %3 = arith.truncf %2 : vector<80x64xf32> to vector<80x64xbf16>
    %c0_4 = arith.constant 0 : index
    %c0_5 = arith.constant 0 : index
    %4 = vector.load %arg2[%c0_4, %c0_5] : memref<64x768xbf16, #tpu.memory_space<vmem>>, vector<64x768xbf16>
    %cst = arith.constant dense<0.000000e+00> : vector<80x768xf32>
    %5 = tpu.matmul %3, %4, %cst {dimension_numbers = #tpu.dot_dimension_numbers<[1], [0], [0], [1], [0, 0, 1, 1], [], []>} : vector<80x64xbf16>, vector<64x768xbf16>, vector<80x768xf32> -> vector<80x768xf32>
    %c0_6 = arith.constant 0 : index
    %c0_7 = arith.constant 0 : index
    %6 = vector.load %arg3[%c0_6, %c0_7] : memref<1x768xf32, #tpu.memory_space<vmem>>, vector<1x768xf32>
    %7 = vector.broadcast %6 : vector<1x768xf32> to vector<80x768xf32>
    %8 = arith.addf %5, %7 : vector<80x768xf32>
    %9 = vector.shape_cast %8 : vector<80x768xf32> to vector<10x8x768xf32>
    %c0_8 = arith.constant 0 : index
    %c0_9 = arith.constant 0 : index
    %c0_10 = arith.constant 0 : index
    %10 = vector.load %arg10[%c0_8, %c0_9, %c0_10] : memref<10x8x768xf32, #tpu.memory_space<vmem>>, vector<10x8x768xf32>
    tpu.vector_store %arg10[%c0_8, %c0_9, %c0_10], %9 {strides = array<i32>} : memref<10x8x768xf32, #tpu.memory_space<vmem>>, vector<10x8x768xf32>,
    %cst_11 = arith.constant 0.000000e+00 : f32
    %11 = vector.broadcast %cst_11 : f32 to vector<8x128xf32>
    %c0_i32 = arith.constant 0 : i32
    %c9_i32 = arith.constant 9 : i32
    %12 = arith.subi %c9_i32, %c0_i32 : i32
    %13 = tpu.concatenate %11, %11 in 1 : vector<8x128xf32>, vector<8x128xf32> -> vector<8x256xf32>
    %14 = arith.truncf %13 : vector<8x256xf32> to vector<8x256xbf16>
    %c0_12 = arith.constant 0 : index
    %c0_13 = arith.constant 0 : index
    %15 = vector.load %arg4[%c0_12, %c0_13] : memref<256x768xbf16, #tpu.memory_space<vmem>>, vector<256x768xbf16>
    %cst_14 = arith.constant dense<0.000000e+00> : vector<8x768xf32>
    %16 = tpu.matmul %14, %15, %cst_14 {dimension_numbers = #tpu.dot_dimension_numbers<[1], [0], [0], [1], [0, 0, 1, 1], [], []>} : vector<8x256xbf16>, vector<256x768xbf16>, vector<8x768xf32> -> vector<8x768xf32>
    %c0_15 = arith.constant 0 : index
    %c0_16 = arith.constant 0 : index
    %17 = vector.load %arg5[%c0_15, %c0_16] : memref<1x768xf32, #tpu.memory_space<vmem>>, vector<1x768xf32>
    %18 = vector.broadcast %17 : vector<1x768xf32> to vector<8x768xf32>
    %19 = arith.addf %16, %18 : vector<8x768xf32>
    %20 = arith.index_cast %c0_i32 : i32 to index
    %c0_17 = arith.constant 0 : index
    %c0_18 = arith.constant 0 : index
    %21 = vector.load %arg10[%20, %c0_17, %c0_18] : memref<10x8x768xf32, #tpu.memory_space<vmem>>, vector<1x8x384xf32>
    %22 = vector.shape_cast %21 : vector<1x8x384xf32> to vector<8x384xf32>
    %23 = arith.index_cast %12 : i32 to index
    %c0_19 = arith.constant 0 : index
    %c384 = arith.constant 384 : index
    %24 = vector.load %arg10[%23, %c0_19, %c384] : memref<10x8x768xf32, #tpu.memory_space<vmem>>, vector<1x8x384xf32>
    %25 = vector.shape_cast %24 : vector<1x8x384xf32> to vector<8x384xf32>
    %26 = vector.extract_strided_slice %19 {offsets = [0, 0], sizes = [8, 384], strides = [1, 1]} : vector<8x768xf32> to vector<8x384xf32>
    %27 = vector.extract_strided_slice %22 {offsets = [0, 0], sizes = [8, 128], strides = [1, 1]} : vector<8x384xf32> to vector<8x128xf32>
    %28 = vector.extract_strided_slice %26 {offsets = [0, 0], sizes = [8, 128], strides = [1, 1]} : vector<8x384xf32> to vector<8x128xf32>
    %29 = arith.addf %27, %28 : vector<8x128xf32>
    %30 = arith.negf %29 : vector<8x128xf32>
    %31 = math.exp %30 : vector<8x128xf32>
    %cst_20 = arith.constant 1.000000e+00 : f32
    %32 = vector.broadcast %cst_20 : f32 to vector<8x128xf32>
    %33 = arith.addf %32, %31 : vector<8x128xf32>
    %34 = arith.divf %32, %33 : vector<8x128xf32>
    %35 = vector.extract_strided_slice %22 {offsets = [0, 128], sizes = [8, 128], strides = [1, 1]} : vector<8x384xf32> to vector<8x128xf32>
    %36 = vector.extract_strided_slice %26 {offsets = [0, 128], sizes = [8, 128], strides = [1, 1]} : vector<8x384xf32> to vector<8x128xf32>
    %37 = arith.addf %35, %36 : vector<8x128xf32>
    %38 = arith.negf %37 : vector<8x128xf32>
    %39 = math.exp %38 : vector<8x128xf32>
    %cst_21 = arith.constant 1.000000e+00 : f32
    %40 = vector.broadcast %cst_21 : f32 to vector<8x128xf32>
    %41 = arith.addf %40, %39 : vector<8x128xf32>
    %42 = arith.divf %40, %41 : vector<8x128xf32>
    %43 = vector.extract_strided_slice %22 {offsets = [0, 256], sizes = [8, 128], strides = [1, 1]} : vector<8x384xf32> to vector<8x128xf32>
    %44 = vector.extract_strided_slice %26 {offsets = [0, 256], sizes = [8, 128], strides = [1, 1]} : vector<8x384xf32> to vector<8x128xf32>
    %45 = arith.mulf %34, %44 : vector<8x128xf32>
    %46 = arith.addf %43, %45 : vector<8x128xf32>
    %47 = math.tanh %46 : vector<8x128xf32>
    %48 = arith.subf %11, %47 : vector<8x128xf32>
    %49 = arith.mulf %42, %48 : vector<8x128xf32>
    %50 = arith.addf %47, %49 : vector<8x128xf32>
    %51 = vector.extract_strided_slice %19 {offsets = [0, 384], sizes = [8, 384], strides = [1, 1]} : vector<8x768xf32> to vector<8x384xf32>
    %52 = vector.extract_strided_slice %25 {offsets = [0, 0], sizes = [8, 128], strides = [1, 1]} : vector<8x384xf32> to vector<8x128xf32>
    %53 = vector.extract_strided_slice %51 {offsets = [0, 0], sizes = [8, 128], strides = [1, 1]} : vector<8x384xf32> to vector<8x128xf32>
    %54 = arith.addf %52, %53 : vector<8x128xf32>
    %55 = arith.negf %54 : vector<8x128xf32>
    %56 = math.exp %55 : vector<8x128xf32>
    %cst_22 = arith.constant 1.000000e+00 : f32
    %57 = vector.broadcast %cst_22 : f32 to vector<8x128xf32>
    %58 = arith.addf %57, %56 : vector<8x128xf32>
    %59 = arith.divf %57, %58 : vector<8x128xf32>
    %60 = vector.extract_strided_slice %25 {offsets = [0, 128], sizes = [8, 128], strides = [1, 1]} : vector<8x384xf32> to vector<8x128xf32>
    %61 = vector.extract_strided_slice %51 {offsets = [0, 128], sizes = [8, 128], strides = [1, 1]} : vector<8x384xf32> to vector<8x128xf32>
    %62 = arith.addf %60, %61 : vector<8x128xf32>
    %63 = arith.negf %62 : vector<8x128xf32>
    %64 = math.exp %63 : vector<8x128xf32>
    %cst_23 = arith.constant 1.000000e+00 : f32
    %65 = vector.broadcast %cst_23 : f32 to vector<8x128xf32>
    %66 = arith.addf %65, %64 : vector<8x128xf32>
    %67 = arith.divf %65, %66 : vector<8x128xf32>
    %68 = vector.extract_strided_slice %25 {offsets = [0, 256], sizes = [8, 128], strides = [1, 1]} : vector<8x384xf32> to vector<8x128xf32>
    %69 = vector.extract_strided_slice %51 {offsets = [0, 256], sizes = [8, 128], strides = [1, 1]} : vector<8x384xf32> to vector<8x128xf32>
    %70 = arith.mulf %59, %69 : vector<8x128xf32>
    %71 = arith.addf %68, %70 : vector<8x128xf32>
    %72 = math.tanh %71 : vector<8x128xf32>
    %73 = arith.subf %11, %72 : vector<8x128xf32>
    %74 = arith.mulf %67, %73 : vector<8x128xf32>
    %75 = arith.addf %72, %74 : vector<8x128xf32>
    %76 = vector.broadcast %c0_i32 : i32 to vector<8x1xi32>
    %77 = arith.cmpi sgt, %0, %76 : vector<8x1xi32>
    %78 = vector.broadcast %12 : i32 to vector<8x1xi32>
    %79 = arith.cmpi sgt, %0, %78 : vector<8x1xi32>
    %cst_24 = arith.constant 0.000000e+00 : f32
    %80 = vector.shape_cast %77 : vector<8x1xi1> to vector<8x1xi1>
    %81 = vector.broadcast %80 : vector<8x1xi1> to vector<8x128xi1>
    %82 = vector.broadcast %cst_24 : f32 to vector<8x128xf32>
    %83 = arith.select %81, %50, %82 : vector<8x128xi1>, vector<8x128xf32>
    %84 = arith.index_cast %c0_i32 : i32 to index
    %c0_25 = arith.constant 0 : index
    %c0_26 = arith.constant 0 : index
    %85 = vector.load %arg8[%84, %c0_25, %c0_26] : memref<10x8x256xf32, #tpu.memory_space<vmem>>, vector<1x8x128xf32>
    %86 = vector.shape_cast %85 : vector<1x8x128xf32> to vector<8x128xf32>
    %87 = vector.shape_cast %83 : vector<8x128xf32> to vector<1x8x128xf32>
    tpu.vector_store %arg8[%84, %c0_25, %c0_26], %87 {strides = array<i32>} : memref<10x8x256xf32, #tpu.memory_space<vmem>>, vector<1x8x128xf32>,
    %cst_27 = arith.constant 0.000000e+00 : f32
    %88 = vector.shape_cast %79 : vector<8x1xi1> to vector<8x1xi1>
    %89 = vector.broadcast %88 : vector<8x1xi1> to vector<8x128xi1>
    %90 = vector.broadcast %cst_27 : f32 to vector<8x128xf32>
    %91 = arith.select %89, %75, %90 : vector<8x128xi1>, vector<8x128xf32>
    %92 = arith.index_cast %12 : i32 to index
    %c0_28 = arith.constant 0 : index
    %c128 = arith.constant 128 : index
    %93 = vector.load %arg8[%92, %c0_28, %c128] : memref<10x8x256xf32, #tpu.memory_space<vmem>>, vector<1x8x128xf32>
    %94 = vector.shape_cast %93 : vector<1x8x128xf32> to vector<8x128xf32>
    %95 = vector.shape_cast %91 : vector<8x128xf32> to vector<1x8x128xf32>
    tpu.vector_store %arg8[%92, %c0_28, %c128], %95 {strides = array<i32>} : memref<10x8x256xf32, #tpu.memory_space<vmem>>, vector<1x8x128xf32>,
    %96 = vector.shape_cast %77 : vector<8x1xi1> to vector<8x1xi1>
    %97 = vector.broadcast %96 : vector<8x1xi1> to vector<8x128xi1>
    %98 = arith.select %97, %50, %11 : vector<8x128xi1>, vector<8x128xf32>
    %99 = vector.shape_cast %79 : vector<8x1xi1> to vector<8x1xi1>
    %100 = vector.broadcast %99 : vector<8x1xi1> to vector<8x128xi1>
    %101 = arith.select %100, %75, %11 : vector<8x128xi1>, vector<8x128xf32>
    %c1_i32 = arith.constant 1 : i32
    %c9_i32_29 = arith.constant 9 : i32
    %102 = arith.subi %c9_i32_29, %c1_i32 : i32
    %103 = tpu.concatenate %98, %101 in 1 : vector<8x128xf32>, vector<8x128xf32> -> vector<8x256xf32>
    %104 = arith.truncf %103 : vector<8x256xf32> to vector<8x256xbf16>
    %c0_30 = arith.constant 0 : index
    %c0_31 = arith.constant 0 : index
    %105 = vector.load %arg4[%c0_30, %c0_31] : memref<256x768xbf16, #tpu.memory_space<vmem>>, vector<256x768xbf16>
    %cst_32 = arith.constant dense<0.000000e+00> : vector<8x768xf32>
    %106 = tpu.matmul %104, %105, %cst_32 {dimension_numbers = #tpu.dot_dimension_numbers<[1], [0], [0], [1], [0, 0, 1, 1], [], []>} : vector<8x256xbf16>, vector<256x768xbf16>, vector<8x768xf32> -> vector<8x768xf32>
    %c0_33 = arith.constant 0 : index
    %c0_34 = arith.constant 0 : index
    %107 = vector.load %arg5[%c0_33, %c0_34] : memref<1x768xf32, #tpu.memory_space<vmem>>, vector<1x768xf32>
    %108 = vector.broadcast %107 : vector<1x768xf32> to vector<8x768xf32>
    %109 = arith.addf %106, %108 : vector<8x768xf32>
    %110 = arith.index_cast %c1_i32 : i32 to index
    %c0_35 = arith.constant 0 : index
    %c0_36 = arith.constant 0 : index
    %111 = vector.load %arg10[%110, %c0_35, %c0_36] : memref<10x8x768xf32, #tpu.memory_space<vmem>>, vector<1x8x384xf32>
    %112 = vector.shape_cast %111 : vector<1x8x384xf32> to vector<8x384xf32>
    %113 = arith.index_cast %102 : i32 to index
    %c0_37 = arith.constant 0 : index
    %c384_38 = arith.constant 384 : index
    %114 = vector.load %arg10[%113, %c0_37, %c384_38] : memref<10x8x768xf32, #tpu.memory_space<vmem>>, vector<1x8x384xf32>
    %115 = vector.shape_cast %114 : vector<1x8x384xf32> to vector<8x384xf32>
    %116 = vector.extract_strided_slice %109 {offsets = [0, 0], sizes = [8, 384], strides = [1, 1]} : vector<8x768xf32> to vector<8x384xf32>
    %117 = vector.extract_strided_slice %112 {offsets = [0, 0], sizes = [8, 128], strides = [1, 1]} : vector<8x384xf32> to vector<8x128xf32>
    %118 = vector.extract_strided_slice %116 {offsets = [0, 0], sizes = [8, 128], strides = [1, 1]} : vector<8x384xf32> to vector<8x128xf32>
    %119 = arith.addf %117, %118 : vector<8x128xf32>
    %120 = arith.negf %119 : vector<8x128xf32>
    %121 = math.exp %120 : vector<8x128xf32>
    %cst_39 = arith.constant 1.000000e+00 : f32
    %122 = vector.broadcast %cst_39 : f32 to vector<8x128xf32>
    %123 = arith.addf %122, %121 : vector<8x128xf32>
    %124 = arith.divf %122, %123 : vector<8x128xf32>
    %125 = vector.extract_strided_slice %112 {offsets = [0, 128], sizes = [8, 128], strides = [1, 1]} : vector<8x384xf32> to vector<8x128xf32>
    %126 = vector.extract_strided_slice %116 {offsets = [0, 128], sizes = [8, 128], strides = [1, 1]} : vector<8x384xf32> to vector<8x128xf32>
    %127 = arith.addf %125, %126 : vector<8x128xf32>
    %128 = arith.negf %127 : vector<8x128xf32>
    %129 = math.exp %128 : vector<8x128xf32>
    %cst_40 = arith.constant 1.000000e+00 : f32
    %130 = vector.broadcast %cst_40 : f32 to vector<8x128xf32>
    %131 = arith.addf %130, %129 : vector<8x128xf32>
    %132 = arith.divf %130, %131 : vector<8x128xf32>
    %133 = vector.extract_strided_slice %112 {offsets = [0, 256], sizes = [8, 128], strides = [1, 1]} : vector<8x384xf32> to vector<8x128xf32>
    %134 = vector.extract_strided_slice %116 {offsets = [0, 256], sizes = [8, 128], strides = [1, 1]} : vector<8x384xf32> to vector<8x128xf32>
    %135 = arith.mulf %124, %134 : vector<8x128xf32>
    %136 = arith.addf %133, %135 : vector<8x128xf32>
    %137 = math.tanh %136 : vector<8x128xf32>
    %138 = arith.subf %98, %137 : vector<8x128xf32>
    %139 = arith.mulf %132, %138 : vector<8x128xf32>
    %140 = arith.addf %137, %139 : vector<8x128xf32>
    %141 = vector.extract_strided_slice %109 {offsets = [0, 384], sizes = [8, 384], strides = [1, 1]} : vector<8x768xf32> to vector<8x384xf32>
    %142 = vector.extract_strided_slice %115 {offsets = [0, 0], sizes = [8, 128], strides = [1, 1]} : vector<8x384xf32> to vector<8x128xf32>
    %143 = vector.extract_strided_slice %141 {offsets = [0, 0], sizes = [8, 128], strides = [1, 1]} : vector<8x384xf32> to vector<8x128xf32>
    %144 = arith.addf %142, %143 : vector<8x128xf32>
    %145 = arith.negf %144 : vector<8x128xf32>
    %146 = math.exp %145 : vector<8x128xf32>
    %cst_41 = arith.constant 1.000000e+00 : f32
    %147 = vector.broadcast %cst_41 : f32 to vector<8x128xf32>
    %148 = arith.addf %147, %146 : vector<8x128xf32>
    %149 = arith.divf %147, %148 : vector<8x128xf32>
    %150 = vector.extract_strided_slice %115 {offsets = [0, 128], sizes = [8, 128], strides = [1, 1]} : vector<8x384xf32> to vector<8x128xf32>
    %151 = vector.extract_strided_slice %141 {offsets = [0, 128], sizes = [8, 128], strides = [1, 1]} : vector<8x384xf32> to vector<8x128xf32>
    %152 = arith.addf %150, %151 : vector<8x128xf32>
    %153 = arith.negf %152 : vector<8x128xf32>
    %154 = math.exp %153 : vector<8x128xf32>
    %cst_42 = arith.constant 1.000000e+00 : f32
    %155 = vector.broadcast %cst_42 : f32 to vector<8x128xf32>
    %156 = arith.addf %155, %154 : vector<8x128xf32>
    %157 = arith.divf %155, %156 : vector<8x128xf32>
    %158 = vector.extract_strided_slice %115 {offsets = [0, 256], sizes = [8, 128], strides = [1, 1]} : vector<8x384xf32> to vector<8x128xf32>
    %159 = vector.extract_strided_slice %141 {offsets = [0, 256], sizes = [8, 128], strides = [1, 1]} : vector<8x384xf32> to vector<8x128xf32>
    %160 = arith.mulf %149, %159 : vector<8x128xf32>
    %161 = arith.addf %158, %160 : vector<8x128xf32>
    %162 = math.tanh %161 : vector<8x128xf32>
    %163 = arith.subf %101, %162 : vector<8x128xf32>
    %164 = arith.mulf %157, %163 : vector<8x128xf32>
    %165 = arith.addf %162, %164 : vector<8x128xf32>
    %166 = vector.broadcast %c1_i32 : i32 to vector<8x1xi32>
    %167 = arith.cmpi sgt, %0, %166 : vector<8x1xi32>
    %168 = vector.broadcast %102 : i32 to vector<8x1xi32>
    %169 = arith.cmpi sgt, %0, %168 : vector<8x1xi32>
    %cst_43 = arith.constant 0.000000e+00 : f32
    %170 = vector.shape_cast %167 : vector<8x1xi1> to vector<8x1xi1>
    %171 = vector.broadcast %170 : vector<8x1xi1> to vector<8x128xi1>
    %172 = vector.broadcast %cst_43 : f32 to vector<8x128xf32>
    %173 = arith.select %171, %140, %172 : vector<8x128xi1>, vector<8x128xf32>
    %174 = arith.index_cast %c1_i32 : i32 to index
    %c0_44 = arith.constant 0 : index
    %c0_45 = arith.constant 0 : index
    %175 = vector.load %arg8[%174, %c0_44, %c0_45] : memref<10x8x256xf32, #tpu.memory_space<vmem>>, vector<1x8x128xf32>
    %176 = vector.shape_cast %175 : vector<1x8x128xf32> to vector<8x128xf32>
    %177 = vector.shape_cast %173 : vector<8x128xf32> to vector<1x8x128xf32>
    tpu.vector_store %arg8[%174, %c0_44, %c0_45], %177 {strides = array<i32>} : memref<10x8x256xf32, #tpu.memory_space<vmem>>, vector<1x8x128xf32>,
    %cst_46 = arith.constant 0.000000e+00 : f32
    %178 = vector.shape_cast %169 : vector<8x1xi1> to vector<8x1xi1>
    %179 = vector.broadcast %178 : vector<8x1xi1> to vector<8x128xi1>
    %180 = vector.broadcast %cst_46 : f32 to vector<8x128xf32>
    %181 = arith.select %179, %165, %180 : vector<8x128xi1>, vector<8x128xf32>
    %182 = arith.index_cast %102 : i32 to index
    %c0_47 = arith.constant 0 : index
    %c128_48 = arith.constant 128 : index
    %183 = vector.load %arg8[%182, %c0_47, %c128_48] : memref<10x8x256xf32, #tpu.memory_space<vmem>>, vector<1x8x128xf32>
    %184 = vector.shape_cast %183 : vector<1x8x128xf32> to vector<8x128xf32>
    %185 = vector.shape_cast %181 : vector<8x128xf32> to vector<1x8x128xf32>
    tpu.vector_store %arg8[%182, %c0_47, %c128_48], %185 {strides = array<i32>} : memref<10x8x256xf32, #tpu.memory_space<vmem>>, vector<1x8x128xf32>,
    %186 = vector.shape_cast %167 : vector<8x1xi1> to vector<8x1xi1>
    %187 = vector.broadcast %186 : vector<8x1xi1> to vector<8x128xi1>
    %188 = arith.select %187, %140, %98 : vector<8x128xi1>, vector<8x128xf32>
    %189 = vector.shape_cast %169 : vector<8x1xi1> to vector<8x1xi1>
    %190 = vector.broadcast %189 : vector<8x1xi1> to vector<8x128xi1>
    %191 = arith.select %190, %165, %101 : vector<8x128xi1>, vector<8x128xf32>
    %c2_i32 = arith.constant 2 : i32
    %c9_i32_49 = arith.constant 9 : i32
    %192 = arith.subi %c9_i32_49, %c2_i32 : i32
    %193 = tpu.concatenate %188, %191 in 1 : vector<8x128xf32>, vector<8x128xf32> -> vector<8x256xf32>
    %194 = arith.truncf %193 : vector<8x256xf32> to vector<8x256xbf16>
    %c0_50 = arith.constant 0 : index
    %c0_51 = arith.constant 0 : index
    %195 = vector.load %arg4[%c0_50, %c0_51] : memref<256x768xbf16, #tpu.memory_space<vmem>>, vector<256x768xbf16>
    %cst_52 = arith.constant dense<0.000000e+00> : vector<8x768xf32>
    %196 = tpu.matmul %194, %195, %cst_52 {dimension_numbers = #tpu.dot_dimension_numbers<[1], [0], [0], [1], [0, 0, 1, 1], [], []>} : vector<8x256xbf16>, vector<256x768xbf16>, vector<8x768xf32> -> vector<8x768xf32>
    %c0_53 = arith.constant 0 : index
    %c0_54 = arith.constant 0 : index
    %197 = vector.load %arg5[%c0_53, %c0_54] : memref<1x768xf32, #tpu.memory_space<vmem>>, vector<1x768xf32>
    %198 = vector.broadcast %197 : vector<1x768xf32> to vector<8x768xf32>
    %199 = arith.addf %196, %198 : vector<8x768xf32>
    %200 = arith.index_cast %c2_i32 : i32 to index
    %c0_55 = arith.constant 0 : index
    %c0_56 = arith.constant 0 : index
    %201 = vector.load %arg10[%200, %c0_55, %c0_56] : memref<10x8x768xf32, #tpu.memory_space<vmem>>, vector<1x8x384xf32>
    %202 = vector.shape_cast %201 : vector<1x8x384xf32> to vector<8x384xf32>
    %203 = arith.index_cast %192 : i32 to index
    %c0_57 = arith.constant 0 : index
    %c384_58 = arith.constant 384 : index
    %204 = vector.load %arg10[%203, %c0_57, %c384_58] : memref<10x8x768xf32, #tpu.memory_space<vmem>>, vector<1x8x384xf32>
    %205 = vector.shape_cast %204 : vector<1x8x384xf32> to vector<8x384xf32>
    %206 = vector.extract_strided_slice %199 {offsets = [0, 0], sizes = [8, 384], strides = [1, 1]} : vector<8x768xf32> to vector<8x384xf32>
    %207 = vector.extract_strided_slice %202 {offsets = [0, 0], sizes = [8, 128], strides = [1, 1]} : vector<8x384xf32> to vector<8x128xf32>
    %208 = vector.extract_strided_slice %206 {offsets = [0, 0], sizes = [8, 128], strides = [1, 1]} : vector<8x384xf32> to vector<8x128xf32>
    %209 = arith.addf %207, %208 : vector<8x128xf32>
    %210 = arith.negf %209 : vector<8x128xf32>
    %211 = math.exp %210 : vector<8x128xf32>
    %cst_59 = arith.constant 1.000000e+00 : f32
    %212 = vector.broadcast %cst_59 : f32 to vector<8x128xf32>
    %213 = arith.addf %212, %211 : vector<8x128xf32>
    %214 = arith.divf %212, %213 : vector<8x128xf32>
    %215 = vector.extract_strided_slice %202 {offsets = [0, 128], sizes = [8, 128], strides = [1, 1]} : vector<8x384xf32> to vector<8x128xf32>
    %216 = vector.extract_strided_slice %206 {offsets = [0, 128], sizes = [8, 128], strides = [1, 1]} : vector<8x384xf32> to vector<8x128xf32>
    %217 = arith.addf %215, %216 : vector<8x128xf32>
    %218 = arith.negf %217 : vector<8x128xf32>
    %219 = math.exp %218 : vector<8x128xf32>
    %cst_60 = arith.constant 1.000000e+00 : f32
    %220 = vector.broadcast %cst_60 : f32 to vector<8x128xf32>
    %221 = arith.addf %220, %219 : vector<8x128xf32>
    %222 = arith.divf %220, %221 : vector<8x128xf32>
    %223 = vector.extract_strided_slice %202 {offsets = [0, 256], sizes = [8, 128], strides = [1, 1]} : vector<8x384xf32> to vector<8x128xf32>
    %224 = vector.extract_strided_slice %206 {offsets = [0, 256], sizes = [8, 128], strides = [1, 1]} : vector<8x384xf32> to vector<8x128xf32>
    %225 = arith.mulf %214, %224 : vector<8x128xf32>
    %226 = arith.addf %223, %225 : vector<8x128xf32>
    %227 = math.tanh %226 : vector<8x128xf32>
    %228 = arith.subf %188, %227 : vector<8x128xf32>
    %229 = arith.mulf %222, %228 : vector<8x128xf32>
    %230 = arith.addf %227, %229 : vector<8x128xf32>
    %231 = vector.extract_strided_slice %199 {offsets = [0, 384], sizes = [8, 384], strides = [1, 1]} : vector<8x768xf32> to vector<8x384xf32>
    %232 = vector.extract_strided_slice %205 {offsets = [0, 0], sizes = [8, 128], strides = [1, 1]} : vector<8x384xf32> to vector<8x128xf32>
    %233 = vector.extract_strided_slice %231 {offsets = [0, 0], sizes = [8, 128], strides = [1, 1]} : vector<8x384xf32> to vector<8x128xf32>
    %234 = arith.addf %232, %233 : vector<8x128xf32>
    %235 = arith.negf %234 : vector<8x128xf32>
    %236 = math.exp %235 : vector<8x128xf32>
    %cst_61 = arith.constant 1.000000e+00 : f32
    %237 = vector.broadcast %cst_61 : f32 to vector<8x128xf32>
    %238 = arith.addf %237, %236 : vector<8x128xf32>
    %239 = arith.divf %237, %238 : vector<8x128xf32>
    %240 = vector.extract_strided_slice %205 {offsets = [0, 128], sizes = [8, 128], strides = [1, 1]} : vector<8x384xf32> to vector<8x128xf32>
    %241 = vector.extract_strided_slice %231 {offsets = [0, 128], sizes = [8, 128], strides = [1, 1]} : vector<8x384xf32> to vector<8x128xf32>
    %242 = arith.addf %240, %241 : vector<8x128xf32>
    %243 = arith.negf %242 : vector<8x128xf32>
    %244 = math.exp %243 : vector<8x128xf32>
    %cst_62 = arith.constant 1.000000e+00 : f32
    %245 = vector.broadcast %cst_62 : f32 to vector<8x128xf32>
    %246 = arith.addf %245, %244 : vector<8x128xf32>
    %247 = arith.divf %245, %246 : vector<8x128xf32>
    %248 = vector.extract_strided_slice %205 {offsets = [0, 256], sizes = [8, 128], strides = [1, 1]} : vector<8x384xf32> to vector<8x128xf32>
    %249 = vector.extract_strided_slice %231 {offsets = [0, 256], sizes = [8, 128], strides = [1, 1]} : vector<8x384xf32> to vector<8x128xf32>
    %250 = arith.mulf %239, %249 : vector<8x128xf32>
    %251 = arith.addf %248, %250 : vector<8x128xf32>
    %252 = math.tanh %251 : vector<8x128xf32>
    %253 = arith.subf %191, %252 : vector<8x128xf32>
    %254 = arith.mulf %247, %253 : vector<8x128xf32>
    %255 = arith.addf %252, %254 : vector<8x128xf32>
    %256 = vector.broadcast %c2_i32 : i32 to vector<8x1xi32>
    %257 = arith.cmpi sgt, %0, %256 : vector<8x1xi32>
    %258 = vector.broadcast %192 : i32 to vector<8x1xi32>
    %259 = arith.cmpi sgt, %0, %258 : vector<8x1xi32>
    %cst_63 = arith.constant 0.000000e+00 : f32
    %260 = vector.shape_cast %257 : vector<8x1xi1> to vector<8x1xi1>
    %261 = vector.broadcast %260 : vector<8x1xi1> to vector<8x128xi1>
    %262 = vector.broadcast %cst_63 : f32 to vector<8x128xf32>
    %263 = arith.select %261, %230, %262 : vector<8x128xi1>, vector<8x128xf32>
    %264 = arith.index_cast %c2_i32 : i32 to index
    %c0_64 = arith.constant 0 : index
    %c0_65 = arith.constant 0 : index
    %265 = vector.load %arg8[%264, %c0_64, %c0_65] : memref<10x8x256xf32, #tpu.memory_space<vmem>>, vector<1x8x128xf32>
    %266 = vector.shape_cast %265 : vector<1x8x128xf32> to vector<8x128xf32>
    %267 = vector.shape_cast %263 : vector<8x128xf32> to vector<1x8x128xf32>
    tpu.vector_store %arg8[%264, %c0_64, %c0_65], %267 {strides = array<i32>} : memref<10x8x256xf32, #tpu.memory_space<vmem>>, vector<1x8x128xf32>,
    %cst_66 = arith.constant 0.000000e+00 : f32
    %268 = vector.shape_cast %259 : vector<8x1xi1> to vector<8x1xi1>
    %269 = vector.broadcast %268 : vector<8x1xi1> to vector<8x128xi1>
    %270 = vector.broadcast %cst_66 : f32 to vector<8x128xf32>
    %271 = arith.select %269, %255, %270 : vector<8x128xi1>, vector<8x128xf32>
    %272 = arith.index_cast %192 : i32 to index
    %c0_67 = arith.constant 0 : index
    %c128_68 = arith.constant 128 : index
    %273 = vector.load %arg8[%272, %c0_67, %c128_68] : memref<10x8x256xf32, #tpu.memory_space<vmem>>, vector<1x8x128xf32>
    %274 = vector.shape_cast %273 : vector<1x8x128xf32> to vector<8x128xf32>
    %275 = vector.shape_cast %271 : vector<8x128xf32> to vector<1x8x128xf32>
    tpu.vector_store %arg8[%272, %c0_67, %c128_68], %275 {strides = array<i32>} : memref<10x8x256xf32, #tpu.memory_space<vmem>>, vector<1x8x128xf32>,
    %276 = vector.shape_cast %257 : vector<8x1xi1> to vector<8x1xi1>
    %277 = vector.broadcast %276 : vector<8x1xi1> to vector<8x128xi1>
    %278 = arith.select %277, %230, %188 : vector<8x128xi1>, vector<8x128xf32>
    %279 = vector.shape_cast %259 : vector<8x1xi1> to vector<8x1xi1>
    %280 = vector.broadcast %279 : vector<8x1xi1> to vector<8x128xi1>
    %281 = arith.select %280, %255, %191 : vector<8x128xi1>, vector<8x128xf32>
    %c3_i32 = arith.constant 3 : i32
    %c9_i32_69 = arith.constant 9 : i32
    %282 = arith.subi %c9_i32_69, %c3_i32 : i32
    %283 = tpu.concatenate %278, %281 in 1 : vector<8x128xf32>, vector<8x128xf32> -> vector<8x256xf32>
    %284 = arith.truncf %283 : vector<8x256xf32> to vector<8x256xbf16>
    %c0_70 = arith.constant 0 : index
    %c0_71 = arith.constant 0 : index
    %285 = vector.load %arg4[%c0_70, %c0_71] : memref<256x768xbf16, #tpu.memory_space<vmem>>, vector<256x768xbf16>
    %cst_72 = arith.constant dense<0.000000e+00> : vector<8x768xf32>
    %286 = tpu.matmul %284, %285, %cst_72 {dimension_numbers = #tpu.dot_dimension_numbers<[1], [0], [0], [1], [0, 0, 1, 1], [], []>} : vector<8x256xbf16>, vector<256x768xbf16>, vector<8x768xf32> -> vector<8x768xf32>
    %c0_73 = arith.constant 0 : index
    %c0_74 = arith.constant 0 : index
    %287 = vector.load %arg5[%c0_73, %c0_74] : memref<1x768xf32, #tpu.memory_space<vmem>>, vector<1x768xf32>
    %288 = vector.broadcast %287 : vector<1x768xf32> to vector<8x768xf32>
    %289 = arith.addf %286, %288 : vector<8x768xf32>
    %290 = arith.index_cast %c3_i32 : i32 to index
    %c0_75 = arith.constant 0 : index
    %c0_76 = arith.constant 0 : index
    %291 = vector.load %arg10[%290, %c0_75, %c0_76] : memref<10x8x768xf32, #tpu.memory_space<vmem>>, vector<1x8x384xf32>
    %292 = vector.shape_cast %291 : vector<1x8x384xf32> to vector<8x384xf32>
    %293 = arith.index_cast %282 : i32 to index
    %c0_77 = arith.constant 0 : index
    %c384_78 = arith.constant 384 : index
    %294 = vector.load %arg10[%293, %c0_77, %c384_78] : memref<10x8x768xf32, #tpu.memory_space<vmem>>, vector<1x8x384xf32>
    %295 = vector.shape_cast %294 : vector<1x8x384xf32> to vector<8x384xf32>
    %296 = vector.extract_strided_slice %289 {offsets = [0, 0], sizes = [8, 384], strides = [1, 1]} : vector<8x768xf32> to vector<8x384xf32>
    %297 = vector.extract_strided_slice %292 {offsets = [0, 0], sizes = [8, 128], strides = [1, 1]} : vector<8x384xf32> to vector<8x128xf32>
    %298 = vector.extract_strided_slice %296 {offsets = [0, 0], sizes = [8, 128], strides = [1, 1]} : vector<8x384xf32> to vector<8x128xf32>
    %299 = arith.addf %297, %298 : vector<8x128xf32>
    %300 = arith.negf %299 : vector<8x128xf32>
    %301 = math.exp %300 : vector<8x128xf32>
    %cst_79 = arith.constant 1.000000e+00 : f32
    %302 = vector.broadcast %cst_79 : f32 to vector<8x128xf32>
    %303 = arith.addf %302, %301 : vector<8x128xf32>
    %304 = arith.divf %302, %303 : vector<8x128xf32>
    %305 = vector.extract_strided_slice %292 {offsets = [0, 128], sizes = [8, 128], strides = [1, 1]} : vector<8x384xf32> to vector<8x128xf32>
    %306 = vector.extract_strided_slice %296 {offsets = [0, 128], sizes = [8, 128], strides = [1, 1]} : vector<8x384xf32> to vector<8x128xf32>
    %307 = arith.addf %305, %306 : vector<8x128xf32>
    %308 = arith.negf %307 : vector<8x128xf32>
    %309 = math.exp %308 : vector<8x128xf32>
    %cst_80 = arith.constant 1.000000e+00 : f32
    %310 = vector.broadcast %cst_80 : f32 to vector<8x128xf32>
    %311 = arith.addf %310, %309 : vector<8x128xf32>
    %312 = arith.divf %310, %311 : vector<8x128xf32>
    %313 = vector.extract_strided_slice %292 {offsets = [0, 256], sizes = [8, 128], strides = [1, 1]} : vector<8x384xf32> to vector<8x128xf32>
    %314 = vector.extract_strided_slice %296 {offsets = [0, 256], sizes = [8, 128], strides = [1, 1]} : vector<8x384xf32> to vector<8x128xf32>
    %315 = arith.mulf %304, %314 : vector<8x128xf32>
    %316 = arith.addf %313, %315 : vector<8x128xf32>
    %317 = math.tanh %316 : vector<8x128xf32>
    %318 = arith.subf %278, %317 : vector<8x128xf32>
    %319 = arith.mulf %312, %318 : vector<8x128xf32>
    %320 = arith.addf %317, %319 : vector<8x128xf32>
    %321 = vector.extract_strided_slice %289 {offsets = [0, 384], sizes = [8, 384], strides = [1, 1]} : vector<8x768xf32> to vector<8x384xf32>
    %322 = vector.extract_strided_slice %295 {offsets = [0, 0], sizes = [8, 128], strides = [1, 1]} : vector<8x384xf32> to vector<8x128xf32>
    %323 = vector.extract_strided_slice %321 {offsets = [0, 0], sizes = [8, 128], strides = [1, 1]} : vector<8x384xf32> to vector<8x128xf32>
    %324 = arith.addf %322, %323 : vector<8x128xf32>
    %325 = arith.negf %324 : vector<8x128xf32>
    %326 = math.exp %325 : vector<8x128xf32>
    %cst_81 = arith.constant 1.000000e+00 : f32
    %327 = vector.broadcast %cst_81 : f32 to vector<8x128xf32>
    %328 = arith.addf %327, %326 : vector<8x128xf32>
    %329 = arith.divf %327, %328 : vector<8x128xf32>
    %330 = vector.extract_strided_slice %295 {offsets = [0, 128], sizes = [8, 128], strides = [1, 1]} : vector<8x384xf32> to vector<8x128xf32>
    %331 = vector.extract_strided_slice %321 {offsets = [0, 128], sizes = [8, 128], strides = [1, 1]} : vector<8x384xf32> to vector<8x128xf32>
    %332 = arith.addf %330, %331 : vector<8x128xf32>
    %333 = arith.negf %332 : vector<8x128xf32>
    %334 = math.exp %333 : vector<8x128xf32>
    %cst_82 = arith.constant 1.000000e+00 : f32
    %335 = vector.broadcast %cst_82 : f32 to vector<8x128xf32>
    %336 = arith.addf %335, %334 : vector<8x128xf32>
    %337 = arith.divf %335, %336 : vector<8x128xf32>
    %338 = vector.extract_strided_slice %295 {offsets = [0, 256], sizes = [8, 128], strides = [1, 1]} : vector<8x384xf32> to vector<8x128xf32>
    %339 = vector.extract_strided_slice %321 {offsets = [0, 256], sizes = [8, 128], strides = [1, 1]} : vector<8x384xf32> to vector<8x128xf32>
    %340 = arith.mulf %329, %339 : vector<8x128xf32>
    %341 = arith.addf %338, %340 : vector<8x128xf32>
    %342 = math.tanh %341 : vector<8x128xf32>
    %343 = arith.subf %281, %342 : vector<8x128xf32>
    %344 = arith.mulf %337, %343 : vector<8x128xf32>
    %345 = arith.addf %342, %344 : vector<8x128xf32>
    %346 = vector.broadcast %c3_i32 : i32 to vector<8x1xi32>
    %347 = arith.cmpi sgt, %0, %346 : vector<8x1xi32>
    %348 = vector.broadcast %282 : i32 to vector<8x1xi32>
    %349 = arith.cmpi sgt, %0, %348 : vector<8x1xi32>
    %cst_83 = arith.constant 0.000000e+00 : f32
    %350 = vector.shape_cast %347 : vector<8x1xi1> to vector<8x1xi1>
    %351 = vector.broadcast %350 : vector<8x1xi1> to vector<8x128xi1>
    %352 = vector.broadcast %cst_83 : f32 to vector<8x128xf32>
    %353 = arith.select %351, %320, %352 : vector<8x128xi1>, vector<8x128xf32>
    %354 = arith.index_cast %c3_i32 : i32 to index
    %c0_84 = arith.constant 0 : index
    %c0_85 = arith.constant 0 : index
    %355 = vector.load %arg8[%354, %c0_84, %c0_85] : memref<10x8x256xf32, #tpu.memory_space<vmem>>, vector<1x8x128xf32>
    %356 = vector.shape_cast %355 : vector<1x8x128xf32> to vector<8x128xf32>
    %357 = vector.shape_cast %353 : vector<8x128xf32> to vector<1x8x128xf32>
    tpu.vector_store %arg8[%354, %c0_84, %c0_85], %357 {strides = array<i32>} : memref<10x8x256xf32, #tpu.memory_space<vmem>>, vector<1x8x128xf32>,
    %cst_86 = arith.constant 0.000000e+00 : f32
    %358 = vector.shape_cast %349 : vector<8x1xi1> to vector<8x1xi1>
    %359 = vector.broadcast %358 : vector<8x1xi1> to vector<8x128xi1>
    %360 = vector.broadcast %cst_86 : f32 to vector<8x128xf32>
    %361 = arith.select %359, %345, %360 : vector<8x128xi1>, vector<8x128xf32>
    %362 = arith.index_cast %282 : i32 to index
    %c0_87 = arith.constant 0 : index
    %c128_88 = arith.constant 128 : index
    %363 = vector.load %arg8[%362, %c0_87, %c128_88] : memref<10x8x256xf32, #tpu.memory_space<vmem>>, vector<1x8x128xf32>
    %364 = vector.shape_cast %363 : vector<1x8x128xf32> to vector<8x128xf32>
    %365 = vector.shape_cast %361 : vector<8x128xf32> to vector<1x8x128xf32>
    tpu.vector_store %arg8[%362, %c0_87, %c128_88], %365 {strides = array<i32>} : memref<10x8x256xf32, #tpu.memory_space<vmem>>, vector<1x8x128xf32>,
    %366 = vector.shape_cast %347 : vector<8x1xi1> to vector<8x1xi1>
    %367 = vector.broadcast %366 : vector<8x1xi1> to vector<8x128xi1>
    %368 = arith.select %367, %320, %278 : vector<8x128xi1>, vector<8x128xf32>
    %369 = vector.shape_cast %349 : vector<8x1xi1> to vector<8x1xi1>
    %370 = vector.broadcast %369 : vector<8x1xi1> to vector<8x128xi1>
    %371 = arith.select %370, %345, %281 : vector<8x128xi1>, vector<8x128xf32>
    %c4_i32 = arith.constant 4 : i32
    %c9_i32_89 = arith.constant 9 : i32
    %372 = arith.subi %c9_i32_89, %c4_i32 : i32
    %373 = tpu.concatenate %368, %371 in 1 : vector<8x128xf32>, vector<8x128xf32> -> vector<8x256xf32>
    %374 = arith.truncf %373 : vector<8x256xf32> to vector<8x256xbf16>
    %c0_90 = arith.constant 0 : index
    %c0_91 = arith.constant 0 : index
    %375 = vector.load %arg4[%c0_90, %c0_91] : memref<256x768xbf16, #tpu.memory_space<vmem>>, vector<256x768xbf16>
    %cst_92 = arith.constant dense<0.000000e+00> : vector<8x768xf32>
    %376 = tpu.matmul %374, %375, %cst_92 {dimension_numbers = #tpu.dot_dimension_numbers<[1], [0], [0], [1], [0, 0, 1, 1], [], []>} : vector<8x256xbf16>, vector<256x768xbf16>, vector<8x768xf32> -> vector<8x768xf32>
    %c0_93 = arith.constant 0 : index
    %c0_94 = arith.constant 0 : index
    %377 = vector.load %arg5[%c0_93, %c0_94] : memref<1x768xf32, #tpu.memory_space<vmem>>, vector<1x768xf32>
    %378 = vector.broadcast %377 : vector<1x768xf32> to vector<8x768xf32>
    %379 = arith.addf %376, %378 : vector<8x768xf32>
    %380 = arith.index_cast %c4_i32 : i32 to index
    %c0_95 = arith.constant 0 : index
    %c0_96 = arith.constant 0 : index
    %381 = vector.load %arg10[%380, %c0_95, %c0_96] : memref<10x8x768xf32, #tpu.memory_space<vmem>>, vector<1x8x384xf32>
    %382 = vector.shape_cast %381 : vector<1x8x384xf32> to vector<8x384xf32>
    %383 = arith.index_cast %372 : i32 to index
    %c0_97 = arith.constant 0 : index
    %c384_98 = arith.constant 384 : index
    %384 = vector.load %arg10[%383, %c0_97, %c384_98] : memref<10x8x768xf32, #tpu.memory_space<vmem>>, vector<1x8x384xf32>
    %385 = vector.shape_cast %384 : vector<1x8x384xf32> to vector<8x384xf32>
    %386 = vector.extract_strided_slice %379 {offsets = [0, 0], sizes = [8, 384], strides = [1, 1]} : vector<8x768xf32> to vector<8x384xf32>
    %387 = vector.extract_strided_slice %382 {offsets = [0, 0], sizes = [8, 128], strides = [1, 1]} : vector<8x384xf32> to vector<8x128xf32>
    %388 = vector.extract_strided_slice %386 {offsets = [0, 0], sizes = [8, 128], strides = [1, 1]} : vector<8x384xf32> to vector<8x128xf32>
    %389 = arith.addf %387, %388 : vector<8x128xf32>
    %390 = arith.negf %389 : vector<8x128xf32>
    %391 = math.exp %390 : vector<8x128xf32>
    %cst_99 = arith.constant 1.000000e+00 : f32
    %392 = vector.broadcast %cst_99 : f32 to vector<8x128xf32>
    %393 = arith.addf %392, %391 : vector<8x128xf32>
    %394 = arith.divf %392, %393 : vector<8x128xf32>
    %395 = vector.extract_strided_slice %382 {offsets = [0, 128], sizes = [8, 128], strides = [1, 1]} : vector<8x384xf32> to vector<8x128xf32>
    %396 = vector.extract_strided_slice %386 {offsets = [0, 128], sizes = [8, 128], strides = [1, 1]} : vector<8x384xf32> to vector<8x128xf32>
    %397 = arith.addf %395, %396 : vector<8x128xf32>
    %398 = arith.negf %397 : vector<8x128xf32>
    %399 = math.exp %398 : vector<8x128xf32>
    %cst_100 = arith.constant 1.000000e+00 : f32
    %400 = vector.broadcast %cst_100 : f32 to vector<8x128xf32>
    %401 = arith.addf %400, %399 : vector<8x128xf32>
    %402 = arith.divf %400, %401 : vector<8x128xf32>
    %403 = vector.extract_strided_slice %382 {offsets = [0, 256], sizes = [8, 128], strides = [1, 1]} : vector<8x384xf32> to vector<8x128xf32>
    %404 = vector.extract_strided_slice %386 {offsets = [0, 256], sizes = [8, 128], strides = [1, 1]} : vector<8x384xf32> to vector<8x128xf32>
    %405 = arith.mulf %394, %404 : vector<8x128xf32>
    %406 = arith.addf %403, %405 : vector<8x128xf32>
    %407 = math.tanh %406 : vector<8x128xf32>
    %408 = arith.subf %368, %407 : vector<8x128xf32>
    %409 = arith.mulf %402, %408 : vector<8x128xf32>
    %410 = arith.addf %407, %409 : vector<8x128xf32>
    %411 = vector.extract_strided_slice %379 {offsets = [0, 384], sizes = [8, 384], strides = [1, 1]} : vector<8x768xf32> to vector<8x384xf32>
    %412 = vector.extract_strided_slice %385 {offsets = [0, 0], sizes = [8, 128], strides = [1, 1]} : vector<8x384xf32> to vector<8x128xf32>
    %413 = vector.extract_strided_slice %411 {offsets = [0, 0], sizes = [8, 128], strides = [1, 1]} : vector<8x384xf32> to vector<8x128xf32>
    %414 = arith.addf %412, %413 : vector<8x128xf32>
    %415 = arith.negf %414 : vector<8x128xf32>
    %416 = math.exp %415 : vector<8x128xf32>
    %cst_101 = arith.constant 1.000000e+00 : f32
    %417 = vector.broadcast %cst_101 : f32 to vector<8x128xf32>
    %418 = arith.addf %417, %416 : vector<8x128xf32>
    %419 = arith.divf %417, %418 : vector<8x128xf32>
    %420 = vector.extract_strided_slice %385 {offsets = [0, 128], sizes = [8, 128], strides = [1, 1]} : vector<8x384xf32> to vector<8x128xf32>
    %421 = vector.extract_strided_slice %411 {offsets = [0, 128], sizes = [8, 128], strides = [1, 1]} : vector<8x384xf32> to vector<8x128xf32>
    %422 = arith.addf %420, %421 : vector<8x128xf32>
    %423 = arith.negf %422 : vector<8x128xf32>
    %424 = math.exp %423 : vector<8x128xf32>
    %cst_102 = arith.constant 1.000000e+00 : f32
    %425 = vector.broadcast %cst_102 : f32 to vector<8x128xf32>
    %426 = arith.addf %425, %424 : vector<8x128xf32>
    %427 = arith.divf %425, %426 : vector<8x128xf32>
    %428 = vector.extract_strided_slice %385 {offsets = [0, 256], sizes = [8, 128], strides = [1, 1]} : vector<8x384xf32> to vector<8x128xf32>
    %429 = vector.extract_strided_slice %411 {offsets = [0, 256], sizes = [8, 128], strides = [1, 1]} : vector<8x384xf32> to vector<8x128xf32>
    %430 = arith.mulf %419, %429 : vector<8x128xf32>
    %431 = arith.addf %428, %430 : vector<8x128xf32>
    %432 = math.tanh %431 : vector<8x128xf32>
    %433 = arith.subf %371, %432 : vector<8x128xf32>
    %434 = arith.mulf %427, %433 : vector<8x128xf32>
    %435 = arith.addf %432, %434 : vector<8x128xf32>
    %436 = vector.broadcast %c4_i32 : i32 to vector<8x1xi32>
    %437 = arith.cmpi sgt, %0, %436 : vector<8x1xi32>
    %438 = vector.broadcast %372 : i32 to vector<8x1xi32>
    %439 = arith.cmpi sgt, %0, %438 : vector<8x1xi32>
    %cst_103 = arith.constant 0.000000e+00 : f32
    %440 = vector.shape_cast %437 : vector<8x1xi1> to vector<8x1xi1>
    %441 = vector.broadcast %440 : vector<8x1xi1> to vector<8x128xi1>
    %442 = vector.broadcast %cst_103 : f32 to vector<8x128xf32>
    %443 = arith.select %441, %410, %442 : vector<8x128xi1>, vector<8x128xf32>
    %444 = arith.index_cast %c4_i32 : i32 to index
    %c0_104 = arith.constant 0 : index
    %c0_105 = arith.constant 0 : index
    %445 = vector.load %arg8[%444, %c0_104, %c0_105] : memref<10x8x256xf32, #tpu.memory_space<vmem>>, vector<1x8x128xf32>
    %446 = vector.shape_cast %445 : vector<1x8x128xf32> to vector<8x128xf32>
    %447 = vector.shape_cast %443 : vector<8x128xf32> to vector<1x8x128xf32>
    tpu.vector_store %arg8[%444, %c0_104, %c0_105], %447 {strides = array<i32>} : memref<10x8x256xf32, #tpu.memory_space<vmem>>, vector<1x8x128xf32>,
    %cst_106 = arith.constant 0.000000e+00 : f32
    %448 = vector.shape_cast %439 : vector<8x1xi1> to vector<8x1xi1>
    %449 = vector.broadcast %448 : vector<8x1xi1> to vector<8x128xi1>
    %450 = vector.broadcast %cst_106 : f32 to vector<8x128xf32>
    %451 = arith.select %449, %435, %450 : vector<8x128xi1>, vector<8x128xf32>
    %452 = arith.index_cast %372 : i32 to index
    %c0_107 = arith.constant 0 : index
    %c128_108 = arith.constant 128 : index
    %453 = vector.load %arg8[%452, %c0_107, %c128_108] : memref<10x8x256xf32, #tpu.memory_space<vmem>>, vector<1x8x128xf32>
    %454 = vector.shape_cast %453 : vector<1x8x128xf32> to vector<8x128xf32>
    %455 = vector.shape_cast %451 : vector<8x128xf32> to vector<1x8x128xf32>
    tpu.vector_store %arg8[%452, %c0_107, %c128_108], %455 {strides = array<i32>} : memref<10x8x256xf32, #tpu.memory_space<vmem>>, vector<1x8x128xf32>,
    %456 = vector.shape_cast %437 : vector<8x1xi1> to vector<8x1xi1>
    %457 = vector.broadcast %456 : vector<8x1xi1> to vector<8x128xi1>
    %458 = arith.select %457, %410, %368 : vector<8x128xi1>, vector<8x128xf32>
    %459 = vector.shape_cast %439 : vector<8x1xi1> to vector<8x1xi1>
    %460 = vector.broadcast %459 : vector<8x1xi1> to vector<8x128xi1>
    %461 = arith.select %460, %435, %371 : vector<8x128xi1>, vector<8x128xf32>
    %c5_i32 = arith.constant 5 : i32
    %c9_i32_109 = arith.constant 9 : i32
    %462 = arith.subi %c9_i32_109, %c5_i32 : i32
    %463 = tpu.concatenate %458, %461 in 1 : vector<8x128xf32>, vector<8x128xf32> -> vector<8x256xf32>
    %464 = arith.truncf %463 : vector<8x256xf32> to vector<8x256xbf16>
    %c0_110 = arith.constant 0 : index
    %c0_111 = arith.constant 0 : index
    %465 = vector.load %arg4[%c0_110, %c0_111] : memref<256x768xbf16, #tpu.memory_space<vmem>>, vector<256x768xbf16>
    %cst_112 = arith.constant dense<0.000000e+00> : vector<8x768xf32>
    %466 = tpu.matmul %464, %465, %cst_112 {dimension_numbers = #tpu.dot_dimension_numbers<[1], [0], [0], [1], [0, 0, 1, 1], [], []>} : vector<8x256xbf16>, vector<256x768xbf16>, vector<8x768xf32> -> vector<8x768xf32>
    %c0_113 = arith.constant 0 : index
    %c0_114 = arith.constant 0 : index
    %467 = vector.load %arg5[%c0_113, %c0_114] : memref<1x768xf32, #tpu.memory_space<vmem>>, vector<1x768xf32>
    %468 = vector.broadcast %467 : vector<1x768xf32> to vector<8x768xf32>
    %469 = arith.addf %466, %468 : vector<8x768xf32>
    %470 = arith.index_cast %c5_i32 : i32 to index
    %c0_115 = arith.constant 0 : index
    %c0_116 = arith.constant 0 : index
    %471 = vector.load %arg10[%470, %c0_115, %c0_116] : memref<10x8x768xf32, #tpu.memory_space<vmem>>, vector<1x8x384xf32>
    %472 = vector.shape_cast %471 : vector<1x8x384xf32> to vector<8x384xf32>
    %473 = arith.index_cast %462 : i32 to index
    %c0_117 = arith.constant 0 : index
    %c384_118 = arith.constant 384 : index
    %474 = vector.load %arg10[%473, %c0_117, %c384_118] : memref<10x8x768xf32, #tpu.memory_space<vmem>>, vector<1x8x384xf32>
    %475 = vector.shape_cast %474 : vector<1x8x384xf32> to vector<8x384xf32>
    %476 = vector.extract_strided_slice %469 {offsets = [0, 0], sizes = [8, 384], strides = [1, 1]} : vector<8x768xf32> to vector<8x384xf32>
    %477 = vector.extract_strided_slice %472 {offsets = [0, 0], sizes = [8, 128], strides = [1, 1]} : vector<8x384xf32> to vector<8x128xf32>
    %478 = vector.extract_strided_slice %476 {offsets = [0, 0], sizes = [8, 128], strides = [1, 1]} : vector<8x384xf32> to vector<8x128xf32>
    %479 = arith.addf %477, %478 : vector<8x128xf32>
    %480 = arith.negf %479 : vector<8x128xf32>
    %481 = math.exp %480 : vector<8x128xf32>
    %cst_119 = arith.constant 1.000000e+00 : f32
    %482 = vector.broadcast %cst_119 : f32 to vector<8x128xf32>
    %483 = arith.addf %482, %481 : vector<8x128xf32>
    %484 = arith.divf %482, %483 : vector<8x128xf32>
    %485 = vector.extract_strided_slice %472 {offsets = [0, 128], sizes = [8, 128], strides = [1, 1]} : vector<8x384xf32> to vector<8x128xf32>
    %486 = vector.extract_strided_slice %476 {offsets = [0, 128], sizes = [8, 128], strides = [1, 1]} : vector<8x384xf32> to vector<8x128xf32>
    %487 = arith.addf %485, %486 : vector<8x128xf32>
    %488 = arith.negf %487 : vector<8x128xf32>
    %489 = math.exp %488 : vector<8x128xf32>
    %cst_120 = arith.constant 1.000000e+00 : f32
    %490 = vector.broadcast %cst_120 : f32 to vector<8x128xf32>
    %491 = arith.addf %490, %489 : vector<8x128xf32>
    %492 = arith.divf %490, %491 : vector<8x128xf32>
    %493 = vector.extract_strided_slice %472 {offsets = [0, 256], sizes = [8, 128], strides = [1, 1]} : vector<8x384xf32> to vector<8x128xf32>
    %494 = vector.extract_strided_slice %476 {offsets = [0, 256], sizes = [8, 128], strides = [1, 1]} : vector<8x384xf32> to vector<8x128xf32>
    %495 = arith.mulf %484, %494 : vector<8x128xf32>
    %496 = arith.addf %493, %495 : vector<8x128xf32>
    %497 = math.tanh %496 : vector<8x128xf32>
    %498 = arith.subf %458, %497 : vector<8x128xf32>
    %499 = arith.mulf %492, %498 : vector<8x128xf32>
    %500 = arith.addf %497, %499 : vector<8x128xf32>
    %501 = vector.extract_strided_slice %469 {offsets = [0, 384], sizes = [8, 384], strides = [1, 1]} : vector<8x768xf32> to vector<8x384xf32>
    %502 = vector.extract_strided_slice %475 {offsets = [0, 0], sizes = [8, 128], strides = [1, 1]} : vector<8x384xf32> to vector<8x128xf32>
    %503 = vector.extract_strided_slice %501 {offsets = [0, 0], sizes = [8, 128], strides = [1, 1]} : vector<8x384xf32> to vector<8x128xf32>
    %504 = arith.addf %502, %503 : vector<8x128xf32>
    %505 = arith.negf %504 : vector<8x128xf32>
    %506 = math.exp %505 : vector<8x128xf32>
    %cst_121 = arith.constant 1.000000e+00 : f32
    %507 = vector.broadcast %cst_121 : f32 to vector<8x128xf32>
    %508 = arith.addf %507, %506 : vector<8x128xf32>
    %509 = arith.divf %507, %508 : vector<8x128xf32>
    %510 = vector.extract_strided_slice %475 {offsets = [0, 128], sizes = [8, 128], strides = [1, 1]} : vector<8x384xf32> to vector<8x128xf32>
    %511 = vector.extract_strided_slice %501 {offsets = [0, 128], sizes = [8, 128], strides = [1, 1]} : vector<8x384xf32> to vector<8x128xf32>
    %512 = arith.addf %510, %511 : vector<8x128xf32>
    %513 = arith.negf %512 : vector<8x128xf32>
    %514 = math.exp %513 : vector<8x128xf32>
    %cst_122 = arith.constant 1.000000e+00 : f32
    %515 = vector.broadcast %cst_122 : f32 to vector<8x128xf32>
    %516 = arith.addf %515, %514 : vector<8x128xf32>
    %517 = arith.divf %515, %516 : vector<8x128xf32>
    %518 = vector.extract_strided_slice %475 {offsets = [0, 256], sizes = [8, 128], strides = [1, 1]} : vector<8x384xf32> to vector<8x128xf32>
    %519 = vector.extract_strided_slice %501 {offsets = [0, 256], sizes = [8, 128], strides = [1, 1]} : vector<8x384xf32> to vector<8x128xf32>
    %520 = arith.mulf %509, %519 : vector<8x128xf32>
    %521 = arith.addf %518, %520 : vector<8x128xf32>
    %522 = math.tanh %521 : vector<8x128xf32>
    %523 = arith.subf %461, %522 : vector<8x128xf32>
    %524 = arith.mulf %517, %523 : vector<8x128xf32>
    %525 = arith.addf %522, %524 : vector<8x128xf32>
    %526 = vector.broadcast %c5_i32 : i32 to vector<8x1xi32>
    %527 = arith.cmpi sgt, %0, %526 : vector<8x1xi32>
    %528 = vector.broadcast %462 : i32 to vector<8x1xi32>
    %529 = arith.cmpi sgt, %0, %528 : vector<8x1xi32>
    %cst_123 = arith.constant 0.000000e+00 : f32
    %530 = vector.shape_cast %527 : vector<8x1xi1> to vector<8x1xi1>
    %531 = vector.broadcast %530 : vector<8x1xi1> to vector<8x128xi1>
    %532 = vector.broadcast %cst_123 : f32 to vector<8x128xf32>
    %533 = arith.select %531, %500, %532 : vector<8x128xi1>, vector<8x128xf32>
    %534 = arith.index_cast %c5_i32 : i32 to index
    %c0_124 = arith.constant 0 : index
    %c0_125 = arith.constant 0 : index
    %535 = vector.load %arg8[%534, %c0_124, %c0_125] : memref<10x8x256xf32, #tpu.memory_space<vmem>>, vector<1x8x128xf32>
    %536 = vector.shape_cast %535 : vector<1x8x128xf32> to vector<8x128xf32>
    %537 = vector.shape_cast %533 : vector<8x128xf32> to vector<1x8x128xf32>
    tpu.vector_store %arg8[%534, %c0_124, %c0_125], %537 {strides = array<i32>} : memref<10x8x256xf32, #tpu.memory_space<vmem>>, vector<1x8x128xf32>,
    %cst_126 = arith.constant 0.000000e+00 : f32
    %538 = vector.shape_cast %529 : vector<8x1xi1> to vector<8x1xi1>
    %539 = vector.broadcast %538 : vector<8x1xi1> to vector<8x128xi1>
    %540 = vector.broadcast %cst_126 : f32 to vector<8x128xf32>
    %541 = arith.select %539, %525, %540 : vector<8x128xi1>, vector<8x128xf32>
    %542 = arith.index_cast %462 : i32 to index
    %c0_127 = arith.constant 0 : index
    %c128_128 = arith.constant 128 : index
    %543 = vector.load %arg8[%542, %c0_127, %c128_128] : memref<10x8x256xf32, #tpu.memory_space<vmem>>, vector<1x8x128xf32>
    %544 = vector.shape_cast %543 : vector<1x8x128xf32> to vector<8x128xf32>
    %545 = vector.shape_cast %541 : vector<8x128xf32> to vector<1x8x128xf32>
    tpu.vector_store %arg8[%542, %c0_127, %c128_128], %545 {strides = array<i32>} : memref<10x8x256xf32, #tpu.memory_space<vmem>>, vector<1x8x128xf32>,
    %546 = vector.shape_cast %527 : vector<8x1xi1> to vector<8x1xi1>
    %547 = vector.broadcast %546 : vector<8x1xi1> to vector<8x128xi1>
    %548 = arith.select %547, %500, %458 : vector<8x128xi1>, vector<8x128xf32>
    %549 = vector.shape_cast %529 : vector<8x1xi1> to vector<8x1xi1>
    %550 = vector.broadcast %549 : vector<8x1xi1> to vector<8x128xi1>
    %551 = arith.select %550, %525, %461 : vector<8x128xi1>, vector<8x128xf32>
    %c6_i32 = arith.constant 6 : i32
    %c9_i32_129 = arith.constant 9 : i32
    %552 = arith.subi %c9_i32_129, %c6_i32 : i32
    %553 = tpu.concatenate %548, %551 in 1 : vector<8x128xf32>, vector<8x128xf32> -> vector<8x256xf32>
    %554 = arith.truncf %553 : vector<8x256xf32> to vector<8x256xbf16>
    %c0_130 = arith.constant 0 : index
    %c0_131 = arith.constant 0 : index
    %555 = vector.load %arg4[%c0_130, %c0_131] : memref<256x768xbf16, #tpu.memory_space<vmem>>, vector<256x768xbf16>
    %cst_132 = arith.constant dense<0.000000e+00> : vector<8x768xf32>
    %556 = tpu.matmul %554, %555, %cst_132 {dimension_numbers = #tpu.dot_dimension_numbers<[1], [0], [0], [1], [0, 0, 1, 1], [], []>} : vector<8x256xbf16>, vector<256x768xbf16>, vector<8x768xf32> -> vector<8x768xf32>
    %c0_133 = arith.constant 0 : index
    %c0_134 = arith.constant 0 : index
    %557 = vector.load %arg5[%c0_133, %c0_134] : memref<1x768xf32, #tpu.memory_space<vmem>>, vector<1x768xf32>
    %558 = vector.broadcast %557 : vector<1x768xf32> to vector<8x768xf32>
    %559 = arith.addf %556, %558 : vector<8x768xf32>
    %560 = arith.index_cast %c6_i32 : i32 to index
    %c0_135 = arith.constant 0 : index
    %c0_136 = arith.constant 0 : index
    %561 = vector.load %arg10[%560, %c0_135, %c0_136] : memref<10x8x768xf32, #tpu.memory_space<vmem>>, vector<1x8x384xf32>
    %562 = vector.shape_cast %561 : vector<1x8x384xf32> to vector<8x384xf32>
    %563 = arith.index_cast %552 : i32 to index
    %c0_137 = arith.constant 0 : index
    %c384_138 = arith.constant 384 : index
    %564 = vector.load %arg10[%563, %c0_137, %c384_138] : memref<10x8x768xf32, #tpu.memory_space<vmem>>, vector<1x8x384xf32>
    %565 = vector.shape_cast %564 : vector<1x8x384xf32> to vector<8x384xf32>
    %566 = vector.extract_strided_slice %559 {offsets = [0, 0], sizes = [8, 384], strides = [1, 1]} : vector<8x768xf32> to vector<8x384xf32>
    %567 = vector.extract_strided_slice %562 {offsets = [0, 0], sizes = [8, 128], strides = [1, 1]} : vector<8x384xf32> to vector<8x128xf32>
    %568 = vector.extract_strided_slice %566 {offsets = [0, 0], sizes = [8, 128], strides = [1, 1]} : vector<8x384xf32> to vector<8x128xf32>
    %569 = arith.addf %567, %568 : vector<8x128xf32>
    %570 = arith.negf %569 : vector<8x128xf32>
    %571 = math.exp %570 : vector<8x128xf32>
    %cst_139 = arith.constant 1.000000e+00 : f32
    %572 = vector.broadcast %cst_139 : f32 to vector<8x128xf32>
    %573 = arith.addf %572, %571 : vector<8x128xf32>
    %574 = arith.divf %572, %573 : vector<8x128xf32>
    %575 = vector.extract_strided_slice %562 {offsets = [0, 128], sizes = [8, 128], strides = [1, 1]} : vector<8x384xf32> to vector<8x128xf32>
    %576 = vector.extract_strided_slice %566 {offsets = [0, 128], sizes = [8, 128], strides = [1, 1]} : vector<8x384xf32> to vector<8x128xf32>
    %577 = arith.addf %575, %576 : vector<8x128xf32>
    %578 = arith.negf %577 : vector<8x128xf32>
    %579 = math.exp %578 : vector<8x128xf32>
    %cst_140 = arith.constant 1.000000e+00 : f32
    %580 = vector.broadcast %cst_140 : f32 to vector<8x128xf32>
    %581 = arith.addf %580, %579 : vector<8x128xf32>
    %582 = arith.divf %580, %581 : vector<8x128xf32>
    %583 = vector.extract_strided_slice %562 {offsets = [0, 256], sizes = [8, 128], strides = [1, 1]} : vector<8x384xf32> to vector<8x128xf32>
    %584 = vector.extract_strided_slice %566 {offsets = [0, 256], sizes = [8, 128], strides = [1, 1]} : vector<8x384xf32> to vector<8x128xf32>
    %585 = arith.mulf %574, %584 : vector<8x128xf32>
    %586 = arith.addf %583, %585 : vector<8x128xf32>
    %587 = math.tanh %586 : vector<8x128xf32>
    %588 = arith.subf %548, %587 : vector<8x128xf32>
    %589 = arith.mulf %582, %588 : vector<8x128xf32>
    %590 = arith.addf %587, %589 : vector<8x128xf32>
    %591 = vector.extract_strided_slice %559 {offsets = [0, 384], sizes = [8, 384], strides = [1, 1]} : vector<8x768xf32> to vector<8x384xf32>
    %592 = vector.extract_strided_slice %565 {offsets = [0, 0], sizes = [8, 128], strides = [1, 1]} : vector<8x384xf32> to vector<8x128xf32>
    %593 = vector.extract_strided_slice %591 {offsets = [0, 0], sizes = [8, 128], strides = [1, 1]} : vector<8x384xf32> to vector<8x128xf32>
    %594 = arith.addf %592, %593 : vector<8x128xf32>
    %595 = arith.negf %594 : vector<8x128xf32>
    %596 = math.exp %595 : vector<8x128xf32>
    %cst_141 = arith.constant 1.000000e+00 : f32
    %597 = vector.broadcast %cst_141 : f32 to vector<8x128xf32>
    %598 = arith.addf %597, %596 : vector<8x128xf32>
    %599 = arith.divf %597, %598 : vector<8x128xf32>
    %600 = vector.extract_strided_slice %565 {offsets = [0, 128], sizes = [8, 128], strides = [1, 1]} : vector<8x384xf32> to vector<8x128xf32>
    %601 = vector.extract_strided_slice %591 {offsets = [0, 128], sizes = [8, 128], strides = [1, 1]} : vector<8x384xf32> to vector<8x128xf32>
    %602 = arith.addf %600, %601 : vector<8x128xf32>
    %603 = arith.negf %602 : vector<8x128xf32>
    %604 = math.exp %603 : vector<8x128xf32>
    %cst_142 = arith.constant 1.000000e+00 : f32
    %605 = vector.broadcast %cst_142 : f32 to vector<8x128xf32>
    %606 = arith.addf %605, %604 : vector<8x128xf32>
    %607 = arith.divf %605, %606 : vector<8x128xf32>
    %608 = vector.extract_strided_slice %565 {offsets = [0, 256], sizes = [8, 128], strides = [1, 1]} : vector<8x384xf32> to vector<8x128xf32>
    %609 = vector.extract_strided_slice %591 {offsets = [0, 256], sizes = [8, 128], strides = [1, 1]} : vector<8x384xf32> to vector<8x128xf32>
    %610 = arith.mulf %599, %609 : vector<8x128xf32>
    %611 = arith.addf %608, %610 : vector<8x128xf32>
    %612 = math.tanh %611 : vector<8x128xf32>
    %613 = arith.subf %551, %612 : vector<8x128xf32>
    %614 = arith.mulf %607, %613 : vector<8x128xf32>
    %615 = arith.addf %612, %614 : vector<8x128xf32>
    %616 = vector.broadcast %c6_i32 : i32 to vector<8x1xi32>
    %617 = arith.cmpi sgt, %0, %616 : vector<8x1xi32>
    %618 = vector.broadcast %552 : i32 to vector<8x1xi32>
    %619 = arith.cmpi sgt, %0, %618 : vector<8x1xi32>
    %cst_143 = arith.constant 0.000000e+00 : f32
    %620 = vector.shape_cast %617 : vector<8x1xi1> to vector<8x1xi1>
    %621 = vector.broadcast %620 : vector<8x1xi1> to vector<8x128xi1>
    %622 = vector.broadcast %cst_143 : f32 to vector<8x128xf32>
    %623 = arith.select %621, %590, %622 : vector<8x128xi1>, vector<8x128xf32>
    %624 = arith.index_cast %c6_i32 : i32 to index
    %c0_144 = arith.constant 0 : index
    %c0_145 = arith.constant 0 : index
    %625 = vector.load %arg8[%624, %c0_144, %c0_145] : memref<10x8x256xf32, #tpu.memory_space<vmem>>, vector<1x8x128xf32>
    %626 = vector.shape_cast %625 : vector<1x8x128xf32> to vector<8x128xf32>
    %627 = vector.shape_cast %623 : vector<8x128xf32> to vector<1x8x128xf32>
    tpu.vector_store %arg8[%624, %c0_144, %c0_145], %627 {strides = array<i32>} : memref<10x8x256xf32, #tpu.memory_space<vmem>>, vector<1x8x128xf32>,
    %cst_146 = arith.constant 0.000000e+00 : f32
    %628 = vector.shape_cast %619 : vector<8x1xi1> to vector<8x1xi1>
    %629 = vector.broadcast %628 : vector<8x1xi1> to vector<8x128xi1>
    %630 = vector.broadcast %cst_146 : f32 to vector<8x128xf32>
    %631 = arith.select %629, %615, %630 : vector<8x128xi1>, vector<8x128xf32>
    %632 = arith.index_cast %552 : i32 to index
    %c0_147 = arith.constant 0 : index
    %c128_148 = arith.constant 128 : index
    %633 = vector.load %arg8[%632, %c0_147, %c128_148] : memref<10x8x256xf32, #tpu.memory_space<vmem>>, vector<1x8x128xf32>
    %634 = vector.shape_cast %633 : vector<1x8x128xf32> to vector<8x128xf32>
    %635 = vector.shape_cast %631 : vector<8x128xf32> to vector<1x8x128xf32>
    tpu.vector_store %arg8[%632, %c0_147, %c128_148], %635 {strides = array<i32>} : memref<10x8x256xf32, #tpu.memory_space<vmem>>, vector<1x8x128xf32>,
    %636 = vector.shape_cast %617 : vector<8x1xi1> to vector<8x1xi1>
    %637 = vector.broadcast %636 : vector<8x1xi1> to vector<8x128xi1>
    %638 = arith.select %637, %590, %548 : vector<8x128xi1>, vector<8x128xf32>
    %639 = vector.shape_cast %619 : vector<8x1xi1> to vector<8x1xi1>
    %640 = vector.broadcast %639 : vector<8x1xi1> to vector<8x128xi1>
    %641 = arith.select %640, %615, %551 : vector<8x128xi1>, vector<8x128xf32>
    %c7_i32 = arith.constant 7 : i32
    %c9_i32_149 = arith.constant 9 : i32
    %642 = arith.subi %c9_i32_149, %c7_i32 : i32
    %643 = tpu.concatenate %638, %641 in 1 : vector<8x128xf32>, vector<8x128xf32> -> vector<8x256xf32>
    %644 = arith.truncf %643 : vector<8x256xf32> to vector<8x256xbf16>
    %c0_150 = arith.constant 0 : index
    %c0_151 = arith.constant 0 : index
    %645 = vector.load %arg4[%c0_150, %c0_151] : memref<256x768xbf16, #tpu.memory_space<vmem>>, vector<256x768xbf16>
    %cst_152 = arith.constant dense<0.000000e+00> : vector<8x768xf32>
    %646 = tpu.matmul %644, %645, %cst_152 {dimension_numbers = #tpu.dot_dimension_numbers<[1], [0], [0], [1], [0, 0, 1, 1], [], []>} : vector<8x256xbf16>, vector<256x768xbf16>, vector<8x768xf32> -> vector<8x768xf32>
    %c0_153 = arith.constant 0 : index
    %c0_154 = arith.constant 0 : index
    %647 = vector.load %arg5[%c0_153, %c0_154] : memref<1x768xf32, #tpu.memory_space<vmem>>, vector<1x768xf32>
    %648 = vector.broadcast %647 : vector<1x768xf32> to vector<8x768xf32>
    %649 = arith.addf %646, %648 : vector<8x768xf32>
    %650 = arith.index_cast %c7_i32 : i32 to index
    %c0_155 = arith.constant 0 : index
    %c0_156 = arith.constant 0 : index
    %651 = vector.load %arg10[%650, %c0_155, %c0_156] : memref<10x8x768xf32, #tpu.memory_space<vmem>>, vector<1x8x384xf32>
    %652 = vector.shape_cast %651 : vector<1x8x384xf32> to vector<8x384xf32>
    %653 = arith.index_cast %642 : i32 to index
    %c0_157 = arith.constant 0 : index
    %c384_158 = arith.constant 384 : index
    %654 = vector.load %arg10[%653, %c0_157, %c384_158] : memref<10x8x768xf32, #tpu.memory_space<vmem>>, vector<1x8x384xf32>
    %655 = vector.shape_cast %654 : vector<1x8x384xf32> to vector<8x384xf32>
    %656 = vector.extract_strided_slice %649 {offsets = [0, 0], sizes = [8, 384], strides = [1, 1]} : vector<8x768xf32> to vector<8x384xf32>
    %657 = vector.extract_strided_slice %652 {offsets = [0, 0], sizes = [8, 128], strides = [1, 1]} : vector<8x384xf32> to vector<8x128xf32>
    %658 = vector.extract_strided_slice %656 {offsets = [0, 0], sizes = [8, 128], strides = [1, 1]} : vector<8x384xf32> to vector<8x128xf32>
    %659 = arith.addf %657, %658 : vector<8x128xf32>
    %660 = arith.negf %659 : vector<8x128xf32>
    %661 = math.exp %660 : vector<8x128xf32>
    %cst_159 = arith.constant 1.000000e+00 : f32
    %662 = vector.broadcast %cst_159 : f32 to vector<8x128xf32>
    %663 = arith.addf %662, %661 : vector<8x128xf32>
    %664 = arith.divf %662, %663 : vector<8x128xf32>
    %665 = vector.extract_strided_slice %652 {offsets = [0, 128], sizes = [8, 128], strides = [1, 1]} : vector<8x384xf32> to vector<8x128xf32>
    %666 = vector.extract_strided_slice %656 {offsets = [0, 128], sizes = [8, 128], strides = [1, 1]} : vector<8x384xf32> to vector<8x128xf32>
    %667 = arith.addf %665, %666 : vector<8x128xf32>
    %668 = arith.negf %667 : vector<8x128xf32>
    %669 = math.exp %668 : vector<8x128xf32>
    %cst_160 = arith.constant 1.000000e+00 : f32
    %670 = vector.broadcast %cst_160 : f32 to vector<8x128xf32>
    %671 = arith.addf %670, %669 : vector<8x128xf32>
    %672 = arith.divf %670, %671 : vector<8x128xf32>
    %673 = vector.extract_strided_slice %652 {offsets = [0, 256], sizes = [8, 128], strides = [1, 1]} : vector<8x384xf32> to vector<8x128xf32>
    %674 = vector.extract_strided_slice %656 {offsets = [0, 256], sizes = [8, 128], strides = [1, 1]} : vector<8x384xf32> to vector<8x128xf32>
    %675 = arith.mulf %664, %674 : vector<8x128xf32>
    %676 = arith.addf %673, %675 : vector<8x128xf32>
    %677 = math.tanh %676 : vector<8x128xf32>
    %678 = arith.subf %638, %677 : vector<8x128xf32>
    %679 = arith.mulf %672, %678 : vector<8x128xf32>
    %680 = arith.addf %677, %679 : vector<8x128xf32>
    %681 = vector.extract_strided_slice %649 {offsets = [0, 384], sizes = [8, 384], strides = [1, 1]} : vector<8x768xf32> to vector<8x384xf32>
    %682 = vector.extract_strided_slice %655 {offsets = [0, 0], sizes = [8, 128], strides = [1, 1]} : vector<8x384xf32> to vector<8x128xf32>
    %683 = vector.extract_strided_slice %681 {offsets = [0, 0], sizes = [8, 128], strides = [1, 1]} : vector<8x384xf32> to vector<8x128xf32>
    %684 = arith.addf %682, %683 : vector<8x128xf32>
    %685 = arith.negf %684 : vector<8x128xf32>
    %686 = math.exp %685 : vector<8x128xf32>
    %cst_161 = arith.constant 1.000000e+00 : f32
    %687 = vector.broadcast %cst_161 : f32 to vector<8x128xf32>
    %688 = arith.addf %687, %686 : vector<8x128xf32>
    %689 = arith.divf %687, %688 : vector<8x128xf32>
    %690 = vector.extract_strided_slice %655 {offsets = [0, 128], sizes = [8, 128], strides = [1, 1]} : vector<8x384xf32> to vector<8x128xf32>
    %691 = vector.extract_strided_slice %681 {offsets = [0, 128], sizes = [8, 128], strides = [1, 1]} : vector<8x384xf32> to vector<8x128xf32>
    %692 = arith.addf %690, %691 : vector<8x128xf32>
    %693 = arith.negf %692 : vector<8x128xf32>
    %694 = math.exp %693 : vector<8x128xf32>
    %cst_162 = arith.constant 1.000000e+00 : f32
    %695 = vector.broadcast %cst_162 : f32 to vector<8x128xf32>
    %696 = arith.addf %695, %694 : vector<8x128xf32>
    %697 = arith.divf %695, %696 : vector<8x128xf32>
    %698 = vector.extract_strided_slice %655 {offsets = [0, 256], sizes = [8, 128], strides = [1, 1]} : vector<8x384xf32> to vector<8x128xf32>
    %699 = vector.extract_strided_slice %681 {offsets = [0, 256], sizes = [8, 128], strides = [1, 1]} : vector<8x384xf32> to vector<8x128xf32>
    %700 = arith.mulf %689, %699 : vector<8x128xf32>
    %701 = arith.addf %698, %700 : vector<8x128xf32>
    %702 = math.tanh %701 : vector<8x128xf32>
    %703 = arith.subf %641, %702 : vector<8x128xf32>
    %704 = arith.mulf %697, %703 : vector<8x128xf32>
    %705 = arith.addf %702, %704 : vector<8x128xf32>
    %706 = vector.broadcast %c7_i32 : i32 to vector<8x1xi32>
    %707 = arith.cmpi sgt, %0, %706 : vector<8x1xi32>
    %708 = vector.broadcast %642 : i32 to vector<8x1xi32>
    %709 = arith.cmpi sgt, %0, %708 : vector<8x1xi32>
    %cst_163 = arith.constant 0.000000e+00 : f32
    %710 = vector.shape_cast %707 : vector<8x1xi1> to vector<8x1xi1>
    %711 = vector.broadcast %710 : vector<8x1xi1> to vector<8x128xi1>
    %712 = vector.broadcast %cst_163 : f32 to vector<8x128xf32>
    %713 = arith.select %711, %680, %712 : vector<8x128xi1>, vector<8x128xf32>
    %714 = arith.index_cast %c7_i32 : i32 to index
    %c0_164 = arith.constant 0 : index
    %c0_165 = arith.constant 0 : index
    %715 = vector.load %arg8[%714, %c0_164, %c0_165] : memref<10x8x256xf32, #tpu.memory_space<vmem>>, vector<1x8x128xf32>
    %716 = vector.shape_cast %715 : vector<1x8x128xf32> to vector<8x128xf32>
    %717 = vector.shape_cast %713 : vector<8x128xf32> to vector<1x8x128xf32>
    tpu.vector_store %arg8[%714, %c0_164, %c0_165], %717 {strides = array<i32>} : memref<10x8x256xf32, #tpu.memory_space<vmem>>, vector<1x8x128xf32>,
    %cst_166 = arith.constant 0.000000e+00 : f32
    %718 = vector.shape_cast %709 : vector<8x1xi1> to vector<8x1xi1>
    %719 = vector.broadcast %718 : vector<8x1xi1> to vector<8x128xi1>
    %720 = vector.broadcast %cst_166 : f32 to vector<8x128xf32>
    %721 = arith.select %719, %705, %720 : vector<8x128xi1>, vector<8x128xf32>
    %722 = arith.index_cast %642 : i32 to index
    %c0_167 = arith.constant 0 : index
    %c128_168 = arith.constant 128 : index
    %723 = vector.load %arg8[%722, %c0_167, %c128_168] : memref<10x8x256xf32, #tpu.memory_space<vmem>>, vector<1x8x128xf32>
    %724 = vector.shape_cast %723 : vector<1x8x128xf32> to vector<8x128xf32>
    %725 = vector.shape_cast %721 : vector<8x128xf32> to vector<1x8x128xf32>
    tpu.vector_store %arg8[%722, %c0_167, %c128_168], %725 {strides = array<i32>} : memref<10x8x256xf32, #tpu.memory_space<vmem>>, vector<1x8x128xf32>,
    %726 = vector.shape_cast %707 : vector<8x1xi1> to vector<8x1xi1>
    %727 = vector.broadcast %726 : vector<8x1xi1> to vector<8x128xi1>
    %728 = arith.select %727, %680, %638 : vector<8x128xi1>, vector<8x128xf32>
    %729 = vector.shape_cast %709 : vector<8x1xi1> to vector<8x1xi1>
    %730 = vector.broadcast %729 : vector<8x1xi1> to vector<8x128xi1>
    %731 = arith.select %730, %705, %641 : vector<8x128xi1>, vector<8x128xf32>
    %c8_i32 = arith.constant 8 : i32
    %c9_i32_169 = arith.constant 9 : i32
    %732 = arith.subi %c9_i32_169, %c8_i32 : i32
    %733 = tpu.concatenate %728, %731 in 1 : vector<8x128xf32>, vector<8x128xf32> -> vector<8x256xf32>
    %734 = arith.truncf %733 : vector<8x256xf32> to vector<8x256xbf16>
    %c0_170 = arith.constant 0 : index
    %c0_171 = arith.constant 0 : index
    %735 = vector.load %arg4[%c0_170, %c0_171] : memref<256x768xbf16, #tpu.memory_space<vmem>>, vector<256x768xbf16>
    %cst_172 = arith.constant dense<0.000000e+00> : vector<8x768xf32>
    %736 = tpu.matmul %734, %735, %cst_172 {dimension_numbers = #tpu.dot_dimension_numbers<[1], [0], [0], [1], [0, 0, 1, 1], [], []>} : vector<8x256xbf16>, vector<256x768xbf16>, vector<8x768xf32> -> vector<8x768xf32>
    %c0_173 = arith.constant 0 : index
    %c0_174 = arith.constant 0 : index
    %737 = vector.load %arg5[%c0_173, %c0_174] : memref<1x768xf32, #tpu.memory_space<vmem>>, vector<1x768xf32>
    %738 = vector.broadcast %737 : vector<1x768xf32> to vector<8x768xf32>
    %739 = arith.addf %736, %738 : vector<8x768xf32>
    %740 = arith.index_cast %c8_i32 : i32 to index
    %c0_175 = arith.constant 0 : index
    %c0_176 = arith.constant 0 : index
    %741 = vector.load %arg10[%740, %c0_175, %c0_176] : memref<10x8x768xf32, #tpu.memory_space<vmem>>, vector<1x8x384xf32>
    %742 = vector.shape_cast %741 : vector<1x8x384xf32> to vector<8x384xf32>
    %743 = arith.index_cast %732 : i32 to index
    %c0_177 = arith.constant 0 : index
    %c384_178 = arith.constant 384 : index
    %744 = vector.load %arg10[%743, %c0_177, %c384_178] : memref<10x8x768xf32, #tpu.memory_space<vmem>>, vector<1x8x384xf32>
    %745 = vector.shape_cast %744 : vector<1x8x384xf32> to vector<8x384xf32>
    %746 = vector.extract_strided_slice %739 {offsets = [0, 0], sizes = [8, 384], strides = [1, 1]} : vector<8x768xf32> to vector<8x384xf32>
    %747 = vector.extract_strided_slice %742 {offsets = [0, 0], sizes = [8, 128], strides = [1, 1]} : vector<8x384xf32> to vector<8x128xf32>
    %748 = vector.extract_strided_slice %746 {offsets = [0, 0], sizes = [8, 128], strides = [1, 1]} : vector<8x384xf32> to vector<8x128xf32>
    %749 = arith.addf %747, %748 : vector<8x128xf32>
    %750 = arith.negf %749 : vector<8x128xf32>
    %751 = math.exp %750 : vector<8x128xf32>
    %cst_179 = arith.constant 1.000000e+00 : f32
    %752 = vector.broadcast %cst_179 : f32 to vector<8x128xf32>
    %753 = arith.addf %752, %751 : vector<8x128xf32>
    %754 = arith.divf %752, %753 : vector<8x128xf32>
    %755 = vector.extract_strided_slice %742 {offsets = [0, 128], sizes = [8, 128], strides = [1, 1]} : vector<8x384xf32> to vector<8x128xf32>
    %756 = vector.extract_strided_slice %746 {offsets = [0, 128], sizes = [8, 128], strides = [1, 1]} : vector<8x384xf32> to vector<8x128xf32>
    %757 = arith.addf %755, %756 : vector<8x128xf32>
    %758 = arith.negf %757 : vector<8x128xf32>
    %759 = math.exp %758 : vector<8x128xf32>
    %cst_180 = arith.constant 1.000000e+00 : f32
    %760 = vector.broadcast %cst_180 : f32 to vector<8x128xf32>
    %761 = arith.addf %760, %759 : vector<8x128xf32>
    %762 = arith.divf %760, %761 : vector<8x128xf32>
    %763 = vector.extract_strided_slice %742 {offsets = [0, 256], sizes = [8, 128], strides = [1, 1]} : vector<8x384xf32> to vector<8x128xf32>
    %764 = vector.extract_strided_slice %746 {offsets = [0, 256], sizes = [8, 128], strides = [1, 1]} : vector<8x384xf32> to vector<8x128xf32>
    %765 = arith.mulf %754, %764 : vector<8x128xf32>
    %766 = arith.addf %763, %765 : vector<8x128xf32>
    %767 = math.tanh %766 : vector<8x128xf32>
    %768 = arith.subf %728, %767 : vector<8x128xf32>
    %769 = arith.mulf %762, %768 : vector<8x128xf32>
    %770 = arith.addf %767, %769 : vector<8x128xf32>
    %771 = vector.extract_strided_slice %739 {offsets = [0, 384], sizes = [8, 384], strides = [1, 1]} : vector<8x768xf32> to vector<8x384xf32>
    %772 = vector.extract_strided_slice %745 {offsets = [0, 0], sizes = [8, 128], strides = [1, 1]} : vector<8x384xf32> to vector<8x128xf32>
    %773 = vector.extract_strided_slice %771 {offsets = [0, 0], sizes = [8, 128], strides = [1, 1]} : vector<8x384xf32> to vector<8x128xf32>
    %774 = arith.addf %772, %773 : vector<8x128xf32>
    %775 = arith.negf %774 : vector<8x128xf32>
    %776 = math.exp %775 : vector<8x128xf32>
    %cst_181 = arith.constant 1.000000e+00 : f32
    %777 = vector.broadcast %cst_181 : f32 to vector<8x128xf32>
    %778 = arith.addf %777, %776 : vector<8x128xf32>
    %779 = arith.divf %777, %778 : vector<8x128xf32>
    %780 = vector.extract_strided_slice %745 {offsets = [0, 128], sizes = [8, 128], strides = [1, 1]} : vector<8x384xf32> to vector<8x128xf32>
    %781 = vector.extract_strided_slice %771 {offsets = [0, 128], sizes = [8, 128], strides = [1, 1]} : vector<8x384xf32> to vector<8x128xf32>
    %782 = arith.addf %780, %781 : vector<8x128xf32>
    %783 = arith.negf %782 : vector<8x128xf32>
    %784 = math.exp %783 : vector<8x128xf32>
    %cst_182 = arith.constant 1.000000e+00 : f32
    %785 = vector.broadcast %cst_182 : f32 to vector<8x128xf32>
    %786 = arith.addf %785, %784 : vector<8x128xf32>
    %787 = arith.divf %785, %786 : vector<8x128xf32>
    %788 = vector.extract_strided_slice %745 {offsets = [0, 256], sizes = [8, 128], strides = [1, 1]} : vector<8x384xf32> to vector<8x128xf32>
    %789 = vector.extract_strided_slice %771 {offsets = [0, 256], sizes = [8, 128], strides = [1, 1]} : vector<8x384xf32> to vector<8x128xf32>
    %790 = arith.mulf %779, %789 : vector<8x128xf32>
    %791 = arith.addf %788, %790 : vector<8x128xf32>
    %792 = math.tanh %791 : vector<8x128xf32>
    %793 = arith.subf %731, %792 : vector<8x128xf32>
    %794 = arith.mulf %787, %793 : vector<8x128xf32>
    %795 = arith.addf %792, %794 : vector<8x128xf32>
    %796 = vector.broadcast %c8_i32 : i32 to vector<8x1xi32>
    %797 = arith.cmpi sgt, %0, %796 : vector<8x1xi32>
    %798 = vector.broadcast %732 : i32 to vector<8x1xi32>
    %799 = arith.cmpi sgt, %0, %798 : vector<8x1xi32>
    %cst_183 = arith.constant 0.000000e+00 : f32
    %800 = vector.shape_cast %797 : vector<8x1xi1> to vector<8x1xi1>
    %801 = vector.broadcast %800 : vector<8x1xi1> to vector<8x128xi1>
    %802 = vector.broadcast %cst_183 : f32 to vector<8x128xf32>
    %803 = arith.select %801, %770, %802 : vector<8x128xi1>, vector<8x128xf32>
    %804 = arith.index_cast %c8_i32 : i32 to index
    %c0_184 = arith.constant 0 : index
    %c0_185 = arith.constant 0 : index
    %805 = vector.load %arg8[%804, %c0_184, %c0_185] : memref<10x8x256xf32, #tpu.memory_space<vmem>>, vector<1x8x128xf32>
    %806 = vector.shape_cast %805 : vector<1x8x128xf32> to vector<8x128xf32>
    %807 = vector.shape_cast %803 : vector<8x128xf32> to vector<1x8x128xf32>
    tpu.vector_store %arg8[%804, %c0_184, %c0_185], %807 {strides = array<i32>} : memref<10x8x256xf32, #tpu.memory_space<vmem>>, vector<1x8x128xf32>,
    %cst_186 = arith.constant 0.000000e+00 : f32
    %808 = vector.shape_cast %799 : vector<8x1xi1> to vector<8x1xi1>
    %809 = vector.broadcast %808 : vector<8x1xi1> to vector<8x128xi1>
    %810 = vector.broadcast %cst_186 : f32 to vector<8x128xf32>
    %811 = arith.select %809, %795, %810 : vector<8x128xi1>, vector<8x128xf32>
    %812 = arith.index_cast %732 : i32 to index
    %c0_187 = arith.constant 0 : index
    %c128_188 = arith.constant 128 : index
    %813 = vector.load %arg8[%812, %c0_187, %c128_188] : memref<10x8x256xf32, #tpu.memory_space<vmem>>, vector<1x8x128xf32>
    %814 = vector.shape_cast %813 : vector<1x8x128xf32> to vector<8x128xf32>
    %815 = vector.shape_cast %811 : vector<8x128xf32> to vector<1x8x128xf32>
    tpu.vector_store %arg8[%812, %c0_187, %c128_188], %815 {strides = array<i32>} : memref<10x8x256xf32, #tpu.memory_space<vmem>>, vector<1x8x128xf32>,
    %816 = vector.shape_cast %797 : vector<8x1xi1> to vector<8x1xi1>
    %817 = vector.broadcast %816 : vector<8x1xi1> to vector<8x128xi1>
    %818 = arith.select %817, %770, %728 : vector<8x128xi1>, vector<8x128xf32>
    %819 = vector.shape_cast %799 : vector<8x1xi1> to vector<8x1xi1>
    %820 = vector.broadcast %819 : vector<8x1xi1> to vector<8x128xi1>
    %821 = arith.select %820, %795, %731 : vector<8x128xi1>, vector<8x128xf32>
    %c9_i32_189 = arith.constant 9 : i32
    %c9_i32_190 = arith.constant 9 : i32
    %822 = arith.subi %c9_i32_190, %c9_i32_189 : i32
    %823 = tpu.concatenate %818, %821 in 1 : vector<8x128xf32>, vector<8x128xf32> -> vector<8x256xf32>
    %824 = arith.truncf %823 : vector<8x256xf32> to vector<8x256xbf16>
    %c0_191 = arith.constant 0 : index
    %c0_192 = arith.constant 0 : index
    %825 = vector.load %arg4[%c0_191, %c0_192] : memref<256x768xbf16, #tpu.memory_space<vmem>>, vector<256x768xbf16>
    %cst_193 = arith.constant dense<0.000000e+00> : vector<8x768xf32>
    %826 = tpu.matmul %824, %825, %cst_193 {dimension_numbers = #tpu.dot_dimension_numbers<[1], [0], [0], [1], [0, 0, 1, 1], [], []>} : vector<8x256xbf16>, vector<256x768xbf16>, vector<8x768xf32> -> vector<8x768xf32>
    %c0_194 = arith.constant 0 : index
    %c0_195 = arith.constant 0 : index
    %827 = vector.load %arg5[%c0_194, %c0_195] : memref<1x768xf32, #tpu.memory_space<vmem>>, vector<1x768xf32>
    %828 = vector.broadcast %827 : vector<1x768xf32> to vector<8x768xf32>
    %829 = arith.addf %826, %828 : vector<8x768xf32>
    %830 = arith.index_cast %c9_i32_189 : i32 to index
    %c0_196 = arith.constant 0 : index
    %c0_197 = arith.constant 0 : index
    %831 = vector.load %arg10[%830, %c0_196, %c0_197] : memref<10x8x768xf32, #tpu.memory_space<vmem>>, vector<1x8x384xf32>
    %832 = vector.shape_cast %831 : vector<1x8x384xf32> to vector<8x384xf32>
    %833 = arith.index_cast %822 : i32 to index
    %c0_198 = arith.constant 0 : index
    %c384_199 = arith.constant 384 : index
    %834 = vector.load %arg10[%833, %c0_198, %c384_199] : memref<10x8x768xf32, #tpu.memory_space<vmem>>, vector<1x8x384xf32>
    %835 = vector.shape_cast %834 : vector<1x8x384xf32> to vector<8x384xf32>
    %836 = vector.extract_strided_slice %829 {offsets = [0, 0], sizes = [8, 384], strides = [1, 1]} : vector<8x768xf32> to vector<8x384xf32>
    %837 = vector.extract_strided_slice %832 {offsets = [0, 0], sizes = [8, 128], strides = [1, 1]} : vector<8x384xf32> to vector<8x128xf32>
    %838 = vector.extract_strided_slice %836 {offsets = [0, 0], sizes = [8, 128], strides = [1, 1]} : vector<8x384xf32> to vector<8x128xf32>
    %839 = arith.addf %837, %838 : vector<8x128xf32>
    %840 = arith.negf %839 : vector<8x128xf32>
    %841 = math.exp %840 : vector<8x128xf32>
    %cst_200 = arith.constant 1.000000e+00 : f32
    %842 = vector.broadcast %cst_200 : f32 to vector<8x128xf32>
    %843 = arith.addf %842, %841 : vector<8x128xf32>
    %844 = arith.divf %842, %843 : vector<8x128xf32>
    %845 = vector.extract_strided_slice %832 {offsets = [0, 128], sizes = [8, 128], strides = [1, 1]} : vector<8x384xf32> to vector<8x128xf32>
    %846 = vector.extract_strided_slice %836 {offsets = [0, 128], sizes = [8, 128], strides = [1, 1]} : vector<8x384xf32> to vector<8x128xf32>
    %847 = arith.addf %845, %846 : vector<8x128xf32>
    %848 = arith.negf %847 : vector<8x128xf32>
    %849 = math.exp %848 : vector<8x128xf32>
    %cst_201 = arith.constant 1.000000e+00 : f32
    %850 = vector.broadcast %cst_201 : f32 to vector<8x128xf32>
    %851 = arith.addf %850, %849 : vector<8x128xf32>
    %852 = arith.divf %850, %851 : vector<8x128xf32>
    %853 = vector.extract_strided_slice %832 {offsets = [0, 256], sizes = [8, 128], strides = [1, 1]} : vector<8x384xf32> to vector<8x128xf32>
    %854 = vector.extract_strided_slice %836 {offsets = [0, 256], sizes = [8, 128], strides = [1, 1]} : vector<8x384xf32> to vector<8x128xf32>
    %855 = arith.mulf %844, %854 : vector<8x128xf32>
    %856 = arith.addf %853, %855 : vector<8x128xf32>
    %857 = math.tanh %856 : vector<8x128xf32>
    %858 = arith.subf %818, %857 : vector<8x128xf32>
    %859 = arith.mulf %852, %858 : vector<8x128xf32>
    %860 = arith.addf %857, %859 : vector<8x128xf32>
    %861 = vector.extract_strided_slice %829 {offsets = [0, 384], sizes = [8, 384], strides = [1, 1]} : vector<8x768xf32> to vector<8x384xf32>
    %862 = vector.extract_strided_slice %835 {offsets = [0, 0], sizes = [8, 128], strides = [1, 1]} : vector<8x384xf32> to vector<8x128xf32>
    %863 = vector.extract_strided_slice %861 {offsets = [0, 0], sizes = [8, 128], strides = [1, 1]} : vector<8x384xf32> to vector<8x128xf32>
    %864 = arith.addf %862, %863 : vector<8x128xf32>
    %865 = arith.negf %864 : vector<8x128xf32>
    %866 = math.exp %865 : vector<8x128xf32>
    %cst_202 = arith.constant 1.000000e+00 : f32
    %867 = vector.broadcast %cst_202 : f32 to vector<8x128xf32>
    %868 = arith.addf %867, %866 : vector<8x128xf32>
    %869 = arith.divf %867, %868 : vector<8x128xf32>
    %870 = vector.extract_strided_slice %835 {offsets = [0, 128], sizes = [8, 128], strides = [1, 1]} : vector<8x384xf32> to vector<8x128xf32>
    %871 = vector.extract_strided_slice %861 {offsets = [0, 128], sizes = [8, 128], strides = [1, 1]} : vector<8x384xf32> to vector<8x128xf32>
    %872 = arith.addf %870, %871 : vector<8x128xf32>
    %873 = arith.negf %872 : vector<8x128xf32>
    %874 = math.exp %873 : vector<8x128xf32>
    %cst_203 = arith.constant 1.000000e+00 : f32
    %875 = vector.broadcast %cst_203 : f32 to vector<8x128xf32>
    %876 = arith.addf %875, %874 : vector<8x128xf32>
    %877 = arith.divf %875, %876 : vector<8x128xf32>
    %878 = vector.extract_strided_slice %835 {offsets = [0, 256], sizes = [8, 128], strides = [1, 1]} : vector<8x384xf32> to vector<8x128xf32>
    %879 = vector.extract_strided_slice %861 {offsets = [0, 256], sizes = [8, 128], strides = [1, 1]} : vector<8x384xf32> to vector<8x128xf32>
    %880 = arith.mulf %869, %879 : vector<8x128xf32>
    %881 = arith.addf %878, %880 : vector<8x128xf32>
    %882 = math.tanh %881 : vector<8x128xf32>
    %883 = arith.subf %821, %882 : vector<8x128xf32>
    %884 = arith.mulf %877, %883 : vector<8x128xf32>
    %885 = arith.addf %882, %884 : vector<8x128xf32>
    %886 = vector.broadcast %c9_i32_189 : i32 to vector<8x1xi32>
    %887 = arith.cmpi sgt, %0, %886 : vector<8x1xi32>
    %888 = vector.broadcast %822 : i32 to vector<8x1xi32>
    %889 = arith.cmpi sgt, %0, %888 : vector<8x1xi32>
    %cst_204 = arith.constant 0.000000e+00 : f32
    %890 = vector.shape_cast %887 : vector<8x1xi1> to vector<8x1xi1>
    %891 = vector.broadcast %890 : vector<8x1xi1> to vector<8x128xi1>
    %892 = vector.broadcast %cst_204 : f32 to vector<8x128xf32>
    %893 = arith.select %891, %860, %892 : vector<8x128xi1>, vector<8x128xf32>
    %894 = arith.index_cast %c9_i32_189 : i32 to index
    %c0_205 = arith.constant 0 : index
    %c0_206 = arith.constant 0 : index
    %895 = vector.load %arg8[%894, %c0_205, %c0_206] : memref<10x8x256xf32, #tpu.memory_space<vmem>>, vector<1x8x128xf32>
    %896 = vector.shape_cast %895 : vector<1x8x128xf32> to vector<8x128xf32>
    %897 = vector.shape_cast %893 : vector<8x128xf32> to vector<1x8x128xf32>
    tpu.vector_store %arg8[%894, %c0_205, %c0_206], %897 {strides = array<i32>} : memref<10x8x256xf32, #tpu.memory_space<vmem>>, vector<1x8x128xf32>,
    %cst_207 = arith.constant 0.000000e+00 : f32
    %898 = vector.shape_cast %889 : vector<8x1xi1> to vector<8x1xi1>
    %899 = vector.broadcast %898 : vector<8x1xi1> to vector<8x128xi1>
    %900 = vector.broadcast %cst_207 : f32 to vector<8x128xf32>
    %901 = arith.select %899, %885, %900 : vector<8x128xi1>, vector<8x128xf32>
    %902 = arith.index_cast %822 : i32 to index
    %c0_208 = arith.constant 0 : index
    %c128_209 = arith.constant 128 : index
    %903 = vector.load %arg8[%902, %c0_208, %c128_209] : memref<10x8x256xf32, #tpu.memory_space<vmem>>, vector<1x8x128xf32>
    %904 = vector.shape_cast %903 : vector<1x8x128xf32> to vector<8x128xf32>
    %905 = vector.shape_cast %901 : vector<8x128xf32> to vector<1x8x128xf32>
    tpu.vector_store %arg8[%902, %c0_208, %c128_209], %905 {strides = array<i32>} : memref<10x8x256xf32, #tpu.memory_space<vmem>>, vector<1x8x128xf32>,
    %906 = vector.shape_cast %887 : vector<8x1xi1> to vector<8x1xi1>
    %907 = vector.broadcast %906 : vector<8x1xi1> to vector<8x128xi1>
    %908 = arith.select %907, %860, %818 : vector<8x128xi1>, vector<8x128xf32>
    %909 = vector.shape_cast %889 : vector<8x1xi1> to vector<8x1xi1>
    %910 = vector.broadcast %909 : vector<8x1xi1> to vector<8x128xi1>
    %911 = arith.select %910, %885, %821 : vector<8x128xi1>, vector<8x128xf32>
    %c10_i32 = arith.constant 10 : i32
    %912 = tpu.concatenate %908, %911 in 1 : vector<8x128xf32>, vector<8x128xf32> -> vector<8x256xf32>
    %c0_210 = arith.constant 0 : index
    %c0_211 = arith.constant 0 : index
    %913 = vector.load %arg6[%c0_210, %c0_211] : memref<256x128xf32, #tpu.memory_space<vmem>>, vector<256x128xf32>
    %cst_212 = arith.constant dense<0.000000e+00> : vector<8x128xf32>
    %914 = tpu.matmul %912, %913, %cst_212 {dimension_numbers = #tpu.dot_dimension_numbers<[1], [0], [0], [1], [0, 0, 1, 1], [], []>} : vector<8x256xf32>, vector<256x128xf32>, vector<8x128xf32> -> vector<8x128xf32>
    %c0_213 = arith.constant 0 : index
    %c0_214 = arith.constant 0 : index
    %915 = vector.load %arg7[%c0_213, %c0_214] : memref<1x128xf32, #tpu.memory_space<vmem>>, vector<1x128xf32>
    %916 = vector.broadcast %915 : vector<1x128xf32> to vector<8x128xf32>
    %917 = arith.addf %914, %916 : vector<8x128xf32>
    %918 = math.tanh %917 : vector<8x128xf32>
    %c0_215 = arith.constant 0 : index
    %c0_216 = arith.constant 0 : index
    %919 = vector.load %arg9[%c0_215, %c0_216] : memref<8x128xf32, #tpu.memory_space<vmem>>, vector<8x128xf32>
    tpu.vector_store %arg9[%c0_215, %c0_216], %918 {strides = array<i32>} : memref<8x128xf32, #tpu.memory_space<vmem>>, vector<8x128xf32>,
    return
  }
}

</mosaic_0001>

<llo_original>
// kernel: tpu_custom_call.1
$region0: #{tpu_custom_call.1}
  #allocation0 [shape = 'u32[]', space=smem, size = 0x4, offset = 0x4, fixed_abs, tag = 'smem constant byte address 0x4 - core index']
  #allocation1 [shape = 'u32[72,128]{1,0:T(1,128)}', space=vmem, size = 0x9000, scoped, tag = 'internal scratch']
  #allocation2 [shape = 'f32[10,8,768]{2,1,0:T(8,128)}', space=vmem, size = 0x3c000, scoped, tag = 'scratch operand']
  %s0 = inlined_call_operand.hbm [shape: f32[10,8,64], index: 0, kind: input, shape index: {}]
  %s1 = inlined_call_operand.vmem [shape: s32[8,1], index: 1, kind: input, shape index: {}]
  %s2 = inlined_call_operand.hbm [shape: bf16[64,768], index: 2, kind: input, shape index: {}]
  %s3 = inlined_call_operand.vmem [shape: f32[1,768], index: 3, kind: input, shape index: {}]
  %s4 = inlined_call_operand.hbm [shape: bf16[256,768], index: 4, kind: input, shape index: {}]
  %s5 = inlined_call_operand.vmem [shape: f32[1,768], index: 5, kind: input, shape index: {}]
  %s6 = inlined_call_operand.hbm [shape: f32[256,128], index: 6, kind: input, shape index: {}]
  %s7 = inlined_call_operand.vmem [shape: f32[1,128], index: 7, kind: input, shape index: {}]
  %s8 = inlined_call_operand.hbm [shape: f32[10,8,256], index: 8, kind: output, shape index: {0}]
  %s9 = inlined_call_operand.hbm [shape: f32[8,128], index: 9, kind: output, shape index: {1}]
  %10 = xla_tuple %s8, %s9
  %s11 = sld [smem:[#allocation0]]
  $region66: #{tpu_custom_call.1} parent=0
    _
  %s13 = ssub.s32 1, %s11
  %s14 = scalar_select 0, %s13, %s11
  $region1: #{tpu_custom_call.1} parent=0
    #allocation3 [shape = 'u8[40960]{0}', space=vmem, size = 0xa000, scoped, tag = 'input window, operand 0, single buffered']
    #allocation4 [shape = 's32[1]{0}', space=sflag, size = 0x4, scoped, tag = 'scoped memory for tpu_custom_call.1']
    #allocation5 [shape = 's32[1]{0}', space=sflag, size = 0x4, scoped, tag = 'scoped memory for tpu_custom_call.1']
    #allocation6 [shape = 'u8[98304]{0}', space=vmem, size = 0x18000, scoped, tag = 'input window, operand 2, single buffered']
    #allocation7 [shape = 's32[1]{0}', space=sflag, size = 0x4, scoped, tag = 'scoped memory for tpu_custom_call.1']
    #allocation8 [shape = 'u8[393216]{0}', space=vmem, size = 0x60000, scoped, tag = 'input window, operand 4, single buffered']
    #allocation9 [shape = 'u8[131072]{0}', space=vmem, size = 0x20000, scoped, tag = 'input window, operand 6, single buffered']
    #allocation10 [shape = 's32[1]{0}', space=sflag, size = 0x4, scoped, tag = 'scoped memory for tpu_custom_call.1']
    #allocation11 [shape = 'u8[81920]{0}', space=vmem, size = 0x14000, scoped, tag = 'output window, operand 0, single buffered']
    #allocation12 [shape = 'u8[4096]{0}', space=vmem, size = 0x1000, scoped, tag = 'output window, operand 1, single buffered']
    #allocation13 [shape = 's32[1]{0}', space=sflag, size = 0x4, scoped, tag = 'scoped memory for tpu_custom_call.1']
    %15 = vsyncpa [#allocation4], 0
    %16 = vsyncpa [#allocation7], 0
    %17 = vsyncpa [#allocation10], 0
    %18 = vsyncpa [#allocation5], 0
    %19 = vsyncpa [#allocation13], 0
    // Predicated region
    $region2: #{tpu_custom_call.1} parent=1 // pred_check
      _
    $region3: #{tpu_custom_call.1} parent=1 // pred_check_branch
      %21 = sbr.rel (0) target = $region5
    $region4: #{tpu_custom_call.1} parent=1 // pred_region
      %23 = vsyncadd [#allocation4], 0
      %s24 = sshll.u32 %s0, 4
      %s25 = int_to_ptr.hbm [resolvable:$true] %s24
      %s26 = sshll.u32 [#allocation3], 4
      %s27 = int_to_ptr.vmem [resolvable:$true] %s26
      %32 = dma.hbm_to_vmem [thread:$0]  %s25, 1280, %s27, [#allocation4], 128, 128, 8
    $region5: #{tpu_custom_call.1} parent=1 // pred_fallthru
      _
    // Predicated region
    $region6: #{tpu_custom_call.1} parent=1 // pred_check
      _
    $region7: #{tpu_custom_call.1} parent=1 // pred_check_branch
      %34 = sbr.rel (0) target = $region9
    $region8: #{tpu_custom_call.1} parent=1 // pred_region
      _
    $region9: #{tpu_custom_call.1} parent=1 // pred_fallthru
      _
    // Predicated region
    $region10: #{tpu_custom_call.1} parent=1 // pred_check
      _
    $region11: #{tpu_custom_call.1} parent=1 // pred_check_branch
      %36 = sbr.rel (0) target = $region13
    $region12: #{tpu_custom_call.1} parent=1 // pred_region
      %38 = vsyncadd [#allocation7], 0
      %s39 = sshll.u32 %s2, 4
      %s40 = int_to_ptr.hbm [resolvable:$true] %s39
      %s41 = sshll.u32 [#allocation6], 4
      %s42 = int_to_ptr.vmem [resolvable:$true] %s41
      %47 = dma.hbm_to_vmem [thread:$0]  %s40, 3072, %s42, [#allocation7], 384, 384, 24
    $region13: #{tpu_custom_call.1} parent=1 // pred_fallthru
      _
    // Predicated region
    $region14: #{tpu_custom_call.1} parent=1 // pred_check
      _
    $region15: #{tpu_custom_call.1} parent=1 // pred_check_branch
      %49 = sbr.rel (0) target = $region17
    $region16: #{tpu_custom_call.1} parent=1 // pred_region
      _
    $region17: #{tpu_custom_call.1} parent=1 // pred_fallthru
      _
    // Predicated region
    $region18: #{tpu_custom_call.1} parent=1 // pred_check
      _
    $region19: #{tpu_custom_call.1} parent=1 // pred_check_branch
      %51 = sbr.rel (0) target = $region21
    $region20: #{tpu_custom_call.1} parent=1 // pred_region
      %53 = vsyncadd [#allocation7], 0
      %s54 = sshll.u32 %s4, 4
      %s55 = int_to_ptr.hbm [resolvable:$true] %s54
      %s56 = sshll.u32 [#allocation8], 4
      %s57 = int_to_ptr.vmem [resolvable:$true] %s56
      %62 = dma.hbm_to_vmem [thread:$0]  %s55, 12288, %s57, [#allocation7], 384, 384, 24
    $region21: #{tpu_custom_call.1} parent=1 // pred_fallthru
      _
    // Predicated region
    $region22: #{tpu_custom_call.1} parent=1 // pred_check
      _
    $region23: #{tpu_custom_call.1} parent=1 // pred_check_branch
      %64 = sbr.rel (0) target = $region25
    $region24: #{tpu_custom_call.1} parent=1 // pred_region
      _
    $region25: #{tpu_custom_call.1} parent=1 // pred_fallthru
      _
    // Predicated region
    $region26: #{tpu_custom_call.1} parent=1 // pred_check
      _
    $region27: #{tpu_custom_call.1} parent=1 // pred_check_branch
      %66 = sbr.rel (0) target = $region29
    $region28: #{tpu_custom_call.1} parent=1 // pred_region
      %68 = vsyncadd [#allocation10], 0
      %s69 = sshll.u32 %s6, 4
      %s70 = int_to_ptr.hbm [resolvable:$true] %s69
      %s71 = sshll.u32 [#allocation9], 4
      %s72 = int_to_ptr.vmem [resolvable:$true] %s71
      %77 = dma.hbm_to_vmem [thread:$0]  %s70, 4096, %s72, [#allocation10], 128, 128, 8
    $region29: #{tpu_custom_call.1} parent=1 // pred_fallthru
      _
    // Predicated region
    $region30: #{tpu_custom_call.1} parent=1 // pred_check
      _
    $region31: #{tpu_custom_call.1} parent=1 // pred_check_branch
      %79 = sbr.rel (0) target = $region33
    $region32: #{tpu_custom_call.1} parent=1 // pred_region
      _
    $region33: #{tpu_custom_call.1} parent=1 // pred_fallthru
      _
    // Predicated region
    $region34: #{tpu_custom_call.1} parent=1 // pred_check
      _
    $region35: #{tpu_custom_call.1} parent=1 // pred_check_branch
      %81 = sbr.rel (0) target = $region37
    $region36: #{tpu_custom_call.1} parent=1 // pred_region
      %83 = dma.done [#allocation4], 1280
    $region37: #{tpu_custom_call.1} parent=1 // pred_fallthru
      _
    // Predicated region
    $region38: #{tpu_custom_call.1} parent=1 // pred_check
      _
    $region39: #{tpu_custom_call.1} parent=1 // pred_check_branch
      %85 = sbr.rel (0) target = $region41
    $region40: #{tpu_custom_call.1} parent=1 // pred_region
      %87 = dma.done [#allocation7], 3072
    $region41: #{tpu_custom_call.1} parent=1 // pred_fallthru
      _
    // Predicated region
    $region42: #{tpu_custom_call.1} parent=1 // pred_check
      _
    $region43: #{tpu_custom_call.1} parent=1 // pred_check_branch
      %89 = sbr.rel (0) target = $region45
    $region44: #{tpu_custom_call.1} parent=1 // pred_region
      %91 = dma.done [#allocation7], 12288
    $region45: #{tpu_custom_call.1} parent=1 // pred_fallthru
      _
    // Predicated region
    $region46: #{tpu_custom_call.1} parent=1 // pred_check
      _
    $region47: #{tpu_custom_call.1} parent=1 // pred_check_branch
      %93 = sbr.rel (0) target = $region49
    $region48: #{tpu_custom_call.1} parent=1 // pred_region
      %95 = dma.done [#allocation10], 4096
    $region49: #{tpu_custom_call.1} parent=1 // pred_fallthru
      _
    %v97 = vld [vmem:[%s1] sm:$0xff]
    %v98 = vld [vmem:[#allocation3] sm:$0xff]
    %v99 = vld [vmem:[#allocation3 + $0x8] sm:$0xff]
    %v100 = vld [vmem:[#allocation3 + $0x10] sm:$0xff]
    %v101 = vld [vmem:[#allocation3 + $0x18] sm:$0xff]
    %v102 = vld [vmem:[#allocation3 + $0x20] sm:$0xff]
    %v103 = vld [vmem:[#allocation3 + $0x28] sm:$0xff]
    %v104 = vld [vmem:[#allocation3 + $0x30] sm:$0xff]
    %v105 = vld [vmem:[#allocation3 + $0x38] sm:$0xff]
    %v106 = vld [vmem:[#allocation3 + $0x40] sm:$0xff]
    %v107 = vld [vmem:[#allocation3 + $0x48] sm:$0xff]
    %v108 = vpack.c.bf16 %v99, %v98
    %v109 = vpack.c.bf16 %v101, %v100
    %v110 = vpack.c.bf16 %v103, %v102
    %v111 = vpack.c.bf16 %v105, %v104
    %v112 = vpack.c.bf16 %v107, %v106
    %v113 = vld [vmem:[#allocation6] sm:$0xff]
    %v114 = vld [vmem:[#allocation6 + $0x8] sm:$0xff]
    %v115 = vld [vmem:[#allocation6 + $0x10] sm:$0xff]
    %v116 = vld [vmem:[#allocation6 + $0x18] sm:$0xff]
    %v117 = vld [vmem:[#allocation6 + $0x20] sm:$0xff]
    %v118 = vld [vmem:[#allocation6 + $0x28] sm:$0xff]
    %v119 = vld [vmem:[#allocation6 + $0x30] sm:$0xff]
    %v120 = vld [vmem:[#allocation6 + $0x38] sm:$0xff]
    %v121 = vld [vmem:[#allocation6 + $0x40] sm:$0xff]
    %v122 = vld [vmem:[#allocation6 + $0x48] sm:$0xff]
    %v123 = vld [vmem:[#allocation6 + $0x50] sm:$0xff]
    %v124 = vld [vmem:[#allocation6 + $0x58] sm:$0xff]
    %v125 = vld [vmem:[#allocation6 + $0x60] sm:$0xff]
    %v126 = vld [vmem:[#allocation6 + $0x68] sm:$0xff]
    %v127 = vld [vmem:[#allocation6 + $0x70] sm:$0xff]
    %v128 = vld [vmem:[#allocation6 + $0x78] sm:$0xff]
    %v129 = vld [vmem:[#allocation6 + $0x80] sm:$0xff]
    %v130 = vld [vmem:[#allocation6 + $0x88] sm:$0xff]
    %v131 = vld [vmem:[#allocation6 + $0x90] sm:$0xff]
    %v132 = vld [vmem:[#allocation6 + $0x98] sm:$0xff]
    %v133 = vld [vmem:[#allocation6 + $0xa0] sm:$0xff]
    %v134 = vld [vmem:[#allocation6 + $0xa8] sm:$0xff]
    %v135 = vld [vmem:[#allocation6 + $0xb0] sm:$0xff]
    %v136 = vld [vmem:[#allocation6 + $0xb8] sm:$0xff]
    %v137 = vld [vmem:[%s3] sm:$0x3f]
    %v139 = vperm.slane %v137, 0
    %v140 = vperm.slane %v137, 1
    %v141 = vperm.slane %v137, 2
    %v142 = vperm.slane %v137, 3
    %v143 = vperm.slane %v137, 4
    %v144 = vperm.slane %v137, 5
    %v175 = vunpack.c.l.b16 %v113
    %v176 = vunpack.c.h.b16 %v113
    %v177 = vunpack.c.l.b16 %v114
    %v178 = vunpack.c.h.b16 %v114
    %v179 = vunpack.c.l.b16 %v115
    %v180 = vunpack.c.h.b16 %v115
    %v181 = vunpack.c.l.b16 %v116
    %v182 = vunpack.c.h.b16 %v116
    %v183 = vunpack.c.l.b16 %v117
    %v184 = vunpack.c.h.b16 %v117
    %v185 = vunpack.c.l.b16 %v118
    %v186 = vunpack.c.h.b16 %v118
    %v187 = vunpack.c.l.b16 %v119
    %v188 = vunpack.c.h.b16 %v119
    %v189 = vunpack.c.l.b16 %v120
    %v190 = vunpack.c.h.b16 %v120
    %v191 = vunpack.c.l.b16 %v121
    %v192 = vunpack.c.h.b16 %v121
    %v193 = vunpack.c.l.b16 %v122
    %v194 = vunpack.c.h.b16 %v122
    %v195 = vunpack.c.l.b16 %v123
    %v196 = vunpack.c.h.b16 %v123
    %v197 = vunpack.c.l.b16 %v124
    %v198 = vunpack.c.h.b16 %v124
    %v199 = vunpack.c.l.b16 %v125
    %v200 = vunpack.c.h.b16 %v125
    %v201 = vunpack.c.l.b16 %v126
    %v202 = vunpack.c.h.b16 %v126
    %v203 = vunpack.c.l.b16 %v127
    %v204 = vunpack.c.h.b16 %v127
    %v205 = vunpack.c.l.b16 %v128
    %v206 = vunpack.c.h.b16 %v128
    %v207 = vunpack.c.l.b16 %v129
    %v208 = vunpack.c.h.b16 %v129
    %v209 = vunpack.c.l.b16 %v130
    %v210 = vunpack.c.h.b16 %v130
    %v211 = vunpack.c.l.b16 %v131
    %v212 = vunpack.c.h.b16 %v131
    %v213 = vunpack.c.l.b16 %v132
    %v214 = vunpack.c.h.b16 %v132
    %v215 = vunpack.c.l.b16 %v133
    %v216 = vunpack.c.h.b16 %v133
    %v217 = vunpack.c.l.b16 %v134
    %v218 = vunpack.c.h.b16 %v134
    %v219 = vunpack.c.l.b16 %v135
    %v220 = vunpack.c.h.b16 %v135
    %v221 = vunpack.c.l.b16 %v136
    %v222 = vunpack.c.h.b16 %v136
    %v223 = vpack.c.b16 %v181, %v175
    %v224 = vpack.c.b16 %v182, %v176
    %v225 = vpack.c.b16 %v183, %v177
    %v226 = vpack.c.b16 %v184, %v178
    %v227 = vpack.c.b16 %v185, %v179
    %v228 = vpack.c.b16 %v186, %v180
    %v229 = vpack.c.b16 %v193, %v187
    %v230 = vpack.c.b16 %v194, %v188
    %v231 = vpack.c.b16 %v195, %v189
    %v232 = vpack.c.b16 %v196, %v190
    %v233 = vpack.c.b16 %v197, %v191
    %v234 = vpack.c.b16 %v198, %v192
    %v235 = vpack.c.b16 %v205, %v199
    %v236 = vpack.c.b16 %v206, %v200
    %v237 = vpack.c.b16 %v207, %v201
    %v238 = vpack.c.b16 %v208, %v202
    %v239 = vpack.c.b16 %v209, %v203
    %v240 = vpack.c.b16 %v210, %v204
    %v241 = vpack.c.b16 %v217, %v211
    %v242 = vpack.c.b16 %v218, %v212
    %v243 = vpack.c.b16 %v219, %v213
    %v244 = vpack.c.b16 %v220, %v214
    %v245 = vpack.c.b16 %v221, %v215
    %v246 = vpack.c.b16 %v222, %v216
    %vm271 = vcmask 523264
    %v273 = vsel %vm271, %v108, 0
    %v276 = vsel %vm271, %v109, 0
    %v279 = vsel %vm271, %v110, 0
    %v282 = vsel %vm271, %v111, 0
    %v285 = vsel %vm271, %v112, 0
    %287 = vmatpush.bf16.msra.mxu0 0
    %288 = vmatpush.bf16.msra.mxu0 0
    %289 = vmatpush.bf16.msra.mxu0 0
    %290 = vmatpush.bf16.msra.mxu0 0
    %291 = vmatpush.bf16.msra.mxu0 %v241
    %292 = vmatpush.bf16.msra.mxu0 %v235
    %293 = vmatpush.bf16.msra.mxu0 %v229
    %294 = vmatpush.bf16.msra.mxu0 %v223
    %295 = vmatmul.bf16.gmra.mxu0 %v273
    %v296 = vpop.f32.mrf.mxu0
    %v297 = vadd.f32 %v139, %v296
    %v298 = vpop.f32.mrf.mxu0
    %v299 = vadd.f32 %v139, %v298
    %300 = vmatmul.bf16.gmra.mxu0 %v276
    %v301 = vpop.f32.mrf.mxu0
    %v302 = vadd.f32 %v139, %v301
    %v303 = vpop.f32.mrf.mxu0
    %v304 = vadd.f32 %v139, %v303
    %305 = vmatmul.bf16.gmra.mxu0 %v279
    %v306 = vpop.f32.mrf.mxu0
    %v307 = vadd.f32 %v139, %v306
    %v308 = vpop.f32.mrf.mxu0
    %v309 = vadd.f32 %v139, %v308
    %310 = vmatmul.bf16.gmra.mxu0 %v282
    %v311 = vpop.f32.mrf.mxu0
    %v312 = vadd.f32 %v139, %v311
    %v313 = vpop.f32.mrf.mxu0
    %v314 = vadd.f32 %v139, %v313
    %315 = vmatmul.bf16.gmra.mxu0 %v285
    %v316 = vpop.f32.mrf.mxu0
    %v317 = vadd.f32 %v139, %v316
    %v318 = vpop.f32.mrf.mxu0
    %v319 = vadd.f32 %v139, %v318
    %320 = vdwg.mxu0
    %321 = vmatpush.bf16.msra.mxu0 0
    %322 = vmatpush.bf16.msra.mxu0 0
    %323 = vmatpush.bf16.msra.mxu0 0
    %324 = vmatpush.bf16.msra.mxu0 0
    %325 = vmatpush.bf16.msra.mxu0 %v242
    %326 = vmatpush.bf16.msra.mxu0 %v236
    %327 = vmatpush.bf16.msra.mxu0 %v230
    %328 = vmatpush.bf16.msra.mxu0 %v224
    %329 = vmatmul.bf16.gmra.mxu0 %v273
    %v330 = vpop.f32.mrf.mxu0
    %v331 = vadd.f32 %v140, %v330
    %v332 = vpop.f32.mrf.mxu0
    %v333 = vadd.f32 %v140, %v332
    %334 = vmatmul.bf16.gmra.mxu0 %v276
    %v335 = vpop.f32.mrf.mxu0
    %v336 = vadd.f32 %v140, %v335
    %v337 = vpop.f32.mrf.mxu0
    %v338 = vadd.f32 %v140, %v337
    %339 = vmatmul.bf16.gmra.mxu0 %v279
    %v340 = vpop.f32.mrf.mxu0
    %v341 = vadd.f32 %v140, %v340
    %v342 = vpop.f32.mrf.mxu0
    %v343 = vadd.f32 %v140, %v342
    %344 = vmatmul.bf16.gmra.mxu0 %v282
    %v345 = vpop.f32.mrf.mxu0
    %v346 = vadd.f32 %v140, %v345
    %v347 = vpop.f32.mrf.mxu0
    %v348 = vadd.f32 %v140, %v347
    %349 = vmatmul.bf16.gmra.mxu0 %v285
    %v350 = vpop.f32.mrf.mxu0
    %v351 = vadd.f32 %v140, %v350
    %v352 = vpop.f32.mrf.mxu0
    %v353 = vadd.f32 %v140, %v352
    %354 = vdwg.mxu0
    %355 = vmatpush.bf16.msra.mxu0 0
    %356 = vmatpush.bf16.msra.mxu0 0
    %357 = vmatpush.bf16.msra.mxu0 0
    %358 = vmatpush.bf16.msra.mxu0 0
    %359 = vmatpush.bf16.msra.mxu0 %v243
    %360 = vmatpush.bf16.msra.mxu0 %v237
    %361 = vmatpush.bf16.msra.mxu0 %v231
    %362 = vmatpush.bf16.msra.mxu0 %v225
    %363 = vmatmul.bf16.gmra.mxu0 %v273
    %v364 = vpop.f32.mrf.mxu0
    %v365 = vadd.f32 %v141, %v364
    %v366 = vpop.f32.mrf.mxu0
    %v367 = vadd.f32 %v141, %v366
    %368 = vmatmul.bf16.gmra.mxu0 %v276
    %v369 = vpop.f32.mrf.mxu0
    %v370 = vadd.f32 %v141, %v369
    %v371 = vpop.f32.mrf.mxu0
    %v372 = vadd.f32 %v141, %v371
    %373 = vmatmul.bf16.gmra.mxu0 %v279
    %v374 = vpop.f32.mrf.mxu0
    %v375 = vadd.f32 %v141, %v374
    %v376 = vpop.f32.mrf.mxu0
    %v377 = vadd.f32 %v141, %v376
    %378 = vmatmul.bf16.gmra.mxu0 %v282
    %v379 = vpop.f32.mrf.mxu0
    %v380 = vadd.f32 %v141, %v379
    %v381 = vpop.f32.mrf.mxu0
    %v382 = vadd.f32 %v141, %v381
    %383 = vmatmul.bf16.gmra.mxu0 %v285
    %v384 = vpop.f32.mrf.mxu0
    %v385 = vadd.f32 %v141, %v384
    %v386 = vpop.f32.mrf.mxu0
    %v387 = vadd.f32 %v141, %v386
    %388 = vdwg.mxu0
    %389 = vmatpush.bf16.msra.mxu0 0
    %390 = vmatpush.bf16.msra.mxu0 0
    %391 = vmatpush.bf16.msra.mxu0 0
    %392 = vmatpush.bf16.msra.mxu0 0
    %393 = vmatpush.bf16.msra.mxu0 %v244
    %394 = vmatpush.bf16.msra.mxu0 %v238
    %395 = vmatpush.bf16.msra.mxu0 %v232
    %396 = vmatpush.bf16.msra.mxu0 %v226
    %397 = vmatmul.bf16.gmra.mxu0 %v273
    %v398 = vpop.f32.mrf.mxu0
    %v399 = vadd.f32 %v142, %v398
    %v400 = vpop.f32.mrf.mxu0
    %v401 = vadd.f32 %v142, %v400
    %402 = vmatmul.bf16.gmra.mxu0 %v276
    %v403 = vpop.f32.mrf.mxu0
    %v404 = vadd.f32 %v142, %v403
    %v405 = vpop.f32.mrf.mxu0
    %v406 = vadd.f32 %v142, %v405
    %407 = vmatmul.bf16.gmra.mxu0 %v279
    %v408 = vpop.f32.mrf.mxu0
    %v409 = vadd.f32 %v142, %v408
    %v410 = vpop.f32.mrf.mxu0
    %v411 = vadd.f32 %v142, %v410
    %412 = vmatmul.bf16.gmra.mxu0 %v282
    %v413 = vpop.f32.mrf.mxu0
    %v414 = vadd.f32 %v142, %v413
    %v415 = vpop.f32.mrf.mxu0
    %v416 = vadd.f32 %v142, %v415
    %417 = vmatmul.bf16.gmra.mxu0 %v285
    %v418 = vpop.f32.mrf.mxu0
    %v419 = vadd.f32 %v142, %v418
    %v420 = vpop.f32.mrf.mxu0
    %v421 = vadd.f32 %v142, %v420
    %422 = vdwg.mxu0
    %423 = vmatpush.bf16.msra.mxu0 0
    %424 = vmatpush.bf16.msra.mxu0 0
    %425 = vmatpush.bf16.msra.mxu0 0
    %426 = vmatpush.bf16.msra.mxu0 0
    %427 = vmatpush.bf16.msra.mxu0 %v245
    %428 = vmatpush.bf16.msra.mxu0 %v239
    %429 = vmatpush.bf16.msra.mxu0 %v233
    %430 = vmatpush.bf16.msra.mxu0 %v227
    %431 = vmatmul.bf16.gmra.mxu0 %v273
    %v432 = vpop.f32.mrf.mxu0
    %v433 = vadd.f32 %v143, %v432
    %v434 = vpop.f32.mrf.mxu0
    %v435 = vadd.f32 %v143, %v434
    %436 = vmatmul.bf16.gmra.mxu0 %v276
    %v437 = vpop.f32.mrf.mxu0
    %v438 = vadd.f32 %v143, %v437
    %v439 = vpop.f32.mrf.mxu0
    %v440 = vadd.f32 %v143, %v439
    %441 = vmatmul.bf16.gmra.mxu0 %v279
    %v442 = vpop.f32.mrf.mxu0
    %v443 = vadd.f32 %v143, %v442
    %v444 = vpop.f32.mrf.mxu0
    %v445 = vadd.f32 %v143, %v444
    %446 = vmatmul.bf16.gmra.mxu0 %v282
    %v447 = vpop.f32.mrf.mxu0
    %v448 = vadd.f32 %v143, %v447
    %v449 = vpop.f32.mrf.mxu0
    %v450 = vadd.f32 %v143, %v449
    %451 = vmatmul.bf16.gmra.mxu0 %v285
    %v452 = vpop.f32.mrf.mxu0
    %v453 = vadd.f32 %v143, %v452
    %v454 = vpop.f32.mrf.mxu0
    %v455 = vadd.f32 %v143, %v454
    %456 = vdwg.mxu0
    %457 = vmatpush.bf16.msra.mxu0 0
    %458 = vmatpush.bf16.msra.mxu0 0
    %459 = vmatpush.bf16.msra.mxu0 0
    %460 = vmatpush.bf16.msra.mxu0 0
    %461 = vmatpush.bf16.msra.mxu0 %v246
    %462 = vmatpush.bf16.msra.mxu0 %v240
    %463 = vmatpush.bf16.msra.mxu0 %v234
    %464 = vmatpush.bf16.msra.mxu0 %v228
    %465 = vmatmul.bf16.gmra.mxu0 %v273
    %v466 = vpop.f32.mrf.mxu0
    %v467 = vadd.f32 %v144, %v466
    %v468 = vpop.f32.mrf.mxu0
    %v469 = vadd.f32 %v144, %v468
    %470 = vmatmul.bf16.gmra.mxu0 %v276
    %v471 = vpop.f32.mrf.mxu0
    %v472 = vadd.f32 %v144, %v471
    %v473 = vpop.f32.mrf.mxu0
    %v474 = vadd.f32 %v144, %v473
    %475 = vmatmul.bf16.gmra.mxu0 %v279
    %v476 = vpop.f32.mrf.mxu0
    %v477 = vadd.f32 %v144, %v476
    %v478 = vpop.f32.mrf.mxu0
    %v479 = vadd.f32 %v144, %v478
    %480 = vmatmul.bf16.gmra.mxu0 %v282
    %v481 = vpop.f32.mrf.mxu0
    %v482 = vadd.f32 %v144, %v481
    %v483 = vpop.f32.mrf.mxu0
    %v484 = vadd.f32 %v144, %v483
    %485 = vmatmul.bf16.gmra.mxu0 %v285
    %v486 = vpop.f32.mrf.mxu0
    %v487 = vadd.f32 %v144, %v486
    %v488 = vpop.f32.mrf.mxu0
    %v489 = vadd.f32 %v144, %v488
    %490 = vdwg.mxu0
    %491 = vst [vmem:[#allocation2] sm:$0xff] %v297
    %492 = vst [vmem:[#allocation2 + $0x8] sm:$0xff] %v331
    %493 = vst [vmem:[#allocation2 + $0x10] sm:$0xff] %v365
    %494 = vst [vmem:[#allocation2 + $0x18] sm:$0xff] %v399
    %495 = vst [vmem:[#allocation2 + $0x20] sm:$0xff] %v433
    %496 = vst [vmem:[#allocation2 + $0x28] sm:$0xff] %v467
    %497 = vst [vmem:[#allocation2 + $0x30] sm:$0xff] %v299
    %498 = vst [vmem:[#allocation2 + $0x38] sm:$0xff] %v333
    %499 = vst [vmem:[#allocation2 + $0x40] sm:$0xff] %v367
    %500 = vst [vmem:[#allocation2 + $0x48] sm:$0xff] %v401
    %501 = vst [vmem:[#allocation2 + $0x50] sm:$0xff] %v435
    %502 = vst [vmem:[#allocation2 + $0x58] sm:$0xff] %v469
    %503 = vst [vmem:[#allocation2 + $0x60] sm:$0xff] %v302
    %504 = vst [vmem:[#allocation2 + $0x68] sm:$0xff] %v336
    %505 = vst [vmem:[#allocation2 + $0x70] sm:$0xff] %v370
    %506 = vst [vmem:[#allocation2 + $0x78] sm:$0xff] %v404
    %507 = vst [vmem:[#allocation2 + $0x80] sm:$0xff] %v438
    %508 = vst [vmem:[#allocation2 + $0x88] sm:$0xff] %v472
    %509 = vst [vmem:[#allocation2 + $0x90] sm:$0xff] %v304
    %510 = vst [vmem:[#allocation2 + $0x98] sm:$0xff] %v338
    %511 = vst [vmem:[#allocation2 + $0xa0] sm:$0xff] %v372
    %512 = vst [vmem:[#allocation2 + $0xa8] sm:$0xff] %v406
    %513 = vst [vmem:[#allocation2 + $0xb0] sm:$0xff] %v440
    %514 = vst [vmem:[#allocation2 + $0xb8] sm:$0xff] %v474
    %515 = vst [vmem:[#allocation2 + $0xc0] sm:$0xff] %v307
    %516 = vst [vmem:[#allocation2 + $0xc8] sm:$0xff] %v341
    %517 = vst [vmem:[#allocation2 + $0xd0] sm:$0xff] %v375
    %518 = vst [vmem:[#allocation2 + $0xd8] sm:$0xff] %v409
    %519 = vst [vmem:[#allocation2 + $0xe0] sm:$0xff] %v443
    %520 = vst [vmem:[#allocation2 + $0xe8] sm:$0xff] %v477
    %521 = vst [vmem:[#allocation2 + $0xf0] sm:$0xff] %v309
    %522 = vst [vmem:[#allocation2 + $0xf8] sm:$0xff] %v343
    %523 = vst [vmem:[#allocation2 + $0x100] sm:$0xff] %v377
    %524 = vst [vmem:[#allocation2 + $0x108] sm:$0xff] %v411
    %525 = vst [vmem:[#allocation2 + $0x110] sm:$0xff] %v445
    %526 = vst [vmem:[#allocation2 + $0x118] sm:$0xff] %v479
    %527 = vst [vmem:[#allocation2 + $0x120] sm:$0xff] %v312
    %528 = vst [vmem:[#allocation2 + $0x128] sm:$0xff] %v346
    %529 = vst [vmem:[#allocation2 + $0x130] sm:$0xff] %v380
    %530 = vst [vmem:[#allocation2 + $0x138] sm:$0xff] %v414
    %531 = vst [vmem:[#allocation2 + $0x140] sm:$0xff] %v448
    %532 = vst [vmem:[#allocation2 + $0x148] sm:$0xff] %v482
    %533 = vst [vmem:[#allocation2 + $0x150] sm:$0xff] %v314
    %534 = vst [vmem:[#allocation2 + $0x158] sm:$0xff] %v348
    %535 = vst [vmem:[#allocation2 + $0x160] sm:$0xff] %v382
    %536 = vst [vmem:[#allocation2 + $0x168] sm:$0xff] %v416
    %537 = vst [vmem:[#allocation2 + $0x170] sm:$0xff] %v450
    %538 = vst [vmem:[#allocation2 + $0x178] sm:$0xff] %v484
    %539 = vst [vmem:[#allocation2 + $0x180] sm:$0xff] %v317
    %540 = vst [vmem:[#allocation2 + $0x188] sm:$0xff] %v351
    %541 = vst [vmem:[#allocation2 + $0x190] sm:$0xff] %v385
    %542 = vst [vmem:[#allocation2 + $0x198] sm:$0xff] %v419
    %543 = vst [vmem:[#allocation2 + $0x1a0] sm:$0xff] %v453
    %544 = vst [vmem:[#allocation2 + $0x1a8] sm:$0xff] %v487
    %545 = vst [vmem:[#allocation2 + $0x1b0] sm:$0xff] %v319
    %546 = vst [vmem:[#allocation2 + $0x1b8] sm:$0xff] %v353
    %547 = vst [vmem:[#allocation2 + $0x1c0] sm:$0xff] %v387
    %548 = vst [vmem:[#allocation2 + $0x1c8] sm:$0xff] %v421
    %549 = vst [vmem:[#allocation2 + $0x1d0] sm:$0xff] %v455
    %550 = vst [vmem:[#allocation2 + $0x1d8] sm:$0xff] %v489
    %v551 = vpack.c.bf16 0.0, 0.0
    %v552 = vld [vmem:[#allocation8] sm:$0xff]
    %v553 = vld [vmem:[#allocation8 + $0x8] sm:$0xff]
    %v554 = vld [vmem:[#allocation8 + $0x10] sm:$0xff]
    %v555 = vld [vmem:[#allocation8 + $0x18] sm:$0xff]
    %v556 = vld [vmem:[#allocation8 + $0x20] sm:$0xff]
    %v557 = vld [vmem:[#allocation8 + $0x28] sm:$0xff]
    %v558 = vld [vmem:[#allocation8 + $0x30] sm:$0xff]
    %v559 = vld [vmem:[#allocation8 + $0x38] sm:$0xff]
    %v560 = vld [vmem:[#allocation8 + $0x40] sm:$0xff]
    %v561 = vld [vmem:[#allocation8 + $0x48] sm:$0xff]
    %v562 = vld [vmem:[#allocation8 + $0x50] sm:$0xff]
    %v563 = vld [vmem:[#allocation8 + $0x58] sm:$0xff]
    %v564 = vld [vmem:[#allocation8 + $0x60] sm:$0xff]
    %v565 = vld [vmem:[#allocation8 + $0x68] sm:$0xff]
    %v566 = vld [vmem:[#allocation8 + $0x70] sm:$0xff]
    %v567 = vld [vmem:[#allocation8 + $0x78] sm:$0xff]
    %v568 = vld [vmem:[#allocation8 + $0x80] sm:$0xff]
    %v569 = vld [vmem:[#allocation8 + $0x88] sm:$0xff]
    %v570 = vld [vmem:[#allocation8 + $0x90] sm:$0xff]
    %v571 = vld [vmem:[#allocation8 + $0x98] sm:$0xff]
    %v572 = vld [vmem:[#allocation8 + $0xa0] sm:$0xff]
    %v573 = vld [vmem:[#allocation8 + $0xa8] sm:$0xff]
    %v574 = vld [vmem:[#allocation8 + $0xb0] sm:$0xff]
    %v575 = vld [vmem:[#allocation8 + $0xb8] sm:$0xff]
    %v576 = vld [vmem:[#allocation8 + $0xc0] sm:$0xff]
    %v577 = vld [vmem:[#allocation8 + $0xc8] sm:$0xff]
    %v578 = vld [vmem:[#allocation8 + $0xd0] sm:$0xff]
    %v579 = vld [vmem:[#allocation8 + $0xd8] sm:$0xff]
    %v580 = vld [vmem:[#allocation8 + $0xe0] sm:$0xff]
    %v581 = vld [vmem:[#allocation8 + $0xe8] sm:$0xff]
    %v582 = vld [vmem:[#allocation8 + $0xf0] sm:$0xff]
    %v583 = vld [vmem:[#allocation8 + $0xf8] sm:$0xff]
    %v584 = vld [vmem:[#allocation8 + $0x100] sm:$0xff]
    %v585 = vld [vmem:[#allocation8 + $0x108] sm:$0xff]
    %v586 = vld [vmem:[#allocation8 + $0x110] sm:$0xff]
    %v587 = vld [vmem:[#allocation8 + $0x118] sm:$0xff]
    %v588 = vld [vmem:[#allocation8 + $0x120] sm:$0xff]
    %v589 = vld [vmem:[#allocation8 + $0x128] sm:$0xff]
    %v590 = vld [vmem:[#allocation8 + $0x130] sm:$0xff]
    %v591 = vld [vmem:[#allocation8 + $0x138] sm:$0xff]
    %v592 = vld [vmem:[#allocation8 + $0x140] sm:$0xff]
    %v593 = vld [vmem:[#allocation8 + $0x148] sm:$0xff]
    %v594 = vld [vmem:[#allocation8 + $0x150] sm:$0xff]
    %v595 = vld [vmem:[#allocation8 + $0x158] sm:$0xff]
    %v596 = vld [vmem:[#allocation8 + $0x160] sm:$0xff]
    %v597 = vld [vmem:[#allocation8 + $0x168] sm:$0xff]
    %v598 = vld [vmem:[#allocation8 + $0x170] sm:$0xff]
    %v599 = vld [vmem:[#allocation8 + $0x178] sm:$0xff]
    %v600 = vld [vmem:[#allocation8 + $0x180] sm:$0xff]
    %v601 = vld [vmem:[#allocation8 + $0x188] sm:$0xff]
    %v602 = vld [vmem:[#allocation8 + $0x190] sm:$0xff]
    %v603 = vld [vmem:[#allocation8 + $0x198] sm:$0xff]
    %v604 = vld [vmem:[#allocation8 + $0x1a0] sm:$0xff]
    %v605 = vld [vmem:[#allocation8 + $0x1a8] sm:$0xff]
    %v606 = vld [vmem:[#allocation8 + $0x1b0] sm:$0xff]
    %v607 = vld [vmem:[#allocation8 + $0x1b8] sm:$0xff]
    %v608 = vld [vmem:[#allocation8 + $0x1c0] sm:$0xff]
    %v609 = vld [vmem:[#allocation8 + $0x1c8] sm:$0xff]
    %v610 = vld [vmem:[#allocation8 + $0x1d0] sm:$0xff]
    %v611 = vld [vmem:[#allocation8 + $0x1d8] sm:$0xff]
    %v612 = vld [vmem:[#allocation8 + $0x1e0] sm:$0xff]
    %v613 = vld [vmem:[#allocation8 + $0x1e8] sm:$0xff]
    %v614 = vld [vmem:[#allocation8 + $0x1f0] sm:$0xff]
    %v615 = vld [vmem:[#allocation8 + $0x1f8] sm:$0xff]
    %v616 = vld [vmem:[#allocation8 + $0x200] sm:$0xff]
    %v617 = vld [vmem:[#allocation8 + $0x208] sm:$0xff]
    %v618 = vld [vmem:[#allocation8 + $0x210] sm:$0xff]
    %v619 = vld [vmem:[#allocation8 + $0x218] sm:$0xff]
    %v620 = vld [vmem:[#allocation8 + $0x220] sm:$0xff]
    %v621 = vld [vmem:[#allocation8 + $0x228] sm:$0xff]
    %v622 = vld [vmem:[#allocation8 + $0x230] sm:$0xff]
    %v623 = vld [vmem:[#allocation8 + $0x238] sm:$0xff]
    %v624 = vld [vmem:[#allocation8 + $0x240] sm:$0xff]
    %v625 = vld [vmem:[#allocation8 + $0x248] sm:$0xff]
    %v626 = vld [vmem:[#allocation8 + $0x250] sm:$0xff]
    %v627 = vld [vmem:[#allocation8 + $0x258] sm:$0xff]
    %v628 = vld [vmem:[#allocation8 + $0x260] sm:$0xff]
    %v629 = vld [vmem:[#allocation8 + $0x268] sm:$0xff]
    %v630 = vld [vmem:[#allocation8 + $0x270] sm:$0xff]
    %v631 = vld [vmem:[#allocation8 + $0x278] sm:$0xff]
    %v632 = vld [vmem:[#allocation8 + $0x280] sm:$0xff]
    %v633 = vld [vmem:[#allocation8 + $0x288] sm:$0xff]
    %v634 = vld [vmem:[#allocation8 + $0x290] sm:$0xff]
    %v635 = vld [vmem:[#allocation8 + $0x298] sm:$0xff]
    %v636 = vld [vmem:[#allocation8 + $0x2a0] sm:$0xff]
    %v637 = vld [vmem:[#allocation8 + $0x2a8] sm:$0xff]
    %v638 = vld [vmem:[#allocation8 + $0x2b0] sm:$0xff]
    %v639 = vld [vmem:[#allocation8 + $0x2b8] sm:$0xff]
    %v640 = vld [vmem:[#allocation8 + $0x2c0] sm:$0xff]
    %v641 = vld [vmem:[#allocation8 + $0x2c8] sm:$0xff]
    %v642 = vld [vmem:[#allocation8 + $0x2d0] sm:$0xff]
    %v643 = vld [vmem:[#allocation8 + $0x2d8] sm:$0xff]
    %v644 = vld [vmem:[#allocation8 + $0x2e0] sm:$0xff]
    %v645 = vld [vmem:[#allocation8 + $0x2e8] sm:$0xff]
    %v646 = vld [vmem:[#allocation8 + $0x2f0] sm:$0xff]
    %v647 = vld [vmem:[#allocation8 + $0x2f8] sm:$0xff]
    %v648 = vld [vmem:[%s5] sm:$0x3f]
    %v650 = vperm.slane %v648, 0
    %v651 = vperm.slane %v648, 1
    %v652 = vperm.slane %v648, 2
    %v653 = vperm.slane %v648, 3
    %v654 = vperm.slane %v648, 4
    %v655 = vperm.slane %v648, 5
    %v758 = vunpack.c.l.b16 %v552
    %v759 = vunpack.c.h.b16 %v552
    %v760 = vunpack.c.l.b16 %v553
    %v761 = vunpack.c.h.b16 %v553
    %v762 = vunpack.c.l.b16 %v554
    %v763 = vunpack.c.h.b16 %v554
    %v764 = vunpack.c.l.b16 %v555
    %v765 = vunpack.c.h.b16 %v555
    %v766 = vunpack.c.l.b16 %v556
    %v767 = vunpack.c.h.b16 %v556
    %v768 = vunpack.c.l.b16 %v557
    %v769 = vunpack.c.h.b16 %v557
    %v770 = vunpack.c.l.b16 %v558
    %v771 = vunpack.c.h.b16 %v558
    %v772 = vunpack.c.l.b16 %v559
    %v773 = vunpack.c.h.b16 %v559
    %v774 = vunpack.c.l.b16 %v560
    %v775 = vunpack.c.h.b16 %v560
    %v776 = vunpack.c.l.b16 %v561
    %v777 = vunpack.c.h.b16 %v561
    %v778 = vunpack.c.l.b16 %v562
    %v779 = vunpack.c.h.b16 %v562
    %v780 = vunpack.c.l.b16 %v563
    %v781 = vunpack.c.h.b16 %v563
    %v782 = vunpack.c.l.b16 %v564
    %v783 = vunpack.c.h.b16 %v564
    %v784 = vunpack.c.l.b16 %v565
    %v785 = vunpack.c.h.b16 %v565
    %v786 = vunpack.c.l.b16 %v566
    %v787 = vunpack.c.h.b16 %v566
    %v788 = vunpack.c.l.b16 %v567
    %v789 = vunpack.c.h.b16 %v567
    %v790 = vunpack.c.l.b16 %v568
    %v791 = vunpack.c.h.b16 %v568
    %v792 = vunpack.c.l.b16 %v569
    %v793 = vunpack.c.h.b16 %v569
    %v794 = vunpack.c.l.b16 %v570
    %v795 = vunpack.c.h.b16 %v570
    %v796 = vunpack.c.l.b16 %v571
    %v797 = vunpack.c.h.b16 %v571
    %v798 = vunpack.c.l.b16 %v572
    %v799 = vunpack.c.h.b16 %v572
    %v800 = vunpack.c.l.b16 %v573
    %v801 = vunpack.c.h.b16 %v573
    %v802 = vunpack.c.l.b16 %v574
    %v803 = vunpack.c.h.b16 %v574
    %v804 = vunpack.c.l.b16 %v575
    %v805 = vunpack.c.h.b16 %v575
    %v806 = vunpack.c.l.b16 %v576
    %v807 = vunpack.c.h.b16 %v576
    %v808 = vunpack.c.l.b16 %v577
    %v809 = vunpack.c.h.b16 %v577
    %v810 = vunpack.c.l.b16 %v578
    %v811 = vunpack.c.h.b16 %v578
    %v812 = vunpack.c.l.b16 %v579
    %v813 = vunpack.c.h.b16 %v579
    %v814 = vunpack.c.l.b16 %v580
    %v815 = vunpack.c.h.b16 %v580
    %v816 = vunpack.c.l.b16 %v581
    %v817 = vunpack.c.h.b16 %v581
    %v818 = vunpack.c.l.b16 %v582
    %v819 = vunpack.c.h.b16 %v582
    %v820 = vunpack.c.l.b16 %v583
    %v821 = vunpack.c.h.b16 %v583
    %v822 = vunpack.c.l.b16 %v584
    %v823 = vunpack.c.h.b16 %v584
    %v824 = vunpack.c.l.b16 %v585
    %v825 = vunpack.c.h.b16 %v585
    %v826 = vunpack.c.l.b16 %v586
    %v827 = vunpack.c.h.b16 %v586
    %v828 = vunpack.c.l.b16 %v587
    %v829 = vunpack.c.h.b16 %v587
    %v830 = vunpack.c.l.b16 %v588
    %v831 = vunpack.c.h.b16 %v588
    %v832 = vunpack.c.l.b16 %v589
    %v833 = vunpack.c.h.b16 %v589
    %v834 = vunpack.c.l.b16 %v590
    %v835 = vunpack.c.h.b16 %v590
    %v836 = vunpack.c.l.b16 %v591
    %v837 = vunpack.c.h.b16 %v591
    %v838 = vunpack.c.l.b16 %v592
    %v839 = vunpack.c.h.b16 %v592
    %v840 = vunpack.c.l.b16 %v593
    %v841 = vunpack.c.h.b16 %v593
    %v842 = vunpack.c.l.b16 %v594
    %v843 = vunpack.c.h.b16 %v594
    %v844 = vunpack.c.l.b16 %v595
    %v845 = vunpack.c.h.b16 %v595
    %v846 = vunpack.c.l.b16 %v596
    %v847 = vunpack.c.h.b16 %v596
    %v848 = vunpack.c.l.b16 %v597
    %v849 = vunpack.c.h.b16 %v597
    %v850 = vunpack.c.l.b16 %v598
    %v851 = vunpack.c.h.b16 %v598
    %v852 = vunpack.c.l.b16 %v599
    %v853 = vunpack.c.h.b16 %v599
    %v854 = vunpack.c.l.b16 %v600
    %v855 = vunpack.c.h.b16 %v600
    %v856 = vunpack.c.l.b16 %v601
    %v857 = vunpack.c.h.b16 %v601
    %v858 = vunpack.c.l.b16 %v602
    %v859 = vunpack.c.h.b16 %v602
    %v860 = vunpack.c.l.b16 %v603
    %v861 = vunpack.c.h.b16 %v603
    %v862 = vunpack.c.l.b16 %v604
    %v863 = vunpack.c.h.b16 %v604
    %v864 = vunpack.c.l.b16 %v605
    %v865 = vunpack.c.h.b16 %v605
    %v866 = vunpack.c.l.b16 %v606
    %v867 = vunpack.c.h.b16 %v606
    %v868 = vunpack.c.l.b16 %v607
    %v869 = vunpack.c.h.b16 %v607
    %v870 = vunpack.c.l.b16 %v608
    %v871 = vunpack.c.h.b16 %v608
    %v872 = vunpack.c.l.b16 %v609
    %v873 = vunpack.c.h.b16 %v609
    %v874 = vunpack.c.l.b16 %v610
    %v875 = vunpack.c.h.b16 %v610
    %v876 = vunpack.c.l.b16 %v611
    %v877 = vunpack.c.h.b16 %v611
    %v878 = vunpack.c.l.b16 %v612
    %v879 = vunpack.c.h.b16 %v612
    %v880 = vunpack.c.l.b16 %v613
    %v881 = vunpack.c.h.b16 %v613
    %v882 = vunpack.c.l.b16 %v614
    %v883 = vunpack.c.h.b16 %v614
    %v884 = vunpack.c.l.b16 %v615
    %v885 = vunpack.c.h.b16 %v615
    %v886 = vunpack.c.l.b16 %v616
    %v887 = vunpack.c.h.b16 %v616
    %v888 = vunpack.c.l.b16 %v617
    %v889 = vunpack.c.h.b16 %v617
    %v890 = vunpack.c.l.b16 %v618
    %v891 = vunpack.c.h.b16 %v618
    %v892 = vunpack.c.l.b16 %v619
    %v893 = vunpack.c.h.b16 %v619
    %v894 = vunpack.c.l.b16 %v620
    %v895 = vunpack.c.h.b16 %v620
    %v896 = vunpack.c.l.b16 %v621
    %v897 = vunpack.c.h.b16 %v621
    %v898 = vunpack.c.l.b16 %v622
    %v899 = vunpack.c.h.b16 %v622
    %v900 = vunpack.c.l.b16 %v623
    %v901 = vunpack.c.h.b16 %v623
    %v902 = vunpack.c.l.b16 %v624
    %v903 = vunpack.c.h.b16 %v624
    %v904 = vunpack.c.l.b16 %v625
    %v905 = vunpack.c.h.b16 %v625
    %v906 = vunpack.c.l.b16 %v626
    %v907 = vunpack.c.h.b16 %v626
    %v908 = vunpack.c.l.b16 %v627
    %v909 = vunpack.c.h.b16 %v627
    %v910 = vunpack.c.l.b16 %v628
    %v911 = vunpack.c.h.b16 %v628
    %v912 = vunpack.c.l.b16 %v629
    %v913 = vunpack.c.h.b16 %v629
    %v914 = vunpack.c.l.b16 %v630
    %v915 = vunpack.c.h.b16 %v630
    %v916 = vunpack.c.l.b16 %v631
    %v917 = vunpack.c.h.b16 %v631
    %v918 = vunpack.c.l.b16 %v632
    %v919 = vunpack.c.h.b16 %v632
    %v920 = vunpack.c.l.b16 %v633
    %v921 = vunpack.c.h.b16 %v633
    %v922 = vunpack.c.l.b16 %v634
    %v923 = vunpack.c.h.b16 %v634
    %v924 = vunpack.c.l.b16 %v635
    %v925 = vunpack.c.h.b16 %v635
    %v926 = vunpack.c.l.b16 %v636
    %v927 = vunpack.c.h.b16 %v636
    %v928 = vunpack.c.l.b16 %v637
    %v929 = vunpack.c.h.b16 %v637
    %v930 = vunpack.c.l.b16 %v638
    %v931 = vunpack.c.h.b16 %v638
    %v932 = vunpack.c.l.b16 %v639
    %v933 = vunpack.c.h.b16 %v639
    %v934 = vunpack.c.l.b16 %v640
    %v935 = vunpack.c.h.b16 %v640
    %v936 = vunpack.c.l.b16 %v641
    %v937 = vunpack.c.h.b16 %v641
    %v938 = vunpack.c.l.b16 %v642
    %v939 = vunpack.c.h.b16 %v642
    %v940 = vunpack.c.l.b16 %v643
    %v941 = vunpack.c.h.b16 %v643
    %v942 = vunpack.c.l.b16 %v644
    %v943 = vunpack.c.h.b16 %v644
    %v944 = vunpack.c.l.b16 %v645
    %v945 = vunpack.c.h.b16 %v645
    %v946 = vunpack.c.l.b16 %v646
    %v947 = vunpack.c.h.b16 %v646
    %v948 = vunpack.c.l.b16 %v647
    %v949 = vunpack.c.h.b16 %v647
    %v950 = vpack.c.b16 %v764, %v758
    %v951 = vpack.c.b16 %v765, %v759
    %v952 = vpack.c.b16 %v766, %v760
    %v953 = vpack.c.b16 %v767, %v761
    %v954 = vpack.c.b16 %v768, %v762
    %v955 = vpack.c.b16 %v769, %v763
    %v956 = vpack.c.b16 %v776, %v770
    %v957 = vpack.c.b16 %v777, %v771
    %v958 = vpack.c.b16 %v778, %v772
    %v959 = vpack.c.b16 %v779, %v773
    %v960 = vpack.c.b16 %v780, %v774
    %v961 = vpack.c.b16 %v781, %v775
    %v962 = vpack.c.b16 %v788, %v782
    %v963 = vpack.c.b16 %v789, %v783
    %v964 = vpack.c.b16 %v790, %v784
    %v965 = vpack.c.b16 %v791, %v785
    %v966 = vpack.c.b16 %v792, %v786
    %v967 = vpack.c.b16 %v793, %v787
    %v968 = vpack.c.b16 %v800, %v794
    %v969 = vpack.c.b16 %v801, %v795
    %v970 = vpack.c.b16 %v802, %v796
    %v971 = vpack.c.b16 %v803, %v797
    %v972 = vpack.c.b16 %v804, %v798
    %v973 = vpack.c.b16 %v805, %v799
    %v974 = vpack.c.b16 %v812, %v806
    %v975 = vpack.c.b16 %v813, %v807
    %v976 = vpack.c.b16 %v814, %v808
    %v977 = vpack.c.b16 %v815, %v809
    %v978 = vpack.c.b16 %v816, %v810
    %v979 = vpack.c.b16 %v817, %v811
    %v980 = vpack.c.b16 %v824, %v818
    %v981 = vpack.c.b16 %v825, %v819
    %v982 = vpack.c.b16 %v826, %v820
    %v983 = vpack.c.b16 %v827, %v821
    %v984 = vpack.c.b16 %v828, %v822
    %v985 = vpack.c.b16 %v829, %v823
    %v986 = vpack.c.b16 %v836, %v830
    %v987 = vpack.c.b16 %v837, %v831
    %v988 = vpack.c.b16 %v838, %v832
    %v989 = vpack.c.b16 %v839, %v833
    %v990 = vpack.c.b16 %v840, %v834
    %v991 = vpack.c.b16 %v841, %v835
    %v992 = vpack.c.b16 %v848, %v842
    %v993 = vpack.c.b16 %v849, %v843
    %v994 = vpack.c.b16 %v850, %v844
    %v995 = vpack.c.b16 %v851, %v845
    %v996 = vpack.c.b16 %v852, %v846
    %v997 = vpack.c.b16 %v853, %v847
    %v998 = vpack.c.b16 %v860, %v854
    %v999 = vpack.c.b16 %v861, %v855
    %v1000 = vpack.c.b16 %v862, %v856
    %v1001 = vpack.c.b16 %v863, %v857
    %v1002 = vpack.c.b16 %v864, %v858
    %v1003 = vpack.c.b16 %v865, %v859
    %v1004 = vpack.c.b16 %v872, %v866
    %v1005 = vpack.c.b16 %v873, %v867
    %v1006 = vpack.c.b16 %v874, %v868
    %v1007 = vpack.c.b16 %v875, %v869
    %v1008 = vpack.c.b16 %v876, %v870
    %v1009 = vpack.c.b16 %v877, %v871
    %v1010 = vpack.c.b16 %v884, %v878
    %v1011 = vpack.c.b16 %v885, %v879
    %v1012 = vpack.c.b16 %v886, %v880
    %v1013 = vpack.c.b16 %v887, %v881
    %v1014 = vpack.c.b16 %v888, %v882
    %v1015 = vpack.c.b16 %v889, %v883
    %v1016 = vpack.c.b16 %v896, %v890
    %v1017 = vpack.c.b16 %v897, %v891
    %v1018 = vpack.c.b16 %v898, %v892
    %v1019 = vpack.c.b16 %v899, %v893
    %v1020 = vpack.c.b16 %v900, %v894
    %v1021 = vpack.c.b16 %v901, %v895
    %v1022 = vpack.c.b16 %v908, %v902
    %v1023 = vpack.c.b16 %v909, %v903
    %v1024 = vpack.c.b16 %v910, %v904
    %v1025 = vpack.c.b16 %v911, %v905
    %v1026 = vpack.c.b16 %v912, %v906
    %v1027 = vpack.c.b16 %v913, %v907
    %v1028 = vpack.c.b16 %v920, %v914
    %v1029 = vpack.c.b16 %v921, %v915
    %v1030 = vpack.c.b16 %v922, %v916
    %v1031 = vpack.c.b16 %v923, %v917
    %v1032 = vpack.c.b16 %v924, %v918
    %v1033 = vpack.c.b16 %v925, %v919
    %v1034 = vpack.c.b16 %v932, %v926
    %v1035 = vpack.c.b16 %v933, %v927
    %v1036 = vpack.c.b16 %v934, %v928
    %v1037 = vpack.c.b16 %v935, %v929
    %v1038 = vpack.c.b16 %v936, %v930
    %v1039 = vpack.c.b16 %v937, %v931
    %v1040 = vpack.c.b16 %v944, %v938
    %v1041 = vpack.c.b16 %v945, %v939
    %v1042 = vpack.c.b16 %v946, %v940
    %v1043 = vpack.c.b16 %v947, %v941
    %v1044 = vpack.c.b16 %v948, %v942
    %v1045 = vpack.c.b16 %v949, %v943
    %1142 = vmatpush.bf16.msra.mxu0 %v992
    %1143 = vmatpush.bf16.msra.mxu0 %v986
    %1144 = vmatpush.bf16.msra.mxu0 %v980
    %1145 = vmatpush.bf16.msra.mxu0 %v974
    %1146 = vmatpush.bf16.msra.mxu0 %v968
    %1147 = vmatpush.bf16.msra.mxu0 %v962
    %1148 = vmatpush.bf16.msra.mxu0 %v956
    %1149 = vmatpush.bf16.msra.mxu0 %v950
    %1150 = vmatmul.bf16.gmra.mxu0 %v551
    %v1151 = vpop.f32.mrf.mxu0
    %v1152 = vadd.f32 %v650, %v1151
    %v1153 = vpop.f32.mrf.mxu0
    %1154 = vdwg.mxu0
    %1155 = vmatpush.bf16.msra.mxu0 %v1040
    %1156 = vmatpush.bf16.msra.mxu0 %v1034
    %1157 = vmatpush.bf16.msra.mxu0 %v1028
    %1158 = vmatpush.bf16.msra.mxu0 %v1022
    %1159 = vmatpush.bf16.msra.mxu0 %v1016
    %1160 = vmatpush.bf16.msra.mxu0 %v1010
    %1161 = vmatpush.bf16.msra.mxu0 %v1004
    %1162 = vmatpush.bf16.msra.mxu0 %v998
    %1163 = vmatmul.bf16.gmra.mxu0 %v551
    %v1164 = vpop.f32.mrf.mxu0
    %v1165 = vadd.f32 %v1152, %v1164
    %v1166 = vpop.f32.mrf.mxu0
    %1167 = vdwg.mxu0
    %1168 = vmatpush.bf16.msra.mxu0 %v993
    %1169 = vmatpush.bf16.msra.mxu0 %v987
    %1170 = vmatpush.bf16.msra.mxu0 %v981
    %1171 = vmatpush.bf16.msra.mxu0 %v975
    %1172 = vmatpush.bf16.msra.mxu0 %v969
    %1173 = vmatpush.bf16.msra.mxu0 %v963
    %1174 = vmatpush.bf16.msra.mxu0 %v957
    %1175 = vmatpush.bf16.msra.mxu0 %v951
    %1176 = vmatmul.bf16.gmra.mxu0 %v551
    %v1177 = vpop.f32.mrf.mxu0
    %v1178 = vadd.f32 %v651, %v1177
    %v1179 = vpop.f32.mrf.mxu0
    %1180 = vdwg.mxu0
    %1181 = vmatpush.bf16.msra.mxu0 %v1041
    %1182 = vmatpush.bf16.msra.mxu0 %v1035
    %1183 = vmatpush.bf16.msra.mxu0 %v1029
    %1184 = vmatpush.bf16.msra.mxu0 %v1023
    %1185 = vmatpush.bf16.msra.mxu0 %v1017
    %1186 = vmatpush.bf16.msra.mxu0 %v1011
    %1187 = vmatpush.bf16.msra.mxu0 %v1005
    %1188 = vmatpush.bf16.msra.mxu0 %v999
    %1189 = vmatmul.bf16.gmra.mxu0 %v551
    %v1190 = vpop.f32.mrf.mxu0
    %v1191 = vadd.f32 %v1178, %v1190
    %v1192 = vpop.f32.mrf.mxu0
    %1193 = vdwg.mxu0
    %1194 = vmatpush.bf16.msra.mxu0 %v994
    %1195 = vmatpush.bf16.msra.mxu0 %v988
    %1196 = vmatpush.bf16.msra.mxu0 %v982
    %1197 = vmatpush.bf16.msra.mxu0 %v976
    %1198 = vmatpush.bf16.msra.mxu0 %v970
    %1199 = vmatpush.bf16.msra.mxu0 %v964
    %1200 = vmatpush.bf16.msra.mxu0 %v958
    %1201 = vmatpush.bf16.msra.mxu0 %v952
    %1202 = vmatmul.bf16.gmra.mxu0 %v551
    %v1203 = vpop.f32.mrf.mxu0
    %v1204 = vadd.f32 %v652, %v1203
    %v1205 = vpop.f32.mrf.mxu0
    %1206 = vdwg.mxu0
    %1207 = vmatpush.bf16.msra.mxu0 %v1042
    %1208 = vmatpush.bf16.msra.mxu0 %v1036
    %1209 = vmatpush.bf16.msra.mxu0 %v1030
    %1210 = vmatpush.bf16.msra.mxu0 %v1024
    %1211 = vmatpush.bf16.msra.mxu0 %v1018
    %1212 = vmatpush.bf16.msra.mxu0 %v1012
    %1213 = vmatpush.bf16.msra.mxu0 %v1006
    %1214 = vmatpush.bf16.msra.mxu0 %v1000
    %1215 = vmatmul.bf16.gmra.mxu0 %v551
    %v1216 = vpop.f32.mrf.mxu0
    %v1217 = vadd.f32 %v1204, %v1216
    %v1218 = vpop.f32.mrf.mxu0
    %1219 = vdwg.mxu0
    %1220 = vmatpush.bf16.msra.mxu0 %v995
    %1221 = vmatpush.bf16.msra.mxu0 %v989
    %1222 = vmatpush.bf16.msra.mxu0 %v983
    %1223 = vmatpush.bf16.msra.mxu0 %v977
    %1224 = vmatpush.bf16.msra.mxu0 %v971
    %1225 = vmatpush.bf16.msra.mxu0 %v965
    %1226 = vmatpush.bf16.msra.mxu0 %v959
    %1227 = vmatpush.bf16.msra.mxu0 %v953
    %1228 = vmatmul.bf16.gmra.mxu0 %v551
    %v1229 = vpop.f32.mrf.mxu0
    %v1230 = vadd.f32 %v653, %v1229
    %v1231 = vpop.f32.mrf.mxu0
    %1232 = vdwg.mxu0
    %1233 = vmatpush.bf16.msra.mxu0 %v1043
    %1234 = vmatpush.bf16.msra.mxu0 %v1037
    %1235 = vmatpush.bf16.msra.mxu0 %v1031
    %1236 = vmatpush.bf16.msra.mxu0 %v1025
    %1237 = vmatpush.bf16.msra.mxu0 %v1019
    %1238 = vmatpush.bf16.msra.mxu0 %v1013
    %1239 = vmatpush.bf16.msra.mxu0 %v1007
    %1240 = vmatpush.bf16.msra.mxu0 %v1001
    %1241 = vmatmul.bf16.gmra.mxu0 %v551
    %v1242 = vpop.f32.mrf.mxu0
    %v1243 = vadd.f32 %v1230, %v1242
    %v1244 = vpop.f32.mrf.mxu0
    %1245 = vdwg.mxu0
    %1246 = vmatpush.bf16.msra.mxu0 %v996
    %1247 = vmatpush.bf16.msra.mxu0 %v990
    %1248 = vmatpush.bf16.msra.mxu0 %v984
    %1249 = vmatpush.bf16.msra.mxu0 %v978
    %1250 = vmatpush.bf16.msra.mxu0 %v972
    %1251 = vmatpush.bf16.msra.mxu0 %v966
    %1252 = vmatpush.bf16.msra.mxu0 %v960
    %1253 = vmatpush.bf16.msra.mxu0 %v954
    %1254 = vmatmul.bf16.gmra.mxu0 %v551
    %v1255 = vpop.f32.mrf.mxu0
    %v1256 = vadd.f32 %v654, %v1255
    %v1257 = vpop.f32.mrf.mxu0
    %1258 = vdwg.mxu0
    %1259 = vmatpush.bf16.msra.mxu0 %v1044
    %1260 = vmatpush.bf16.msra.mxu0 %v1038
    %1261 = vmatpush.bf16.msra.mxu0 %v1032
    %1262 = vmatpush.bf16.msra.mxu0 %v1026
    %1263 = vmatpush.bf16.msra.mxu0 %v1020
    %1264 = vmatpush.bf16.msra.mxu0 %v1014
    %1265 = vmatpush.bf16.msra.mxu0 %v1008
    %1266 = vmatpush.bf16.msra.mxu0 %v1002
    %1267 = vmatmul.bf16.gmra.mxu0 %v551
    %v1268 = vpop.f32.mrf.mxu0
    %v1269 = vadd.f32 %v1256, %v1268
    %v1270 = vpop.f32.mrf.mxu0
    %1271 = vdwg.mxu0
    %1272 = vmatpush.bf16.msra.mxu0 %v997
    %1273 = vmatpush.bf16.msra.mxu0 %v991
    %1274 = vmatpush.bf16.msra.mxu0 %v985
    %1275 = vmatpush.bf16.msra.mxu0 %v979
    %1276 = vmatpush.bf16.msra.mxu0 %v973
    %1277 = vmatpush.bf16.msra.mxu0 %v967
    %1278 = vmatpush.bf16.msra.mxu0 %v961
    %1279 = vmatpush.bf16.msra.mxu0 %v955
    %1280 = vmatmul.bf16.gmra.mxu0 %v551
    %v1281 = vpop.f32.mrf.mxu0
    %v1282 = vadd.f32 %v655, %v1281
    %v1283 = vpop.f32.mrf.mxu0
    %1284 = vdwg.mxu0
    %1285 = vmatpush.bf16.msra.mxu0 %v1045
    %1286 = vmatpush.bf16.msra.mxu0 %v1039
    %1287 = vmatpush.bf16.msra.mxu0 %v1033
    %1288 = vmatpush.bf16.msra.mxu0 %v1027
    %1289 = vmatpush.bf16.msra.mxu0 %v1021
    %1290 = vmatpush.bf16.msra.mxu0 %v1015
    %1291 = vmatpush.bf16.msra.mxu0 %v1009
    %1292 = vmatpush.bf16.msra.mxu0 %v1003
    %1293 = vmatmul.bf16.gmra.mxu0 %v551
    %v1294 = vpop.f32.mrf.mxu0
    %v1295 = vadd.f32 %v1282, %v1294
    %v1296 = vpop.f32.mrf.mxu0
    %1297 = vdwg.mxu0
    %v1298 = vld [vmem:[#allocation2] sm:$0xff]
    %v1299 = vld [vmem:[#allocation2 + $0x8] sm:$0xff]
    %v1300 = vld [vmem:[#allocation2 + $0x10] sm:$0xff]
    %s1301 = scalar_lea.vmem [#allocation2], 432
    %v1302 = vld [vmem:[%s1301 + $0x18] sm:$0xff]
    %v1303 = vld [vmem:[%s1301 + $0x20] sm:$0xff]
    %v1304 = vld [vmem:[%s1301 + $0x28] sm:$0xff]
    %v1305 = vadd.f32 %v1298, %v1165
    %v1306 = vxor.u32 %v1305, 2147483648
    %v1307 = vmul.f32 %v1306, 1.442695
    %v1308 = vpow.pop %v1307
    %v1309 = vadd.f32 %v1308, 1.0
    %v1310 = vrcp.pop %v1309
    %v1311 = vmul.f32 %v1309, %v1310
    %v1312 = vsub.f32 1.0, %v1311
    %v1313 = vmul.f32 %v1310, %v1312
    %v1314 = vadd.f32 %v1310, %v1313
    %vm1315 = vweird.f32 %v1309
    %vm1316 = vweird.f32 %v1310
    %vm1317 = vmor %vm1315, %vm1316
    %v1318 = vsel %vm1317, %v1310, %v1314
    %v1319 = vand.u32 2147483647, %v1309
    %vm1320 = vcmp.eq.f32.partialorder %v1319, 8.507059e+37
    %v1321 = vand.u32 %v1309, 2147483648
    %v1322 = vor.u32 1.1754944e-38, %v1321
    %v1323 = vsel %vm1320, %v1322, %v1318
    %v1324 = vmul.f32 1.0, %v1323
    %v1325 = vadd.f32 %v1299, %v1191
    %v1326 = vxor.u32 %v1325, 2147483648
    %v1327 = vmul.f32 %v1326, 1.442695
    %v1328 = vpow.pop %v1327
    %v1329 = vadd.f32 %v1328, 1.0
    %v1330 = vrcp.pop %v1329
    %v1331 = vmul.f32 %v1329, %v1330
    %v1332 = vsub.f32 1.0, %v1331
    %v1333 = vmul.f32 %v1330, %v1332
    %v1334 = vadd.f32 %v1330, %v1333
    %vm1335 = vweird.f32 %v1329
    %vm1336 = vweird.f32 %v1330
    %vm1337 = vmor %vm1335, %vm1336
    %v1338 = vsel %vm1337, %v1330, %v1334
    %v1339 = vand.u32 2147483647, %v1329
    %vm1340 = vcmp.eq.f32.partialorder %v1339, 8.507059e+37
    %v1341 = vand.u32 %v1329, 2147483648
    %v1342 = vor.u32 1.1754944e-38, %v1341
    %v1343 = vsel %vm1340, %v1342, %v1338
    %v1344 = vmul.f32 1.0, %v1343
    %v1345 = vmul.f32 %v1324, %v1217
    %v1346 = vadd.f32 %v1300, %v1345
    %v1347 = vtanh.pop %v1346
    %v1348 = vsub.f32 0.0, %v1347
    %v1349 = vmul.f32 %v1344, %v1348
    %v1350 = vadd.f32 %v1347, %v1349
    %v1351 = vadd.f32 %v1302, %v1243
    %v1352 = vxor.u32 %v1351, 2147483648
    %v1353 = vmul.f32 %v1352, 1.442695
    %v1354 = vpow.pop %v1353
    %v1355 = vadd.f32 %v1354, 1.0
    %v1356 = vrcp.pop %v1355
    %v1357 = vmul.f32 %v1355, %v1356
    %v1358 = vsub.f32 1.0, %v1357
    %v1359 = vmul.f32 %v1356, %v1358
    %v1360 = vadd.f32 %v1356, %v1359
    %vm1361 = vweird.f32 %v1355
    %vm1362 = vweird.f32 %v1356
    %vm1363 = vmor %vm1361, %vm1362
    %v1364 = vsel %vm1363, %v1356, %v1360
    %v1365 = vand.u32 2147483647, %v1355
    %vm1366 = vcmp.eq.f32.partialorder %v1365, 8.507059e+37
    %v1367 = vand.u32 %v1355, 2147483648
    %v1368 = vor.u32 1.1754944e-38, %v1367
    %v1369 = vsel %vm1366, %v1368, %v1364
    %v1370 = vmul.f32 1.0, %v1369
    %v1371 = vadd.f32 %v1303, %v1269
    %v1372 = vxor.u32 %v1371, 2147483648
    %v1373 = vmul.f32 %v1372, 1.442695
    %v1374 = vpow.pop %v1373
    %v1375 = vadd.f32 %v1374, 1.0
    %v1376 = vrcp.pop %v1375
    %v1377 = vmul.f32 %v1375, %v1376
    %v1378 = vsub.f32 1.0, %v1377
    %v1379 = vmul.f32 %v1376, %v1378
    %v1380 = vadd.f32 %v1376, %v1379
    %vm1381 = vweird.f32 %v1375
    %vm1382 = vweird.f32 %v1376
    %vm1383 = vmor %vm1381, %vm1382
    %v1384 = vsel %vm1383, %v1376, %v1380
    %v1385 = vand.u32 2147483647, %v1375
    %vm1386 = vcmp.eq.f32.partialorder %v1385, 8.507059e+37
    %v1387 = vand.u32 %v1375, 2147483648
    %v1388 = vor.u32 1.1754944e-38, %v1387
    %v1389 = vsel %vm1386, %v1388, %v1384
    %v1390 = vmul.f32 1.0, %v1389
    %v1391 = vmul.f32 %v1370, %v1295
    %v1392 = vadd.f32 %v1304, %v1391
    %v1393 = vtanh.pop %v1392
    %v1394 = vsub.f32 0.0, %v1393
    %v1395 = vmul.f32 %v1390, %v1394
    %v1396 = vadd.f32 %v1393, %v1395
    %vm1397 = vcmp.gt.s32.totalorder %v97, 0
    %vm1398 = vcmp.gt.s32.totalorder %v97, 9
    %v1399 = vsel %vm1397, 1, 0
    %1400 = vset.pattern.permute.xlu0 0
    %1401 = vperm.xlu0 %1400, %v1399
    %v1402 = vpop.permute.xlu0 %1401
    %vm1403 = vcmp.eq.s32.totalorder %v1402, 1
    %v1404 = vsel %vm1403, %v1350, 0.0
    %1405 = vst [vmem:[#allocation11] sm:$0xff] %v1404
    %v1406 = vsel %vm1398, 1, 0
    %1407 = vset.pattern.permute.xlu0 0
    %1408 = vperm.xlu0 %1407, %v1406
    %v1409 = vpop.permute.xlu0 %1408
    %vm1410 = vcmp.eq.s32.totalorder %v1409, 1
    %v1411 = vsel %vm1410, %v1396, 0.0
    %s1412 = scalar_lea.vmem [#allocation11], 144
    %1413 = vst [vmem:[%s1412 + $0x8] sm:$0xff] %v1411
    %v1414 = vpack.c.bf16 %v1404, %v1404
    %v1415 = vpack.c.bf16 %v1411, %v1411
    %v1416 = vld [vmem:[#allocation8] sm:$0xff]
    %v1417 = vld [vmem:[#allocation8 + $0x8] sm:$0xff]
    %v1418 = vld [vmem:[#allocation8 + $0x10] sm:$0xff]
    %v1419 = vld [vmem:[#allocation8 + $0x18] sm:$0xff]
    %v1420 = vld [vmem:[#allocation8 + $0x20] sm:$0xff]
    %v1421 = vld [vmem:[#allocation8 + $0x28] sm:$0xff]
    %v1422 = vld [vmem:[#allocation8 + $0x30] sm:$0xff]
    %v1423 = vld [vmem:[#allocation8 + $0x38] sm:$0xff]
    %v1424 = vld [vmem:[#allocation8 + $0x40] sm:$0xff]
    %v1425 = vld [vmem:[#allocation8 + $0x48] sm:$0xff]
    %v1426 = vld [vmem:[#allocation8 + $0x50] sm:$0xff]
    %v1427 = vld [vmem:[#allocation8 + $0x58] sm:$0xff]
    %v1428 = vld [vmem:[#allocation8 + $0x60] sm:$0xff]
    %v1429 = vld [vmem:[#allocation8 + $0x68] sm:$0xff]
    %v1430 = vld [vmem:[#allocation8 + $0x70] sm:$0xff]
    %v1431 = vld [vmem:[#allocation8 + $0x78] sm:$0xff]
    %v1432 = vld [vmem:[#allocation8 + $0x80] sm:$0xff]
    %v1433 = vld [vmem:[#allocation8 + $0x88] sm:$0xff]
    %v1434 = vld [vmem:[#allocation8 + $0x90] sm:$0xff]
    %v1435 = vld [vmem:[#allocation8 + $0x98] sm:$0xff]
    %v1436 = vld [vmem:[#allocation8 + $0xa0] sm:$0xff]
    %v1437 = vld [vmem:[#allocation8 + $0xa8] sm:$0xff]
    %v1438 = vld [vmem:[#allocation8 + $0xb0] sm:$0xff]
    %v1439 = vld [vmem:[#allocation8 + $0xb8] sm:$0xff]
    %v1440 = vld [vmem:[#allocation8 + $0xc0] sm:$0xff]
    %v1441 = vld [vmem:[#allocation8 + $0xc8] sm:$0xff]
    %v1442 = vld [vmem:[#allocation8 + $0xd0] sm:$0xff]
    %v1443 = vld [vmem:[#allocation8 + $0xd8] sm:$0xff]
    %v1444 = vld [vmem:[#allocation8 + $0xe0] sm:$0xff]
    %v1445 = vld [vmem:[#allocation8 + $0xe8] sm:$0xff]
    %v1446 = vld [vmem:[#allocation8 + $0xf0] sm:$0xff]
    %v1447 = vld [vmem:[#allocation8 + $0xf8] sm:$0xff]
    %v1448 = vld [vmem:[#allocation8 + $0x100] sm:$0xff]
    %v1449 = vld [vmem:[#allocation8 + $0x108] sm:$0xff]
    %v1450 = vld [vmem:[#allocation8 + $0x110] sm:$0xff]
    %v1451 = vld [vmem:[#allocation8 + $0x118] sm:$0xff]
    %v1452 = vld [vmem:[#allocation8 + $0x120] sm:$0xff]
    %v1453 = vld [vmem:[#allocation8 + $0x128] sm:$0xff]
    %v1454 = vld [vmem:[#allocation8 + $0x130] sm:$0xff]
    %v1455 = vld [vmem:[#allocation8 + $0x138] sm:$0xff]
    %v1456 = vld [vmem:[#allocation8 + $0x140] sm:$0xff]
    %v1457 = vld [vmem:[#allocation8 + $0x148] sm:$0xff]
    %v1458 = vld [vmem:[#allocation8 + $0x150] sm:$0xff]
    %v1459 = vld [vmem:[#allocation8 + $0x158] sm:$0xff]
    %v1460 = vld [vmem:[#allocation8 + $0x160] sm:$0xff]
    %v1461 = vld [vmem:[#allocation8 + $0x168] sm:$0xff]
    %v1462 = vld [vmem:[#allocation8 + $0x170] sm:$0xff]
    %v1463 = vld [vmem:[#allocation8 + $0x178] sm:$0xff]
    %v1464 = vld [vmem:[#allocation8 + $0x180] sm:$0xff]
    %v1465 = vld [vmem:[#allocation8 + $0x188] sm:$0xff]
    %v1466 = vld [vmem:[#allocation8 + $0x190] sm:$0xff]
    %v1467 = vld [vmem:[#allocation8 + $0x198] sm:$0xff]
    %v1468 = vld [vmem:[#allocation8 + $0x1a0] sm:$0xff]
    %v1469 = vld [vmem:[#allocation8 + $0x1a8] sm:$0xff]
    %v1470 = vld [vmem:[#allocation8 + $0x1b0] sm:$0xff]
    %v1471 = vld [vmem:[#allocation8 + $0x1b8] sm:$0xff]
    %v1472 = vld [vmem:[#allocation8 + $0x1c0] sm:$0xff]
    %v1473 = vld [vmem:[#allocation8 + $0x1c8] sm:$0xff]
    %v1474 = vld [vmem:[#allocation8 + $0x1d0] sm:$0xff]
    %v1475 = vld [vmem:[#allocation8 + $0x1d8] sm:$0xff]
    %v1476 = vld [vmem:[#allocation8 + $0x1e0] sm:$0xff]
    %v1477 = vld [vmem:[#allocation8 + $0x1e8] sm:$0xff]
    %v1478 = vld [vmem:[#allocation8 + $0x1f0] sm:$0xff]
    %v1479 = vld [vmem:[#allocation8 + $0x1f8] sm:$0xff]
    %v1480 = vld [vmem:[#allocation8 + $0x200] sm:$0xff]
    %v1481 = vld [vmem:[#allocation8 + $0x208] sm:$0xff]
    %v1482 = vld [vmem:[#allocation8 + $0x210] sm:$0xff]
    %v1483 = vld [vmem:[#allocation8 + $0x218] sm:$0xff]
    %v1484 = vld [vmem:[#allocation8 + $0x220] sm:$0xff]
    %v1485 = vld [vmem:[#allocation8 + $0x228] sm:$0xff]
    %v1486 = vld [vmem:[#allocation8 + $0x230] sm:$0xff]
    %v1487 = vld [vmem:[#allocation8 + $0x238] sm:$0xff]
    %v1488 = vld [vmem:[#allocation8 + $0x240] sm:$0xff]
    %v1489 = vld [vmem:[#allocation8 + $0x248] sm:$0xff]
    %v1490 = vld [vmem:[#allocation8 + $0x250] sm:$0xff]
    %v1491 = vld [vmem:[#allocation8 + $0x258] sm:$0xff]
    %v1492 = vld [vmem:[#allocation8 + $0x260] sm:$0xff]
    %v1493 = vld [vmem:[#allocation8 + $0x268] sm:$0xff]
    %v1494 = vld [vmem:[#allocation8 + $0x270] sm:$0xff]
    %v1495 = vld [vmem:[#allocation8 + $0x278] sm:$0xff]
    %v1496 = vld [vmem:[#allocation8 + $0x280] sm:$0xff]
    %v1497 = vld [vmem:[#allocation8 + $0x288] sm:$0xff]
    %v1498 = vld [vmem:[#allocation8 + $0x290] sm:$0xff]
    %v1499 = vld [vmem:[#allocation8 + $0x298] sm:$0xff]
    %v1500 = vld [vmem:[#allocation8 + $0x2a0] sm:$0xff]
    %v1501 = vld [vmem:[#allocation8 + $0x2a8] sm:$0xff]
    %v1502 = vld [vmem:[#allocation8 + $0x2b0] sm:$0xff]
    %v1503 = vld [vmem:[#allocation8 + $0x2b8] sm:$0xff]
    %v1504 = vld [vmem:[#allocation8 + $0x2c0] sm:$0xff]
    %v1505 = vld [vmem:[#allocation8 + $0x2c8] sm:$0xff]
    %v1506 = vld [vmem:[#allocation8 + $0x2d0] sm:$0xff]
    %v1507 = vld [vmem:[#allocation8 + $0x2d8] sm:$0xff]
    %v1508 = vld [vmem:[#allocation8 + $0x2e0] sm:$0xff]
    %v1509 = vld [vmem:[#allocation8 + $0x2e8] sm:$0xff]
    %v1510 = vld [vmem:[#allocation8 + $0x2f0] sm:$0xff]
    %v1511 = vld [vmem:[#allocation8 + $0x2f8] sm:$0xff]
    %v1512 = vld [vmem:[%s5] sm:$0x3f]
    %v1514 = vperm.slane %v1512, 0
    %v1515 = vperm.slane %v1512, 1
    %v1516 = vperm.slane %v1512, 2
    %v1517 = vperm.slane %v1512, 3
    %v1518 = vperm.slane %v1512, 4
    %v1519 = vperm.slane %v1512, 5
    %v1622 = vunpack.c.l.b16 %v1416
    %v1623 = vunpack.c.h.b16 %v1416
    %v1624 = vunpack.c.l.b16 %v1417
    %v1625 = vunpack.c.h.b16 %v1417
    %v1626 = vunpack.c.l.b16 %v1418
    %v1627 = vunpack.c.h.b16 %v1418
    %v1628 = vunpack.c.l.b16 %v1419
    %v1629 = vunpack.c.h.b16 %v1419
    %v1630 = vunpack.c.l.b16 %v1420
    %v1631 = vunpack.c.h.b16 %v1420
    %v1632 = vunpack.c.l.b16 %v1421
    %v1633 = vunpack.c.h.b16 %v1421
    %v1634 = vunpack.c.l.b16 %v1422
    %v1635 = vunpack.c.h.b16 %v1422
    %v1636 = vunpack.c.l.b16 %v1423
    %v1637 = vunpack.c.h.b16 %v1423
    %v1638 = vunpack.c.l.b16 %v1424
    %v1639 = vunpack.c.h.b16 %v1424
    %v1640 = vunpack.c.l.b16 %v1425
    %v1641 = vunpack.c.h.b16 %v1425
    %v1642 = vunpack.c.l.b16 %v1426
    %v1643 = vunpack.c.h.b16 %v1426
    %v1644 = vunpack.c.l.b16 %v1427
    %v1645 = vunpack.c.h.b16 %v1427
    %v1646 = vunpack.c.l.b16 %v1428
    %v1647 = vunpack.c.h.b16 %v1428
    %v1648 = vunpack.c.l.b16 %v1429
    %v1649 = vunpack.c.h.b16 %v1429
    %v1650 = vunpack.c.l.b16 %v1430
    %v1651 = vunpack.c.h.b16 %v1430
    %v1652 = vunpack.c.l.b16 %v1431
    %v1653 = vunpack.c.h.b16 %v1431
    %v1654 = vunpack.c.l.b16 %v1432
    %v1655 = vunpack.c.h.b16 %v1432
    %v1656 = vunpack.c.l.b16 %v1433
    %v1657 = vunpack.c.h.b16 %v1433
    %v1658 = vunpack.c.l.b16 %v1434
    %v1659 = vunpack.c.h.b16 %v1434
    %v1660 = vunpack.c.l.b16 %v1435
    %v1661 = vunpack.c.h.b16 %v1435
    %v1662 = vunpack.c.l.b16 %v1436
    %v1663 = vunpack.c.h.b16 %v1436
    %v1664 = vunpack.c.l.b16 %v1437
    %v1665 = vunpack.c.h.b16 %v1437
    %v1666 = vunpack.c.l.b16 %v1438
    %v1667 = vunpack.c.h.b16 %v1438
    %v1668 = vunpack.c.l.b16 %v1439
    %v1669 = vunpack.c.h.b16 %v1439
    %v1670 = vunpack.c.l.b16 %v1440
    %v1671 = vunpack.c.h.b16 %v1440
    %v1672 = vunpack.c.l.b16 %v1441
    %v1673 = vunpack.c.h.b16 %v1441
    %v1674 = vunpack.c.l.b16 %v1442
    %v1675 = vunpack.c.h.b16 %v1442
    %v1676 = vunpack.c.l.b16 %v1443
    %v1677 = vunpack.c.h.b16 %v1443
    %v1678 = vunpack.c.l.b16 %v1444
    %v1679 = vunpack.c.h.b16 %v1444
    %v1680 = vunpack.c.l.b16 %v1445
    %v1681 = vunpack.c.h.b16 %v1445
    %v1682 = vunpack.c.l.b16 %v1446
    %v1683 = vunpack.c.h.b16 %v1446
    %v1684 = vunpack.c.l.b16 %v1447
    %v1685 = vunpack.c.h.b16 %v1447
    %v1686 = vunpack.c.l.b16 %v1448
    %v1687 = vunpack.c.h.b16 %v1448
    %v1688 = vunpack.c.l.b16 %v1449
    %v1689 = vunpack.c.h.b16 %v1449
    %v1690 = vunpack.c.l.b16 %v1450
    %v1691 = vunpack.c.h.b16 %v1450
    %v1692 = vunpack.c.l.b16 %v1451
    %v1693 = vunpack.c.h.b16 %v1451
    %v1694 = vunpack.c.l.b16 %v1452
    %v1695 = vunpack.c.h.b16 %v1452
    %v1696 = vunpack.c.l.b16 %v1453
    %v1697 = vunpack.c.h.b16 %v1453
    %v1698 = vunpack.c.l.b16 %v1454
    %v1699 = vunpack.c.h.b16 %v1454
    %v1700 = vunpack.c.l.b16 %v1455
    %v1701 = vunpack.c.h.b16 %v1455
    %v1702 = vunpack.c.l.b16 %v1456
    %v1703 = vunpack.c.h.b16 %v1456
    %v1704 = vunpack.c.l.b16 %v1457
    %v1705 = vunpack.c.h.b16 %v1457
    %v1706 = vunpack.c.l.b16 %v1458
    %v1707 = vunpack.c.h.b16 %v1458
    %v1708 = vunpack.c.l.b16 %v1459
    %v1709 = vunpack.c.h.b16 %v1459
    %v1710 = vunpack.c.l.b16 %v1460
    %v1711 = vunpack.c.h.b16 %v1460
    %v1712 = vunpack.c.l.b16 %v1461
    %v1713 = vunpack.c.h.b16 %v1461
    %v1714 = vunpack.c.l.b16 %v1462
    %v1715 = vunpack.c.h.b16 %v1462
    %v1716 = vunpack.c.l.b16 %v1463
    %v1717 = vunpack.c.h.b16 %v1463
    %v1718 = vunpack.c.l.b16 %v1464
    %v1719 = vunpack.c.h.b16 %v1464
    %v1720 = vunpack.c.l.b16 %v1465
    %v1721 = vunpack.c.h.b16 %v1465
    %v1722 = vunpack.c.l.b16 %v1466
    %v1723 = vunpack.c.h.b16 %v1466
    %v1724 = vunpack.c.l.b16 %v1467
    %v1725 = vunpack.c.h.b16 %v1467
    %v1726 = vunpack.c.l.b16 %v1468
    %v1727 = vunpack.c.h.b16 %v1468
    %v1728 = vunpack.c.l.b16 %v1469
    %v1729 = vunpack.c.h.b16 %v1469
    %v1730 = vunpack.c.l.b16 %v1470
    %v1731 = vunpack.c.h.b16 %v1470
    %v1732 = vunpack.c.l.b16 %v1471
    %v1733 = vunpack.c.h.b16 %v1471
    %v1734 = vunpack.c.l.b16 %v1472
    %v1735 = vunpack.c.h.b16 %v1472
    %v1736 = vunpack.c.l.b16 %v1473
    %v1737 = vunpack.c.h.b16 %v1473
    %v1738 = vunpack.c.l.b16 %v1474
    %v1739 = vunpack.c.h.b16 %v1474
    %v1740 = vunpack.c.l.b16 %v1475
    %v1741 = vunpack.c.h.b16 %v1475
    %v1742 = vunpack.c.l.b16 %v1476
    %v1743 = vunpack.c.h.b16 %v1476
    %v1744 = vunpack.c.l.b16 %v1477
    %v1745 = vunpack.c.h.b16 %v1477
    %v1746 = vunpack.c.l.b16 %v1478
    %v1747 = vunpack.c.h.b16 %v1478
    %v1748 = vunpack.c.l.b16 %v1479
    %v1749 = vunpack.c.h.b16 %v1479
    %v1750 = vunpack.c.l.b16 %v1480
    %v1751 = vunpack.c.h.b16 %v1480
    %v1752 = vunpack.c.l.b16 %v1481
    %v1753 = vunpack.c.h.b16 %v1481
    %v1754 = vunpack.c.l.b16 %v1482
    %v1755 = vunpack.c.h.b16 %v1482
    %v1756 = vunpack.c.l.b16 %v1483
    %v1757 = vunpack.c.h.b16 %v1483
    %v1758 = vunpack.c.l.b16 %v1484
    %v1759 = vunpack.c.h.b16 %v1484
    %v1760 = vunpack.c.l.b16 %v1485
    %v1761 = vunpack.c.h.b16 %v1485
    %v1762 = vunpack.c.l.b16 %v1486
    %v1763 = vunpack.c.h.b16 %v1486
    %v1764 = vunpack.c.l.b16 %v1487
    %v1765 = vunpack.c.h.b16 %v1487
    %v1766 = vunpack.c.l.b16 %v1488
    %v1767 = vunpack.c.h.b16 %v1488
    %v1768 = vunpack.c.l.b16 %v1489
    %v1769 = vunpack.c.h.b16 %v1489
    %v1770 = vunpack.c.l.b16 %v1490
    %v1771 = vunpack.c.h.b16 %v1490
    %v1772 = vunpack.c.l.b16 %v1491
    %v1773 = vunpack.c.h.b16 %v1491
    %v1774 = vunpack.c.l.b16 %v1492
    %v1775 = vunpack.c.h.b16 %v1492
    %v1776 = vunpack.c.l.b16 %v1493
    %v1777 = vunpack.c.h.b16 %v1493
    %v1778 = vunpack.c.l.b16 %v1494
    %v1779 = vunpack.c.h.b16 %v1494
    %v1780 = vunpack.c.l.b16 %v1495
    %v1781 = vunpack.c.h.b16 %v1495
    %v1782 = vunpack.c.l.b16 %v1496
    %v1783 = vunpack.c.h.b16 %v1496
    %v1784 = vunpack.c.l.b16 %v1497
    %v1785 = vunpack.c.h.b16 %v1497
    %v1786 = vunpack.c.l.b16 %v1498
    %v1787 = vunpack.c.h.b16 %v1498
    %v1788 = vunpack.c.l.b16 %v1499
    %v1789 = vunpack.c.h.b16 %v1499
    %v1790 = vunpack.c.l.b16 %v1500
    %v1791 = vunpack.c.h.b16 %v1500
    %v1792 = vunpack.c.l.b16 %v1501
    %v1793 = vunpack.c.h.b16 %v1501
    %v1794 = vunpack.c.l.b16 %v1502
    %v1795 = vunpack.c.h.b16 %v1502
    %v1796 = vunpack.c.l.b16 %v1503
    %v1797 = vunpack.c.h.b16 %v1503
    %v1798 = vunpack.c.l.b16 %v1504
    %v1799 = vunpack.c.h.b16 %v1504
    %v1800 = vunpack.c.l.b16 %v1505
    %v1801 = vunpack.c.h.b16 %v1505
    %v1802 = vunpack.c.l.b16 %v1506
    %v1803 = vunpack.c.h.b16 %v1506
    %v1804 = vunpack.c.l.b16 %v1507
    %v1805 = vunpack.c.h.b16 %v1507
    %v1806 = vunpack.c.l.b16 %v1508
    %v1807 = vunpack.c.h.b16 %v1508
    %v1808 = vunpack.c.l.b16 %v1509
    %v1809 = vunpack.c.h.b16 %v1509
    %v1810 = vunpack.c.l.b16 %v1510
    %v1811 = vunpack.c.h.b16 %v1510
    %v1812 = vunpack.c.l.b16 %v1511
    %v1813 = vunpack.c.h.b16 %v1511
    %v1814 = vpack.c.b16 %v1628, %v1622
    %v1815 = vpack.c.b16 %v1629, %v1623
    %v1816 = vpack.c.b16 %v1630, %v1624
    %v1817 = vpack.c.b16 %v1631, %v1625
    %v1818 = vpack.c.b16 %v1632, %v1626
    %v1819 = vpack.c.b16 %v1633, %v1627
    %v1820 = vpack.c.b16 %v1640, %v1634
    %v1821 = vpack.c.b16 %v1641, %v1635
    %v1822 = vpack.c.b16 %v1642, %v1636
    %v1823 = vpack.c.b16 %v1643, %v1637
    %v1824 = vpack.c.b16 %v1644, %v1638
    %v1825 = vpack.c.b16 %v1645, %v1639
    %v1826 = vpack.c.b16 %v1652, %v1646
    %v1827 = vpack.c.b16 %v1653, %v1647
    %v1828 = vpack.c.b16 %v1654, %v1648
    %v1829 = vpack.c.b16 %v1655, %v1649
    %v1830 = vpack.c.b16 %v1656, %v1650
    %v1831 = vpack.c.b16 %v1657, %v1651
    %v1832 = vpack.c.b16 %v1664, %v1658
    %v1833 = vpack.c.b16 %v1665, %v1659
    %v1834 = vpack.c.b16 %v1666, %v1660
    %v1835 = vpack.c.b16 %v1667, %v1661
    %v1836 = vpack.c.b16 %v1668, %v1662
    %v1837 = vpack.c.b16 %v1669, %v1663
    %v1838 = vpack.c.b16 %v1676, %v1670
    %v1839 = vpack.c.b16 %v1677, %v1671
    %v1840 = vpack.c.b16 %v1678, %v1672
    %v1841 = vpack.c.b16 %v1679, %v1673
    %v1842 = vpack.c.b16 %v1680, %v1674
    %v1843 = vpack.c.b16 %v1681, %v1675
    %v1844 = vpack.c.b16 %v1688, %v1682
    %v1845 = vpack.c.b16 %v1689, %v1683
    %v1846 = vpack.c.b16 %v1690, %v1684
    %v1847 = vpack.c.b16 %v1691, %v1685
    %v1848 = vpack.c.b16 %v1692, %v1686
    %v1849 = vpack.c.b16 %v1693, %v1687
    %v1850 = vpack.c.b16 %v1700, %v1694
    %v1851 = vpack.c.b16 %v1701, %v1695
    %v1852 = vpack.c.b16 %v1702, %v1696
    %v1853 = vpack.c.b16 %v1703, %v1697
    %v1854 = vpack.c.b16 %v1704, %v1698
    %v1855 = vpack.c.b16 %v1705, %v1699
    %v1856 = vpack.c.b16 %v1712, %v1706
    %v1857 = vpack.c.b16 %v1713, %v1707
    %v1858 = vpack.c.b16 %v1714, %v1708
    %v1859 = vpack.c.b16 %v1715, %v1709
    %v1860 = vpack.c.b16 %v1716, %v1710
    %v1861 = vpack.c.b16 %v1717, %v1711
    %v1862 = vpack.c.b16 %v1724, %v1718
    %v1863 = vpack.c.b16 %v1725, %v1719
    %v1864 = vpack.c.b16 %v1726, %v1720
    %v1865 = vpack.c.b16 %v1727, %v1721
    %v1866 = vpack.c.b16 %v1728, %v1722
    %v1867 = vpack.c.b16 %v1729, %v1723
    %v1868 = vpack.c.b16 %v1736, %v1730
    %v1869 = vpack.c.b16 %v1737, %v1731
    %v1870 = vpack.c.b16 %v1738, %v1732
    %v1871 = vpack.c.b16 %v1739, %v1733
    %v1872 = vpack.c.b16 %v1740, %v1734
    %v1873 = vpack.c.b16 %v1741, %v1735
    %v1874 = vpack.c.b16 %v1748, %v1742
    %v1875 = vpack.c.b16 %v1749, %v1743
    %v1876 = vpack.c.b16 %v1750, %v1744
    %v1877 = vpack.c.b16 %v1751, %v1745
    %v1878 = vpack.c.b16 %v1752, %v1746
    %v1879 = vpack.c.b16 %v1753, %v1747
    %v1880 = vpack.c.b16 %v1760, %v1754
    %v1881 = vpack.c.b16 %v1761, %v1755
    %v1882 = vpack.c.b16 %v1762, %v1756
    %v1883 = vpack.c.b16 %v1763, %v1757
    %v1884 = vpack.c.b16 %v1764, %v1758
    %v1885 = vpack.c.b16 %v1765, %v1759
    %v1886 = vpack.c.b16 %v1772, %v1766
    %v1887 = vpack.c.b16 %v1773, %v1767
    %v1888 = vpack.c.b16 %v1774, %v1768
    %v1889 = vpack.c.b16 %v1775, %v1769
    %v1890 = vpack.c.b16 %v1776, %v1770
    %v1891 = vpack.c.b16 %v1777, %v1771
    %v1892 = vpack.c.b16 %v1784, %v1778
    %v1893 = vpack.c.b16 %v1785, %v1779
    %v1894 = vpack.c.b16 %v1786, %v1780
    %v1895 = vpack.c.b16 %v1787, %v1781
    %v1896 = vpack.c.b16 %v1788, %v1782
    %v1897 = vpack.c.b16 %v1789, %v1783
    %v1898 = vpack.c.b16 %v1796, %v1790
    %v1899 = vpack.c.b16 %v1797, %v1791
    %v1900 = vpack.c.b16 %v1798, %v1792
    %v1901 = vpack.c.b16 %v1799, %v1793
    %v1902 = vpack.c.b16 %v1800, %v1794
    %v1903 = vpack.c.b16 %v1801, %v1795
    %v1904 = vpack.c.b16 %v1808, %v1802
    %v1905 = vpack.c.b16 %v1809, %v1803
    %v1906 = vpack.c.b16 %v1810, %v1804
    %v1907 = vpack.c.b16 %v1811, %v1805
    %v1908 = vpack.c.b16 %v1812, %v1806
    %v1909 = vpack.c.b16 %v1813, %v1807
    %2006 = vmatpush.bf16.msra.mxu0 %v1856
    %2007 = vmatpush.bf16.msra.mxu0 %v1850
    %2008 = vmatpush.bf16.msra.mxu0 %v1844
    %2009 = vmatpush.bf16.msra.mxu0 %v1838
    %2010 = vmatpush.bf16.msra.mxu0 %v1832
    %2011 = vmatpush.bf16.msra.mxu0 %v1826
    %2012 = vmatpush.bf16.msra.mxu0 %v1820
    %2013 = vmatpush.bf16.msra.mxu0 %v1814
    %2014 = vmatmul.bf16.gmra.mxu0 %v1414
    %v2015 = vpop.f32.mrf.mxu0
    %v2016 = vadd.f32 %v1514, %v2015
    %v2017 = vpop.f32.mrf.mxu0
    %2018 = vdwg.mxu0
    %2019 = vmatpush.bf16.msra.mxu0 %v1904
    %2020 = vmatpush.bf16.msra.mxu0 %v1898
    %2021 = vmatpush.bf16.msra.mxu0 %v1892
    %2022 = vmatpush.bf16.msra.mxu0 %v1886
    %2023 = vmatpush.bf16.msra.mxu0 %v1880
    %2024 = vmatpush.bf16.msra.mxu0 %v1874
    %2025 = vmatpush.bf16.msra.mxu0 %v1868
    %2026 = vmatpush.bf16.msra.mxu0 %v1862
    %2027 = vmatmul.bf16.gmra.mxu0 %v1415
    %v2028 = vpop.f32.mrf.mxu0
    %v2029 = vadd.f32 %v2016, %v2028
    %v2030 = vpop.f32.mrf.mxu0
    %2031 = vdwg.mxu0
    %2032 = vmatpush.bf16.msra.mxu0 %v1857
    %2033 = vmatpush.bf16.msra.mxu0 %v1851
    %2034 = vmatpush.bf16.msra.mxu0 %v1845
    %2035 = vmatpush.bf16.msra.mxu0 %v1839
    %2036 = vmatpush.bf16.msra.mxu0 %v1833
    %2037 = vmatpush.bf16.msra.mxu0 %v1827
    %2038 = vmatpush.bf16.msra.mxu0 %v1821
    %2039 = vmatpush.bf16.msra.mxu0 %v1815
    %2040 = vmatmul.bf16.gmra.mxu0 %v1414
    %v2041 = vpop.f32.mrf.mxu0
    %v2042 = vadd.f32 %v1515, %v2041
    %v2043 = vpop.f32.mrf.mxu0
    %2044 = vdwg.mxu0
    %2045 = vmatpush.bf16.msra.mxu0 %v1905
    %2046 = vmatpush.bf16.msra.mxu0 %v1899
    %2047 = vmatpush.bf16.msra.mxu0 %v1893
    %2048 = vmatpush.bf16.msra.mxu0 %v1887
    %2049 = vmatpush.bf16.msra.mxu0 %v1881
    %2050 = vmatpush.bf16.msra.mxu0 %v1875
    %2051 = vmatpush.bf16.msra.mxu0 %v1869
    %2052 = vmatpush.bf16.msra.mxu0 %v1863
    %2053 = vmatmul.bf16.gmra.mxu0 %v1415
    %v2054 = vpop.f32.mrf.mxu0
    %v2055 = vadd.f32 %v2042, %v2054
    %v2056 = vpop.f32.mrf.mxu0
    %2057 = vdwg.mxu0
    %2058 = vmatpush.bf16.msra.mxu0 %v1858
    %2059 = vmatpush.bf16.msra.mxu0 %v1852
    %2060 = vmatpush.bf16.msra.mxu0 %v1846
    %2061 = vmatpush.bf16.msra.mxu0 %v1840
    %2062 = vmatpush.bf16.msra.mxu0 %v1834
    %2063 = vmatpush.bf16.msra.mxu0 %v1828
    %2064 = vmatpush.bf16.msra.mxu0 %v1822
    %2065 = vmatpush.bf16.msra.mxu0 %v1816
    %2066 = vmatmul.bf16.gmra.mxu0 %v1414
    %v2067 = vpop.f32.mrf.mxu0
    %v2068 = vadd.f32 %v1516, %v2067
    %v2069 = vpop.f32.mrf.mxu0
    %2070 = vdwg.mxu0
    %2071 = vmatpush.bf16.msra.mxu0 %v1906
    %2072 = vmatpush.bf16.msra.mxu0 %v1900
    %2073 = vmatpush.bf16.msra.mxu0 %v1894
    %2074 = vmatpush.bf16.msra.mxu0 %v1888
    %2075 = vmatpush.bf16.msra.mxu0 %v1882
    %2076 = vmatpush.bf16.msra.mxu0 %v1876
    %2077 = vmatpush.bf16.msra.mxu0 %v1870
    %2078 = vmatpush.bf16.msra.mxu0 %v1864
    %2079 = vmatmul.bf16.gmra.mxu0 %v1415
    %v2080 = vpop.f32.mrf.mxu0
    %v2081 = vadd.f32 %v2068, %v2080
    %v2082 = vpop.f32.mrf.mxu0
    %2083 = vdwg.mxu0
    %2084 = vmatpush.bf16.msra.mxu0 %v1859
    %2085 = vmatpush.bf16.msra.mxu0 %v1853
    %2086 = vmatpush.bf16.msra.mxu0 %v1847
    %2087 = vmatpush.bf16.msra.mxu0 %v1841
    %2088 = vmatpush.bf16.msra.mxu0 %v1835
    %2089 = vmatpush.bf16.msra.mxu0 %v1829
    %2090 = vmatpush.bf16.msra.mxu0 %v1823
    %2091 = vmatpush.bf16.msra.mxu0 %v1817
    %2092 = vmatmul.bf16.gmra.mxu0 %v1414
    %v2093 = vpop.f32.mrf.mxu0
    %v2094 = vadd.f32 %v1517, %v2093
    %v2095 = vpop.f32.mrf.mxu0
    %2096 = vdwg.mxu0
    %2097 = vmatpush.bf16.msra.mxu0 %v1907
    %2098 = vmatpush.bf16.msra.mxu0 %v1901
    %2099 = vmatpush.bf16.msra.mxu0 %v1895
    %2100 = vmatpush.bf16.msra.mxu0 %v1889
    %2101 = vmatpush.bf16.msra.mxu0 %v1883
    %2102 = vmatpush.bf16.msra.mxu0 %v1877
    %2103 = vmatpush.bf16.msra.mxu0 %v1871
    %2104 = vmatpush.bf16.msra.mxu0 %v1865
    %2105 = vmatmul.bf16.gmra.mxu0 %v1415
    %v2106 = vpop.f32.mrf.mxu0
    %v2107 = vadd.f32 %v2094, %v2106
    %v2108 = vpop.f32.mrf.mxu0
    %2109 = vdwg.mxu0
    %2110 = vmatpush.bf16.msra.mxu0 %v1860
    %2111 = vmatpush.bf16.msra.mxu0 %v1854
    %2112 = vmatpush.bf16.msra.mxu0 %v1848
    %2113 = vmatpush.bf16.msra.mxu0 %v1842
    %2114 = vmatpush.bf16.msra.mxu0 %v1836
    %2115 = vmatpush.bf16.msra.mxu0 %v1830
    %2116 = vmatpush.bf16.msra.mxu0 %v1824
    %2117 = vmatpush.bf16.msra.mxu0 %v1818
    %2118 = vmatmul.bf16.gmra.mxu0 %v1414
    %v2119 = vpop.f32.mrf.mxu0
    %v2120 = vadd.f32 %v1518, %v2119
    %v2121 = vpop.f32.mrf.mxu0
    %2122 = vdwg.mxu0
    %2123 = vmatpush.bf16.msra.mxu0 %v1908
    %2124 = vmatpush.bf16.msra.mxu0 %v1902
    %2125 = vmatpush.bf16.msra.mxu0 %v1896
    %2126 = vmatpush.bf16.msra.mxu0 %v1890
    %2127 = vmatpush.bf16.msra.mxu0 %v1884
    %2128 = vmatpush.bf16.msra.mxu0 %v1878
    %2129 = vmatpush.bf16.msra.mxu0 %v1872
    %2130 = vmatpush.bf16.msra.mxu0 %v1866
    %2131 = vmatmul.bf16.gmra.mxu0 %v1415
    %v2132 = vpop.f32.mrf.mxu0
    %v2133 = vadd.f32 %v2120, %v2132
    %v2134 = vpop.f32.mrf.mxu0
    %2135 = vdwg.mxu0
    %2136 = vmatpush.bf16.msra.mxu0 %v1861
    %2137 = vmatpush.bf16.msra.mxu0 %v1855
    %2138 = vmatpush.bf16.msra.mxu0 %v1849
    %2139 = vmatpush.bf16.msra.mxu0 %v1843
    %2140 = vmatpush.bf16.msra.mxu0 %v1837
    %2141 = vmatpush.bf16.msra.mxu0 %v1831
    %2142 = vmatpush.bf16.msra.mxu0 %v1825
    %2143 = vmatpush.bf16.msra.mxu0 %v1819
    %2144 = vmatmul.bf16.gmra.mxu0 %v1414
    %v2145 = vpop.f32.mrf.mxu0
    %v2146 = vadd.f32 %v1519, %v2145
    %v2147 = vpop.f32.mrf.mxu0
    %2148 = vdwg.mxu0
    %2149 = vmatpush.bf16.msra.mxu0 %v1909
    %2150 = vmatpush.bf16.msra.mxu0 %v1903
    %2151 = vmatpush.bf16.msra.mxu0 %v1897
    %2152 = vmatpush.bf16.msra.mxu0 %v1891
    %2153 = vmatpush.bf16.msra.mxu0 %v1885
    %2154 = vmatpush.bf16.msra.mxu0 %v1879
    %2155 = vmatpush.bf16.msra.mxu0 %v1873
    %2156 = vmatpush.bf16.msra.mxu0 %v1867
    %2157 = vmatmul.bf16.gmra.mxu0 %v1415
    %v2158 = vpop.f32.mrf.mxu0
    %v2159 = vadd.f32 %v2146, %v2158
    %v2160 = vpop.f32.mrf.mxu0
    %2161 = vdwg.mxu0
    %s2162 = scalar_lea.vmem [#allocation2], 48
    %v2163 = vld [vmem:[%s2162] sm:$0xff]
    %v2164 = vld [vmem:[%s2162 + $0x8] sm:$0xff]
    %v2165 = vld [vmem:[%s2162 + $0x10] sm:$0xff]
    %s2166 = scalar_lea.vmem [#allocation2], 384
    %v2167 = vld [vmem:[%s2166 + $0x18] sm:$0xff]
    %v2168 = vld [vmem:[%s2166 + $0x20] sm:$0xff]
    %v2169 = vld [vmem:[%s2166 + $0x28] sm:$0xff]
    %v2170 = vadd.f32 %v2163, %v2029
    %v2171 = vxor.u32 %v2170, 2147483648
    %v2172 = vmul.f32 %v2171, 1.442695
    %v2173 = vpow.pop %v2172
    %v2174 = vadd.f32 %v2173, 1.0
    %v2175 = vrcp.pop %v2174
    %v2176 = vmul.f32 %v2174, %v2175
    %v2177 = vsub.f32 1.0, %v2176
    %v2178 = vmul.f32 %v2175, %v2177
    %v2179 = vadd.f32 %v2175, %v2178
    %vm2180 = vweird.f32 %v2174
    %vm2181 = vweird.f32 %v2175
    %vm2182 = vmor %vm2180, %vm2181
    %v2183 = vsel %vm2182, %v2175, %v2179
    %v2184 = vand.u32 2147483647, %v2174
    %vm2185 = vcmp.eq.f32.partialorder %v2184, 8.507059e+37
    %v2186 = vand.u32 %v2174, 2147483648
    %v2187 = vor.u32 1.1754944e-38, %v2186
    %v2188 = vsel %vm2185, %v2187, %v2183
    %v2189 = vmul.f32 1.0, %v2188
    %v2190 = vadd.f32 %v2164, %v2055
    %v2191 = vxor.u32 %v2190, 2147483648
    %v2192 = vmul.f32 %v2191, 1.442695
    %v2193 = vpow.pop %v2192
    %v2194 = vadd.f32 %v2193, 1.0
    %v2195 = vrcp.pop %v2194
    %v2196 = vmul.f32 %v2194, %v2195
    %v2197 = vsub.f32 1.0, %v2196
    %v2198 = vmul.f32 %v2195, %v2197
    %v2199 = vadd.f32 %v2195, %v2198
    %vm2200 = vweird.f32 %v2194
    %vm2201 = vweird.f32 %v2195
    %vm2202 = vmor %vm2200, %vm2201
    %v2203 = vsel %vm2202, %v2195, %v2199
    %v2204 = vand.u32 2147483647, %v2194
    %vm2205 = vcmp.eq.f32.partialorder %v2204, 8.507059e+37
    %v2206 = vand.u32 %v2194, 2147483648
    %v2207 = vor.u32 1.1754944e-38, %v2206
    %v2208 = vsel %vm2205, %v2207, %v2203
    %v2209 = vmul.f32 1.0, %v2208
    %v2210 = vmul.f32 %v2189, %v2081
    %v2211 = vadd.f32 %v2165, %v2210
    %v2212 = vtanh.pop %v2211
    %v2213 = vsub.f32 %v1404, %v2212
    %v2214 = vmul.f32 %v2209, %v2213
    %v2215 = vadd.f32 %v2212, %v2214
    %v2216 = vadd.f32 %v2167, %v2107
    %v2217 = vxor.u32 %v2216, 2147483648
    %v2218 = vmul.f32 %v2217, 1.442695
    %v2219 = vpow.pop %v2218
    %v2220 = vadd.f32 %v2219, 1.0
    %v2221 = vrcp.pop %v2220
    %v2222 = vmul.f32 %v2220, %v2221
    %v2223 = vsub.f32 1.0, %v2222
    %v2224 = vmul.f32 %v2221, %v2223
    %v2225 = vadd.f32 %v2221, %v2224
    %vm2226 = vweird.f32 %v2220
    %vm2227 = vweird.f32 %v2221
    %vm2228 = vmor %vm2226, %vm2227
    %v2229 = vsel %vm2228, %v2221, %v2225
    %v2230 = vand.u32 2147483647, %v2220
    %vm2231 = vcmp.eq.f32.partialorder %v2230, 8.507059e+37
    %v2232 = vand.u32 %v2220, 2147483648
    %v2233 = vor.u32 1.1754944e-38, %v2232
    %v2234 = vsel %vm2231, %v2233, %v2229
    %v2235 = vmul.f32 1.0, %v2234
    %v2236 = vadd.f32 %v2168, %v2133
    %v2237 = vxor.u32 %v2236, 2147483648
    %v2238 = vmul.f32 %v2237, 1.442695
    %v2239 = vpow.pop %v2238
    %v2240 = vadd.f32 %v2239, 1.0
    %v2241 = vrcp.pop %v2240
    %v2242 = vmul.f32 %v2240, %v2241
    %v2243 = vsub.f32 1.0, %v2242
    %v2244 = vmul.f32 %v2241, %v2243
    %v2245 = vadd.f32 %v2241, %v2244
    %vm2246 = vweird.f32 %v2240
    %vm2247 = vweird.f32 %v2241
    %vm2248 = vmor %vm2246, %vm2247
    %v2249 = vsel %vm2248, %v2241, %v2245
    %v2250 = vand.u32 2147483647, %v2240
    %vm2251 = vcmp.eq.f32.partialorder %v2250, 8.507059e+37
    %v2252 = vand.u32 %v2240, 2147483648
    %v2253 = vor.u32 1.1754944e-38, %v2252
    %v2254 = vsel %vm2251, %v2253, %v2249
    %v2255 = vmul.f32 1.0, %v2254
    %v2256 = vmul.f32 %v2235, %v2159
    %v2257 = vadd.f32 %v2169, %v2256
    %v2258 = vtanh.pop %v2257
    %v2259 = vsub.f32 %v1411, %v2258
    %v2260 = vmul.f32 %v2255, %v2259
    %v2261 = vadd.f32 %v2258, %v2260
    %vm2262 = vcmp.gt.s32.totalorder %v97, 1
    %vm2263 = vcmp.gt.s32.totalorder %v97, 8
    %v2264 = vsel %vm2262, 1, 0
    %2265 = vset.pattern.permute.xlu0 0
    %2266 = vperm.xlu0 %2265, %v2264
    %v2267 = vpop.permute.xlu0 %2266
    %vm2268 = vcmp.eq.s32.totalorder %v2267, 1
    %v2269 = vsel %vm2268, %v2215, 0.0
    %s2270 = scalar_lea.vmem [#allocation11], 16
    %2271 = vst [vmem:[%s2270] sm:$0xff] %v2269
    %v2272 = vsel %vm2263, 1, 0
    %2273 = vset.pattern.permute.xlu0 0
    %2274 = vperm.xlu0 %2273, %v2272
    %v2275 = vpop.permute.xlu0 %2274
    %vm2276 = vcmp.eq.s32.totalorder %v2275, 1
    %v2277 = vsel %vm2276, %v2261, 0.0
    %s2278 = scalar_lea.vmem [#allocation11], 128
    %2279 = vst [vmem:[%s2278 + $0x8] sm:$0xff] %v2277
    %v2280 = vsel %vm2268, %v2215, %v1404
    %v2281 = vsel %vm2276, %v2261, %v1411
    %v2282 = vpack.c.bf16 %v2280, %v2280
    %v2283 = vpack.c.bf16 %v2281, %v2281
    %v2284 = vld [vmem:[#allocation8] sm:$0xff]
    %v2285 = vld [vmem:[#allocation8 + $0x8] sm:$0xff]
    %v2286 = vld [vmem:[#allocation8 + $0x10] sm:$0xff]
    %v2287 = vld [vmem:[#allocation8 + $0x18] sm:$0xff]
    %v2288 = vld [vmem:[#allocation8 + $0x20] sm:$0xff]
    %v2289 = vld [vmem:[#allocation8 + $0x28] sm:$0xff]
    %v2290 = vld [vmem:[#allocation8 + $0x30] sm:$0xff]
    %v2291 = vld [vmem:[#allocation8 + $0x38] sm:$0xff]
    %v2292 = vld [vmem:[#allocation8 + $0x40] sm:$0xff]
    %v2293 = vld [vmem:[#allocation8 + $0x48] sm:$0xff]
    %v2294 = vld [vmem:[#allocation8 + $0x50] sm:$0xff]
    %v2295 = vld [vmem:[#allocation8 + $0x58] sm:$0xff]
    %v2296 = vld [vmem:[#allocation8 + $0x60] sm:$0xff]
    %v2297 = vld [vmem:[#allocation8 + $0x68] sm:$0xff]
    %v2298 = vld [vmem:[#allocation8 + $0x70] sm:$0xff]
    %v2299 = vld [vmem:[#allocation8 + $0x78] sm:$0xff]
    %v2300 = vld [vmem:[#allocation8 + $0x80] sm:$0xff]
    %v2301 = vld [vmem:[#allocation8 + $0x88] sm:$0xff]
    %v2302 = vld [vmem:[#allocation8 + $0x90] sm:$0xff]
    %v2303 = vld [vmem:[#allocation8 + $0x98] sm:$0xff]
    %v2304 = vld [vmem:[#allocation8 + $0xa0] sm:$0xff]
    %v2305 = vld [vmem:[#allocation8 + $0xa8] sm:$0xff]
    %v2306 = vld [vmem:[#allocation8 + $0xb0] sm:$0xff]
    %v2307 = vld [vmem:[#allocation8 + $0xb8] sm:$0xff]
    %v2308 = vld [vmem:[#allocation8 + $0xc0] sm:$0xff]
    %v2309 = vld [vmem:[#allocation8 + $0xc8] sm:$0xff]
    %v2310 = vld [vmem:[#allocation8 + $0xd0] sm:$0xff]
    %v2311 = vld [vmem:[#allocation8 + $0xd8] sm:$0xff]
    %v2312 = vld [vmem:[#allocation8 + $0xe0] sm:$0xff]
    %v2313 = vld [vmem:[#allocation8 + $0xe8] sm:$0xff]
    %v2314 = vld [vmem:[#allocation8 + $0xf0] sm:$0xff]
    %v2315 = vld [vmem:[#allocation8 + $0xf8] sm:$0xff]
    %v2316 = vld [vmem:[#allocation8 + $0x100] sm:$0xff]
    %v2317 = vld [vmem:[#allocation8 + $0x108] sm:$0xff]
    %v2318 = vld [vmem:[#allocation8 + $0x110] sm:$0xff]
    %v2319 = vld [vmem:[#allocation8 + $0x118] sm:$0xff]
    %v2320 = vld [vmem:[#allocation8 + $0x120] sm:$0xff]
    %v2321 = vld [vmem:[#allocation8 + $0x128] sm:$0xff]
    %v2322 = vld [vmem:[#allocation8 + $0x130] sm:$0xff]
    %v2323 = vld [vmem:[#allocation8 + $0x138] sm:$0xff]
    %v2324 = vld [vmem:[#allocation8 + $0x140] sm:$0xff]
    %v2325 = vld [vmem:[#allocation8 + $0x148] sm:$0xff]
    %v2326 = vld [vmem:[#allocation8 + $0x150] sm:$0xff]
    %v2327 = vld [vmem:[#allocation8 + $0x158] sm:$0xff]
    %v2328 = vld [vmem:[#allocation8 + $0x160] sm:$0xff]
    %v2329 = vld [vmem:[#allocation8 + $0x168] sm:$0xff]
    %v2330 = vld [vmem:[#allocation8 + $0x170] sm:$0xff]
    %v2331 = vld [vmem:[#allocation8 + $0x178] sm:$0xff]
    %v2332 = vld [vmem:[#allocation8 + $0x180] sm:$0xff]
    %v2333 = vld [vmem:[#allocation8 + $0x188] sm:$0xff]
    %v2334 = vld [vmem:[#allocation8 + $0x190] sm:$0xff]
    %v2335 = vld [vmem:[#allocation8 + $0x198] sm:$0xff]
    %v2336 = vld [vmem:[#allocation8 + $0x1a0] sm:$0xff]
    %v2337 = vld [vmem:[#allocation8 + $0x1a8] sm:$0xff]
    %v2338 = vld [vmem:[#allocation8 + $0x1b0] sm:$0xff]
    %v2339 = vld [vmem:[#allocation8 + $0x1b8] sm:$0xff]
    %v2340 = vld [vmem:[#allocation8 + $0x1c0] sm:$0xff]
    %v2341 = vld [vmem:[#allocation8 + $0x1c8] sm:$0xff]
    %v2342 = vld [vmem:[#allocation8 + $0x1d0] sm:$0xff]
    %v2343 = vld [vmem:[#allocation8 + $0x1d8] sm:$0xff]
    %v2344 = vld [vmem:[#allocation8 + $0x1e0] sm:$0xff]
    %v2345 = vld [vmem:[#allocation8 + $0x1e8] sm:$0xff]
    %v2346 = vld [vmem:[#allocation8 + $0x1f0] sm:$0xff]
    %v2347 = vld [vmem:[#allocation8 + $0x1f8] sm:$0xff]
    %v2348 = vld [vmem:[#allocation8 + $0x200] sm:$0xff]
    %v2349 = vld [vmem:[#allocation8 + $0x208] sm:$0xff]
    %v2350 = vld [vmem:[#allocation8 + $0x210] sm:$0xff]
    %v2351 = vld [vmem:[#allocation8 + $0x218] sm:$0xff]
    %v2352 = vld [vmem:[#allocation8 + $0x220] sm:$0xff]
    %v2353 = vld [vmem:[#allocation8 + $0x228] sm:$0xff]
    %v2354 = vld [vmem:[#allocation8 + $0x230] sm:$0xff]
    %v2355 = vld [vmem:[#allocation8 + $0x238] sm:$0xff]
    %v2356 = vld [vmem:[#allocation8 + $0x240] sm:$0xff]
    %v2357 = vld [vmem:[#allocation8 + $0x248] sm:$0xff]
    %v2358 = vld [vmem:[#allocation8 + $0x250] sm:$0xff]
    %v2359 = vld [vmem:[#allocation8 + $0x258] sm:$0xff]
    %v2360 = vld [vmem:[#allocation8 + $0x260] sm:$0xff]
    %v2361 = vld [vmem:[#allocation8 + $0x268] sm:$0xff]
    %v2362 = vld [vmem:[#allocation8 + $0x270] sm:$0xff]
    %v2363 = vld [vmem:[#allocation8 + $0x278] sm:$0xff]
    %v2364 = vld [vmem:[#allocation8 + $0x280] sm:$0xff]
    %v2365 = vld [vmem:[#allocation8 + $0x288] sm:$0xff]
    %v2366 = vld [vmem:[#allocation8 + $0x290] sm:$0xff]
    %v2367 = vld [vmem:[#allocation8 + $0x298] sm:$0xff]
    %v2368 = vld [vmem:[#allocation8 + $0x2a0] sm:$0xff]
    %v2369 = vld [vmem:[#allocation8 + $0x2a8] sm:$0xff]
    %v2370 = vld [vmem:[#allocation8 + $0x2b0] sm:$0xff]
    %v2371 = vld [vmem:[#allocation8 + $0x2b8] sm:$0xff]
    %v2372 = vld [vmem:[#allocation8 + $0x2c0] sm:$0xff]
    %v2373 = vld [vmem:[#allocation8 + $0x2c8] sm:$0xff]
    %v2374 = vld [vmem:[#allocation8 + $0x2d0] sm:$0xff]
    %v2375 = vld [vmem:[#allocation8 + $0x2d8] sm:$0xff]
    %v2376 = vld [vmem:[#allocation8 + $0x2e0] sm:$0xff]
    %v2377 = vld [vmem:[#allocation8 + $0x2e8] sm:$0xff]
    %v2378 = vld [vmem:[#allocation8 + $0x2f0] sm:$0xff]
    %v2379 = vld [vmem:[#allocation8 + $0x2f8] sm:$0xff]
    %v2380 = vld [vmem:[%s5] sm:$0x3f]
    %v2382 = vperm.slane %v2380, 0
    %v2383 = vperm.slane %v2380, 1
    %v2384 = vperm.slane %v2380, 2
    %v2385 = vperm.slane %v2380, 3
    %v2386 = vperm.slane %v2380, 4
    %v2387 = vperm.slane %v2380, 5
    %v2490 = vunpack.c.l.b16 %v2284
    %v2491 = vunpack.c.h.b16 %v2284
    %v2492 = vunpack.c.l.b16 %v2285
    %v2493 = vunpack.c.h.b16 %v2285
    %v2494 = vunpack.c.l.b16 %v2286
    %v2495 = vunpack.c.h.b16 %v2286
    %v2496 = vunpack.c.l.b16 %v2287
    %v2497 = vunpack.c.h.b16 %v2287
    %v2498 = vunpack.c.l.b16 %v2288
    %v2499 = vunpack.c.h.b16 %v2288
    %v2500 = vunpack.c.l.b16 %v2289
    %v2501 = vunpack.c.h.b16 %v2289
    %v2502 = vunpack.c.l.b16 %v2290
    %v2503 = vunpack.c.h.b16 %v2290
    %v2504 = vunpack.c.l.b16 %v2291
    %v2505 = vunpack.c.h.b16 %v2291
    %v2506 = vunpack.c.l.b16 %v2292
    %v2507 = vunpack.c.h.b16 %v2292
    %v2508 = vunpack.c.l.b16 %v2293
    %v2509 = vunpack.c.h.b16 %v2293
    %v2510 = vunpack.c.l.b16 %v2294
    %v2511 = vunpack.c.h.b16 %v2294
    %v2512 = vunpack.c.l.b16 %v2295
    %v2513 = vunpack.c.h.b16 %v2295
    %v2514 = vunpack.c.l.b16 %v2296
    %v2515 = vunpack.c.h.b16 %v2296
    %v2516 = vunpack.c.l.b16 %v2297
    %v2517 = vunpack.c.h.b16 %v2297
    %v2518 = vunpack.c.l.b16 %v2298
    %v2519 = vunpack.c.h.b16 %v2298
    %v2520 = vunpack.c.l.b16 %v2299
    %v2521 = vunpack.c.h.b16 %v2299
    %v2522 = vunpack.c.l.b16 %v2300
    %v2523 = vunpack.c.h.b16 %v2300
    %v2524 = vunpack.c.l.b16 %v2301
    %v2525 = vunpack.c.h.b16 %v2301
    %v2526 = vunpack.c.l.b16 %v2302
    %v2527 = vunpack.c.h.b16 %v2302
    %v2528 = vunpack.c.l.b16 %v2303
    %v2529 = vunpack.c.h.b16 %v2303
    %v2530 = vunpack.c.l.b16 %v2304
    %v2531 = vunpack.c.h.b16 %v2304
    %v2532 = vunpack.c.l.b16 %v2305
    %v2533 = vunpack.c.h.b16 %v2305
    %v2534 = vunpack.c.l.b16 %v2306
    %v2535 = vunpack.c.h.b16 %v2306
    %v2536 = vunpack.c.l.b16 %v2307
    %v2537 = vunpack.c.h.b16 %v2307
    %v2538 = vunpack.c.l.b16 %v2308
    %v2539 = vunpack.c.h.b16 %v2308
    %v2540 = vunpack.c.l.b16 %v2309
    %v2541 = vunpack.c.h.b16 %v2309
    %v2542 = vunpack.c.l.b16 %v2310
    %v2543 = vunpack.c.h.b16 %v2310
    %v2544 = vunpack.c.l.b16 %v2311
    %v2545 = vunpack.c.h.b16 %v2311
    %v2546 = vunpack.c.l.b16 %v2312
    %v2547 = vunpack.c.h.b16 %v2312
    %v2548 = vunpack.c.l.b16 %v2313
    %v2549 = vunpack.c.h.b16 %v2313
    %v2550 = vunpack.c.l.b16 %v2314
    %v2551 = vunpack.c.h.b16 %v2314
    %v2552 = vunpack.c.l.b16 %v2315
    %v2553 = vunpack.c.h.b16 %v2315
    %v2554 = vunpack.c.l.b16 %v2316
    %v2555 = vunpack.c.h.b16 %v2316
    %v2556 = vunpack.c.l.b16 %v2317
    %v2557 = vunpack.c.h.b16 %v2317
    %v2558 = vunpack.c.l.b16 %v2318
    %v2559 = vunpack.c.h.b16 %v2318
    %v2560 = vunpack.c.l.b16 %v2319
    %v2561 = vunpack.c.h.b16 %v2319
    %v2562 = vunpack.c.l.b16 %v2320
    %v2563 = vunpack.c.h.b16 %v2320
    %v2564 = vunpack.c.l.b16 %v2321
    %v2565 = vunpack.c.h.b16 %v2321
    %v2566 = vunpack.c.l.b16 %v2322
    %v2567 = vunpack.c.h.b16 %v2322
    %v2568 = vunpack.c.l.b16 %v2323
    %v2569 = vunpack.c.h.b16 %v2323
    %v2570 = vunpack.c.l.b16 %v2324
    %v2571 = vunpack.c.h.b16 %v2324
    %v2572 = vunpack.c.l.b16 %v2325
    %v2573 = vunpack.c.h.b16 %v2325
    %v2574 = vunpack.c.l.b16 %v2326
    %v2575 = vunpack.c.h.b16 %v2326
    %v2576 = vunpack.c.l.b16 %v2327
    %v2577 = vunpack.c.h.b16 %v2327
    %v2578 = vunpack.c.l.b16 %v2328
    %v2579 = vunpack.c.h.b16 %v2328
    %v2580 = vunpack.c.l.b16 %v2329
    %v2581 = vunpack.c.h.b16 %v2329
    %v2582 = vunpack.c.l.b16 %v2330
    %v2583 = vunpack.c.h.b16 %v2330
    %v2584 = vunpack.c.l.b16 %v2331
    %v2585 = vunpack.c.h.b16 %v2331
    %v2586 = vunpack.c.l.b16 %v2332
    %v2587 = vunpack.c.h.b16 %v2332
    %v2588 = vunpack.c.l.b16 %v2333
    %v2589 = vunpack.c.h.b16 %v2333
    %v2590 = vunpack.c.l.b16 %v2334
    %v2591 = vunpack.c.h.b16 %v2334
    %v2592 = vunpack.c.l.b16 %v2335
    %v2593 = vunpack.c.h.b16 %v2335
    %v2594 = vunpack.c.l.b16 %v2336
    %v2595 = vunpack.c.h.b16 %v2336
    %v2596 = vunpack.c.l.b16 %v2337
    %v2597 = vunpack.c.h.b16 %v2337
    %v2598 = vunpack.c.l.b16 %v2338
    %v2599 = vunpack.c.h.b16 %v2338
    %v2600 = vunpack.c.l.b16 %v2339
    %v2601 = vunpack.c.h.b16 %v2339
    %v2602 = vunpack.c.l.b16 %v2340
    %v2603 = vunpack.c.h.b16 %v2340
    %v2604 = vunpack.c.l.b16 %v2341
    %v2605 = vunpack.c.h.b16 %v2341
    %v2606 = vunpack.c.l.b16 %v2342
    %v2607 = vunpack.c.h.b16 %v2342
    %v2608 = vunpack.c.l.b16 %v2343
    %v2609 = vunpack.c.h.b16 %v2343
    %v2610 = vunpack.c.l.b16 %v2344
    %v2611 = vunpack.c.h.b16 %v2344
    %v2612 = vunpack.c.l.b16 %v2345
    %v2613 = vunpack.c.h.b16 %v2345
    %v2614 = vunpack.c.l.b16 %v2346
    %v2615 = vunpack.c.h.b16 %v2346
    %v2616 = vunpack.c.l.b16 %v2347
    %v2617 = vunpack.c.h.b16 %v2347
    %v2618 = vunpack.c.l.b16 %v2348
    %v2619 = vunpack.c.h.b16 %v2348
    %v2620 = vunpack.c.l.b16 %v2349
    %v2621 = vunpack.c.h.b16 %v2349
    %v2622 = vunpack.c.l.b16 %v2350
    %v2623 = vunpack.c.h.b16 %v2350
    %v2624 = vunpack.c.l.b16 %v2351
    %v2625 = vunpack.c.h.b16 %v2351
    %v2626 = vunpack.c.l.b16 %v2352
    %v2627 = vunpack.c.h.b16 %v2352
    %v2628 = vunpack.c.l.b16 %v2353
    %v2629 = vunpack.c.h.b16 %v2353
    %v2630 = vunpack.c.l.b16 %v2354
    %v2631 = vunpack.c.h.b16 %v2354
    %v2632 = vunpack.c.l.b16 %v2355
    %v2633 = vunpack.c.h.b16 %v2355
    %v2634 = vunpack.c.l.b16 %v2356
    %v2635 = vunpack.c.h.b16 %v2356
    %v2636 = vunpack.c.l.b16 %v2357
    %v2637 = vunpack.c.h.b16 %v2357
    %v2638 = vunpack.c.l.b16 %v2358
    %v2639 = vunpack.c.h.b16 %v2358
    %v2640 = vunpack.c.l.b16 %v2359
    %v2641 = vunpack.c.h.b16 %v2359
    %v2642 = vunpack.c.l.b16 %v2360
    %v2643 = vunpack.c.h.b16 %v2360
    %v2644 = vunpack.c.l.b16 %v2361
    %v2645 = vunpack.c.h.b16 %v2361
    %v2646 = vunpack.c.l.b16 %v2362
    %v2647 = vunpack.c.h.b16 %v2362
    %v2648 = vunpack.c.l.b16 %v2363
    %v2649 = vunpack.c.h.b16 %v2363
    %v2650 = vunpack.c.l.b16 %v2364
    %v2651 = vunpack.c.h.b16 %v2364
    %v2652 = vunpack.c.l.b16 %v2365
    %v2653 = vunpack.c.h.b16 %v2365
    %v2654 = vunpack.c.l.b16 %v2366
    %v2655 = vunpack.c.h.b16 %v2366
    %v2656 = vunpack.c.l.b16 %v2367
    %v2657 = vunpack.c.h.b16 %v2367
    %v2658 = vunpack.c.l.b16 %v2368
    %v2659 = vunpack.c.h.b16 %v2368
    %v2660 = vunpack.c.l.b16 %v2369
    %v2661 = vunpack.c.h.b16 %v2369
    %v2662 = vunpack.c.l.b16 %v2370
    %v2663 = vunpack.c.h.b16 %v2370
    %v2664 = vunpack.c.l.b16 %v2371
    %v2665 = vunpack.c.h.b16 %v2371
    %v2666 = vunpack.c.l.b16 %v2372
    %v2667 = vunpack.c.h.b16 %v2372
    %v2668 = vunpack.c.l.b16 %v2373
    %v2669 = vunpack.c.h.b16 %v2373
    %v2670 = vunpack.c.l.b16 %v2374
    %v2671 = vunpack.c.h.b16 %v2374
    %v2672 = vunpack.c.l.b16 %v2375
    %v2673 = vunpack.c.h.b16 %v2375
    %v2674 = vunpack.c.l.b16 %v2376
    %v2675 = vunpack.c.h.b16 %v2376
    %v2676 = vunpack.c.l.b16 %v2377
    %v2677 = vunpack.c.h.b16 %v2377
    %v2678 = vunpack.c.l.b16 %v2378
    %v2679 = vunpack.c.h.b16 %v2378
    %v2680 = vunpack.c.l.b16 %v2379
    %v2681 = vunpack.c.h.b16 %v2379
    %v2682 = vpack.c.b16 %v2496, %v2490
    %v2683 = vpack.c.b16 %v2497, %v2491
    %v2684 = vpack.c.b16 %v2498, %v2492
    %v2685 = vpack.c.b16 %v2499, %v2493
    %v2686 = vpack.c.b16 %v2500, %v2494
    %v2687 = vpack.c.b16 %v2501, %v2495
    %v2688 = vpack.c.b16 %v2508, %v2502
    %v2689 = vpack.c.b16 %v2509, %v2503
    %v2690 = vpack.c.b16 %v2510, %v2504
    %v2691 = vpack.c.b16 %v2511, %v2505
    %v2692 = vpack.c.b16 %v2512, %v2506
    %v2693 = vpack.c.b16 %v2513, %v2507
    %v2694 = vpack.c.b16 %v2520, %v2514
    %v2695 = vpack.c.b16 %v2521, %v2515
    %v2696 = vpack.c.b16 %v2522, %v2516
    %v2697 = vpack.c.b16 %v2523, %v2517
    %v2698 = vpack.c.b16 %v2524, %v2518
    %v2699 = vpack.c.b16 %v2525, %v2519
    %v2700 = vpack.c.b16 %v2532, %v2526
    %v2701 = vpack.c.b16 %v2533, %v2527
    %v2702 = vpack.c.b16 %v2534, %v2528
    %v2703 = vpack.c.b16 %v2535, %v2529
    %v2704 = vpack.c.b16 %v2536, %v2530
    %v2705 = vpack.c.b16 %v2537, %v2531
    %v2706 = vpack.c.b16 %v2544, %v2538
    %v2707 = vpack.c.b16 %v2545, %v2539
    %v2708 = vpack.c.b16 %v2546, %v2540
    %v2709 = vpack.c.b16 %v2547, %v2541
    %v2710 = vpack.c.b16 %v2548, %v2542
    %v2711 = vpack.c.b16 %v2549, %v2543
    %v2712 = vpack.c.b16 %v2556, %v2550
    %v2713 = vpack.c.b16 %v2557, %v2551
    %v2714 = vpack.c.b16 %v2558, %v2552
    %v2715 = vpack.c.b16 %v2559, %v2553
    %v2716 = vpack.c.b16 %v2560, %v2554
    %v2717 = vpack.c.b16 %v2561, %v2555
    %v2718 = vpack.c.b16 %v2568, %v2562
    %v2719 = vpack.c.b16 %v2569, %v2563
    %v2720 = vpack.c.b16 %v2570, %v2564
    %v2721 = vpack.c.b16 %v2571, %v2565
    %v2722 = vpack.c.b16 %v2572, %v2566
    %v2723 = vpack.c.b16 %v2573, %v2567
    %v2724 = vpack.c.b16 %v2580, %v2574
    %v2725 = vpack.c.b16 %v2581, %v2575
    %v2726 = vpack.c.b16 %v2582, %v2576
    %v2727 = vpack.c.b16 %v2583, %v2577
    %v2728 = vpack.c.b16 %v2584, %v2578
    %v2729 = vpack.c.b16 %v2585, %v2579
    %v2730 = vpack.c.b16 %v2592, %v2586
    %v2731 = vpack.c.b16 %v2593, %v2587
    %v2732 = vpack.c.b16 %v2594, %v2588
    %v2733 = vpack.c.b16 %v2595, %v2589
    %v2734 = vpack.c.b16 %v2596, %v2590
    %v2735 = vpack.c.b16 %v2597, %v2591
    %v2736 = vpack.c.b16 %v2604, %v2598
    %v2737 = vpack.c.b16 %v2605, %v2599
    %v2738 = vpack.c.b16 %v2606, %v2600
    %v2739 = vpack.c.b16 %v2607, %v2601
    %v2740 = vpack.c.b16 %v2608, %v2602
    %v2741 = vpack.c.b16 %v2609, %v2603
    %v2742 = vpack.c.b16 %v2616, %v2610
    %v2743 = vpack.c.b16 %v2617, %v2611
    %v2744 = vpack.c.b16 %v2618, %v2612
    %v2745 = vpack.c.b16 %v2619, %v2613
    %v2746 = vpack.c.b16 %v2620, %v2614
    %v2747 = vpack.c.b16 %v2621, %v2615
    %v2748 = vpack.c.b16 %v2628, %v2622
    %v2749 = vpack.c.b16 %v2629, %v2623
    %v2750 = vpack.c.b16 %v2630, %v2624
    %v2751 = vpack.c.b16 %v2631, %v2625
    %v2752 = vpack.c.b16 %v2632, %v2626
    %v2753 = vpack.c.b16 %v2633, %v2627
    %v2754 = vpack.c.b16 %v2640, %v2634
    %v2755 = vpack.c.b16 %v2641, %v2635
    %v2756 = vpack.c.b16 %v2642, %v2636
    %v2757 = vpack.c.b16 %v2643, %v2637
    %v2758 = vpack.c.b16 %v2644, %v2638
    %v2759 = vpack.c.b16 %v2645, %v2639
    %v2760 = vpack.c.b16 %v2652, %v2646
    %v2761 = vpack.c.b16 %v2653, %v2647
    %v2762 = vpack.c.b16 %v2654, %v2648
    %v2763 = vpack.c.b16 %v2655, %v2649
    %v2764 = vpack.c.b16 %v2656, %v2650
    %v2765 = vpack.c.b16 %v2657, %v2651
    %v2766 = vpack.c.b16 %v2664, %v2658
    %v2767 = vpack.c.b16 %v2665, %v2659
    %v2768 = vpack.c.b16 %v2666, %v2660
    %v2769 = vpack.c.b16 %v2667, %v2661
    %v2770 = vpack.c.b16 %v2668, %v2662
    %v2771 = vpack.c.b16 %v2669, %v2663
    %v2772 = vpack.c.b16 %v2676, %v2670
    %v2773 = vpack.c.b16 %v2677, %v2671
    %v2774 = vpack.c.b16 %v2678, %v2672
    %v2775 = vpack.c.b16 %v2679, %v2673
    %v2776 = vpack.c.b16 %v2680, %v2674
    %v2777 = vpack.c.b16 %v2681, %v2675
    %2874 = vmatpush.bf16.msra.mxu0 %v2724
    %2875 = vmatpush.bf16.msra.mxu0 %v2718
    %2876 = vmatpush.bf16.msra.mxu0 %v2712
    %2877 = vmatpush.bf16.msra.mxu0 %v2706
    %2878 = vmatpush.bf16.msra.mxu0 %v2700
    %2879 = vmatpush.bf16.msra.mxu0 %v2694
    %2880 = vmatpush.bf16.msra.mxu0 %v2688
    %2881 = vmatpush.bf16.msra.mxu0 %v2682
    %2882 = vmatmul.bf16.gmra.mxu0 %v2282
    %v2883 = vpop.f32.mrf.mxu0
    %v2884 = vadd.f32 %v2382, %v2883
    %v2885 = vpop.f32.mrf.mxu0
    %2886 = vdwg.mxu0
    %2887 = vmatpush.bf16.msra.mxu0 %v2772
    %2888 = vmatpush.bf16.msra.mxu0 %v2766
    %2889 = vmatpush.bf16.msra.mxu0 %v2760
    %2890 = vmatpush.bf16.msra.mxu0 %v2754
    %2891 = vmatpush.bf16.msra.mxu0 %v2748
    %2892 = vmatpush.bf16.msra.mxu0 %v2742
    %2893 = vmatpush.bf16.msra.mxu0 %v2736
    %2894 = vmatpush.bf16.msra.mxu0 %v2730
    %2895 = vmatmul.bf16.gmra.mxu0 %v2283
    %v2896 = vpop.f32.mrf.mxu0
    %v2897 = vadd.f32 %v2884, %v2896
    %v2898 = vpop.f32.mrf.mxu0
    %2899 = vdwg.mxu0
    %2900 = vmatpush.bf16.msra.mxu0 %v2725
    %2901 = vmatpush.bf16.msra.mxu0 %v2719
    %2902 = vmatpush.bf16.msra.mxu0 %v2713
    %2903 = vmatpush.bf16.msra.mxu0 %v2707
    %2904 = vmatpush.bf16.msra.mxu0 %v2701
    %2905 = vmatpush.bf16.msra.mxu0 %v2695
    %2906 = vmatpush.bf16.msra.mxu0 %v2689
    %2907 = vmatpush.bf16.msra.mxu0 %v2683
    %2908 = vmatmul.bf16.gmra.mxu0 %v2282
    %v2909 = vpop.f32.mrf.mxu0
    %v2910 = vadd.f32 %v2383, %v2909
    %v2911 = vpop.f32.mrf.mxu0
    %2912 = vdwg.mxu0
    %2913 = vmatpush.bf16.msra.mxu0 %v2773
    %2914 = vmatpush.bf16.msra.mxu0 %v2767
    %2915 = vmatpush.bf16.msra.mxu0 %v2761
    %2916 = vmatpush.bf16.msra.mxu0 %v2755
    %2917 = vmatpush.bf16.msra.mxu0 %v2749
    %2918 = vmatpush.bf16.msra.mxu0 %v2743
    %2919 = vmatpush.bf16.msra.mxu0 %v2737
    %2920 = vmatpush.bf16.msra.mxu0 %v2731
    %2921 = vmatmul.bf16.gmra.mxu0 %v2283
    %v2922 = vpop.f32.mrf.mxu0
    %v2923 = vadd.f32 %v2910, %v2922
    %v2924 = vpop.f32.mrf.mxu0
    %2925 = vdwg.mxu0
    %2926 = vmatpush.bf16.msra.mxu0 %v2726
    %2927 = vmatpush.bf16.msra.mxu0 %v2720
    %2928 = vmatpush.bf16.msra.mxu0 %v2714
    %2929 = vmatpush.bf16.msra.mxu0 %v2708
    %2930 = vmatpush.bf16.msra.mxu0 %v2702
    %2931 = vmatpush.bf16.msra.mxu0 %v2696
    %2932 = vmatpush.bf16.msra.mxu0 %v2690
    %2933 = vmatpush.bf16.msra.mxu0 %v2684
    %2934 = vmatmul.bf16.gmra.mxu0 %v2282
    %v2935 = vpop.f32.mrf.mxu0
    %v2936 = vadd.f32 %v2384, %v2935
    %v2937 = vpop.f32.mrf.mxu0
    %2938 = vdwg.mxu0
    %2939 = vmatpush.bf16.msra.mxu0 %v2774
    %2940 = vmatpush.bf16.msra.mxu0 %v2768
    %2941 = vmatpush.bf16.msra.mxu0 %v2762
    %2942 = vmatpush.bf16.msra.mxu0 %v2756
    %2943 = vmatpush.bf16.msra.mxu0 %v2750
    %2944 = vmatpush.bf16.msra.mxu0 %v2744
    %2945 = vmatpush.bf16.msra.mxu0 %v2738
    %2946 = vmatpush.bf16.msra.mxu0 %v2732
    %2947 = vmatmul.bf16.gmra.mxu0 %v2283
    %v2948 = vpop.f32.mrf.mxu0
    %v2949 = vadd.f32 %v2936, %v2948
    %v2950 = vpop.f32.mrf.mxu0
    %2951 = vdwg.mxu0
    %2952 = vmatpush.bf16.msra.mxu0 %v2727
    %2953 = vmatpush.bf16.msra.mxu0 %v2721
    %2954 = vmatpush.bf16.msra.mxu0 %v2715
    %2955 = vmatpush.bf16.msra.mxu0 %v2709
    %2956 = vmatpush.bf16.msra.mxu0 %v2703
    %2957 = vmatpush.bf16.msra.mxu0 %v2697
    %2958 = vmatpush.bf16.msra.mxu0 %v2691
    %2959 = vmatpush.bf16.msra.mxu0 %v2685
    %2960 = vmatmul.bf16.gmra.mxu0 %v2282
    %v2961 = vpop.f32.mrf.mxu0
    %v2962 = vadd.f32 %v2385, %v2961
    %v2963 = vpop.f32.mrf.mxu0
    %2964 = vdwg.mxu0
    %2965 = vmatpush.bf16.msra.mxu0 %v2775
    %2966 = vmatpush.bf16.msra.mxu0 %v2769
    %2967 = vmatpush.bf16.msra.mxu0 %v2763
    %2968 = vmatpush.bf16.msra.mxu0 %v2757
    %2969 = vmatpush.bf16.msra.mxu0 %v2751
    %2970 = vmatpush.bf16.msra.mxu0 %v2745
    %2971 = vmatpush.bf16.msra.mxu0 %v2739
    %2972 = vmatpush.bf16.msra.mxu0 %v2733
    %2973 = vmatmul.bf16.gmra.mxu0 %v2283
    %v2974 = vpop.f32.mrf.mxu0
    %v2975 = vadd.f32 %v2962, %v2974
    %v2976 = vpop.f32.mrf.mxu0
    %2977 = vdwg.mxu0
    %2978 = vmatpush.bf16.msra.mxu0 %v2728
    %2979 = vmatpush.bf16.msra.mxu0 %v2722
    %2980 = vmatpush.bf16.msra.mxu0 %v2716
    %2981 = vmatpush.bf16.msra.mxu0 %v2710
    %2982 = vmatpush.bf16.msra.mxu0 %v2704
    %2983 = vmatpush.bf16.msra.mxu0 %v2698
    %2984 = vmatpush.bf16.msra.mxu0 %v2692
    %2985 = vmatpush.bf16.msra.mxu0 %v2686
    %2986 = vmatmul.bf16.gmra.mxu0 %v2282
    %v2987 = vpop.f32.mrf.mxu0
    %v2988 = vadd.f32 %v2386, %v2987
    %v2989 = vpop.f32.mrf.mxu0
    %2990 = vdwg.mxu0
    %2991 = vmatpush.bf16.msra.mxu0 %v2776
    %2992 = vmatpush.bf16.msra.mxu0 %v2770
    %2993 = vmatpush.bf16.msra.mxu0 %v2764
    %2994 = vmatpush.bf16.msra.mxu0 %v2758
    %2995 = vmatpush.bf16.msra.mxu0 %v2752
    %2996 = vmatpush.bf16.msra.mxu0 %v2746
    %2997 = vmatpush.bf16.msra.mxu0 %v2740
    %2998 = vmatpush.bf16.msra.mxu0 %v2734
    %2999 = vmatmul.bf16.gmra.mxu0 %v2283
    %v3000 = vpop.f32.mrf.mxu0
    %v3001 = vadd.f32 %v2988, %v3000
    %v3002 = vpop.f32.mrf.mxu0
    %3003 = vdwg.mxu0
    %3004 = vmatpush.bf16.msra.mxu0 %v2729
    %3005 = vmatpush.bf16.msra.mxu0 %v2723
    %3006 = vmatpush.bf16.msra.mxu0 %v2717
    %3007 = vmatpush.bf16.msra.mxu0 %v2711
    %3008 = vmatpush.bf16.msra.mxu0 %v2705
    %3009 = vmatpush.bf16.msra.mxu0 %v2699
    %3010 = vmatpush.bf16.msra.mxu0 %v2693
    %3011 = vmatpush.bf16.msra.mxu0 %v2687
    %3012 = vmatmul.bf16.gmra.mxu0 %v2282
    %v3013 = vpop.f32.mrf.mxu0
    %v3014 = vadd.f32 %v2387, %v3013
    %v3015 = vpop.f32.mrf.mxu0
    %3016 = vdwg.mxu0
    %3017 = vmatpush.bf16.msra.mxu0 %v2777
    %3018 = vmatpush.bf16.msra.mxu0 %v2771
    %3019 = vmatpush.bf16.msra.mxu0 %v2765
    %3020 = vmatpush.bf16.msra.mxu0 %v2759
    %3021 = vmatpush.bf16.msra.mxu0 %v2753
    %3022 = vmatpush.bf16.msra.mxu0 %v2747
    %3023 = vmatpush.bf16.msra.mxu0 %v2741
    %3024 = vmatpush.bf16.msra.mxu0 %v2735
    %3025 = vmatmul.bf16.gmra.mxu0 %v2283
    %v3026 = vpop.f32.mrf.mxu0
    %v3027 = vadd.f32 %v3014, %v3026
    %v3028 = vpop.f32.mrf.mxu0
    %3029 = vdwg.mxu0
    %s3030 = scalar_lea.vmem [#allocation2], 96
    %v3031 = vld [vmem:[%s3030] sm:$0xff]
    %v3032 = vld [vmem:[%s3030 + $0x8] sm:$0xff]
    %v3033 = vld [vmem:[%s3030 + $0x10] sm:$0xff]
    %s3034 = scalar_lea.vmem [#allocation2], 336
    %v3035 = vld [vmem:[%s3034 + $0x18] sm:$0xff]
    %v3036 = vld [vmem:[%s3034 + $0x20] sm:$0xff]
    %v3037 = vld [vmem:[%s3034 + $0x28] sm:$0xff]
    %v3038 = vadd.f32 %v3031, %v2897
    %v3039 = vxor.u32 %v3038, 2147483648
    %v3040 = vmul.f32 %v3039, 1.442695
    %v3041 = vpow.pop %v3040
    %v3042 = vadd.f32 %v3041, 1.0
    %v3043 = vrcp.pop %v3042
    %v3044 = vmul.f32 %v3042, %v3043
    %v3045 = vsub.f32 1.0, %v3044
    %v3046 = vmul.f32 %v3043, %v3045
    %v3047 = vadd.f32 %v3043, %v3046
    %vm3048 = vweird.f32 %v3042
    %vm3049 = vweird.f32 %v3043
    %vm3050 = vmor %vm3048, %vm3049
    %v3051 = vsel %vm3050, %v3043, %v3047
    %v3052 = vand.u32 2147483647, %v3042
    %vm3053 = vcmp.eq.f32.partialorder %v3052, 8.507059e+37
    %v3054 = vand.u32 %v3042, 2147483648
    %v3055 = vor.u32 1.1754944e-38, %v3054
    %v3056 = vsel %vm3053, %v3055, %v3051
    %v3057 = vmul.f32 1.0, %v3056
    %v3058 = vadd.f32 %v3032, %v2923
    %v3059 = vxor.u32 %v3058, 2147483648
    %v3060 = vmul.f32 %v3059, 1.442695
    %v3061 = vpow.pop %v3060
    %v3062 = vadd.f32 %v3061, 1.0
    %v3063 = vrcp.pop %v3062
    %v3064 = vmul.f32 %v3062, %v3063
    %v3065 = vsub.f32 1.0, %v3064
    %v3066 = vmul.f32 %v3063, %v3065
    %v3067 = vadd.f32 %v3063, %v3066
    %vm3068 = vweird.f32 %v3062
    %vm3069 = vweird.f32 %v3063
    %vm3070 = vmor %vm3068, %vm3069
    %v3071 = vsel %vm3070, %v3063, %v3067
    %v3072 = vand.u32 2147483647, %v3062
    %vm3073 = vcmp.eq.f32.partialorder %v3072, 8.507059e+37
    %v3074 = vand.u32 %v3062, 2147483648
    %v3075 = vor.u32 1.1754944e-38, %v3074
    %v3076 = vsel %vm3073, %v3075, %v3071
    %v3077 = vmul.f32 1.0, %v3076
    %v3078 = vmul.f32 %v3057, %v2949
    %v3079 = vadd.f32 %v3033, %v3078
    %v3080 = vtanh.pop %v3079
    %v3081 = vsub.f32 %v2280, %v3080
    %v3082 = vmul.f32 %v3077, %v3081
    %v3083 = vadd.f32 %v3080, %v3082
    %v3084 = vadd.f32 %v3035, %v2975
    %v3085 = vxor.u32 %v3084, 2147483648
    %v3086 = vmul.f32 %v3085, 1.442695
    %v3087 = vpow.pop %v3086
    %v3088 = vadd.f32 %v3087, 1.0
    %v3089 = vrcp.pop %v3088
    %v3090 = vmul.f32 %v3088, %v3089
    %v3091 = vsub.f32 1.0, %v3090
    %v3092 = vmul.f32 %v3089, %v3091
    %v3093 = vadd.f32 %v3089, %v3092
    %vm3094 = vweird.f32 %v3088
    %vm3095 = vweird.f32 %v3089
    %vm3096 = vmor %vm3094, %vm3095
    %v3097 = vsel %vm3096, %v3089, %v3093
    %v3098 = vand.u32 2147483647, %v3088
    %vm3099 = vcmp.eq.f32.partialorder %v3098, 8.507059e+37
    %v3100 = vand.u32 %v3088, 2147483648
    %v3101 = vor.u32 1.1754944e-38, %v3100
    %v3102 = vsel %vm3099, %v3101, %v3097
    %v3103 = vmul.f32 1.0, %v3102
    %v3104 = vadd.f32 %v3036, %v3001
    %v3105 = vxor.u32 %v3104, 2147483648
    %v3106 = vmul.f32 %v3105, 1.442695
    %v3107 = vpow.pop %v3106
    %v3108 = vadd.f32 %v3107, 1.0
    %v3109 = vrcp.pop %v3108
    %v3110 = vmul.f32 %v3108, %v3109
    %v3111 = vsub.f32 1.0, %v3110
    %v3112 = vmul.f32 %v3109, %v3111
    %v3113 = vadd.f32 %v3109, %v3112
    %vm3114 = vweird.f32 %v3108
    %vm3115 = vweird.f32 %v3109
    %vm3116 = vmor %vm3114, %vm3115
    %v3117 = vsel %vm3116, %v3109, %v3113
    %v3118 = vand.u32 2147483647, %v3108
    %vm3119 = vcmp.eq.f32.partialorder %v3118, 8.507059e+37
    %v3120 = vand.u32 %v3108, 2147483648
    %v3121 = vor.u32 1.1754944e-38, %v3120
    %v3122 = vsel %vm3119, %v3121, %v3117
    %v3123 = vmul.f32 1.0, %v3122
    %v3124 = vmul.f32 %v3103, %v3027
    %v3125 = vadd.f32 %v3037, %v3124
    %v3126 = vtanh.pop %v3125
    %v3127 = vsub.f32 %v2281, %v3126
    %v3128 = vmul.f32 %v3123, %v3127
    %v3129 = vadd.f32 %v3126, %v3128
    %vm3130 = vcmp.gt.s32.totalorder %v97, 2
    %vm3131 = vcmp.gt.s32.totalorder %v97, 7
    %v3132 = vsel %vm3130, 1, 0
    %3133 = vset.pattern.permute.xlu0 0
    %3134 = vperm.xlu0 %3133, %v3132
    %v3135 = vpop.permute.xlu0 %3134
    %vm3136 = vcmp.eq.s32.totalorder %v3135, 1
    %v3137 = vsel %vm3136, %v3083, 0.0
    %s3138 = scalar_lea.vmem [#allocation11], 32
    %3139 = vst [vmem:[%s3138] sm:$0xff] %v3137
    %v3140 = vsel %vm3131, 1, 0
    %3141 = vset.pattern.permute.xlu0 0
    %3142 = vperm.xlu0 %3141, %v3140
    %v3143 = vpop.permute.xlu0 %3142
    %vm3144 = vcmp.eq.s32.totalorder %v3143, 1
    %v3145 = vsel %vm3144, %v3129, 0.0
    %s3146 = scalar_lea.vmem [#allocation11], 112
    %3147 = vst [vmem:[%s3146 + $0x8] sm:$0xff] %v3145
    %v3148 = vsel %vm3136, %v3083, %v2280
    %v3149 = vsel %vm3144, %v3129, %v2281
    %v3150 = vpack.c.bf16 %v3148, %v3148
    %v3151 = vpack.c.bf16 %v3149, %v3149
    %v3152 = vld [vmem:[#allocation8] sm:$0xff]
    %v3153 = vld [vmem:[#allocation8 + $0x8] sm:$0xff]
    %v3154 = vld [vmem:[#allocation8 + $0x10] sm:$0xff]
    %v3155 = vld [vmem:[#allocation8 + $0x18] sm:$0xff]
    %v3156 = vld [vmem:[#allocation8 + $0x20] sm:$0xff]
    %v3157 = vld [vmem:[#allocation8 + $0x28] sm:$0xff]
    %v3158 = vld [vmem:[#allocation8 + $0x30] sm:$0xff]
    %v3159 = vld [vmem:[#allocation8 + $0x38] sm:$0xff]
    %v3160 = vld [vmem:[#allocation8 + $0x40] sm:$0xff]
    %v3161 = vld [vmem:[#allocation8 + $0x48] sm:$0xff]
    %v3162 = vld [vmem:[#allocation8 + $0x50] sm:$0xff]
    %v3163 = vld [vmem:[#allocation8 + $0x58] sm:$0xff]
    %v3164 = vld [vmem:[#allocation8 + $0x60] sm:$0xff]
    %v3165 = vld [vmem:[#allocation8 + $0x68] sm:$0xff]
    %v3166 = vld [vmem:[#allocation8 + $0x70] sm:$0xff]
    %v3167 = vld [vmem:[#allocation8 + $0x78] sm:$0xff]
    %v3168 = vld [vmem:[#allocation8 + $0x80] sm:$0xff]
    %v3169 = vld [vmem:[#allocation8 + $0x88] sm:$0xff]
    %v3170 = vld [vmem:[#allocation8 + $0x90] sm:$0xff]
    %v3171 = vld [vmem:[#allocation8 + $0x98] sm:$0xff]
    %v3172 = vld [vmem:[#allocation8 + $0xa0] sm:$0xff]
    %v3173 = vld [vmem:[#allocation8 + $0xa8] sm:$0xff]
    %v3174 = vld [vmem:[#allocation8 + $0xb0] sm:$0xff]
    %v3175 = vld [vmem:[#allocation8 + $0xb8] sm:$0xff]
    %v3176 = vld [vmem:[#allocation8 + $0xc0] sm:$0xff]
    %v3177 = vld [vmem:[#allocation8 + $0xc8] sm:$0xff]
    %v3178 = vld [vmem:[#allocation8 + $0xd0] sm:$0xff]
    %v3179 = vld [vmem:[#allocation8 + $0xd8] sm:$0xff]
    %v3180 = vld [vmem:[#allocation8 + $0xe0] sm:$0xff]
    %v3181 = vld [vmem:[#allocation8 + $0xe8] sm:$0xff]
    %v3182 = vld [vmem:[#allocation8 + $0xf0] sm:$0xff]
    %v3183 = vld [vmem:[#allocation8 + $0xf8] sm:$0xff]
    %v3184 = vld [vmem:[#allocation8 + $0x100] sm:$0xff]
    %v3185 = vld [vmem:[#allocation8 + $0x108] sm:$0xff]
    %v3186 = vld [vmem:[#allocation8 + $0x110] sm:$0xff]
    %v3187 = vld [vmem:[#allocation8 + $0x118] sm:$0xff]
    %v3188 = vld [vmem:[#allocation8 + $0x120] sm:$0xff]
    %v3189 = vld [vmem:[#allocation8 + $0x128] sm:$0xff]
    %v3190 = vld [vmem:[#allocation8 + $0x130] sm:$0xff]
    %v3191 = vld [vmem:[#allocation8 + $0x138] sm:$0xff]
    %v3192 = vld [vmem:[#allocation8 + $0x140] sm:$0xff]
    %v3193 = vld [vmem:[#allocation8 + $0x148] sm:$0xff]
    %v3194 = vld [vmem:[#allocation8 + $0x150] sm:$0xff]
    %v3195 = vld [vmem:[#allocation8 + $0x158] sm:$0xff]
    %v3196 = vld [vmem:[#allocation8 + $0x160] sm:$0xff]
    %v3197 = vld [vmem:[#allocation8 + $0x168] sm:$0xff]
    %v3198 = vld [vmem:[#allocation8 + $0x170] sm:$0xff]
    %v3199 = vld [vmem:[#allocation8 + $0x178] sm:$0xff]
    %v3200 = vld [vmem:[#allocation8 + $0x180] sm:$0xff]
    %v3201 = vld [vmem:[#allocation8 + $0x188] sm:$0xff]
    %v3202 = vld [vmem:[#allocation8 + $0x190] sm:$0xff]
    %v3203 = vld [vmem:[#allocation8 + $0x198] sm:$0xff]
    %v3204 = vld [vmem:[#allocation8 + $0x1a0] sm:$0xff]
    %v3205 = vld [vmem:[#allocation8 + $0x1a8] sm:$0xff]
    %v3206 = vld [vmem:[#allocation8 + $0x1b0] sm:$0xff]
    %v3207 = vld [vmem:[#allocation8 + $0x1b8] sm:$0xff]
    %v3208 = vld [vmem:[#allocation8 + $0x1c0] sm:$0xff]
    %v3209 = vld [vmem:[#allocation8 + $0x1c8] sm:$0xff]
    %v3210 = vld [vmem:[#allocation8 + $0x1d0] sm:$0xff]
    %v3211 = vld [vmem:[#allocation8 + $0x1d8] sm:$0xff]
    %v3212 = vld [vmem:[#allocation8 + $0x1e0] sm:$0xff]
    %v3213 = vld [vmem:[#allocation8 + $0x1e8] sm:$0xff]
    %v3214 = vld [vmem:[#allocation8 + $0x1f0] sm:$0xff]
    %v3215 = vld [vmem:[#allocation8 + $0x1f8] sm:$0xff]
    %v3216 = vld [vmem:[#allocation8 + $0x200] sm:$0xff]
    %v3217 = vld [vmem:[#allocation8 + $0x208] sm:$0xff]
    %v3218 = vld [vmem:[#allocation8 + $0x210] sm:$0xff]
    %v3219 = vld [vmem:[#allocation8 + $0x218] sm:$0xff]
    %v3220 = vld [vmem:[#allocation8 + $0x220] sm:$0xff]
    %v3221 = vld [vmem:[#allocation8 + $0x228] sm:$0xff]
    %v3222 = vld [vmem:[#allocation8 + $0x230] sm:$0xff]
    %v3223 = vld [vmem:[#allocation8 + $0x238] sm:$0xff]
    %v3224 = vld [vmem:[#allocation8 + $0x240] sm:$0xff]
    %v3225 = vld [vmem:[#allocation8 + $0x248] sm:$0xff]
    %v3226 = vld [vmem:[#allocation8 + $0x250] sm:$0xff]
    %v3227 = vld [vmem:[#allocation8 + $0x258] sm:$0xff]
    %v3228 = vld [vmem:[#allocation8 + $0x260] sm:$0xff]
    %v3229 = vld [vmem:[#allocation8 + $0x268] sm:$0xff]
    %v3230 = vld [vmem:[#allocation8 + $0x270] sm:$0xff]
    %v3231 = vld [vmem:[#allocation8 + $0x278] sm:$0xff]
    %v3232 = vld [vmem:[#allocation8 + $0x280] sm:$0xff]
    %v3233 = vld [vmem:[#allocation8 + $0x288] sm:$0xff]
    %v3234 = vld [vmem:[#allocation8 + $0x290] sm:$0xff]
    %v3235 = vld [vmem:[#allocation8 + $0x298] sm:$0xff]
    %v3236 = vld [vmem:[#allocation8 + $0x2a0] sm:$0xff]
    %v3237 = vld [vmem:[#allocation8 + $0x2a8] sm:$0xff]
    %v3238 = vld [vmem:[#allocation8 + $0x2b0] sm:$0xff]
    %v3239 = vld [vmem:[#allocation8 + $0x2b8] sm:$0xff]
    %v3240 = vld [vmem:[#allocation8 + $0x2c0] sm:$0xff]
    %v3241 = vld [vmem:[#allocation8 + $0x2c8] sm:$0xff]
    %v3242 = vld [vmem:[#allocation8 + $0x2d0] sm:$0xff]
    %v3243 = vld [vmem:[#allocation8 + $0x2d8] sm:$0xff]
    %v3244 = vld [vmem:[#allocation8 + $0x2e0] sm:$0xff]
    %v3245 = vld [vmem:[#allocation8 + $0x2e8] sm:$0xff]
    %v3246 = vld [vmem:[#allocation8 + $0x2f0] sm:$0xff]
    %v3247 = vld [vmem:[#allocation8 + $0x2f8] sm:$0xff]
    %v3248 = vld [vmem:[%s5] sm:$0x3f]
    %v3250 = vperm.slane %v3248, 0
    %v3251 = vperm.slane %v3248, 1
    %v3252 = vperm.slane %v3248, 2
    %v3253 = vperm.slane %v3248, 3
    %v3254 = vperm.slane %v3248, 4
    %v3255 = vperm.slane %v3248, 5
    %v3358 = vunpack.c.l.b16 %v3152
    %v3359 = vunpack.c.h.b16 %v3152
    %v3360 = vunpack.c.l.b16 %v3153
    %v3361 = vunpack.c.h.b16 %v3153
    %v3362 = vunpack.c.l.b16 %v3154
    %v3363 = vunpack.c.h.b16 %v3154
    %v3364 = vunpack.c.l.b16 %v3155
    %v3365 = vunpack.c.h.b16 %v3155
    %v3366 = vunpack.c.l.b16 %v3156
    %v3367 = vunpack.c.h.b16 %v3156
    %v3368 = vunpack.c.l.b16 %v3157
    %v3369 = vunpack.c.h.b16 %v3157
    %v3370 = vunpack.c.l.b16 %v3158
    %v3371 = vunpack.c.h.b16 %v3158
    %v3372 = vunpack.c.l.b16 %v3159
    %v3373 = vunpack.c.h.b16 %v3159
    %v3374 = vunpack.c.l.b16 %v3160
    %v3375 = vunpack.c.h.b16 %v3160
    %v3376 = vunpack.c.l.b16 %v3161
    %v3377 = vunpack.c.h.b16 %v3161
    %v3378 = vunpack.c.l.b16 %v3162
    %v3379 = vunpack.c.h.b16 %v3162
    %v3380 = vunpack.c.l.b16 %v3163
    %v3381 = vunpack.c.h.b16 %v3163
    %v3382 = vunpack.c.l.b16 %v3164
    %v3383 = vunpack.c.h.b16 %v3164
    %v3384 = vunpack.c.l.b16 %v3165
    %v3385 = vunpack.c.h.b16 %v3165
    %v3386 = vunpack.c.l.b16 %v3166
    %v3387 = vunpack.c.h.b16 %v3166
    %v3388 = vunpack.c.l.b16 %v3167
    %v3389 = vunpack.c.h.b16 %v3167
    %v3390 = vunpack.c.l.b16 %v3168
    %v3391 = vunpack.c.h.b16 %v3168
    %v3392 = vunpack.c.l.b16 %v3169
    %v3393 = vunpack.c.h.b16 %v3169
    %v3394 = vunpack.c.l.b16 %v3170
    %v3395 = vunpack.c.h.b16 %v3170
    %v3396 = vunpack.c.l.b16 %v3171
    %v3397 = vunpack.c.h.b16 %v3171
    %v3398 = vunpack.c.l.b16 %v3172
    %v3399 = vunpack.c.h.b16 %v3172
    %v3400 = vunpack.c.l.b16 %v3173
    %v3401 = vunpack.c.h.b16 %v3173
    %v3402 = vunpack.c.l.b16 %v3174
    %v3403 = vunpack.c.h.b16 %v3174
    %v3404 = vunpack.c.l.b16 %v3175
    %v3405 = vunpack.c.h.b16 %v3175
    %v3406 = vunpack.c.l.b16 %v3176
    %v3407 = vunpack.c.h.b16 %v3176
    %v3408 = vunpack.c.l.b16 %v3177
    %v3409 = vunpack.c.h.b16 %v3177
    %v3410 = vunpack.c.l.b16 %v3178
    %v3411 = vunpack.c.h.b16 %v3178
    %v3412 = vunpack.c.l.b16 %v3179
    %v3413 = vunpack.c.h.b16 %v3179
    %v3414 = vunpack.c.l.b16 %v3180
    %v3415 = vunpack.c.h.b16 %v3180
    %v3416 = vunpack.c.l.b16 %v3181
    %v3417 = vunpack.c.h.b16 %v3181
    %v3418 = vunpack.c.l.b16 %v3182
    %v3419 = vunpack.c.h.b16 %v3182
    %v3420 = vunpack.c.l.b16 %v3183
    %v3421 = vunpack.c.h.b16 %v3183
    %v3422 = vunpack.c.l.b16 %v3184
    %v3423 = vunpack.c.h.b16 %v3184
    %v3424 = vunpack.c.l.b16 %v3185
    %v3425 = vunpack.c.h.b16 %v3185
    %v3426 = vunpack.c.l.b16 %v3186
    %v3427 = vunpack.c.h.b16 %v3186
    %v3428 = vunpack.c.l.b16 %v3187
    %v3429 = vunpack.c.h.b16 %v3187
    %v3430 = vunpack.c.l.b16 %v3188
    %v3431 = vunpack.c.h.b16 %v3188
    %v3432 = vunpack.c.l.b16 %v3189
    %v3433 = vunpack.c.h.b16 %v3189
    %v3434 = vunpack.c.l.b16 %v3190
    %v3435 = vunpack.c.h.b16 %v3190
    %v3436 = vunpack.c.l.b16 %v3191
    %v3437 = vunpack.c.h.b16 %v3191
    %v3438 = vunpack.c.l.b16 %v3192
    %v3439 = vunpack.c.h.b16 %v3192
    %v3440 = vunpack.c.l.b16 %v3193
    %v3441 = vunpack.c.h.b16 %v3193
    %v3442 = vunpack.c.l.b16 %v3194
    %v3443 = vunpack.c.h.b16 %v3194
    %v3444 = vunpack.c.l.b16 %v3195
    %v3445 = vunpack.c.h.b16 %v3195
    %v3446 = vunpack.c.l.b16 %v3196
    %v3447 = vunpack.c.h.b16 %v3196
    %v3448 = vunpack.c.l.b16 %v3197
    %v3449 = vunpack.c.h.b16 %v3197
    %v3450 = vunpack.c.l.b16 %v3198
    %v3451 = vunpack.c.h.b16 %v3198
    %v3452 = vunpack.c.l.b16 %v3199
    %v3453 = vunpack.c.h.b16 %v3199
    %v3454 = vunpack.c.l.b16 %v3200
    %v3455 = vunpack.c.h.b16 %v3200
    %v3456 = vunpack.c.l.b16 %v3201
    %v3457 = vunpack.c.h.b16 %v3201
    %v3458 = vunpack.c.l.b16 %v3202
    %v3459 = vunpack.c.h.b16 %v3202
    %v3460 = vunpack.c.l.b16 %v3203
    %v3461 = vunpack.c.h.b16 %v3203
    %v3462 = vunpack.c.l.b16 %v3204
    %v3463 = vunpack.c.h.b16 %v3204
    %v3464 = vunpack.c.l.b16 %v3205
    %v3465 = vunpack.c.h.b16 %v3205
    %v3466 = vunpack.c.l.b16 %v3206
    %v3467 = vunpack.c.h.b16 %v3206
    %v3468 = vunpack.c.l.b16 %v3207
    %v3469 = vunpack.c.h.b16 %v3207
    %v3470 = vunpack.c.l.b16 %v3208
    %v3471 = vunpack.c.h.b16 %v3208
    %v3472 = vunpack.c.l.b16 %v3209
    %v3473 = vunpack.c.h.b16 %v3209
    %v3474 = vunpack.c.l.b16 %v3210
    %v3475 = vunpack.c.h.b16 %v3210
    %v3476 = vunpack.c.l.b16 %v3211
    %v3477 = vunpack.c.h.b16 %v3211
    %v3478 = vunpack.c.l.b16 %v3212
    %v3479 = vunpack.c.h.b16 %v3212
    %v3480 = vunpack.c.l.b16 %v3213
    %v3481 = vunpack.c.h.b16 %v3213
    %v3482 = vunpack.c.l.b16 %v3214
    %v3483 = vunpack.c.h.b16 %v3214
    %v3484 = vunpack.c.l.b16 %v3215
    %v3485 = vunpack.c.h.b16 %v3215
    %v3486 = vunpack.c.l.b16 %v3216
    %v3487 = vunpack.c.h.b16 %v3216
    %v3488 = vunpack.c.l.b16 %v3217
    %v3489 = vunpack.c.h.b16 %v3217
    %v3490 = vunpack.c.l.b16 %v3218
    %v3491 = vunpack.c.h.b16 %v3218
    %v3492 = vunpack.c.l.b16 %v3219
    %v3493 = vunpack.c.h.b16 %v3219
    %v3494 = vunpack.c.l.b16 %v3220
    %v3495 = vunpack.c.h.b16 %v3220
    %v3496 = vunpack.c.l.b16 %v3221
    %v3497 = vunpack.c.h.b16 %v3221
    %v3498 = vunpack.c.l.b16 %v3222
    %v3499 = vunpack.c.h.b16 %v3222
    %v3500 = vunpack.c.l.b16 %v3223
    %v3501 = vunpack.c.h.b16 %v3223
    %v3502 = vunpack.c.l.b16 %v3224
    %v3503 = vunpack.c.h.b16 %v3224
    %v3504 = vunpack.c.l.b16 %v3225
    %v3505 = vunpack.c.h.b16 %v3225
    %v3506 = vunpack.c.l.b16 %v3226
    %v3507 = vunpack.c.h.b16 %v3226
    %v3508 = vunpack.c.l.b16 %v3227
    %v3509 = vunpack.c.h.b16 %v3227
    %v3510 = vunpack.c.l.b16 %v3228
    %v3511 = vunpack.c.h.b16 %v3228
    %v3512 = vunpack.c.l.b16 %v3229
    %v3513 = vunpack.c.h.b16 %v3229
    %v3514 = vunpack.c.l.b16 %v3230
    %v3515 = vunpack.c.h.b16 %v3230
    %v3516 = vunpack.c.l.b16 %v3231
    %v3517 = vunpack.c.h.b16 %v3231
    %v3518 = vunpack.c.l.b16 %v3232
    %v3519 = vunpack.c.h.b16 %v3232
    %v3520 = vunpack.c.l.b16 %v3233
    %v3521 = vunpack.c.h.b16 %v3233
    %v3522 = vunpack.c.l.b16 %v3234
    %v3523 = vunpack.c.h.b16 %v3234
    %v3524 = vunpack.c.l.b16 %v3235
    %v3525 = vunpack.c.h.b16 %v3235
    %v3526 = vunpack.c.l.b16 %v3236
    %v3527 = vunpack.c.h.b16 %v3236
    %v3528 = vunpack.c.l.b16 %v3237
    %v3529 = vunpack.c.h.b16 %v3237
    %v3530 = vunpack.c.l.b16 %v3238
    %v3531 = vunpack.c.h.b16 %v3238
    %v3532 = vunpack.c.l.b16 %v3239
    %v3533 = vunpack.c.h.b16 %v3239
    %v3534 = vunpack.c.l.b16 %v3240
    %v3535 = vunpack.c.h.b16 %v3240
    %v3536 = vunpack.c.l.b16 %v3241
    %v3537 = vunpack.c.h.b16 %v3241
    %v3538 = vunpack.c.l.b16 %v3242
    %v3539 = vunpack.c.h.b16 %v3242
    %v3540 = vunpack.c.l.b16 %v3243
    %v3541 = vunpack.c.h.b16 %v3243
    %v3542 = vunpack.c.l.b16 %v3244
    %v3543 = vunpack.c.h.b16 %v3244
    %v3544 = vunpack.c.l.b16 %v3245
    %v3545 = vunpack.c.h.b16 %v3245
    %v3546 = vunpack.c.l.b16 %v3246
    %v3547 = vunpack.c.h.b16 %v3246
    %v3548 = vunpack.c.l.b16 %v3247
    %v3549 = vunpack.c.h.b16 %v3247
    %v3550 = vpack.c.b16 %v3364, %v3358
    %v3551 = vpack.c.b16 %v3365, %v3359
    %v3552 = vpack.c.b16 %v3366, %v3360
    %v3553 = vpack.c.b16 %v3367, %v3361
    %v3554 = vpack.c.b16 %v3368, %v3362
    %v3555 = vpack.c.b16 %v3369, %v3363
    %v3556 = vpack.c.b16 %v3376, %v3370
    %v3557 = vpack.c.b16 %v3377, %v3371
    %v3558 = vpack.c.b16 %v3378, %v3372
    %v3559 = vpack.c.b16 %v3379, %v3373
    %v3560 = vpack.c.b16 %v3380, %v3374
    %v3561 = vpack.c.b16 %v3381, %v3375
    %v3562 = vpack.c.b16 %v3388, %v3382
    %v3563 = vpack.c.b16 %v3389, %v3383
    %v3564 = vpack.c.b16 %v3390, %v3384
    %v3565 = vpack.c.b16 %v3391, %v3385
    %v3566 = vpack.c.b16 %v3392, %v3386
    %v3567 = vpack.c.b16 %v3393, %v3387
    %v3568 = vpack.c.b16 %v3400, %v3394
    %v3569 = vpack.c.b16 %v3401, %v3395
    %v3570 = vpack.c.b16 %v3402, %v3396
    %v3571 = vpack.c.b16 %v3403, %v3397
    %v3572 = vpack.c.b16 %v3404, %v3398
    %v3573 = vpack.c.b16 %v3405, %v3399
    %v3574 = vpack.c.b16 %v3412, %v3406
    %v3575 = vpack.c.b16 %v3413, %v3407
    %v3576 = vpack.c.b16 %v3414, %v3408
    %v3577 = vpack.c.b16 %v3415, %v3409
    %v3578 = vpack.c.b16 %v3416, %v3410
    %v3579 = vpack.c.b16 %v3417, %v3411
    %v3580 = vpack.c.b16 %v3424, %v3418
    %v3581 = vpack.c.b16 %v3425, %v3419
    %v3582 = vpack.c.b16 %v3426, %v3420
    %v3583 = vpack.c.b16 %v3427, %v3421
    %v3584 = vpack.c.b16 %v3428, %v3422
    %v3585 = vpack.c.b16 %v3429, %v3423
    %v3586 = vpack.c.b16 %v3436, %v3430
    %v3587 = vpack.c.b16 %v3437, %v3431
    %v3588 = vpack.c.b16 %v3438, %v3432
    %v3589 = vpack.c.b16 %v3439, %v3433
    %v3590 = vpack.c.b16 %v3440, %v3434
    %v3591 = vpack.c.b16 %v3441, %v3435
    %v3592 = vpack.c.b16 %v3448, %v3442
    %v3593 = vpack.c.b16 %v3449, %v3443
    %v3594 = vpack.c.b16 %v3450, %v3444
    %v3595 = vpack.c.b16 %v3451, %v3445
    %v3596 = vpack.c.b16 %v3452, %v3446
    %v3597 = vpack.c.b16 %v3453, %v3447
    %v3598 = vpack.c.b16 %v3460, %v3454
    %v3599 = vpack.c.b16 %v3461, %v3455
    %v3600 = vpack.c.b16 %v3462, %v3456
    %v3601 = vpack.c.b16 %v3463, %v3457
    %v3602 = vpack.c.b16 %v3464, %v3458
    %v3603 = vpack.c.b16 %v3465, %v3459
    %v3604 = vpack.c.b16 %v3472, %v3466
    %v3605 = vpack.c.b16 %v3473, %v3467
    %v3606 = vpack.c.b16 %v3474, %v3468
    %v3607 = vpack.c.b16 %v3475, %v3469
    %v3608 = vpack.c.b16 %v3476, %v3470
    %v3609 = vpack.c.b16 %v3477, %v3471
    %v3610 = vpack.c.b16 %v3484, %v3478
    %v3611 = vpack.c.b16 %v3485, %v3479
    %v3612 = vpack.c.b16 %v3486, %v3480
    %v3613 = vpack.c.b16 %v3487, %v3481
    %v3614 = vpack.c.b16 %v3488, %v3482
    %v3615 = vpack.c.b16 %v3489, %v3483
    %v3616 = vpack.c.b16 %v3496, %v3490
    %v3617 = vpack.c.b16 %v3497, %v3491
    %v3618 = vpack.c.b16 %v3498, %v3492
    %v3619 = vpack.c.b16 %v3499, %v3493
    %v3620 = vpack.c.b16 %v3500, %v3494
    %v3621 = vpack.c.b16 %v3501, %v3495
    %v3622 = vpack.c.b16 %v3508, %v3502
    %v3623 = vpack.c.b16 %v3509, %v3503
    %v3624 = vpack.c.b16 %v3510, %v3504
    %v3625 = vpack.c.b16 %v3511, %v3505
    %v3626 = vpack.c.b16 %v3512, %v3506
    %v3627 = vpack.c.b16 %v3513, %v3507
    %v3628 = vpack.c.b16 %v3520, %v3514
    %v3629 = vpack.c.b16 %v3521, %v3515
    %v3630 = vpack.c.b16 %v3522, %v3516
    %v3631 = vpack.c.b16 %v3523, %v3517
    %v3632 = vpack.c.b16 %v3524, %v3518
    %v3633 = vpack.c.b16 %v3525, %v3519
    %v3634 = vpack.c.b16 %v3532, %v3526
    %v3635 = vpack.c.b16 %v3533, %v3527
    %v3636 = vpack.c.b16 %v3534, %v3528
    %v3637 = vpack.c.b16 %v3535, %v3529
    %v3638 = vpack.c.b16 %v3536, %v3530
    %v3639 = vpack.c.b16 %v3537, %v3531
    %v3640 = vpack.c.b16 %v3544, %v3538
    %v3641 = vpack.c.b16 %v3545, %v3539
    %v3642 = vpack.c.b16 %v3546, %v3540
    %v3643 = vpack.c.b16 %v3547, %v3541
    %v3644 = vpack.c.b16 %v3548, %v3542
    %v3645 = vpack.c.b16 %v3549, %v3543
    %3742 = vmatpush.bf16.msra.mxu0 %v3592
    %3743 = vmatpush.bf16.msra.mxu0 %v3586
    %3744 = vmatpush.bf16.msra.mxu0 %v3580
    %3745 = vmatpush.bf16.msra.mxu0 %v3574
    %3746 = vmatpush.bf16.msra.mxu0 %v3568
    %3747 = vmatpush.bf16.msra.mxu0 %v3562
    %3748 = vmatpush.bf16.msra.mxu0 %v3556
    %3749 = vmatpush.bf16.msra.mxu0 %v3550
    %3750 = vmatmul.bf16.gmra.mxu0 %v3150
    %v3751 = vpop.f32.mrf.mxu0
    %v3752 = vadd.f32 %v3250, %v3751
    %v3753 = vpop.f32.mrf.mxu0
    %3754 = vdwg.mxu0
    %3755 = vmatpush.bf16.msra.mxu0 %v3640
    %3756 = vmatpush.bf16.msra.mxu0 %v3634
    %3757 = vmatpush.bf16.msra.mxu0 %v3628
    %3758 = vmatpush.bf16.msra.mxu0 %v3622
    %3759 = vmatpush.bf16.msra.mxu0 %v3616
    %3760 = vmatpush.bf16.msra.mxu0 %v3610
    %3761 = vmatpush.bf16.msra.mxu0 %v3604
    %3762 = vmatpush.bf16.msra.mxu0 %v3598
    %3763 = vmatmul.bf16.gmra.mxu0 %v3151
    %v3764 = vpop.f32.mrf.mxu0
    %v3765 = vadd.f32 %v3752, %v3764
    %v3766 = vpop.f32.mrf.mxu0
    %3767 = vdwg.mxu0
    %3768 = vmatpush.bf16.msra.mxu0 %v3593
    %3769 = vmatpush.bf16.msra.mxu0 %v3587
    %3770 = vmatpush.bf16.msra.mxu0 %v3581
    %3771 = vmatpush.bf16.msra.mxu0 %v3575
    %3772 = vmatpush.bf16.msra.mxu0 %v3569
    %3773 = vmatpush.bf16.msra.mxu0 %v3563
    %3774 = vmatpush.bf16.msra.mxu0 %v3557
    %3775 = vmatpush.bf16.msra.mxu0 %v3551
    %3776 = vmatmul.bf16.gmra.mxu0 %v3150
    %v3777 = vpop.f32.mrf.mxu0
    %v3778 = vadd.f32 %v3251, %v3777
    %v3779 = vpop.f32.mrf.mxu0
    %3780 = vdwg.mxu0
    %3781 = vmatpush.bf16.msra.mxu0 %v3641
    %3782 = vmatpush.bf16.msra.mxu0 %v3635
    %3783 = vmatpush.bf16.msra.mxu0 %v3629
    %3784 = vmatpush.bf16.msra.mxu0 %v3623
    %3785 = vmatpush.bf16.msra.mxu0 %v3617
    %3786 = vmatpush.bf16.msra.mxu0 %v3611
    %3787 = vmatpush.bf16.msra.mxu0 %v3605
    %3788 = vmatpush.bf16.msra.mxu0 %v3599
    %3789 = vmatmul.bf16.gmra.mxu0 %v3151
    %v3790 = vpop.f32.mrf.mxu0
    %v3791 = vadd.f32 %v3778, %v3790
    %v3792 = vpop.f32.mrf.mxu0
    %3793 = vdwg.mxu0
    %3794 = vmatpush.bf16.msra.mxu0 %v3594
    %3795 = vmatpush.bf16.msra.mxu0 %v3588
    %3796 = vmatpush.bf16.msra.mxu0 %v3582
    %3797 = vmatpush.bf16.msra.mxu0 %v3576
    %3798 = vmatpush.bf16.msra.mxu0 %v3570
    %3799 = vmatpush.bf16.msra.mxu0 %v3564
    %3800 = vmatpush.bf16.msra.mxu0 %v3558
    %3801 = vmatpush.bf16.msra.mxu0 %v3552
    %3802 = vmatmul.bf16.gmra.mxu0 %v3150
    %v3803 = vpop.f32.mrf.mxu0
    %v3804 = vadd.f32 %v3252, %v3803
    %v3805 = vpop.f32.mrf.mxu0
    %3806 = vdwg.mxu0
    %3807 = vmatpush.bf16.msra.mxu0 %v3642
    %3808 = vmatpush.bf16.msra.mxu0 %v3636
    %3809 = vmatpush.bf16.msra.mxu0 %v3630
    %3810 = vmatpush.bf16.msra.mxu0 %v3624
    %3811 = vmatpush.bf16.msra.mxu0 %v3618
    %3812 = vmatpush.bf16.msra.mxu0 %v3612
    %3813 = vmatpush.bf16.msra.mxu0 %v3606
    %3814 = vmatpush.bf16.msra.mxu0 %v3600
    %3815 = vmatmul.bf16.gmra.mxu0 %v3151
    %v3816 = vpop.f32.mrf.mxu0
    %v3817 = vadd.f32 %v3804, %v3816
    %v3818 = vpop.f32.mrf.mxu0
    %3819 = vdwg.mxu0
    %3820 = vmatpush.bf16.msra.mxu0 %v3595
    %3821 = vmatpush.bf16.msra.mxu0 %v3589
    %3822 = vmatpush.bf16.msra.mxu0 %v3583
    %3823 = vmatpush.bf16.msra.mxu0 %v3577
    %3824 = vmatpush.bf16.msra.mxu0 %v3571
    %3825 = vmatpush.bf16.msra.mxu0 %v3565
    %3826 = vmatpush.bf16.msra.mxu0 %v3559
    %3827 = vmatpush.bf16.msra.mxu0 %v3553
    %3828 = vmatmul.bf16.gmra.mxu0 %v3150
    %v3829 = vpop.f32.mrf.mxu0
    %v3830 = vadd.f32 %v3253, %v3829
    %v3831 = vpop.f32.mrf.mxu0
    %3832 = vdwg.mxu0
    %3833 = vmatpush.bf16.msra.mxu0 %v3643
    %3834 = vmatpush.bf16.msra.mxu0 %v3637
    %3835 = vmatpush.bf16.msra.mxu0 %v3631
    %3836 = vmatpush.bf16.msra.mxu0 %v3625
    %3837 = vmatpush.bf16.msra.mxu0 %v3619
    %3838 = vmatpush.bf16.msra.mxu0 %v3613
    %3839 = vmatpush.bf16.msra.mxu0 %v3607
    %3840 = vmatpush.bf16.msra.mxu0 %v3601
    %3841 = vmatmul.bf16.gmra.mxu0 %v3151
    %v3842 = vpop.f32.mrf.mxu0
    %v3843 = vadd.f32 %v3830, %v3842
    %v3844 = vpop.f32.mrf.mxu0
    %3845 = vdwg.mxu0
    %3846 = vmatpush.bf16.msra.mxu0 %v3596
    %3847 = vmatpush.bf16.msra.mxu0 %v3590
    %3848 = vmatpush.bf16.msra.mxu0 %v3584
    %3849 = vmatpush.bf16.msra.mxu0 %v3578
    %3850 = vmatpush.bf16.msra.mxu0 %v3572
    %3851 = vmatpush.bf16.msra.mxu0 %v3566
    %3852 = vmatpush.bf16.msra.mxu0 %v3560
    %3853 = vmatpush.bf16.msra.mxu0 %v3554
    %3854 = vmatmul.bf16.gmra.mxu0 %v3150
    %v3855 = vpop.f32.mrf.mxu0
    %v3856 = vadd.f32 %v3254, %v3855
    %v3857 = vpop.f32.mrf.mxu0
    %3858 = vdwg.mxu0
    %3859 = vmatpush.bf16.msra.mxu0 %v3644
    %3860 = vmatpush.bf16.msra.mxu0 %v3638
    %3861 = vmatpush.bf16.msra.mxu0 %v3632
    %3862 = vmatpush.bf16.msra.mxu0 %v3626
    %3863 = vmatpush.bf16.msra.mxu0 %v3620
    %3864 = vmatpush.bf16.msra.mxu0 %v3614
    %3865 = vmatpush.bf16.msra.mxu0 %v3608
    %3866 = vmatpush.bf16.msra.mxu0 %v3602
    %3867 = vmatmul.bf16.gmra.mxu0 %v3151
    %v3868 = vpop.f32.mrf.mxu0
    %v3869 = vadd.f32 %v3856, %v3868
    %v3870 = vpop.f32.mrf.mxu0
    %3871 = vdwg.mxu0
    %3872 = vmatpush.bf16.msra.mxu0 %v3597
    %3873 = vmatpush.bf16.msra.mxu0 %v3591
    %3874 = vmatpush.bf16.msra.mxu0 %v3585
    %3875 = vmatpush.bf16.msra.mxu0 %v3579
    %3876 = vmatpush.bf16.msra.mxu0 %v3573
    %3877 = vmatpush.bf16.msra.mxu0 %v3567
    %3878 = vmatpush.bf16.msra.mxu0 %v3561
    %3879 = vmatpush.bf16.msra.mxu0 %v3555
    %3880 = vmatmul.bf16.gmra.mxu0 %v3150
    %v3881 = vpop.f32.mrf.mxu0
    %v3882 = vadd.f32 %v3255, %v3881
    %v3883 = vpop.f32.mrf.mxu0
    %3884 = vdwg.mxu0
    %3885 = vmatpush.bf16.msra.mxu0 %v3645
    %3886 = vmatpush.bf16.msra.mxu0 %v3639
    %3887 = vmatpush.bf16.msra.mxu0 %v3633
    %3888 = vmatpush.bf16.msra.mxu0 %v3627
    %3889 = vmatpush.bf16.msra.mxu0 %v3621
    %3890 = vmatpush.bf16.msra.mxu0 %v3615
    %3891 = vmatpush.bf16.msra.mxu0 %v3609
    %3892 = vmatpush.bf16.msra.mxu0 %v3603
    %3893 = vmatmul.bf16.gmra.mxu0 %v3151
    %v3894 = vpop.f32.mrf.mxu0
    %v3895 = vadd.f32 %v3882, %v3894
    %v3896 = vpop.f32.mrf.mxu0
    %3897 = vdwg.mxu0
    %s3898 = scalar_lea.vmem [#allocation2], 144
    %v3899 = vld [vmem:[%s3898] sm:$0xff]
    %v3900 = vld [vmem:[%s3898 + $0x8] sm:$0xff]
    %v3901 = vld [vmem:[%s3898 + $0x10] sm:$0xff]
    %s3902 = scalar_lea.vmem [#allocation2], 288
    %v3903 = vld [vmem:[%s3902 + $0x18] sm:$0xff]
    %v3904 = vld [vmem:[%s3902 + $0x20] sm:$0xff]
    %v3905 = vld [vmem:[%s3902 + $0x28] sm:$0xff]
    %v3906 = vadd.f32 %v3899, %v3765
    %v3907 = vxor.u32 %v3906, 2147483648
    %v3908 = vmul.f32 %v3907, 1.442695
    %v3909 = vpow.pop %v3908
    %v3910 = vadd.f32 %v3909, 1.0
    %v3911 = vrcp.pop %v3910
    %v3912 = vmul.f32 %v3910, %v3911
    %v3913 = vsub.f32 1.0, %v3912
    %v3914 = vmul.f32 %v3911, %v3913
    %v3915 = vadd.f32 %v3911, %v3914
    %vm3916 = vweird.f32 %v3910
    %vm3917 = vweird.f32 %v3911
    %vm3918 = vmor %vm3916, %vm3917
    %v3919 = vsel %vm3918, %v3911, %v3915
    %v3920 = vand.u32 2147483647, %v3910
    %vm3921 = vcmp.eq.f32.partialorder %v3920, 8.507059e+37
    %v3922 = vand.u32 %v3910, 2147483648
    %v3923 = vor.u32 1.1754944e-38, %v3922
    %v3924 = vsel %vm3921, %v3923, %v3919
    %v3925 = vmul.f32 1.0, %v3924
    %v3926 = vadd.f32 %v3900, %v3791
    %v3927 = vxor.u32 %v3926, 2147483648
    %v3928 = vmul.f32 %v3927, 1.442695
    %v3929 = vpow.pop %v3928
    %v3930 = vadd.f32 %v3929, 1.0
    %v3931 = vrcp.pop %v3930
    %v3932 = vmul.f32 %v3930, %v3931
    %v3933 = vsub.f32 1.0, %v3932
    %v3934 = vmul.f32 %v3931, %v3933
    %v3935 = vadd.f32 %v3931, %v3934
    %vm3936 = vweird.f32 %v3930
    %vm3937 = vweird.f32 %v3931
    %vm3938 = vmor %vm3936, %vm3937
    %v3939 = vsel %vm3938, %v3931, %v3935
    %v3940 = vand.u32 2147483647, %v3930
    %vm3941 = vcmp.eq.f32.partialorder %v3940, 8.507059e+37
    %v3942 = vand.u32 %v3930, 2147483648
    %v3943 = vor.u32 1.1754944e-38, %v3942
    %v3944 = vsel %vm3941, %v3943, %v3939
    %v3945 = vmul.f32 1.0, %v3944
    %v3946 = vmul.f32 %v3925, %v3817
    %v3947 = vadd.f32 %v3901, %v3946
    %v3948 = vtanh.pop %v3947
    %v3949 = vsub.f32 %v3148, %v3948
    %v3950 = vmul.f32 %v3945, %v3949
    %v3951 = vadd.f32 %v3948, %v3950
    %v3952 = vadd.f32 %v3903, %v3843
    %v3953 = vxor.u32 %v3952, 2147483648
    %v3954 = vmul.f32 %v3953, 1.442695
    %v3955 = vpow.pop %v3954
    %v3956 = vadd.f32 %v3955, 1.0
    %v3957 = vrcp.pop %v3956
    %v3958 = vmul.f32 %v3956, %v3957
    %v3959 = vsub.f32 1.0, %v3958
    %v3960 = vmul.f32 %v3957, %v3959
    %v3961 = vadd.f32 %v3957, %v3960
    %vm3962 = vweird.f32 %v3956
    %vm3963 = vweird.f32 %v3957
    %vm3964 = vmor %vm3962, %vm3963
    %v3965 = vsel %vm3964, %v3957, %v3961
    %v3966 = vand.u32 2147483647, %v3956
    %vm3967 = vcmp.eq.f32.partialorder %v3966, 8.507059e+37
    %v3968 = vand.u32 %v3956, 2147483648
    %v3969 = vor.u32 1.1754944e-38, %v3968
    %v3970 = vsel %vm3967, %v3969, %v3965
    %v3971 = vmul.f32 1.0, %v3970
    %v3972 = vadd.f32 %v3904, %v3869
    %v3973 = vxor.u32 %v3972, 2147483648
    %v3974 = vmul.f32 %v3973, 1.442695
    %v3975 = vpow.pop %v3974
    %v3976 = vadd.f32 %v3975, 1.0
    %v3977 = vrcp.pop %v3976
    %v3978 = vmul.f32 %v3976, %v3977
    %v3979 = vsub.f32 1.0, %v3978
    %v3980 = vmul.f32 %v3977, %v3979
    %v3981 = vadd.f32 %v3977, %v3980
    %vm3982 = vweird.f32 %v3976
    %vm3983 = vweird.f32 %v3977
    %vm3984 = vmor %vm3982, %vm3983
    %v3985 = vsel %vm3984, %v3977, %v3981
    %v3986 = vand.u32 2147483647, %v3976
    %vm3987 = vcmp.eq.f32.partialorder %v3986, 8.507059e+37
    %v3988 = vand.u32 %v3976, 2147483648
    %v3989 = vor.u32 1.1754944e-38, %v3988
    %v3990 = vsel %vm3987, %v3989, %v3985
    %v3991 = vmul.f32 1.0, %v3990
    %v3992 = vmul.f32 %v3971, %v3895
    %v3993 = vadd.f32 %v3905, %v3992
    %v3994 = vtanh.pop %v3993
    %v3995 = vsub.f32 %v3149, %v3994
    %v3996 = vmul.f32 %v3991, %v3995
    %v3997 = vadd.f32 %v3994, %v3996
    %vm3998 = vcmp.gt.s32.totalorder %v97, 3
    %vm3999 = vcmp.gt.s32.totalorder %v97, 6
    %v4000 = vsel %vm3998, 1, 0
    %4001 = vset.pattern.permute.xlu0 0
    %4002 = vperm.xlu0 %4001, %v4000
    %v4003 = vpop.permute.xlu0 %4002
    %vm4004 = vcmp.eq.s32.totalorder %v4003, 1
    %v4005 = vsel %vm4004, %v3951, 0.0
    %s4006 = scalar_lea.vmem [#allocation11], 48
    %4007 = vst [vmem:[%s4006] sm:$0xff] %v4005
    %v4008 = vsel %vm3999, 1, 0
    %4009 = vset.pattern.permute.xlu0 0
    %4010 = vperm.xlu0 %4009, %v4008
    %v4011 = vpop.permute.xlu0 %4010
    %vm4012 = vcmp.eq.s32.totalorder %v4011, 1
    %v4013 = vsel %vm4012, %v3997, 0.0
    %s4014 = scalar_lea.vmem [#allocation11], 96
    %4015 = vst [vmem:[%s4014 + $0x8] sm:$0xff] %v4013
    %v4016 = vsel %vm4004, %v3951, %v3148
    %v4017 = vsel %vm4012, %v3997, %v3149
    %v4018 = vpack.c.bf16 %v4016, %v4016
    %v4019 = vpack.c.bf16 %v4017, %v4017
    %v4020 = vld [vmem:[#allocation8] sm:$0xff]
    %v4021 = vld [vmem:[#allocation8 + $0x8] sm:$0xff]
    %v4022 = vld [vmem:[#allocation8 + $0x10] sm:$0xff]
    %v4023 = vld [vmem:[#allocation8 + $0x18] sm:$0xff]
    %v4024 = vld [vmem:[#allocation8 + $0x20] sm:$0xff]
    %v4025 = vld [vmem:[#allocation8 + $0x28] sm:$0xff]
    %v4026 = vld [vmem:[#allocation8 + $0x30] sm:$0xff]
    %v4027 = vld [vmem:[#allocation8 + $0x38] sm:$0xff]
    %v4028 = vld [vmem:[#allocation8 + $0x40] sm:$0xff]
    %v4029 = vld [vmem:[#allocation8 + $0x48] sm:$0xff]
    %v4030 = vld [vmem:[#allocation8 + $0x50] sm:$0xff]
    %v4031 = vld [vmem:[#allocation8 + $0x58] sm:$0xff]
    %v4032 = vld [vmem:[#allocation8 + $0x60] sm:$0xff]
    %v4033 = vld [vmem:[#allocation8 + $0x68] sm:$0xff]
    %v4034 = vld [vmem:[#allocation8 + $0x70] sm:$0xff]
    %v4035 = vld [vmem:[#allocation8 + $0x78] sm:$0xff]
    %v4036 = vld [vmem:[#allocation8 + $0x80] sm:$0xff]
    %v4037 = vld [vmem:[#allocation8 + $0x88] sm:$0xff]
    %v4038 = vld [vmem:[#allocation8 + $0x90] sm:$0xff]
    %v4039 = vld [vmem:[#allocation8 + $0x98] sm:$0xff]
    %v4040 = vld [vmem:[#allocation8 + $0xa0] sm:$0xff]
    %v4041 = vld [vmem:[#allocation8 + $0xa8] sm:$0xff]
    %v4042 = vld [vmem:[#allocation8 + $0xb0] sm:$0xff]
    %v4043 = vld [vmem:[#allocation8 + $0xb8] sm:$0xff]
    %v4044 = vld [vmem:[#allocation8 + $0xc0] sm:$0xff]
    %v4045 = vld [vmem:[#allocation8 + $0xc8] sm:$0xff]
    %v4046 = vld [vmem:[#allocation8 + $0xd0] sm:$0xff]
    %v4047 = vld [vmem:[#allocation8 + $0xd8] sm:$0xff]
    %v4048 = vld [vmem:[#allocation8 + $0xe0] sm:$0xff]
    %v4049 = vld [vmem:[#allocation8 + $0xe8] sm:$0xff]
    %v4050 = vld [vmem:[#allocation8 + $0xf0] sm:$0xff]
    %v4051 = vld [vmem:[#allocation8 + $0xf8] sm:$0xff]
    %v4052 = vld [vmem:[#allocation8 + $0x100] sm:$0xff]
    %v4053 = vld [vmem:[#allocation8 + $0x108] sm:$0xff]
    %v4054 = vld [vmem:[#allocation8 + $0x110] sm:$0xff]
    %v4055 = vld [vmem:[#allocation8 + $0x118] sm:$0xff]
    %v4056 = vld [vmem:[#allocation8 + $0x120] sm:$0xff]
    %v4057 = vld [vmem:[#allocation8 + $0x128] sm:$0xff]
    %v4058 = vld [vmem:[#allocation8 + $0x130] sm:$0xff]
    %v4059 = vld [vmem:[#allocation8 + $0x138] sm:$0xff]
    %v4060 = vld [vmem:[#allocation8 + $0x140] sm:$0xff]
    %v4061 = vld [vmem:[#allocation8 + $0x148] sm:$0xff]
    %v4062 = vld [vmem:[#allocation8 + $0x150] sm:$0xff]
    %v4063 = vld [vmem:[#allocation8 + $0x158] sm:$0xff]
    %v4064 = vld [vmem:[#allocation8 + $0x160] sm:$0xff]
    %v4065 = vld [vmem:[#allocation8 + $0x168] sm:$0xff]
    %v4066 = vld [vmem:[#allocation8 + $0x170] sm:$0xff]
    %v4067 = vld [vmem:[#allocation8 + $0x178] sm:$0xff]
    %v4068 = vld [vmem:[#allocation8 + $0x180] sm:$0xff]
    %v4069 = vld [vmem:[#allocation8 + $0x188] sm:$0xff]
    %v4070 = vld [vmem:[#allocation8 + $0x190] sm:$0xff]
    %v4071 = vld [vmem:[#allocation8 + $0x198] sm:$0xff]
    %v4072 = vld [vmem:[#allocation8 + $0x1a0] sm:$0xff]
    %v4073 = vld [vmem:[#allocation8 + $0x1a8] sm:$0xff]
    %v4074 = vld [vmem:[#allocation8 + $0x1b0] sm:$0xff]
    %v4075 = vld [vmem:[#allocation8 + $0x1b8] sm:$0xff]
    %v4076 = vld [vmem:[#allocation8 + $0x1c0] sm:$0xff]
    %v4077 = vld [vmem:[#allocation8 + $0x1c8] sm:$0xff]
    %v4078 = vld [vmem:[#allocation8 + $0x1d0] sm:$0xff]
    %v4079 = vld [vmem:[#allocation8 + $0x1d8] sm:$0xff]
    %v4080 = vld [vmem:[#allocation8 + $0x1e0] sm:$0xff]
    %v4081 = vld [vmem:[#allocation8 + $0x1e8] sm:$0xff]
    %v4082 = vld [vmem:[#allocation8 + $0x1f0] sm:$0xff]
    %v4083 = vld [vmem:[#allocation8 + $0x1f8] sm:$0xff]
    %v4084 = vld [vmem:[#allocation8 + $0x200] sm:$0xff]
    %v4085 = vld [vmem:[#allocation8 + $0x208] sm:$0xff]
    %v4086 = vld [vmem:[#allocation8 + $0x210] sm:$0xff]
    %v4087 = vld [vmem:[#allocation8 + $0x218] sm:$0xff]
    %v4088 = vld [vmem:[#allocation8 + $0x220] sm:$0xff]
    %v4089 = vld [vmem:[#allocation8 + $0x228] sm:$0xff]
    %v4090 = vld [vmem:[#allocation8 + $0x230] sm:$0xff]
    %v4091 = vld [vmem:[#allocation8 + $0x238] sm:$0xff]
    %v4092 = vld [vmem:[#allocation8 + $0x240] sm:$0xff]
    %v4093 = vld [vmem:[#allocation8 + $0x248] sm:$0xff]
    %v4094 = vld [vmem:[#allocation8 + $0x250] sm:$0xff]
    %v4095 = vld [vmem:[#allocation8 + $0x258] sm:$0xff]
    %v4096 = vld [vmem:[#allocation8 + $0x260] sm:$0xff]
    %v4097 = vld [vmem:[#allocation8 + $0x268] sm:$0xff]
    %v4098 = vld [vmem:[#allocation8 + $0x270] sm:$0xff]
    %v4099 = vld [vmem:[#allocation8 + $0x278] sm:$0xff]
    %v4100 = vld [vmem:[#allocation8 + $0x280] sm:$0xff]
    %v4101 = vld [vmem:[#allocation8 + $0x288] sm:$0xff]
    %v4102 = vld [vmem:[#allocation8 + $0x290] sm:$0xff]
    %v4103 = vld [vmem:[#allocation8 + $0x298] sm:$0xff]
    %v4104 = vld [vmem:[#allocation8 + $0x2a0] sm:$0xff]
    %v4105 = vld [vmem:[#allocation8 + $0x2a8] sm:$0xff]
    %v4106 = vld [vmem:[#allocation8 + $0x2b0] sm:$0xff]
    %v4107 = vld [vmem:[#allocation8 + $0x2b8] sm:$0xff]
    %v4108 = vld [vmem:[#allocation8 + $0x2c0] sm:$0xff]
    %v4109 = vld [vmem:[#allocation8 + $0x2c8] sm:$0xff]
    %v4110 = vld [vmem:[#allocation8 + $0x2d0] sm:$0xff]
    %v4111 = vld [vmem:[#allocation8 + $0x2d8] sm:$0xff]
    %v4112 = vld [vmem:[#allocation8 + $0x2e0] sm:$0xff]
    %v4113 = vld [vmem:[#allocation8 + $0x2e8] sm:$0xff]
    %v4114 = vld [vmem:[#allocation8 + $0x2f0] sm:$0xff]
    %v4115 = vld [vmem:[#allocation8 + $0x2f8] sm:$0xff]
    %v4116 = vld [vmem:[%s5] sm:$0x3f]
    %v4118 = vperm.slane %v4116, 0
    %v4119 = vperm.slane %v4116, 1
    %v4120 = vperm.slane %v4116, 2
    %v4121 = vperm.slane %v4116, 3
    %v4122 = vperm.slane %v4116, 4
    %v4123 = vperm.slane %v4116, 5
    %v4226 = vunpack.c.l.b16 %v4020
    %v4227 = vunpack.c.h.b16 %v4020
    %v4228 = vunpack.c.l.b16 %v4021
    %v4229 = vunpack.c.h.b16 %v4021
    %v4230 = vunpack.c.l.b16 %v4022
    %v4231 = vunpack.c.h.b16 %v4022
    %v4232 = vunpack.c.l.b16 %v4023
    %v4233 = vunpack.c.h.b16 %v4023
    %v4234 = vunpack.c.l.b16 %v4024
    %v4235 = vunpack.c.h.b16 %v4024
    %v4236 = vunpack.c.l.b16 %v4025
    %v4237 = vunpack.c.h.b16 %v4025
    %v4238 = vunpack.c.l.b16 %v4026
    %v4239 = vunpack.c.h.b16 %v4026
    %v4240 = vunpack.c.l.b16 %v4027
    %v4241 = vunpack.c.h.b16 %v4027
    %v4242 = vunpack.c.l.b16 %v4028
    %v4243 = vunpack.c.h.b16 %v4028
    %v4244 = vunpack.c.l.b16 %v4029
    %v4245 = vunpack.c.h.b16 %v4029
    %v4246 = vunpack.c.l.b16 %v4030
    %v4247 = vunpack.c.h.b16 %v4030
    %v4248 = vunpack.c.l.b16 %v4031
    %v4249 = vunpack.c.h.b16 %v4031
    %v4250 = vunpack.c.l.b16 %v4032
    %v4251 = vunpack.c.h.b16 %v4032
    %v4252 = vunpack.c.l.b16 %v4033
    %v4253 = vunpack.c.h.b16 %v4033
    %v4254 = vunpack.c.l.b16 %v4034
    %v4255 = vunpack.c.h.b16 %v4034
    %v4256 = vunpack.c.l.b16 %v4035
    %v4257 = vunpack.c.h.b16 %v4035
    %v4258 = vunpack.c.l.b16 %v4036
    %v4259 = vunpack.c.h.b16 %v4036
    %v4260 = vunpack.c.l.b16 %v4037
    %v4261 = vunpack.c.h.b16 %v4037
    %v4262 = vunpack.c.l.b16 %v4038
    %v4263 = vunpack.c.h.b16 %v4038
    %v4264 = vunpack.c.l.b16 %v4039
    %v4265 = vunpack.c.h.b16 %v4039
    %v4266 = vunpack.c.l.b16 %v4040
    %v4267 = vunpack.c.h.b16 %v4040
    %v4268 = vunpack.c.l.b16 %v4041
    %v4269 = vunpack.c.h.b16 %v4041
    %v4270 = vunpack.c.l.b16 %v4042
    %v4271 = vunpack.c.h.b16 %v4042
    %v4272 = vunpack.c.l.b16 %v4043
    %v4273 = vunpack.c.h.b16 %v4043
    %v4274 = vunpack.c.l.b16 %v4044
    %v4275 = vunpack.c.h.b16 %v4044
    %v4276 = vunpack.c.l.b16 %v4045
    %v4277 = vunpack.c.h.b16 %v4045
    %v4278 = vunpack.c.l.b16 %v4046
    %v4279 = vunpack.c.h.b16 %v4046
    %v4280 = vunpack.c.l.b16 %v4047
    %v4281 = vunpack.c.h.b16 %v4047
    %v4282 = vunpack.c.l.b16 %v4048
    %v4283 = vunpack.c.h.b16 %v4048
    %v4284 = vunpack.c.l.b16 %v4049
    %v4285 = vunpack.c.h.b16 %v4049
    %v4286 = vunpack.c.l.b16 %v4050
    %v4287 = vunpack.c.h.b16 %v4050
    %v4288 = vunpack.c.l.b16 %v4051
    %v4289 = vunpack.c.h.b16 %v4051
    %v4290 = vunpack.c.l.b16 %v4052
    %v4291 = vunpack.c.h.b16 %v4052
    %v4292 = vunpack.c.l.b16 %v4053
    %v4293 = vunpack.c.h.b16 %v4053
    %v4294 = vunpack.c.l.b16 %v4054
    %v4295 = vunpack.c.h.b16 %v4054
    %v4296 = vunpack.c.l.b16 %v4055
    %v4297 = vunpack.c.h.b16 %v4055
    %v4298 = vunpack.c.l.b16 %v4056
    %v4299 = vunpack.c.h.b16 %v4056
    %v4300 = vunpack.c.l.b16 %v4057
    %v4301 = vunpack.c.h.b16 %v4057
    %v4302 = vunpack.c.l.b16 %v4058
    %v4303 = vunpack.c.h.b16 %v4058
    %v4304 = vunpack.c.l.b16 %v4059
    %v4305 = vunpack.c.h.b16 %v4059
    %v4306 = vunpack.c.l.b16 %v4060
    %v4307 = vunpack.c.h.b16 %v4060
    %v4308 = vunpack.c.l.b16 %v4061
    %v4309 = vunpack.c.h.b16 %v4061
    %v4310 = vunpack.c.l.b16 %v4062
    %v4311 = vunpack.c.h.b16 %v4062
    %v4312 = vunpack.c.l.b16 %v4063
    %v4313 = vunpack.c.h.b16 %v4063
    %v4314 = vunpack.c.l.b16 %v4064
    %v4315 = vunpack.c.h.b16 %v4064
    %v4316 = vunpack.c.l.b16 %v4065
    %v4317 = vunpack.c.h.b16 %v4065
    %v4318 = vunpack.c.l.b16 %v4066
    %v4319 = vunpack.c.h.b16 %v4066
    %v4320 = vunpack.c.l.b16 %v4067
    %v4321 = vunpack.c.h.b16 %v4067
    %v4322 = vunpack.c.l.b16 %v4068
    %v4323 = vunpack.c.h.b16 %v4068
    %v4324 = vunpack.c.l.b16 %v4069
    %v4325 = vunpack.c.h.b16 %v4069
    %v4326 = vunpack.c.l.b16 %v4070
    %v4327 = vunpack.c.h.b16 %v4070
    %v4328 = vunpack.c.l.b16 %v4071
    %v4329 = vunpack.c.h.b16 %v4071
    %v4330 = vunpack.c.l.b16 %v4072
    %v4331 = vunpack.c.h.b16 %v4072
    %v4332 = vunpack.c.l.b16 %v4073
    %v4333 = vunpack.c.h.b16 %v4073
    %v4334 = vunpack.c.l.b16 %v4074
    %v4335 = vunpack.c.h.b16 %v4074
    %v4336 = vunpack.c.l.b16 %v4075
    %v4337 = vunpack.c.h.b16 %v4075
    %v4338 = vunpack.c.l.b16 %v4076
    %v4339 = vunpack.c.h.b16 %v4076
    %v4340 = vunpack.c.l.b16 %v4077
    %v4341 = vunpack.c.h.b16 %v4077
    %v4342 = vunpack.c.l.b16 %v4078
    %v4343 = vunpack.c.h.b16 %v4078
    %v4344 = vunpack.c.l.b16 %v4079
    %v4345 = vunpack.c.h.b16 %v4079
    %v4346 = vunpack.c.l.b16 %v4080
    %v4347 = vunpack.c.h.b16 %v4080
    %v4348 = vunpack.c.l.b16 %v4081
    %v4349 = vunpack.c.h.b16 %v4081
    %v4350 = vunpack.c.l.b16 %v4082
    %v4351 = vunpack.c.h.b16 %v4082
    %v4352 = vunpack.c.l.b16 %v4083
    %v4353 = vunpack.c.h.b16 %v4083
    %v4354 = vunpack.c.l.b16 %v4084
    %v4355 = vunpack.c.h.b16 %v4084
    %v4356 = vunpack.c.l.b16 %v4085
    %v4357 = vunpack.c.h.b16 %v4085
    %v4358 = vunpack.c.l.b16 %v4086
    %v4359 = vunpack.c.h.b16 %v4086
    %v4360 = vunpack.c.l.b16 %v4087
    %v4361 = vunpack.c.h.b16 %v4087
    %v4362 = vunpack.c.l.b16 %v4088
    %v4363 = vunpack.c.h.b16 %v4088
    %v4364 = vunpack.c.l.b16 %v4089
    %v4365 = vunpack.c.h.b16 %v4089
    %v4366 = vunpack.c.l.b16 %v4090
    %v4367 = vunpack.c.h.b16 %v4090
    %v4368 = vunpack.c.l.b16 %v4091
    %v4369 = vunpack.c.h.b16 %v4091
    %v4370 = vunpack.c.l.b16 %v4092
    %v4371 = vunpack.c.h.b16 %v4092
    %v4372 = vunpack.c.l.b16 %v4093
    %v4373 = vunpack.c.h.b16 %v4093
    %v4374 = vunpack.c.l.b16 %v4094
    %v4375 = vunpack.c.h.b16 %v4094
    %v4376 = vunpack.c.l.b16 %v4095
    %v4377 = vunpack.c.h.b16 %v4095
    %v4378 = vunpack.c.l.b16 %v4096
    %v4379 = vunpack.c.h.b16 %v4096
    %v4380 = vunpack.c.l.b16 %v4097
    %v4381 = vunpack.c.h.b16 %v4097
    %v4382 = vunpack.c.l.b16 %v4098
    %v4383 = vunpack.c.h.b16 %v4098
    %v4384 = vunpack.c.l.b16 %v4099
    %v4385 = vunpack.c.h.b16 %v4099
    %v4386 = vunpack.c.l.b16 %v4100
    %v4387 = vunpack.c.h.b16 %v4100
    %v4388 = vunpack.c.l.b16 %v4101
    %v4389 = vunpack.c.h.b16 %v4101
    %v4390 = vunpack.c.l.b16 %v4102
    %v4391 = vunpack.c.h.b16 %v4102
    %v4392 = vunpack.c.l.b16 %v4103
    %v4393 = vunpack.c.h.b16 %v4103
    %v4394 = vunpack.c.l.b16 %v4104
    %v4395 = vunpack.c.h.b16 %v4104
    %v4396 = vunpack.c.l.b16 %v4105
    %v4397 = vunpack.c.h.b16 %v4105
    %v4398 = vunpack.c.l.b16 %v4106
    %v4399 = vunpack.c.h.b16 %v4106
    %v4400 = vunpack.c.l.b16 %v4107
    %v4401 = vunpack.c.h.b16 %v4107
    %v4402 = vunpack.c.l.b16 %v4108
    %v4403 = vunpack.c.h.b16 %v4108
    %v4404 = vunpack.c.l.b16 %v4109
    %v4405 = vunpack.c.h.b16 %v4109
    %v4406 = vunpack.c.l.b16 %v4110
    %v4407 = vunpack.c.h.b16 %v4110
    %v4408 = vunpack.c.l.b16 %v4111
    %v4409 = vunpack.c.h.b16 %v4111
    %v4410 = vunpack.c.l.b16 %v4112
    %v4411 = vunpack.c.h.b16 %v4112
    %v4412 = vunpack.c.l.b16 %v4113
    %v4413 = vunpack.c.h.b16 %v4113
    %v4414 = vunpack.c.l.b16 %v4114
    %v4415 = vunpack.c.h.b16 %v4114
    %v4416 = vunpack.c.l.b16 %v4115
    %v4417 = vunpack.c.h.b16 %v4115
    %v4418 = vpack.c.b16 %v4232, %v4226
    %v4419 = vpack.c.b16 %v4233, %v4227
    %v4420 = vpack.c.b16 %v4234, %v4228
    %v4421 = vpack.c.b16 %v4235, %v4229
    %v4422 = vpack.c.b16 %v4236, %v4230
    %v4423 = vpack.c.b16 %v4237, %v4231
    %v4424 = vpack.c.b16 %v4244, %v4238
    %v4425 = vpack.c.b16 %v4245, %v4239
    %v4426 = vpack.c.b16 %v4246, %v4240
    %v4427 = vpack.c.b16 %v4247, %v4241
    %v4428 = vpack.c.b16 %v4248, %v4242
    %v4429 = vpack.c.b16 %v4249, %v4243
    %v4430 = vpack.c.b16 %v4256, %v4250
    %v4431 = vpack.c.b16 %v4257, %v4251
    %v4432 = vpack.c.b16 %v4258, %v4252
    %v4433 = vpack.c.b16 %v4259, %v4253
    %v4434 = vpack.c.b16 %v4260, %v4254
    %v4435 = vpack.c.b16 %v4261, %v4255
    %v4436 = vpack.c.b16 %v4268, %v4262
    %v4437 = vpack.c.b16 %v4269, %v4263
    %v4438 = vpack.c.b16 %v4270, %v4264
    %v4439 = vpack.c.b16 %v4271, %v4265
    %v4440 = vpack.c.b16 %v4272, %v4266
    %v4441 = vpack.c.b16 %v4273, %v4267
    %v4442 = vpack.c.b16 %v4280, %v4274
    %v4443 = vpack.c.b16 %v4281, %v4275
    %v4444 = vpack.c.b16 %v4282, %v4276
    %v4445 = vpack.c.b16 %v4283, %v4277
    %v4446 = vpack.c.b16 %v4284, %v4278
    %v4447 = vpack.c.b16 %v4285, %v4279
    %v4448 = vpack.c.b16 %v4292, %v4286
    %v4449 = vpack.c.b16 %v4293, %v4287
    %v4450 = vpack.c.b16 %v4294, %v4288
    %v4451 = vpack.c.b16 %v4295, %v4289
    %v4452 = vpack.c.b16 %v4296, %v4290
    %v4453 = vpack.c.b16 %v4297, %v4291
    %v4454 = vpack.c.b16 %v4304, %v4298
    %v4455 = vpack.c.b16 %v4305, %v4299
    %v4456 = vpack.c.b16 %v4306, %v4300
    %v4457 = vpack.c.b16 %v4307, %v4301
    %v4458 = vpack.c.b16 %v4308, %v4302
    %v4459 = vpack.c.b16 %v4309, %v4303
    %v4460 = vpack.c.b16 %v4316, %v4310
    %v4461 = vpack.c.b16 %v4317, %v4311
    %v4462 = vpack.c.b16 %v4318, %v4312
    %v4463 = vpack.c.b16 %v4319, %v4313
    %v4464 = vpack.c.b16 %v4320, %v4314
    %v4465 = vpack.c.b16 %v4321, %v4315
    %v4466 = vpack.c.b16 %v4328, %v4322
    %v4467 = vpack.c.b16 %v4329, %v4323
    %v4468 = vpack.c.b16 %v4330, %v4324
    %v4469 = vpack.c.b16 %v4331, %v4325
    %v4470 = vpack.c.b16 %v4332, %v4326
    %v4471 = vpack.c.b16 %v4333, %v4327
    %v4472 = vpack.c.b16 %v4340, %v4334
    %v4473 = vpack.c.b16 %v4341, %v4335
    %v4474 = vpack.c.b16 %v4342, %v4336
    %v4475 = vpack.c.b16 %v4343, %v4337
    %v4476 = vpack.c.b16 %v4344, %v4338
    %v4477 = vpack.c.b16 %v4345, %v4339
    %v4478 = vpack.c.b16 %v4352, %v4346
    %v4479 = vpack.c.b16 %v4353, %v4347
    %v4480 = vpack.c.b16 %v4354, %v4348
    %v4481 = vpack.c.b16 %v4355, %v4349
    %v4482 = vpack.c.b16 %v4356, %v4350
    %v4483 = vpack.c.b16 %v4357, %v4351
    %v4484 = vpack.c.b16 %v4364, %v4358
    %v4485 = vpack.c.b16 %v4365, %v4359
    %v4486 = vpack.c.b16 %v4366, %v4360
    %v4487 = vpack.c.b16 %v4367, %v4361
    %v4488 = vpack.c.b16 %v4368, %v4362
    %v4489 = vpack.c.b16 %v4369, %v4363
    %v4490 = vpack.c.b16 %v4376, %v4370
    %v4491 = vpack.c.b16 %v4377, %v4371
    %v4492 = vpack.c.b16 %v4378, %v4372
    %v4493 = vpack.c.b16 %v4379, %v4373
    %v4494 = vpack.c.b16 %v4380, %v4374
    %v4495 = vpack.c.b16 %v4381, %v4375
    %v4496 = vpack.c.b16 %v4388, %v4382
    %v4497 = vpack.c.b16 %v4389, %v4383
    %v4498 = vpack.c.b16 %v4390, %v4384
    %v4499 = vpack.c.b16 %v4391, %v4385
    %v4500 = vpack.c.b16 %v4392, %v4386
    %v4501 = vpack.c.b16 %v4393, %v4387
    %v4502 = vpack.c.b16 %v4400, %v4394
    %v4503 = vpack.c.b16 %v4401, %v4395
    %v4504 = vpack.c.b16 %v4402, %v4396
    %v4505 = vpack.c.b16 %v4403, %v4397
    %v4506 = vpack.c.b16 %v4404, %v4398
    %v4507 = vpack.c.b16 %v4405, %v4399
    %v4508 = vpack.c.b16 %v4412, %v4406
    %v4509 = vpack.c.b16 %v4413, %v4407
    %v4510 = vpack.c.b16 %v4414, %v4408
    %v4511 = vpack.c.b16 %v4415, %v4409
    %v4512 = vpack.c.b16 %v4416, %v4410
    %v4513 = vpack.c.b16 %v4417, %v4411
    %4610 = vmatpush.bf16.msra.mxu0 %v4460
    %4611 = vmatpush.bf16.msra.mxu0 %v4454
    %4612 = vmatpush.bf16.msra.mxu0 %v4448
    %4613 = vmatpush.bf16.msra.mxu0 %v4442
    %4614 = vmatpush.bf16.msra.mxu0 %v4436
    %4615 = vmatpush.bf16.msra.mxu0 %v4430
    %4616 = vmatpush.bf16.msra.mxu0 %v4424
    %4617 = vmatpush.bf16.msra.mxu0 %v4418
    %4618 = vmatmul.bf16.gmra.mxu0 %v4018
    %v4619 = vpop.f32.mrf.mxu0
    %v4620 = vadd.f32 %v4118, %v4619
    %v4621 = vpop.f32.mrf.mxu0
    %4622 = vdwg.mxu0
    %4623 = vmatpush.bf16.msra.mxu0 %v4508
    %4624 = vmatpush.bf16.msra.mxu0 %v4502
    %4625 = vmatpush.bf16.msra.mxu0 %v4496
    %4626 = vmatpush.bf16.msra.mxu0 %v4490
    %4627 = vmatpush.bf16.msra.mxu0 %v4484
    %4628 = vmatpush.bf16.msra.mxu0 %v4478
    %4629 = vmatpush.bf16.msra.mxu0 %v4472
    %4630 = vmatpush.bf16.msra.mxu0 %v4466
    %4631 = vmatmul.bf16.gmra.mxu0 %v4019
    %v4632 = vpop.f32.mrf.mxu0
    %v4633 = vadd.f32 %v4620, %v4632
    %v4634 = vpop.f32.mrf.mxu0
    %4635 = vdwg.mxu0
    %4636 = vmatpush.bf16.msra.mxu0 %v4461
    %4637 = vmatpush.bf16.msra.mxu0 %v4455
    %4638 = vmatpush.bf16.msra.mxu0 %v4449
    %4639 = vmatpush.bf16.msra.mxu0 %v4443
    %4640 = vmatpush.bf16.msra.mxu0 %v4437
    %4641 = vmatpush.bf16.msra.mxu0 %v4431
    %4642 = vmatpush.bf16.msra.mxu0 %v4425
    %4643 = vmatpush.bf16.msra.mxu0 %v4419
    %4644 = vmatmul.bf16.gmra.mxu0 %v4018
    %v4645 = vpop.f32.mrf.mxu0
    %v4646 = vadd.f32 %v4119, %v4645
    %v4647 = vpop.f32.mrf.mxu0
    %4648 = vdwg.mxu0
    %4649 = vmatpush.bf16.msra.mxu0 %v4509
    %4650 = vmatpush.bf16.msra.mxu0 %v4503
    %4651 = vmatpush.bf16.msra.mxu0 %v4497
    %4652 = vmatpush.bf16.msra.mxu0 %v4491
    %4653 = vmatpush.bf16.msra.mxu0 %v4485
    %4654 = vmatpush.bf16.msra.mxu0 %v4479
    %4655 = vmatpush.bf16.msra.mxu0 %v4473
    %4656 = vmatpush.bf16.msra.mxu0 %v4467
    %4657 = vmatmul.bf16.gmra.mxu0 %v4019
    %v4658 = vpop.f32.mrf.mxu0
    %v4659 = vadd.f32 %v4646, %v4658
    %v4660 = vpop.f32.mrf.mxu0
    %4661 = vdwg.mxu0
    %4662 = vmatpush.bf16.msra.mxu0 %v4462
    %4663 = vmatpush.bf16.msra.mxu0 %v4456
    %4664 = vmatpush.bf16.msra.mxu0 %v4450
    %4665 = vmatpush.bf16.msra.mxu0 %v4444
    %4666 = vmatpush.bf16.msra.mxu0 %v4438
    %4667 = vmatpush.bf16.msra.mxu0 %v4432
    %4668 = vmatpush.bf16.msra.mxu0 %v4426
    %4669 = vmatpush.bf16.msra.mxu0 %v4420
    %4670 = vmatmul.bf16.gmra.mxu0 %v4018
    %v4671 = vpop.f32.mrf.mxu0
    %v4672 = vadd.f32 %v4120, %v4671
    %v4673 = vpop.f32.mrf.mxu0
    %4674 = vdwg.mxu0
    %4675 = vmatpush.bf16.msra.mxu0 %v4510
    %4676 = vmatpush.bf16.msra.mxu0 %v4504
    %4677 = vmatpush.bf16.msra.mxu0 %v4498
    %4678 = vmatpush.bf16.msra.mxu0 %v4492
    %4679 = vmatpush.bf16.msra.mxu0 %v4486
    %4680 = vmatpush.bf16.msra.mxu0 %v4480
    %4681 = vmatpush.bf16.msra.mxu0 %v4474
    %4682 = vmatpush.bf16.msra.mxu0 %v4468
    %4683 = vmatmul.bf16.gmra.mxu0 %v4019
    %v4684 = vpop.f32.mrf.mxu0
    %v4685 = vadd.f32 %v4672, %v4684
    %v4686 = vpop.f32.mrf.mxu0
    %4687 = vdwg.mxu0
    %4688 = vmatpush.bf16.msra.mxu0 %v4463
    %4689 = vmatpush.bf16.msra.mxu0 %v4457
    %4690 = vmatpush.bf16.msra.mxu0 %v4451
    %4691 = vmatpush.bf16.msra.mxu0 %v4445
    %4692 = vmatpush.bf16.msra.mxu0 %v4439
    %4693 = vmatpush.bf16.msra.mxu0 %v4433
    %4694 = vmatpush.bf16.msra.mxu0 %v4427
    %4695 = vmatpush.bf16.msra.mxu0 %v4421
    %4696 = vmatmul.bf16.gmra.mxu0 %v4018
    %v4697 = vpop.f32.mrf.mxu0
    %v4698 = vadd.f32 %v4121, %v4697
    %v4699 = vpop.f32.mrf.mxu0
    %4700 = vdwg.mxu0
    %4701 = vmatpush.bf16.msra.mxu0 %v4511
    %4702 = vmatpush.bf16.msra.mxu0 %v4505
    %4703 = vmatpush.bf16.msra.mxu0 %v4499
    %4704 = vmatpush.bf16.msra.mxu0 %v4493
    %4705 = vmatpush.bf16.msra.mxu0 %v4487
    %4706 = vmatpush.bf16.msra.mxu0 %v4481
    %4707 = vmatpush.bf16.msra.mxu0 %v4475
    %4708 = vmatpush.bf16.msra.mxu0 %v4469
    %4709 = vmatmul.bf16.gmra.mxu0 %v4019
    %v4710 = vpop.f32.mrf.mxu0
    %v4711 = vadd.f32 %v4698, %v4710
    %v4712 = vpop.f32.mrf.mxu0
    %4713 = vdwg.mxu0
    %4714 = vmatpush.bf16.msra.mxu0 %v4464
    %4715 = vmatpush.bf16.msra.mxu0 %v4458
    %4716 = vmatpush.bf16.msra.mxu0 %v4452
    %4717 = vmatpush.bf16.msra.mxu0 %v4446
    %4718 = vmatpush.bf16.msra.mxu0 %v4440
    %4719 = vmatpush.bf16.msra.mxu0 %v4434
    %4720 = vmatpush.bf16.msra.mxu0 %v4428
    %4721 = vmatpush.bf16.msra.mxu0 %v4422
    %4722 = vmatmul.bf16.gmra.mxu0 %v4018
    %v4723 = vpop.f32.mrf.mxu0
    %v4724 = vadd.f32 %v4122, %v4723
    %v4725 = vpop.f32.mrf.mxu0
    %4726 = vdwg.mxu0
    %4727 = vmatpush.bf16.msra.mxu0 %v4512
    %4728 = vmatpush.bf16.msra.mxu0 %v4506
    %4729 = vmatpush.bf16.msra.mxu0 %v4500
    %4730 = vmatpush.bf16.msra.mxu0 %v4494
    %4731 = vmatpush.bf16.msra.mxu0 %v4488
    %4732 = vmatpush.bf16.msra.mxu0 %v4482
    %4733 = vmatpush.bf16.msra.mxu0 %v4476
    %4734 = vmatpush.bf16.msra.mxu0 %v4470
    %4735 = vmatmul.bf16.gmra.mxu0 %v4019
    %v4736 = vpop.f32.mrf.mxu0
    %v4737 = vadd.f32 %v4724, %v4736
    %v4738 = vpop.f32.mrf.mxu0
    %4739 = vdwg.mxu0
    %4740 = vmatpush.bf16.msra.mxu0 %v4465
    %4741 = vmatpush.bf16.msra.mxu0 %v4459
    %4742 = vmatpush.bf16.msra.mxu0 %v4453
    %4743 = vmatpush.bf16.msra.mxu0 %v4447
    %4744 = vmatpush.bf16.msra.mxu0 %v4441
    %4745 = vmatpush.bf16.msra.mxu0 %v4435
    %4746 = vmatpush.bf16.msra.mxu0 %v4429
    %4747 = vmatpush.bf16.msra.mxu0 %v4423
    %4748 = vmatmul.bf16.gmra.mxu0 %v4018
    %v4749 = vpop.f32.mrf.mxu0
    %v4750 = vadd.f32 %v4123, %v4749
    %v4751 = vpop.f32.mrf.mxu0
    %4752 = vdwg.mxu0
    %4753 = vmatpush.bf16.msra.mxu0 %v4513
    %4754 = vmatpush.bf16.msra.mxu0 %v4507
    %4755 = vmatpush.bf16.msra.mxu0 %v4501
    %4756 = vmatpush.bf16.msra.mxu0 %v4495
    %4757 = vmatpush.bf16.msra.mxu0 %v4489
    %4758 = vmatpush.bf16.msra.mxu0 %v4483
    %4759 = vmatpush.bf16.msra.mxu0 %v4477
    %4760 = vmatpush.bf16.msra.mxu0 %v4471
    %4761 = vmatmul.bf16.gmra.mxu0 %v4019
    %v4762 = vpop.f32.mrf.mxu0
    %v4763 = vadd.f32 %v4750, %v4762
    %v4764 = vpop.f32.mrf.mxu0
    %4765 = vdwg.mxu0
    %s4766 = scalar_lea.vmem [#allocation2], 192
    %v4767 = vld [vmem:[%s4766] sm:$0xff]
    %v4768 = vld [vmem:[%s4766 + $0x8] sm:$0xff]
    %v4769 = vld [vmem:[%s4766 + $0x10] sm:$0xff]
    %s4770 = scalar_lea.vmem [#allocation2], 240
    %v4771 = vld [vmem:[%s4770 + $0x18] sm:$0xff]
    %v4772 = vld [vmem:[%s4770 + $0x20] sm:$0xff]
    %v4773 = vld [vmem:[%s4770 + $0x28] sm:$0xff]
    %v4774 = vadd.f32 %v4767, %v4633
    %v4775 = vxor.u32 %v4774, 2147483648
    %v4776 = vmul.f32 %v4775, 1.442695
    %v4777 = vpow.pop %v4776
    %v4778 = vadd.f32 %v4777, 1.0
    %v4779 = vrcp.pop %v4778
    %v4780 = vmul.f32 %v4778, %v4779
    %v4781 = vsub.f32 1.0, %v4780
    %v4782 = vmul.f32 %v4779, %v4781
    %v4783 = vadd.f32 %v4779, %v4782
    %vm4784 = vweird.f32 %v4778
    %vm4785 = vweird.f32 %v4779
    %vm4786 = vmor %vm4784, %vm4785
    %v4787 = vsel %vm4786, %v4779, %v4783
    %v4788 = vand.u32 2147483647, %v4778
    %vm4789 = vcmp.eq.f32.partialorder %v4788, 8.507059e+37
    %v4790 = vand.u32 %v4778, 2147483648
    %v4791 = vor.u32 1.1754944e-38, %v4790
    %v4792 = vsel %vm4789, %v4791, %v4787
    %v4793 = vmul.f32 1.0, %v4792
    %v4794 = vadd.f32 %v4768, %v4659
    %v4795 = vxor.u32 %v4794, 2147483648
    %v4796 = vmul.f32 %v4795, 1.442695
    %v4797 = vpow.pop %v4796
    %v4798 = vadd.f32 %v4797, 1.0
    %v4799 = vrcp.pop %v4798
    %v4800 = vmul.f32 %v4798, %v4799
    %v4801 = vsub.f32 1.0, %v4800
    %v4802 = vmul.f32 %v4799, %v4801
    %v4803 = vadd.f32 %v4799, %v4802
    %vm4804 = vweird.f32 %v4798
    %vm4805 = vweird.f32 %v4799
    %vm4806 = vmor %vm4804, %vm4805
    %v4807 = vsel %vm4806, %v4799, %v4803
    %v4808 = vand.u32 2147483647, %v4798
    %vm4809 = vcmp.eq.f32.partialorder %v4808, 8.507059e+37
    %v4810 = vand.u32 %v4798, 2147483648
    %v4811 = vor.u32 1.1754944e-38, %v4810
    %v4812 = vsel %vm4809, %v4811, %v4807
    %v4813 = vmul.f32 1.0, %v4812
    %v4814 = vmul.f32 %v4793, %v4685
    %v4815 = vadd.f32 %v4769, %v4814
    %v4816 = vtanh.pop %v4815
    %v4817 = vsub.f32 %v4016, %v4816
    %v4818 = vmul.f32 %v4813, %v4817
    %v4819 = vadd.f32 %v4816, %v4818
    %v4820 = vadd.f32 %v4771, %v4711
    %v4821 = vxor.u32 %v4820, 2147483648
    %v4822 = vmul.f32 %v4821, 1.442695
    %v4823 = vpow.pop %v4822
    %v4824 = vadd.f32 %v4823, 1.0
    %v4825 = vrcp.pop %v4824
    %v4826 = vmul.f32 %v4824, %v4825
    %v4827 = vsub.f32 1.0, %v4826
    %v4828 = vmul.f32 %v4825, %v4827
    %v4829 = vadd.f32 %v4825, %v4828
    %vm4830 = vweird.f32 %v4824
    %vm4831 = vweird.f32 %v4825
    %vm4832 = vmor %vm4830, %vm4831
    %v4833 = vsel %vm4832, %v4825, %v4829
    %v4834 = vand.u32 2147483647, %v4824
    %vm4835 = vcmp.eq.f32.partialorder %v4834, 8.507059e+37
    %v4836 = vand.u32 %v4824, 2147483648
    %v4837 = vor.u32 1.1754944e-38, %v4836
    %v4838 = vsel %vm4835, %v4837, %v4833
    %v4839 = vmul.f32 1.0, %v4838
    %v4840 = vadd.f32 %v4772, %v4737
    %v4841 = vxor.u32 %v4840, 2147483648
    %v4842 = vmul.f32 %v4841, 1.442695
    %v4843 = vpow.pop %v4842
    %v4844 = vadd.f32 %v4843, 1.0
    %v4845 = vrcp.pop %v4844
    %v4846 = vmul.f32 %v4844, %v4845
    %v4847 = vsub.f32 1.0, %v4846
    %v4848 = vmul.f32 %v4845, %v4847
    %v4849 = vadd.f32 %v4845, %v4848
    %vm4850 = vweird.f32 %v4844
    %vm4851 = vweird.f32 %v4845
    %vm4852 = vmor %vm4850, %vm4851
    %v4853 = vsel %vm4852, %v4845, %v4849
    %v4854 = vand.u32 2147483647, %v4844
    %vm4855 = vcmp.eq.f32.partialorder %v4854, 8.507059e+37
    %v4856 = vand.u32 %v4844, 2147483648
    %v4857 = vor.u32 1.1754944e-38, %v4856
    %v4858 = vsel %vm4855, %v4857, %v4853
    %v4859 = vmul.f32 1.0, %v4858
    %v4860 = vmul.f32 %v4839, %v4763
    %v4861 = vadd.f32 %v4773, %v4860
    %v4862 = vtanh.pop %v4861
    %v4863 = vsub.f32 %v4017, %v4862
    %v4864 = vmul.f32 %v4859, %v4863
    %v4865 = vadd.f32 %v4862, %v4864
    %vm4866 = vcmp.gt.s32.totalorder %v97, 4
    %vm4867 = vcmp.gt.s32.totalorder %v97, 5
    %v4868 = vsel %vm4866, 1, 0
    %4869 = vset.pattern.permute.xlu0 0
    %4870 = vperm.xlu0 %4869, %v4868
    %v4871 = vpop.permute.xlu0 %4870
    %vm4872 = vcmp.eq.s32.totalorder %v4871, 1
    %v4873 = vsel %vm4872, %v4819, 0.0
    %s4874 = scalar_lea.vmem [#allocation11], 64
    %4875 = vst [vmem:[%s4874] sm:$0xff] %v4873
    %v4876 = vsel %vm4867, 1, 0
    %4877 = vset.pattern.permute.xlu0 0
    %4878 = vperm.xlu0 %4877, %v4876
    %v4879 = vpop.permute.xlu0 %4878
    %vm4880 = vcmp.eq.s32.totalorder %v4879, 1
    %v4881 = vsel %vm4880, %v4865, 0.0
    %s4882 = scalar_lea.vmem [#allocation11], 80
    %4883 = vst [vmem:[%s4882 + $0x8] sm:$0xff] %v4881
    %v4884 = vsel %vm4872, %v4819, %v4016
    %v4885 = vsel %vm4880, %v4865, %v4017
    %v4886 = vpack.c.bf16 %v4884, %v4884
    %v4887 = vpack.c.bf16 %v4885, %v4885
    %v4888 = vld [vmem:[#allocation8] sm:$0xff]
    %v4889 = vld [vmem:[#allocation8 + $0x8] sm:$0xff]
    %v4890 = vld [vmem:[#allocation8 + $0x10] sm:$0xff]
    %v4891 = vld [vmem:[#allocation8 + $0x18] sm:$0xff]
    %v4892 = vld [vmem:[#allocation8 + $0x20] sm:$0xff]
    %v4893 = vld [vmem:[#allocation8 + $0x28] sm:$0xff]
    %v4894 = vld [vmem:[#allocation8 + $0x30] sm:$0xff]
    %v4895 = vld [vmem:[#allocation8 + $0x38] sm:$0xff]
    %v4896 = vld [vmem:[#allocation8 + $0x40] sm:$0xff]
    %v4897 = vld [vmem:[#allocation8 + $0x48] sm:$0xff]
    %v4898 = vld [vmem:[#allocation8 + $0x50] sm:$0xff]
    %v4899 = vld [vmem:[#allocation8 + $0x58] sm:$0xff]
    %v4900 = vld [vmem:[#allocation8 + $0x60] sm:$0xff]
    %v4901 = vld [vmem:[#allocation8 + $0x68] sm:$0xff]
    %v4902 = vld [vmem:[#allocation8 + $0x70] sm:$0xff]
    %v4903 = vld [vmem:[#allocation8 + $0x78] sm:$0xff]
    %v4904 = vld [vmem:[#allocation8 + $0x80] sm:$0xff]
    %v4905 = vld [vmem:[#allocation8 + $0x88] sm:$0xff]
    %v4906 = vld [vmem:[#allocation8 + $0x90] sm:$0xff]
    %v4907 = vld [vmem:[#allocation8 + $0x98] sm:$0xff]
    %v4908 = vld [vmem:[#allocation8 + $0xa0] sm:$0xff]
    %v4909 = vld [vmem:[#allocation8 + $0xa8] sm:$0xff]
    %v4910 = vld [vmem:[#allocation8 + $0xb0] sm:$0xff]
    %v4911 = vld [vmem:[#allocation8 + $0xb8] sm:$0xff]
    %v4912 = vld [vmem:[#allocation8 + $0xc0] sm:$0xff]
    %v4913 = vld [vmem:[#allocation8 + $0xc8] sm:$0xff]
    %v4914 = vld [vmem:[#allocation8 + $0xd0] sm:$0xff]
    %v4915 = vld [vmem:[#allocation8 + $0xd8] sm:$0xff]
    %v4916 = vld [vmem:[#allocation8 + $0xe0] sm:$0xff]
    %v4917 = vld [vmem:[#allocation8 + $0xe8] sm:$0xff]
    %v4918 = vld [vmem:[#allocation8 + $0xf0] sm:$0xff]
    %v4919 = vld [vmem:[#allocation8 + $0xf8] sm:$0xff]
    %v4920 = vld [vmem:[#allocation8 + $0x100] sm:$0xff]
    %v4921 = vld [vmem:[#allocation8 + $0x108] sm:$0xff]
    %v4922 = vld [vmem:[#allocation8 + $0x110] sm:$0xff]
    %v4923 = vld [vmem:[#allocation8 + $0x118] sm:$0xff]
    %v4924 = vld [vmem:[#allocation8 + $0x120] sm:$0xff]
    %v4925 = vld [vmem:[#allocation8 + $0x128] sm:$0xff]
    %v4926 = vld [vmem:[#allocation8 + $0x130] sm:$0xff]
    %v4927 = vld [vmem:[#allocation8 + $0x138] sm:$0xff]
    %v4928 = vld [vmem:[#allocation8 + $0x140] sm:$0xff]
    %v4929 = vld [vmem:[#allocation8 + $0x148] sm:$0xff]
    %v4930 = vld [vmem:[#allocation8 + $0x150] sm:$0xff]
    %v4931 = vld [vmem:[#allocation8 + $0x158] sm:$0xff]
    %v4932 = vld [vmem:[#allocation8 + $0x160] sm:$0xff]
    %v4933 = vld [vmem:[#allocation8 + $0x168] sm:$0xff]
    %v4934 = vld [vmem:[#allocation8 + $0x170] sm:$0xff]
    %v4935 = vld [vmem:[#allocation8 + $0x178] sm:$0xff]
    %v4936 = vld [vmem:[#allocation8 + $0x180] sm:$0xff]
    %v4937 = vld [vmem:[#allocation8 + $0x188] sm:$0xff]
    %v4938 = vld [vmem:[#allocation8 + $0x190] sm:$0xff]
    %v4939 = vld [vmem:[#allocation8 + $0x198] sm:$0xff]
    %v4940 = vld [vmem:[#allocation8 + $0x1a0] sm:$0xff]
    %v4941 = vld [vmem:[#allocation8 + $0x1a8] sm:$0xff]
    %v4942 = vld [vmem:[#allocation8 + $0x1b0] sm:$0xff]
    %v4943 = vld [vmem:[#allocation8 + $0x1b8] sm:$0xff]
    %v4944 = vld [vmem:[#allocation8 + $0x1c0] sm:$0xff]
    %v4945 = vld [vmem:[#allocation8 + $0x1c8] sm:$0xff]
    %v4946 = vld [vmem:[#allocation8 + $0x1d0] sm:$0xff]
    %v4947 = vld [vmem:[#allocation8 + $0x1d8] sm:$0xff]
    %v4948 = vld [vmem:[#allocation8 + $0x1e0] sm:$0xff]
    %v4949 = vld [vmem:[#allocation8 + $0x1e8] sm:$0xff]
    %v4950 = vld [vmem:[#allocation8 + $0x1f0] sm:$0xff]
    %v4951 = vld [vmem:[#allocation8 + $0x1f8] sm:$0xff]
    %v4952 = vld [vmem:[#allocation8 + $0x200] sm:$0xff]
    %v4953 = vld [vmem:[#allocation8 + $0x208] sm:$0xff]
    %v4954 = vld [vmem:[#allocation8 + $0x210] sm:$0xff]
    %v4955 = vld [vmem:[#allocation8 + $0x218] sm:$0xff]
    %v4956 = vld [vmem:[#allocation8 + $0x220] sm:$0xff]
    %v4957 = vld [vmem:[#allocation8 + $0x228] sm:$0xff]
    %v4958 = vld [vmem:[#allocation8 + $0x230] sm:$0xff]
    %v4959 = vld [vmem:[#allocation8 + $0x238] sm:$0xff]
    %v4960 = vld [vmem:[#allocation8 + $0x240] sm:$0xff]
    %v4961 = vld [vmem:[#allocation8 + $0x248] sm:$0xff]
    %v4962 = vld [vmem:[#allocation8 + $0x250] sm:$0xff]
    %v4963 = vld [vmem:[#allocation8 + $0x258] sm:$0xff]
    %v4964 = vld [vmem:[#allocation8 + $0x260] sm:$0xff]
    %v4965 = vld [vmem:[#allocation8 + $0x268] sm:$0xff]
    %v4966 = vld [vmem:[#allocation8 + $0x270] sm:$0xff]
    %v4967 = vld [vmem:[#allocation8 + $0x278] sm:$0xff]
    %v4968 = vld [vmem:[#allocation8 + $0x280] sm:$0xff]
    %v4969 = vld [vmem:[#allocation8 + $0x288] sm:$0xff]
    %v4970 = vld [vmem:[#allocation8 + $0x290] sm:$0xff]
    %v4971 = vld [vmem:[#allocation8 + $0x298] sm:$0xff]
    %v4972 = vld [vmem:[#allocation8 + $0x2a0] sm:$0xff]
    %v4973 = vld [vmem:[#allocation8 + $0x2a8] sm:$0xff]
    %v4974 = vld [vmem:[#allocation8 + $0x2b0] sm:$0xff]
    %v4975 = vld [vmem:[#allocation8 + $0x2b8] sm:$0xff]
    %v4976 = vld [vmem:[#allocation8 + $0x2c0] sm:$0xff]
    %v4977 = vld [vmem:[#allocation8 + $0x2c8] sm:$0xff]
    %v4978 = vld [vmem:[#allocation8 + $0x2d0] sm:$0xff]
    %v4979 = vld [vmem:[#allocation8 + $0x2d8] sm:$0xff]
    %v4980 = vld [vmem:[#allocation8 + $0x2e0] sm:$0xff]
    %v4981 = vld [vmem:[#allocation8 + $0x2e8] sm:$0xff]
    %v4982 = vld [vmem:[#allocation8 + $0x2f0] sm:$0xff]
    %v4983 = vld [vmem:[#allocation8 + $0x2f8] sm:$0xff]
    %v4984 = vld [vmem:[%s5] sm:$0x3f]
    %v4986 = vperm.slane %v4984, 0
    %v4987 = vperm.slane %v4984, 1
    %v4988 = vperm.slane %v4984, 2
    %v4989 = vperm.slane %v4984, 3
    %v4990 = vperm.slane %v4984, 4
    %v4991 = vperm.slane %v4984, 5
    %v5094 = vunpack.c.l.b16 %v4888
    %v5095 = vunpack.c.h.b16 %v4888
    %v5096 = vunpack.c.l.b16 %v4889
    %v5097 = vunpack.c.h.b16 %v4889
    %v5098 = vunpack.c.l.b16 %v4890
    %v5099 = vunpack.c.h.b16 %v4890
    %v5100 = vunpack.c.l.b16 %v4891
    %v5101 = vunpack.c.h.b16 %v4891
    %v5102 = vunpack.c.l.b16 %v4892
    %v5103 = vunpack.c.h.b16 %v4892
    %v5104 = vunpack.c.l.b16 %v4893
    %v5105 = vunpack.c.h.b16 %v4893
    %v5106 = vunpack.c.l.b16 %v4894
    %v5107 = vunpack.c.h.b16 %v4894
    %v5108 = vunpack.c.l.b16 %v4895
    %v5109 = vunpack.c.h.b16 %v4895
    %v5110 = vunpack.c.l.b16 %v4896
    %v5111 = vunpack.c.h.b16 %v4896
    %v5112 = vunpack.c.l.b16 %v4897
    %v5113 = vunpack.c.h.b16 %v4897
    %v5114 = vunpack.c.l.b16 %v4898
    %v5115 = vunpack.c.h.b16 %v4898
    %v5116 = vunpack.c.l.b16 %v4899
    %v5117 = vunpack.c.h.b16 %v4899
    %v5118 = vunpack.c.l.b16 %v4900
    %v5119 = vunpack.c.h.b16 %v4900
    %v5120 = vunpack.c.l.b16 %v4901
    %v5121 = vunpack.c.h.b16 %v4901
    %v5122 = vunpack.c.l.b16 %v4902
    %v5123 = vunpack.c.h.b16 %v4902
    %v5124 = vunpack.c.l.b16 %v4903
    %v5125 = vunpack.c.h.b16 %v4903
    %v5126 = vunpack.c.l.b16 %v4904
    %v5127 = vunpack.c.h.b16 %v4904
    %v5128 = vunpack.c.l.b16 %v4905
    %v5129 = vunpack.c.h.b16 %v4905
    %v5130 = vunpack.c.l.b16 %v4906
    %v5131 = vunpack.c.h.b16 %v4906
    %v5132 = vunpack.c.l.b16 %v4907
    %v5133 = vunpack.c.h.b16 %v4907
    %v5134 = vunpack.c.l.b16 %v4908
    %v5135 = vunpack.c.h.b16 %v4908
    %v5136 = vunpack.c.l.b16 %v4909
    %v5137 = vunpack.c.h.b16 %v4909
    %v5138 = vunpack.c.l.b16 %v4910
    %v5139 = vunpack.c.h.b16 %v4910
    %v5140 = vunpack.c.l.b16 %v4911
    %v5141 = vunpack.c.h.b16 %v4911
    %v5142 = vunpack.c.l.b16 %v4912
    %v5143 = vunpack.c.h.b16 %v4912
    %v5144 = vunpack.c.l.b16 %v4913
    %v5145 = vunpack.c.h.b16 %v4913
    %v5146 = vunpack.c.l.b16 %v4914
    %v5147 = vunpack.c.h.b16 %v4914
    %v5148 = vunpack.c.l.b16 %v4915
    %v5149 = vunpack.c.h.b16 %v4915
    %v5150 = vunpack.c.l.b16 %v4916
    %v5151 = vunpack.c.h.b16 %v4916
    %v5152 = vunpack.c.l.b16 %v4917
    %v5153 = vunpack.c.h.b16 %v4917
    %v5154 = vunpack.c.l.b16 %v4918
    %v5155 = vunpack.c.h.b16 %v4918
    %v5156 = vunpack.c.l.b16 %v4919
    %v5157 = vunpack.c.h.b16 %v4919
    %v5158 = vunpack.c.l.b16 %v4920
    %v5159 = vunpack.c.h.b16 %v4920
    %v5160 = vunpack.c.l.b16 %v4921
    %v5161 = vunpack.c.h.b16 %v4921
    %v5162 = vunpack.c.l.b16 %v4922
    %v5163 = vunpack.c.h.b16 %v4922
    %v5164 = vunpack.c.l.b16 %v4923
    %v5165 = vunpack.c.h.b16 %v4923
    %v5166 = vunpack.c.l.b16 %v4924
    %v5167 = vunpack.c.h.b16 %v4924
    %v5168 = vunpack.c.l.b16 %v4925
    %v5169 = vunpack.c.h.b16 %v4925
    %v5170 = vunpack.c.l.b16 %v4926
    %v5171 = vunpack.c.h.b16 %v4926
    %v5172 = vunpack.c.l.b16 %v4927
    %v5173 = vunpack.c.h.b16 %v4927
    %v5174 = vunpack.c.l.b16 %v4928
    %v5175 = vunpack.c.h.b16 %v4928
    %v5176 = vunpack.c.l.b16 %v4929
    %v5177 = vunpack.c.h.b16 %v4929
    %v5178 = vunpack.c.l.b16 %v4930
    %v5179 = vunpack.c.h.b16 %v4930
    %v5180 = vunpack.c.l.b16 %v4931
    %v5181 = vunpack.c.h.b16 %v4931
    %v5182 = vunpack.c.l.b16 %v4932
    %v5183 = vunpack.c.h.b16 %v4932
    %v5184 = vunpack.c.l.b16 %v4933
    %v5185 = vunpack.c.h.b16 %v4933
    %v5186 = vunpack.c.l.b16 %v4934
    %v5187 = vunpack.c.h.b16 %v4934
    %v5188 = vunpack.c.l.b16 %v4935
    %v5189 = vunpack.c.h.b16 %v4935
    %v5190 = vunpack.c.l.b16 %v4936
    %v5191 = vunpack.c.h.b16 %v4936
    %v5192 = vunpack.c.l.b16 %v4937
    %v5193 = vunpack.c.h.b16 %v4937
    %v5194 = vunpack.c.l.b16 %v4938
    %v5195 = vunpack.c.h.b16 %v4938
    %v5196 = vunpack.c.l.b16 %v4939
    %v5197 = vunpack.c.h.b16 %v4939
    %v5198 = vunpack.c.l.b16 %v4940
    %v5199 = vunpack.c.h.b16 %v4940
    %v5200 = vunpack.c.l.b16 %v4941
    %v5201 = vunpack.c.h.b16 %v4941
    %v5202 = vunpack.c.l.b16 %v4942
    %v5203 = vunpack.c.h.b16 %v4942
    %v5204 = vunpack.c.l.b16 %v4943
    %v5205 = vunpack.c.h.b16 %v4943
    %v5206 = vunpack.c.l.b16 %v4944
    %v5207 = vunpack.c.h.b16 %v4944
    %v5208 = vunpack.c.l.b16 %v4945
    %v5209 = vunpack.c.h.b16 %v4945
    %v5210 = vunpack.c.l.b16 %v4946
    %v5211 = vunpack.c.h.b16 %v4946
    %v5212 = vunpack.c.l.b16 %v4947
    %v5213 = vunpack.c.h.b16 %v4947
    %v5214 = vunpack.c.l.b16 %v4948
    %v5215 = vunpack.c.h.b16 %v4948
    %v5216 = vunpack.c.l.b16 %v4949
    %v5217 = vunpack.c.h.b16 %v4949
    %v5218 = vunpack.c.l.b16 %v4950
    %v5219 = vunpack.c.h.b16 %v4950
    %v5220 = vunpack.c.l.b16 %v4951
    %v5221 = vunpack.c.h.b16 %v4951
    %v5222 = vunpack.c.l.b16 %v4952
    %v5223 = vunpack.c.h.b16 %v4952
    %v5224 = vunpack.c.l.b16 %v4953
    %v5225 = vunpack.c.h.b16 %v4953
    %v5226 = vunpack.c.l.b16 %v4954
    %v5227 = vunpack.c.h.b16 %v4954
    %v5228 = vunpack.c.l.b16 %v4955
    %v5229 = vunpack.c.h.b16 %v4955
    %v5230 = vunpack.c.l.b16 %v4956
    %v5231 = vunpack.c.h.b16 %v4956
    %v5232 = vunpack.c.l.b16 %v4957
    %v5233 = vunpack.c.h.b16 %v4957
    %v5234 = vunpack.c.l.b16 %v4958
    %v5235 = vunpack.c.h.b16 %v4958
    %v5236 = vunpack.c.l.b16 %v4959
    %v5237 = vunpack.c.h.b16 %v4959
    %v5238 = vunpack.c.l.b16 %v4960
    %v5239 = vunpack.c.h.b16 %v4960
    %v5240 = vunpack.c.l.b16 %v4961
    %v5241 = vunpack.c.h.b16 %v4961
    %v5242 = vunpack.c.l.b16 %v4962
    %v5243 = vunpack.c.h.b16 %v4962
    %v5244 = vunpack.c.l.b16 %v4963
    %v5245 = vunpack.c.h.b16 %v4963
    %v5246 = vunpack.c.l.b16 %v4964
    %v5247 = vunpack.c.h.b16 %v4964
    %v5248 = vunpack.c.l.b16 %v4965
    %v5249 = vunpack.c.h.b16 %v4965
    %v5250 = vunpack.c.l.b16 %v4966
    %v5251 = vunpack.c.h.b16 %v4966
    %v5252 = vunpack.c.l.b16 %v4967
    %v5253 = vunpack.c.h.b16 %v4967
    %v5254 = vunpack.c.l.b16 %v4968
    %v5255 = vunpack.c.h.b16 %v4968
    %v5256 = vunpack.c.l.b16 %v4969
    %v5257 = vunpack.c.h.b16 %v4969
    %v5258 = vunpack.c.l.b16 %v4970
    %v5259 = vunpack.c.h.b16 %v4970
    %v5260 = vunpack.c.l.b16 %v4971
    %v5261 = vunpack.c.h.b16 %v4971
    %v5262 = vunpack.c.l.b16 %v4972
    %v5263 = vunpack.c.h.b16 %v4972
    %v5264 = vunpack.c.l.b16 %v4973
    %v5265 = vunpack.c.h.b16 %v4973
    %v5266 = vunpack.c.l.b16 %v4974
    %v5267 = vunpack.c.h.b16 %v4974
    %v5268 = vunpack.c.l.b16 %v4975
    %v5269 = vunpack.c.h.b16 %v4975
    %v5270 = vunpack.c.l.b16 %v4976
    %v5271 = vunpack.c.h.b16 %v4976
    %v5272 = vunpack.c.l.b16 %v4977
    %v5273 = vunpack.c.h.b16 %v4977
    %v5274 = vunpack.c.l.b16 %v4978
    %v5275 = vunpack.c.h.b16 %v4978
    %v5276 = vunpack.c.l.b16 %v4979
    %v5277 = vunpack.c.h.b16 %v4979
    %v5278 = vunpack.c.l.b16 %v4980
    %v5279 = vunpack.c.h.b16 %v4980
    %v5280 = vunpack.c.l.b16 %v4981
    %v5281 = vunpack.c.h.b16 %v4981
    %v5282 = vunpack.c.l.b16 %v4982
    %v5283 = vunpack.c.h.b16 %v4982
    %v5284 = vunpack.c.l.b16 %v4983
    %v5285 = vunpack.c.h.b16 %v4983
    %v5286 = vpack.c.b16 %v5100, %v5094
    %v5287 = vpack.c.b16 %v5101, %v5095
    %v5288 = vpack.c.b16 %v5102, %v5096
    %v5289 = vpack.c.b16 %v5103, %v5097
    %v5290 = vpack.c.b16 %v5104, %v5098
    %v5291 = vpack.c.b16 %v5105, %v5099
    %v5292 = vpack.c.b16 %v5112, %v5106
    %v5293 = vpack.c.b16 %v5113, %v5107
    %v5294 = vpack.c.b16 %v5114, %v5108
    %v5295 = vpack.c.b16 %v5115, %v5109
    %v5296 = vpack.c.b16 %v5116, %v5110
    %v5297 = vpack.c.b16 %v5117, %v5111
    %v5298 = vpack.c.b16 %v5124, %v5118
    %v5299 = vpack.c.b16 %v5125, %v5119
    %v5300 = vpack.c.b16 %v5126, %v5120
    %v5301 = vpack.c.b16 %v5127, %v5121
    %v5302 = vpack.c.b16 %v5128, %v5122
    %v5303 = vpack.c.b16 %v5129, %v5123
    %v5304 = vpack.c.b16 %v5136, %v5130
    %v5305 = vpack.c.b16 %v5137, %v5131
    %v5306 = vpack.c.b16 %v5138, %v5132
    %v5307 = vpack.c.b16 %v5139, %v5133
    %v5308 = vpack.c.b16 %v5140, %v5134
    %v5309 = vpack.c.b16 %v5141, %v5135
    %v5310 = vpack.c.b16 %v5148, %v5142
    %v5311 = vpack.c.b16 %v5149, %v5143
    %v5312 = vpack.c.b16 %v5150, %v5144
    %v5313 = vpack.c.b16 %v5151, %v5145
    %v5314 = vpack.c.b16 %v5152, %v5146
    %v5315 = vpack.c.b16 %v5153, %v5147
    %v5316 = vpack.c.b16 %v5160, %v5154
    %v5317 = vpack.c.b16 %v5161, %v5155
    %v5318 = vpack.c.b16 %v5162, %v5156
    %v5319 = vpack.c.b16 %v5163, %v5157
    %v5320 = vpack.c.b16 %v5164, %v5158
    %v5321 = vpack.c.b16 %v5165, %v5159
    %v5322 = vpack.c.b16 %v5172, %v5166
    %v5323 = vpack.c.b16 %v5173, %v5167
    %v5324 = vpack.c.b16 %v5174, %v5168
    %v5325 = vpack.c.b16 %v5175, %v5169
    %v5326 = vpack.c.b16 %v5176, %v5170
    %v5327 = vpack.c.b16 %v5177, %v5171
    %v5328 = vpack.c.b16 %v5184, %v5178
    %v5329 = vpack.c.b16 %v5185, %v5179
    %v5330 = vpack.c.b16 %v5186, %v5180
    %v5331 = vpack.c.b16 %v5187, %v5181
    %v5332 = vpack.c.b16 %v5188, %v5182
    %v5333 = vpack.c.b16 %v5189, %v5183
    %v5334 = vpack.c.b16 %v5196, %v5190
    %v5335 = vpack.c.b16 %v5197, %v5191
    %v5336 = vpack.c.b16 %v5198, %v5192
    %v5337 = vpack.c.b16 %v5199, %v5193
    %v5338 = vpack.c.b16 %v5200, %v5194
    %v5339 = vpack.c.b16 %v5201, %v5195
    %v5340 = vpack.c.b16 %v5208, %v5202
    %v5341 = vpack.c.b16 %v5209, %v5203
    %v5342 = vpack.c.b16 %v5210, %v5204
    %v5343 = vpack.c.b16 %v5211, %v5205
    %v5344 = vpack.c.b16 %v5212, %v5206
    %v5345 = vpack.c.b16 %v5213, %v5207
    %v5346 = vpack.c.b16 %v5220, %v5214
    %v5347 = vpack.c.b16 %v5221, %v5215
    %v5348 = vpack.c.b16 %v5222, %v5216
    %v5349 = vpack.c.b16 %v5223, %v5217
    %v5350 = vpack.c.b16 %v5224, %v5218
    %v5351 = vpack.c.b16 %v5225, %v5219
    %v5352 = vpack.c.b16 %v5232, %v5226
    %v5353 = vpack.c.b16 %v5233, %v5227
    %v5354 = vpack.c.b16 %v5234, %v5228
    %v5355 = vpack.c.b16 %v5235, %v5229
    %v5356 = vpack.c.b16 %v5236, %v5230
    %v5357 = vpack.c.b16 %v5237, %v5231
    %v5358 = vpack.c.b16 %v5244, %v5238
    %v5359 = vpack.c.b16 %v5245, %v5239
    %v5360 = vpack.c.b16 %v5246, %v5240
    %v5361 = vpack.c.b16 %v5247, %v5241
    %v5362 = vpack.c.b16 %v5248, %v5242
    %v5363 = vpack.c.b16 %v5249, %v5243
    %v5364 = vpack.c.b16 %v5256, %v5250
    %v5365 = vpack.c.b16 %v5257, %v5251
    %v5366 = vpack.c.b16 %v5258, %v5252
    %v5367 = vpack.c.b16 %v5259, %v5253
    %v5368 = vpack.c.b16 %v5260, %v5254
    %v5369 = vpack.c.b16 %v5261, %v5255
    %v5370 = vpack.c.b16 %v5268, %v5262
    %v5371 = vpack.c.b16 %v5269, %v5263
    %v5372 = vpack.c.b16 %v5270, %v5264
    %v5373 = vpack.c.b16 %v5271, %v5265
    %v5374 = vpack.c.b16 %v5272, %v5266
    %v5375 = vpack.c.b16 %v5273, %v5267
    %v5376 = vpack.c.b16 %v5280, %v5274
    %v5377 = vpack.c.b16 %v5281, %v5275
    %v5378 = vpack.c.b16 %v5282, %v5276
    %v5379 = vpack.c.b16 %v5283, %v5277
    %v5380 = vpack.c.b16 %v5284, %v5278
    %v5381 = vpack.c.b16 %v5285, %v5279
    %5478 = vmatpush.bf16.msra.mxu0 %v5328
    %5479 = vmatpush.bf16.msra.mxu0 %v5322
    %5480 = vmatpush.bf16.msra.mxu0 %v5316
    %5481 = vmatpush.bf16.msra.mxu0 %v5310
    %5482 = vmatpush.bf16.msra.mxu0 %v5304
    %5483 = vmatpush.bf16.msra.mxu0 %v5298
    %5484 = vmatpush.bf16.msra.mxu0 %v5292
    %5485 = vmatpush.bf16.msra.mxu0 %v5286
    %5486 = vmatmul.bf16.gmra.mxu0 %v4886
    %v5487 = vpop.f32.mrf.mxu0
    %v5488 = vadd.f32 %v4986, %v5487
    %v5489 = vpop.f32.mrf.mxu0
    %5490 = vdwg.mxu0
    %5491 = vmatpush.bf16.msra.mxu0 %v5376
    %5492 = vmatpush.bf16.msra.mxu0 %v5370
    %5493 = vmatpush.bf16.msra.mxu0 %v5364
    %5494 = vmatpush.bf16.msra.mxu0 %v5358
    %5495 = vmatpush.bf16.msra.mxu0 %v5352
    %5496 = vmatpush.bf16.msra.mxu0 %v5346
    %5497 = vmatpush.bf16.msra.mxu0 %v5340
    %5498 = vmatpush.bf16.msra.mxu0 %v5334
    %5499 = vmatmul.bf16.gmra.mxu0 %v4887
    %v5500 = vpop.f32.mrf.mxu0
    %v5501 = vadd.f32 %v5488, %v5500
    %v5502 = vpop.f32.mrf.mxu0
    %5503 = vdwg.mxu0
    %5504 = vmatpush.bf16.msra.mxu0 %v5329
    %5505 = vmatpush.bf16.msra.mxu0 %v5323
    %5506 = vmatpush.bf16.msra.mxu0 %v5317
    %5507 = vmatpush.bf16.msra.mxu0 %v5311
    %5508 = vmatpush.bf16.msra.mxu0 %v5305
    %5509 = vmatpush.bf16.msra.mxu0 %v5299
    %5510 = vmatpush.bf16.msra.mxu0 %v5293
    %5511 = vmatpush.bf16.msra.mxu0 %v5287
    %5512 = vmatmul.bf16.gmra.mxu0 %v4886
    %v5513 = vpop.f32.mrf.mxu0
    %v5514 = vadd.f32 %v4987, %v5513
    %v5515 = vpop.f32.mrf.mxu0
    %5516 = vdwg.mxu0
    %5517 = vmatpush.bf16.msra.mxu0 %v5377
    %5518 = vmatpush.bf16.msra.mxu0 %v5371
    %5519 = vmatpush.bf16.msra.mxu0 %v5365
    %5520 = vmatpush.bf16.msra.mxu0 %v5359
    %5521 = vmatpush.bf16.msra.mxu0 %v5353
    %5522 = vmatpush.bf16.msra.mxu0 %v5347
    %5523 = vmatpush.bf16.msra.mxu0 %v5341
    %5524 = vmatpush.bf16.msra.mxu0 %v5335
    %5525 = vmatmul.bf16.gmra.mxu0 %v4887
    %v5526 = vpop.f32.mrf.mxu0
    %v5527 = vadd.f32 %v5514, %v5526
    %v5528 = vpop.f32.mrf.mxu0
    %5529 = vdwg.mxu0
    %5530 = vmatpush.bf16.msra.mxu0 %v5330
    %5531 = vmatpush.bf16.msra.mxu0 %v5324
    %5532 = vmatpush.bf16.msra.mxu0 %v5318
    %5533 = vmatpush.bf16.msra.mxu0 %v5312
    %5534 = vmatpush.bf16.msra.mxu0 %v5306
    %5535 = vmatpush.bf16.msra.mxu0 %v5300
    %5536 = vmatpush.bf16.msra.mxu0 %v5294
    %5537 = vmatpush.bf16.msra.mxu0 %v5288
    %5538 = vmatmul.bf16.gmra.mxu0 %v4886
    %v5539 = vpop.f32.mrf.mxu0
    %v5540 = vadd.f32 %v4988, %v5539
    %v5541 = vpop.f32.mrf.mxu0
    %5542 = vdwg.mxu0
    %5543 = vmatpush.bf16.msra.mxu0 %v5378
    %5544 = vmatpush.bf16.msra.mxu0 %v5372
    %5545 = vmatpush.bf16.msra.mxu0 %v5366
    %5546 = vmatpush.bf16.msra.mxu0 %v5360
    %5547 = vmatpush.bf16.msra.mxu0 %v5354
    %5548 = vmatpush.bf16.msra.mxu0 %v5348
    %5549 = vmatpush.bf16.msra.mxu0 %v5342
    %5550 = vmatpush.bf16.msra.mxu0 %v5336
    %5551 = vmatmul.bf16.gmra.mxu0 %v4887
    %v5552 = vpop.f32.mrf.mxu0
    %v5553 = vadd.f32 %v5540, %v5552
    %v5554 = vpop.f32.mrf.mxu0
    %5555 = vdwg.mxu0
    %5556 = vmatpush.bf16.msra.mxu0 %v5331
    %5557 = vmatpush.bf16.msra.mxu0 %v5325
    %5558 = vmatpush.bf16.msra.mxu0 %v5319
    %5559 = vmatpush.bf16.msra.mxu0 %v5313
    %5560 = vmatpush.bf16.msra.mxu0 %v5307
    %5561 = vmatpush.bf16.msra.mxu0 %v5301
    %5562 = vmatpush.bf16.msra.mxu0 %v5295
    %5563 = vmatpush.bf16.msra.mxu0 %v5289
    %5564 = vmatmul.bf16.gmra.mxu0 %v4886
    %v5565 = vpop.f32.mrf.mxu0
    %v5566 = vadd.f32 %v4989, %v5565
    %v5567 = vpop.f32.mrf.mxu0
    %5568 = vdwg.mxu0
    %5569 = vmatpush.bf16.msra.mxu0 %v5379
    %5570 = vmatpush.bf16.msra.mxu0 %v5373
    %5571 = vmatpush.bf16.msra.mxu0 %v5367
    %5572 = vmatpush.bf16.msra.mxu0 %v5361
    %5573 = vmatpush.bf16.msra.mxu0 %v5355
    %5574 = vmatpush.bf16.msra.mxu0 %v5349
    %5575 = vmatpush.bf16.msra.mxu0 %v5343
    %5576 = vmatpush.bf16.msra.mxu0 %v5337
    %5577 = vmatmul.bf16.gmra.mxu0 %v4887
    %v5578 = vpop.f32.mrf.mxu0
    %v5579 = vadd.f32 %v5566, %v5578
    %v5580 = vpop.f32.mrf.mxu0
    %5581 = vdwg.mxu0
    %5582 = vmatpush.bf16.msra.mxu0 %v5332
    %5583 = vmatpush.bf16.msra.mxu0 %v5326
    %5584 = vmatpush.bf16.msra.mxu0 %v5320
    %5585 = vmatpush.bf16.msra.mxu0 %v5314
    %5586 = vmatpush.bf16.msra.mxu0 %v5308
    %5587 = vmatpush.bf16.msra.mxu0 %v5302
    %5588 = vmatpush.bf16.msra.mxu0 %v5296
    %5589 = vmatpush.bf16.msra.mxu0 %v5290
    %5590 = vmatmul.bf16.gmra.mxu0 %v4886
    %v5591 = vpop.f32.mrf.mxu0
    %v5592 = vadd.f32 %v4990, %v5591
    %v5593 = vpop.f32.mrf.mxu0
    %5594 = vdwg.mxu0
    %5595 = vmatpush.bf16.msra.mxu0 %v5380
    %5596 = vmatpush.bf16.msra.mxu0 %v5374
    %5597 = vmatpush.bf16.msra.mxu0 %v5368
    %5598 = vmatpush.bf16.msra.mxu0 %v5362
    %5599 = vmatpush.bf16.msra.mxu0 %v5356
    %5600 = vmatpush.bf16.msra.mxu0 %v5350
    %5601 = vmatpush.bf16.msra.mxu0 %v5344
    %5602 = vmatpush.bf16.msra.mxu0 %v5338
    %5603 = vmatmul.bf16.gmra.mxu0 %v4887
    %v5604 = vpop.f32.mrf.mxu0
    %v5605 = vadd.f32 %v5592, %v5604
    %v5606 = vpop.f32.mrf.mxu0
    %5607 = vdwg.mxu0
    %5608 = vmatpush.bf16.msra.mxu0 %v5333
    %5609 = vmatpush.bf16.msra.mxu0 %v5327
    %5610 = vmatpush.bf16.msra.mxu0 %v5321
    %5611 = vmatpush.bf16.msra.mxu0 %v5315
    %5612 = vmatpush.bf16.msra.mxu0 %v5309
    %5613 = vmatpush.bf16.msra.mxu0 %v5303
    %5614 = vmatpush.bf16.msra.mxu0 %v5297
    %5615 = vmatpush.bf16.msra.mxu0 %v5291
    %5616 = vmatmul.bf16.gmra.mxu0 %v4886
    %v5617 = vpop.f32.mrf.mxu0
    %v5618 = vadd.f32 %v4991, %v5617
    %v5619 = vpop.f32.mrf.mxu0
    %5620 = vdwg.mxu0
    %5621 = vmatpush.bf16.msra.mxu0 %v5381
    %5622 = vmatpush.bf16.msra.mxu0 %v5375
    %5623 = vmatpush.bf16.msra.mxu0 %v5369
    %5624 = vmatpush.bf16.msra.mxu0 %v5363
    %5625 = vmatpush.bf16.msra.mxu0 %v5357
    %5626 = vmatpush.bf16.msra.mxu0 %v5351
    %5627 = vmatpush.bf16.msra.mxu0 %v5345
    %5628 = vmatpush.bf16.msra.mxu0 %v5339
    %5629 = vmatmul.bf16.gmra.mxu0 %v4887
    %v5630 = vpop.f32.mrf.mxu0
    %v5631 = vadd.f32 %v5618, %v5630
    %v5632 = vpop.f32.mrf.mxu0
    %5633 = vdwg.mxu0
    %v5634 = vld [vmem:[%s4770] sm:$0xff]
    %v5635 = vld [vmem:[%s4770 + $0x8] sm:$0xff]
    %v5636 = vld [vmem:[%s4770 + $0x10] sm:$0xff]
    %v5637 = vld [vmem:[%s4766 + $0x18] sm:$0xff]
    %v5638 = vld [vmem:[%s4766 + $0x20] sm:$0xff]
    %v5639 = vld [vmem:[%s4766 + $0x28] sm:$0xff]
    %v5640 = vadd.f32 %v5634, %v5501
    %v5641 = vxor.u32 %v5640, 2147483648
    %v5642 = vmul.f32 %v5641, 1.442695
    %v5643 = vpow.pop %v5642
    %v5644 = vadd.f32 %v5643, 1.0
    %v5645 = vrcp.pop %v5644
    %v5646 = vmul.f32 %v5644, %v5645
    %v5647 = vsub.f32 1.0, %v5646
    %v5648 = vmul.f32 %v5645, %v5647
    %v5649 = vadd.f32 %v5645, %v5648
    %vm5650 = vweird.f32 %v5644
    %vm5651 = vweird.f32 %v5645
    %vm5652 = vmor %vm5650, %vm5651
    %v5653 = vsel %vm5652, %v5645, %v5649
    %v5654 = vand.u32 2147483647, %v5644
    %vm5655 = vcmp.eq.f32.partialorder %v5654, 8.507059e+37
    %v5656 = vand.u32 %v5644, 2147483648
    %v5657 = vor.u32 1.1754944e-38, %v5656
    %v5658 = vsel %vm5655, %v5657, %v5653
    %v5659 = vmul.f32 1.0, %v5658
    %v5660 = vadd.f32 %v5635, %v5527
    %v5661 = vxor.u32 %v5660, 2147483648
    %v5662 = vmul.f32 %v5661, 1.442695
    %v5663 = vpow.pop %v5662
    %v5664 = vadd.f32 %v5663, 1.0
    %v5665 = vrcp.pop %v5664
    %v5666 = vmul.f32 %v5664, %v5665
    %v5667 = vsub.f32 1.0, %v5666
    %v5668 = vmul.f32 %v5665, %v5667
    %v5669 = vadd.f32 %v5665, %v5668
    %vm5670 = vweird.f32 %v5664
    %vm5671 = vweird.f32 %v5665
    %vm5672 = vmor %vm5670, %vm5671
    %v5673 = vsel %vm5672, %v5665, %v5669
    %v5674 = vand.u32 2147483647, %v5664
    %vm5675 = vcmp.eq.f32.partialorder %v5674, 8.507059e+37
    %v5676 = vand.u32 %v5664, 2147483648
    %v5677 = vor.u32 1.1754944e-38, %v5676
    %v5678 = vsel %vm5675, %v5677, %v5673
    %v5679 = vmul.f32 1.0, %v5678
    %v5680 = vmul.f32 %v5659, %v5553
    %v5681 = vadd.f32 %v5636, %v5680
    %v5682 = vtanh.pop %v5681
    %v5683 = vsub.f32 %v4884, %v5682
    %v5684 = vmul.f32 %v5679, %v5683
    %v5685 = vadd.f32 %v5682, %v5684
    %v5686 = vadd.f32 %v5637, %v5579
    %v5687 = vxor.u32 %v5686, 2147483648
    %v5688 = vmul.f32 %v5687, 1.442695
    %v5689 = vpow.pop %v5688
    %v5690 = vadd.f32 %v5689, 1.0
    %v5691 = vrcp.pop %v5690
    %v5692 = vmul.f32 %v5690, %v5691
    %v5693 = vsub.f32 1.0, %v5692
    %v5694 = vmul.f32 %v5691, %v5693
    %v5695 = vadd.f32 %v5691, %v5694
    %vm5696 = vweird.f32 %v5690
    %vm5697 = vweird.f32 %v5691
    %vm5698 = vmor %vm5696, %vm5697
    %v5699 = vsel %vm5698, %v5691, %v5695
    %v5700 = vand.u32 2147483647, %v5690
    %vm5701 = vcmp.eq.f32.partialorder %v5700, 8.507059e+37
    %v5702 = vand.u32 %v5690, 2147483648
    %v5703 = vor.u32 1.1754944e-38, %v5702
    %v5704 = vsel %vm5701, %v5703, %v5699
    %v5705 = vmul.f32 1.0, %v5704
    %v5706 = vadd.f32 %v5638, %v5605
    %v5707 = vxor.u32 %v5706, 2147483648
    %v5708 = vmul.f32 %v5707, 1.442695
    %v5709 = vpow.pop %v5708
    %v5710 = vadd.f32 %v5709, 1.0
    %v5711 = vrcp.pop %v5710
    %v5712 = vmul.f32 %v5710, %v5711
    %v5713 = vsub.f32 1.0, %v5712
    %v5714 = vmul.f32 %v5711, %v5713
    %v5715 = vadd.f32 %v5711, %v5714
    %vm5716 = vweird.f32 %v5710
    %vm5717 = vweird.f32 %v5711
    %vm5718 = vmor %vm5716, %vm5717
    %v5719 = vsel %vm5718, %v5711, %v5715
    %v5720 = vand.u32 2147483647, %v5710
    %vm5721 = vcmp.eq.f32.partialorder %v5720, 8.507059e+37
    %v5722 = vand.u32 %v5710, 2147483648
    %v5723 = vor.u32 1.1754944e-38, %v5722
    %v5724 = vsel %vm5721, %v5723, %v5719
    %v5725 = vmul.f32 1.0, %v5724
    %v5726 = vmul.f32 %v5705, %v5631
    %v5727 = vadd.f32 %v5639, %v5726
    %v5728 = vtanh.pop %v5727
    %v5729 = vsub.f32 %v4885, %v5728
    %v5730 = vmul.f32 %v5725, %v5729
    %v5731 = vadd.f32 %v5728, %v5730
    %v5732 = vsel %vm4880, %v5685, 0.0
    %5733 = vst [vmem:[%s4882] sm:$0xff] %v5732
    %v5734 = vsel %vm4872, %v5731, 0.0
    %5735 = vst [vmem:[%s4874 + $0x8] sm:$0xff] %v5734
    %v5736 = vsel %vm4880, %v5685, %v4884
    %v5737 = vsel %vm4872, %v5731, %v4885
    %v5738 = vpack.c.bf16 %v5736, %v5736
    %v5739 = vpack.c.bf16 %v5737, %v5737
    %v5740 = vld [vmem:[#allocation8] sm:$0xff]
    %v5741 = vld [vmem:[#allocation8 + $0x8] sm:$0xff]
    %v5742 = vld [vmem:[#allocation8 + $0x10] sm:$0xff]
    %v5743 = vld [vmem:[#allocation8 + $0x18] sm:$0xff]
    %v5744 = vld [vmem:[#allocation8 + $0x20] sm:$0xff]
    %v5745 = vld [vmem:[#allocation8 + $0x28] sm:$0xff]
    %v5746 = vld [vmem:[#allocation8 + $0x30] sm:$0xff]
    %v5747 = vld [vmem:[#allocation8 + $0x38] sm:$0xff]
    %v5748 = vld [vmem:[#allocation8 + $0x40] sm:$0xff]
    %v5749 = vld [vmem:[#allocation8 + $0x48] sm:$0xff]
    %v5750 = vld [vmem:[#allocation8 + $0x50] sm:$0xff]
    %v5751 = vld [vmem:[#allocation8 + $0x58] sm:$0xff]
    %v5752 = vld [vmem:[#allocation8 + $0x60] sm:$0xff]
    %v5753 = vld [vmem:[#allocation8 + $0x68] sm:$0xff]
    %v5754 = vld [vmem:[#allocation8 + $0x70] sm:$0xff]
    %v5755 = vld [vmem:[#allocation8 + $0x78] sm:$0xff]
    %v5756 = vld [vmem:[#allocation8 + $0x80] sm:$0xff]
    %v5757 = vld [vmem:[#allocation8 + $0x88] sm:$0xff]
    %v5758 = vld [vmem:[#allocation8 + $0x90] sm:$0xff]
    %v5759 = vld [vmem:[#allocation8 + $0x98] sm:$0xff]
    %v5760 = vld [vmem:[#allocation8 + $0xa0] sm:$0xff]
    %v5761 = vld [vmem:[#allocation8 + $0xa8] sm:$0xff]
    %v5762 = vld [vmem:[#allocation8 + $0xb0] sm:$0xff]
    %v5763 = vld [vmem:[#allocation8 + $0xb8] sm:$0xff]
    %v5764 = vld [vmem:[#allocation8 + $0xc0] sm:$0xff]
    %v5765 = vld [vmem:[#allocation8 + $0xc8] sm:$0xff]
    %v5766 = vld [vmem:[#allocation8 + $0xd0] sm:$0xff]
    %v5767 = vld [vmem:[#allocation8 + $0xd8] sm:$0xff]
    %v5768 = vld [vmem:[#allocation8 + $0xe0] sm:$0xff]
    %v5769 = vld [vmem:[#allocation8 + $0xe8] sm:$0xff]
    %v5770 = vld [vmem:[#allocation8 + $0xf0] sm:$0xff]
    %v5771 = vld [vmem:[#allocation8 + $0xf8] sm:$0xff]
    %v5772 = vld [vmem:[#allocation8 + $0x100] sm:$0xff]
    %v5773 = vld [vmem:[#allocation8 + $0x108] sm:$0xff]
    %v5774 = vld [vmem:[#allocation8 + $0x110] sm:$0xff]
    %v5775 = vld [vmem:[#allocation8 + $0x118] sm:$0xff]
    %v5776 = vld [vmem:[#allocation8 + $0x120] sm:$0xff]
    %v5777 = vld [vmem:[#allocation8 + $0x128] sm:$0xff]
    %v5778 = vld [vmem:[#allocation8 + $0x130] sm:$0xff]
    %v5779 = vld [vmem:[#allocation8 + $0x138] sm:$0xff]
    %v5780 = vld [vmem:[#allocation8 + $0x140] sm:$0xff]
    %v5781 = vld [vmem:[#allocation8 + $0x148] sm:$0xff]
    %v5782 = vld [vmem:[#allocation8 + $0x150] sm:$0xff]
    %v5783 = vld [vmem:[#allocation8 + $0x158] sm:$0xff]
    %v5784 = vld [vmem:[#allocation8 + $0x160] sm:$0xff]
    %v5785 = vld [vmem:[#allocation8 + $0x168] sm:$0xff]
    %v5786 = vld [vmem:[#allocation8 + $0x170] sm:$0xff]
    %v5787 = vld [vmem:[#allocation8 + $0x178] sm:$0xff]
    %v5788 = vld [vmem:[#allocation8 + $0x180] sm:$0xff]
    %v5789 = vld [vmem:[#allocation8 + $0x188] sm:$0xff]
    %v5790 = vld [vmem:[#allocation8 + $0x190] sm:$0xff]
    %v5791 = vld [vmem:[#allocation8 + $0x198] sm:$0xff]
    %v5792 = vld [vmem:[#allocation8 + $0x1a0] sm:$0xff]
    %v5793 = vld [vmem:[#allocation8 + $0x1a8] sm:$0xff]
    %v5794 = vld [vmem:[#allocation8 + $0x1b0] sm:$0xff]
    %v5795 = vld [vmem:[#allocation8 + $0x1b8] sm:$0xff]
    %v5796 = vld [vmem:[#allocation8 + $0x1c0] sm:$0xff]
    %v5797 = vld [vmem:[#allocation8 + $0x1c8] sm:$0xff]
    %v5798 = vld [vmem:[#allocation8 + $0x1d0] sm:$0xff]
    %v5799 = vld [vmem:[#allocation8 + $0x1d8] sm:$0xff]
    %v5800 = vld [vmem:[#allocation8 + $0x1e0] sm:$0xff]
    %v5801 = vld [vmem:[#allocation8 + $0x1e8] sm:$0xff]
    %v5802 = vld [vmem:[#allocation8 + $0x1f0] sm:$0xff]
    %v5803 = vld [vmem:[#allocation8 + $0x1f8] sm:$0xff]
    %v5804 = vld [vmem:[#allocation8 + $0x200] sm:$0xff]
    %v5805 = vld [vmem:[#allocation8 + $0x208] sm:$0xff]
    %v5806 = vld [vmem:[#allocation8 + $0x210] sm:$0xff]
    %v5807 = vld [vmem:[#allocation8 + $0x218] sm:$0xff]
    %v5808 = vld [vmem:[#allocation8 + $0x220] sm:$0xff]
    %v5809 = vld [vmem:[#allocation8 + $0x228] sm:$0xff]
    %v5810 = vld [vmem:[#allocation8 + $0x230] sm:$0xff]
    %v5811 = vld [vmem:[#allocation8 + $0x238] sm:$0xff]
    %v5812 = vld [vmem:[#allocation8 + $0x240] sm:$0xff]
    %v5813 = vld [vmem:[#allocation8 + $0x248] sm:$0xff]
    %v5814 = vld [vmem:[#allocation8 + $0x250] sm:$0xff]
    %v5815 = vld [vmem:[#allocation8 + $0x258] sm:$0xff]
    %v5816 = vld [vmem:[#allocation8 + $0x260] sm:$0xff]
    %v5817 = vld [vmem:[#allocation8 + $0x268] sm:$0xff]
    %v5818 = vld [vmem:[#allocation8 + $0x270] sm:$0xff]
    %v5819 = vld [vmem:[#allocation8 + $0x278] sm:$0xff]
    %v5820 = vld [vmem:[#allocation8 + $0x280] sm:$0xff]
    %v5821 = vld [vmem:[#allocation8 + $0x288] sm:$0xff]
    %v5822 = vld [vmem:[#allocation8 + $0x290] sm:$0xff]
    %v5823 = vld [vmem:[#allocation8 + $0x298] sm:$0xff]
    %v5824 = vld [vmem:[#allocation8 + $0x2a0] sm:$0xff]
    %v5825 = vld [vmem:[#allocation8 + $0x2a8] sm:$0xff]
    %v5826 = vld [vmem:[#allocation8 + $0x2b0] sm:$0xff]
    %v5827 = vld [vmem:[#allocation8 + $0x2b8] sm:$0xff]
    %v5828 = vld [vmem:[#allocation8 + $0x2c0] sm:$0xff]
    %v5829 = vld [vmem:[#allocation8 + $0x2c8] sm:$0xff]
    %v5830 = vld [vmem:[#allocation8 + $0x2d0] sm:$0xff]
    %v5831 = vld [vmem:[#allocation8 + $0x2d8] sm:$0xff]
    %v5832 = vld [vmem:[#allocation8 + $0x2e0] sm:$0xff]
    %v5833 = vld [vmem:[#allocation8 + $0x2e8] sm:$0xff]
    %v5834 = vld [vmem:[#allocation8 + $0x2f0] sm:$0xff]
    %v5835 = vld [vmem:[#allocation8 + $0x2f8] sm:$0xff]
    %v5836 = vld [vmem:[%s5] sm:$0x3f]
    %v5838 = vperm.slane %v5836, 0
    %v5839 = vperm.slane %v5836, 1
    %v5840 = vperm.slane %v5836, 2
    %v5841 = vperm.slane %v5836, 3
    %v5842 = vperm.slane %v5836, 4
    %v5843 = vperm.slane %v5836, 5
    %v5946 = vunpack.c.l.b16 %v5740
    %v5947 = vunpack.c.h.b16 %v5740
    %v5948 = vunpack.c.l.b16 %v5741
    %v5949 = vunpack.c.h.b16 %v5741
    %v5950 = vunpack.c.l.b16 %v5742
    %v5951 = vunpack.c.h.b16 %v5742
    %v5952 = vunpack.c.l.b16 %v5743
    %v5953 = vunpack.c.h.b16 %v5743
    %v5954 = vunpack.c.l.b16 %v5744
    %v5955 = vunpack.c.h.b16 %v5744
    %v5956 = vunpack.c.l.b16 %v5745
    %v5957 = vunpack.c.h.b16 %v5745
    %v5958 = vunpack.c.l.b16 %v5746
    %v5959 = vunpack.c.h.b16 %v5746
    %v5960 = vunpack.c.l.b16 %v5747
    %v5961 = vunpack.c.h.b16 %v5747
    %v5962 = vunpack.c.l.b16 %v5748
    %v5963 = vunpack.c.h.b16 %v5748
    %v5964 = vunpack.c.l.b16 %v5749
    %v5965 = vunpack.c.h.b16 %v5749
    %v5966 = vunpack.c.l.b16 %v5750
    %v5967 = vunpack.c.h.b16 %v5750
    %v5968 = vunpack.c.l.b16 %v5751
    %v5969 = vunpack.c.h.b16 %v5751
    %v5970 = vunpack.c.l.b16 %v5752
    %v5971 = vunpack.c.h.b16 %v5752
    %v5972 = vunpack.c.l.b16 %v5753
    %v5973 = vunpack.c.h.b16 %v5753
    %v5974 = vunpack.c.l.b16 %v5754
    %v5975 = vunpack.c.h.b16 %v5754
    %v5976 = vunpack.c.l.b16 %v5755
    %v5977 = vunpack.c.h.b16 %v5755
    %v5978 = vunpack.c.l.b16 %v5756
    %v5979 = vunpack.c.h.b16 %v5756
    %v5980 = vunpack.c.l.b16 %v5757
    %v5981 = vunpack.c.h.b16 %v5757
    %v5982 = vunpack.c.l.b16 %v5758
    %v5983 = vunpack.c.h.b16 %v5758
    %v5984 = vunpack.c.l.b16 %v5759
    %v5985 = vunpack.c.h.b16 %v5759
    %v5986 = vunpack.c.l.b16 %v5760
    %v5987 = vunpack.c.h.b16 %v5760
    %v5988 = vunpack.c.l.b16 %v5761
    %v5989 = vunpack.c.h.b16 %v5761
    %v5990 = vunpack.c.l.b16 %v5762
    %v5991 = vunpack.c.h.b16 %v5762
    %v5992 = vunpack.c.l.b16 %v5763
    %v5993 = vunpack.c.h.b16 %v5763
    %v5994 = vunpack.c.l.b16 %v5764
    %v5995 = vunpack.c.h.b16 %v5764
    %v5996 = vunpack.c.l.b16 %v5765
    %v5997 = vunpack.c.h.b16 %v5765
    %v5998 = vunpack.c.l.b16 %v5766
    %v5999 = vunpack.c.h.b16 %v5766
    %v6000 = vunpack.c.l.b16 %v5767
    %v6001 = vunpack.c.h.b16 %v5767
    %v6002 = vunpack.c.l.b16 %v5768
    %v6003 = vunpack.c.h.b16 %v5768
    %v6004 = vunpack.c.l.b16 %v5769
    %v6005 = vunpack.c.h.b16 %v5769
    %v6006 = vunpack.c.l.b16 %v5770
    %v6007 = vunpack.c.h.b16 %v5770
    %v6008 = vunpack.c.l.b16 %v5771
    %v6009 = vunpack.c.h.b16 %v5771
    %v6010 = vunpack.c.l.b16 %v5772
    %v6011 = vunpack.c.h.b16 %v5772
    %v6012 = vunpack.c.l.b16 %v5773
    %v6013 = vunpack.c.h.b16 %v5773
    %v6014 = vunpack.c.l.b16 %v5774
    %v6015 = vunpack.c.h.b16 %v5774
    %v6016 = vunpack.c.l.b16 %v5775
    %v6017 = vunpack.c.h.b16 %v5775
    %v6018 = vunpack.c.l.b16 %v5776
    %v6019 = vunpack.c.h.b16 %v5776
    %v6020 = vunpack.c.l.b16 %v5777
    %v6021 = vunpack.c.h.b16 %v5777
    %v6022 = vunpack.c.l.b16 %v5778
    %v6023 = vunpack.c.h.b16 %v5778
    %v6024 = vunpack.c.l.b16 %v5779
    %v6025 = vunpack.c.h.b16 %v5779
    %v6026 = vunpack.c.l.b16 %v5780
    %v6027 = vunpack.c.h.b16 %v5780
    %v6028 = vunpack.c.l.b16 %v5781
    %v6029 = vunpack.c.h.b16 %v5781
    %v6030 = vunpack.c.l.b16 %v5782
    %v6031 = vunpack.c.h.b16 %v5782
    %v6032 = vunpack.c.l.b16 %v5783
    %v6033 = vunpack.c.h.b16 %v5783
    %v6034 = vunpack.c.l.b16 %v5784
    %v6035 = vunpack.c.h.b16 %v5784
    %v6036 = vunpack.c.l.b16 %v5785
    %v6037 = vunpack.c.h.b16 %v5785
    %v6038 = vunpack.c.l.b16 %v5786
    %v6039 = vunpack.c.h.b16 %v5786
    %v6040 = vunpack.c.l.b16 %v5787
    %v6041 = vunpack.c.h.b16 %v5787
    %v6042 = vunpack.c.l.b16 %v5788
    %v6043 = vunpack.c.h.b16 %v5788
    %v6044 = vunpack.c.l.b16 %v5789
    %v6045 = vunpack.c.h.b16 %v5789
    %v6046 = vunpack.c.l.b16 %v5790
    %v6047 = vunpack.c.h.b16 %v5790
    %v6048 = vunpack.c.l.b16 %v5791
    %v6049 = vunpack.c.h.b16 %v5791
    %v6050 = vunpack.c.l.b16 %v5792
    %v6051 = vunpack.c.h.b16 %v5792
    %v6052 = vunpack.c.l.b16 %v5793
    %v6053 = vunpack.c.h.b16 %v5793
    %v6054 = vunpack.c.l.b16 %v5794
    %v6055 = vunpack.c.h.b16 %v5794
    %v6056 = vunpack.c.l.b16 %v5795
    %v6057 = vunpack.c.h.b16 %v5795
    %v6058 = vunpack.c.l.b16 %v5796
    %v6059 = vunpack.c.h.b16 %v5796
    %v6060 = vunpack.c.l.b16 %v5797
    %v6061 = vunpack.c.h.b16 %v5797
    %v6062 = vunpack.c.l.b16 %v5798
    %v6063 = vunpack.c.h.b16 %v5798
    %v6064 = vunpack.c.l.b16 %v5799
    %v6065 = vunpack.c.h.b16 %v5799
    %v6066 = vunpack.c.l.b16 %v5800
    %v6067 = vunpack.c.h.b16 %v5800
    %v6068 = vunpack.c.l.b16 %v5801
    %v6069 = vunpack.c.h.b16 %v5801
    %v6070 = vunpack.c.l.b16 %v5802
    %v6071 = vunpack.c.h.b16 %v5802
    %v6072 = vunpack.c.l.b16 %v5803
    %v6073 = vunpack.c.h.b16 %v5803
    %v6074 = vunpack.c.l.b16 %v5804
    %v6075 = vunpack.c.h.b16 %v5804
    %v6076 = vunpack.c.l.b16 %v5805
    %v6077 = vunpack.c.h.b16 %v5805
    %v6078 = vunpack.c.l.b16 %v5806
    %v6079 = vunpack.c.h.b16 %v5806
    %v6080 = vunpack.c.l.b16 %v5807
    %v6081 = vunpack.c.h.b16 %v5807
    %v6082 = vunpack.c.l.b16 %v5808
    %v6083 = vunpack.c.h.b16 %v5808
    %v6084 = vunpack.c.l.b16 %v5809
    %v6085 = vunpack.c.h.b16 %v5809
    %v6086 = vunpack.c.l.b16 %v5810
    %v6087 = vunpack.c.h.b16 %v5810
    %v6088 = vunpack.c.l.b16 %v5811
    %v6089 = vunpack.c.h.b16 %v5811
    %v6090 = vunpack.c.l.b16 %v5812
    %v6091 = vunpack.c.h.b16 %v5812
    %v6092 = vunpack.c.l.b16 %v5813
    %v6093 = vunpack.c.h.b16 %v5813
    %v6094 = vunpack.c.l.b16 %v5814
    %v6095 = vunpack.c.h.b16 %v5814
    %v6096 = vunpack.c.l.b16 %v5815
    %v6097 = vunpack.c.h.b16 %v5815
    %v6098 = vunpack.c.l.b16 %v5816
    %v6099 = vunpack.c.h.b16 %v5816
    %v6100 = vunpack.c.l.b16 %v5817
    %v6101 = vunpack.c.h.b16 %v5817
    %v6102 = vunpack.c.l.b16 %v5818
    %v6103 = vunpack.c.h.b16 %v5818
    %v6104 = vunpack.c.l.b16 %v5819
    %v6105 = vunpack.c.h.b16 %v5819
    %v6106 = vunpack.c.l.b16 %v5820
    %v6107 = vunpack.c.h.b16 %v5820
    %v6108 = vunpack.c.l.b16 %v5821
    %v6109 = vunpack.c.h.b16 %v5821
    %v6110 = vunpack.c.l.b16 %v5822
    %v6111 = vunpack.c.h.b16 %v5822
    %v6112 = vunpack.c.l.b16 %v5823
    %v6113 = vunpack.c.h.b16 %v5823
    %v6114 = vunpack.c.l.b16 %v5824
    %v6115 = vunpack.c.h.b16 %v5824
    %v6116 = vunpack.c.l.b16 %v5825
    %v6117 = vunpack.c.h.b16 %v5825
    %v6118 = vunpack.c.l.b16 %v5826
    %v6119 = vunpack.c.h.b16 %v5826
    %v6120 = vunpack.c.l.b16 %v5827
    %v6121 = vunpack.c.h.b16 %v5827
    %v6122 = vunpack.c.l.b16 %v5828
    %v6123 = vunpack.c.h.b16 %v5828
    %v6124 = vunpack.c.l.b16 %v5829
    %v6125 = vunpack.c.h.b16 %v5829
    %v6126 = vunpack.c.l.b16 %v5830
    %v6127 = vunpack.c.h.b16 %v5830
    %v6128 = vunpack.c.l.b16 %v5831
    %v6129 = vunpack.c.h.b16 %v5831
    %v6130 = vunpack.c.l.b16 %v5832
    %v6131 = vunpack.c.h.b16 %v5832
    %v6132 = vunpack.c.l.b16 %v5833
    %v6133 = vunpack.c.h.b16 %v5833
    %v6134 = vunpack.c.l.b16 %v5834
    %v6135 = vunpack.c.h.b16 %v5834
    %v6136 = vunpack.c.l.b16 %v5835
    %v6137 = vunpack.c.h.b16 %v5835
    %v6138 = vpack.c.b16 %v5952, %v5946
    %v6139 = vpack.c.b16 %v5953, %v5947
    %v6140 = vpack.c.b16 %v5954, %v5948
    %v6141 = vpack.c.b16 %v5955, %v5949
    %v6142 = vpack.c.b16 %v5956, %v5950
    %v6143 = vpack.c.b16 %v5957, %v5951
    %v6144 = vpack.c.b16 %v5964, %v5958
    %v6145 = vpack.c.b16 %v5965, %v5959
    %v6146 = vpack.c.b16 %v5966, %v5960
    %v6147 = vpack.c.b16 %v5967, %v5961
    %v6148 = vpack.c.b16 %v5968, %v5962
    %v6149 = vpack.c.b16 %v5969, %v5963
    %v6150 = vpack.c.b16 %v5976, %v5970
    %v6151 = vpack.c.b16 %v5977, %v5971
    %v6152 = vpack.c.b16 %v5978, %v5972
    %v6153 = vpack.c.b16 %v5979, %v5973
    %v6154 = vpack.c.b16 %v5980, %v5974
    %v6155 = vpack.c.b16 %v5981, %v5975
    %v6156 = vpack.c.b16 %v5988, %v5982
    %v6157 = vpack.c.b16 %v5989, %v5983
    %v6158 = vpack.c.b16 %v5990, %v5984
    %v6159 = vpack.c.b16 %v5991, %v5985
    %v6160 = vpack.c.b16 %v5992, %v5986
    %v6161 = vpack.c.b16 %v5993, %v5987
    %v6162 = vpack.c.b16 %v6000, %v5994
    %v6163 = vpack.c.b16 %v6001, %v5995
    %v6164 = vpack.c.b16 %v6002, %v5996
    %v6165 = vpack.c.b16 %v6003, %v5997
    %v6166 = vpack.c.b16 %v6004, %v5998
    %v6167 = vpack.c.b16 %v6005, %v5999
    %v6168 = vpack.c.b16 %v6012, %v6006
    %v6169 = vpack.c.b16 %v6013, %v6007
    %v6170 = vpack.c.b16 %v6014, %v6008
    %v6171 = vpack.c.b16 %v6015, %v6009
    %v6172 = vpack.c.b16 %v6016, %v6010
    %v6173 = vpack.c.b16 %v6017, %v6011
    %v6174 = vpack.c.b16 %v6024, %v6018
    %v6175 = vpack.c.b16 %v6025, %v6019
    %v6176 = vpack.c.b16 %v6026, %v6020
    %v6177 = vpack.c.b16 %v6027, %v6021
    %v6178 = vpack.c.b16 %v6028, %v6022
    %v6179 = vpack.c.b16 %v6029, %v6023
    %v6180 = vpack.c.b16 %v6036, %v6030
    %v6181 = vpack.c.b16 %v6037, %v6031
    %v6182 = vpack.c.b16 %v6038, %v6032
    %v6183 = vpack.c.b16 %v6039, %v6033
    %v6184 = vpack.c.b16 %v6040, %v6034
    %v6185 = vpack.c.b16 %v6041, %v6035
    %v6186 = vpack.c.b16 %v6048, %v6042
    %v6187 = vpack.c.b16 %v6049, %v6043
    %v6188 = vpack.c.b16 %v6050, %v6044
    %v6189 = vpack.c.b16 %v6051, %v6045
    %v6190 = vpack.c.b16 %v6052, %v6046
    %v6191 = vpack.c.b16 %v6053, %v6047
    %v6192 = vpack.c.b16 %v6060, %v6054
    %v6193 = vpack.c.b16 %v6061, %v6055
    %v6194 = vpack.c.b16 %v6062, %v6056
    %v6195 = vpack.c.b16 %v6063, %v6057
    %v6196 = vpack.c.b16 %v6064, %v6058
    %v6197 = vpack.c.b16 %v6065, %v6059
    %v6198 = vpack.c.b16 %v6072, %v6066
    %v6199 = vpack.c.b16 %v6073, %v6067
    %v6200 = vpack.c.b16 %v6074, %v6068
    %v6201 = vpack.c.b16 %v6075, %v6069
    %v6202 = vpack.c.b16 %v6076, %v6070
    %v6203 = vpack.c.b16 %v6077, %v6071
    %v6204 = vpack.c.b16 %v6084, %v6078
    %v6205 = vpack.c.b16 %v6085, %v6079
    %v6206 = vpack.c.b16 %v6086, %v6080
    %v6207 = vpack.c.b16 %v6087, %v6081
    %v6208 = vpack.c.b16 %v6088, %v6082
    %v6209 = vpack.c.b16 %v6089, %v6083
    %v6210 = vpack.c.b16 %v6096, %v6090
    %v6211 = vpack.c.b16 %v6097, %v6091
    %v6212 = vpack.c.b16 %v6098, %v6092
    %v6213 = vpack.c.b16 %v6099, %v6093
    %v6214 = vpack.c.b16 %v6100, %v6094
    %v6215 = vpack.c.b16 %v6101, %v6095
    %v6216 = vpack.c.b16 %v6108, %v6102
    %v6217 = vpack.c.b16 %v6109, %v6103
    %v6218 = vpack.c.b16 %v6110, %v6104
    %v6219 = vpack.c.b16 %v6111, %v6105
    %v6220 = vpack.c.b16 %v6112, %v6106
    %v6221 = vpack.c.b16 %v6113, %v6107
    %v6222 = vpack.c.b16 %v6120, %v6114
    %v6223 = vpack.c.b16 %v6121, %v6115
    %v6224 = vpack.c.b16 %v6122, %v6116
    %v6225 = vpack.c.b16 %v6123, %v6117
    %v6226 = vpack.c.b16 %v6124, %v6118
    %v6227 = vpack.c.b16 %v6125, %v6119
    %v6228 = vpack.c.b16 %v6132, %v6126
    %v6229 = vpack.c.b16 %v6133, %v6127
    %v6230 = vpack.c.b16 %v6134, %v6128
    %v6231 = vpack.c.b16 %v6135, %v6129
    %v6232 = vpack.c.b16 %v6136, %v6130
    %v6233 = vpack.c.b16 %v6137, %v6131
    %6330 = vmatpush.bf16.msra.mxu0 %v6180
    %6331 = vmatpush.bf16.msra.mxu0 %v6174
    %6332 = vmatpush.bf16.msra.mxu0 %v6168
    %6333 = vmatpush.bf16.msra.mxu0 %v6162
    %6334 = vmatpush.bf16.msra.mxu0 %v6156
    %6335 = vmatpush.bf16.msra.mxu0 %v6150
    %6336 = vmatpush.bf16.msra.mxu0 %v6144
    %6337 = vmatpush.bf16.msra.mxu0 %v6138
    %6338 = vmatmul.bf16.gmra.mxu0 %v5738
    %v6339 = vpop.f32.mrf.mxu0
    %v6340 = vadd.f32 %v5838, %v6339
    %v6341 = vpop.f32.mrf.mxu0
    %6342 = vdwg.mxu0
    %6343 = vmatpush.bf16.msra.mxu0 %v6228
    %6344 = vmatpush.bf16.msra.mxu0 %v6222
    %6345 = vmatpush.bf16.msra.mxu0 %v6216
    %6346 = vmatpush.bf16.msra.mxu0 %v6210
    %6347 = vmatpush.bf16.msra.mxu0 %v6204
    %6348 = vmatpush.bf16.msra.mxu0 %v6198
    %6349 = vmatpush.bf16.msra.mxu0 %v6192
    %6350 = vmatpush.bf16.msra.mxu0 %v6186
    %6351 = vmatmul.bf16.gmra.mxu0 %v5739
    %v6352 = vpop.f32.mrf.mxu0
    %v6353 = vadd.f32 %v6340, %v6352
    %v6354 = vpop.f32.mrf.mxu0
    %6355 = vdwg.mxu0
    %6356 = vmatpush.bf16.msra.mxu0 %v6181
    %6357 = vmatpush.bf16.msra.mxu0 %v6175
    %6358 = vmatpush.bf16.msra.mxu0 %v6169
    %6359 = vmatpush.bf16.msra.mxu0 %v6163
    %6360 = vmatpush.bf16.msra.mxu0 %v6157
    %6361 = vmatpush.bf16.msra.mxu0 %v6151
    %6362 = vmatpush.bf16.msra.mxu0 %v6145
    %6363 = vmatpush.bf16.msra.mxu0 %v6139
    %6364 = vmatmul.bf16.gmra.mxu0 %v5738
    %v6365 = vpop.f32.mrf.mxu0
    %v6366 = vadd.f32 %v5839, %v6365
    %v6367 = vpop.f32.mrf.mxu0
    %6368 = vdwg.mxu0
    %6369 = vmatpush.bf16.msra.mxu0 %v6229
    %6370 = vmatpush.bf16.msra.mxu0 %v6223
    %6371 = vmatpush.bf16.msra.mxu0 %v6217
    %6372 = vmatpush.bf16.msra.mxu0 %v6211
    %6373 = vmatpush.bf16.msra.mxu0 %v6205
    %6374 = vmatpush.bf16.msra.mxu0 %v6199
    %6375 = vmatpush.bf16.msra.mxu0 %v6193
    %6376 = vmatpush.bf16.msra.mxu0 %v6187
    %6377 = vmatmul.bf16.gmra.mxu0 %v5739
    %v6378 = vpop.f32.mrf.mxu0
    %v6379 = vadd.f32 %v6366, %v6378
    %v6380 = vpop.f32.mrf.mxu0
    %6381 = vdwg.mxu0
    %6382 = vmatpush.bf16.msra.mxu0 %v6182
    %6383 = vmatpush.bf16.msra.mxu0 %v6176
    %6384 = vmatpush.bf16.msra.mxu0 %v6170
    %6385 = vmatpush.bf16.msra.mxu0 %v6164
    %6386 = vmatpush.bf16.msra.mxu0 %v6158
    %6387 = vmatpush.bf16.msra.mxu0 %v6152
    %6388 = vmatpush.bf16.msra.mxu0 %v6146
    %6389 = vmatpush.bf16.msra.mxu0 %v6140
    %6390 = vmatmul.bf16.gmra.mxu0 %v5738
    %v6391 = vpop.f32.mrf.mxu0
    %v6392 = vadd.f32 %v5840, %v6391
    %v6393 = vpop.f32.mrf.mxu0
    %6394 = vdwg.mxu0
    %6395 = vmatpush.bf16.msra.mxu0 %v6230
    %6396 = vmatpush.bf16.msra.mxu0 %v6224
    %6397 = vmatpush.bf16.msra.mxu0 %v6218
    %6398 = vmatpush.bf16.msra.mxu0 %v6212
    %6399 = vmatpush.bf16.msra.mxu0 %v6206
    %6400 = vmatpush.bf16.msra.mxu0 %v6200
    %6401 = vmatpush.bf16.msra.mxu0 %v6194
    %6402 = vmatpush.bf16.msra.mxu0 %v6188
    %6403 = vmatmul.bf16.gmra.mxu0 %v5739
    %v6404 = vpop.f32.mrf.mxu0
    %v6405 = vadd.f32 %v6392, %v6404
    %v6406 = vpop.f32.mrf.mxu0
    %6407 = vdwg.mxu0
    %6408 = vmatpush.bf16.msra.mxu0 %v6183
    %6409 = vmatpush.bf16.msra.mxu0 %v6177
    %6410 = vmatpush.bf16.msra.mxu0 %v6171
    %6411 = vmatpush.bf16.msra.mxu0 %v6165
    %6412 = vmatpush.bf16.msra.mxu0 %v6159
    %6413 = vmatpush.bf16.msra.mxu0 %v6153
    %6414 = vmatpush.bf16.msra.mxu0 %v6147
    %6415 = vmatpush.bf16.msra.mxu0 %v6141
    %6416 = vmatmul.bf16.gmra.mxu0 %v5738
    %v6417 = vpop.f32.mrf.mxu0
    %v6418 = vadd.f32 %v5841, %v6417
    %v6419 = vpop.f32.mrf.mxu0
    %6420 = vdwg.mxu0
    %6421 = vmatpush.bf16.msra.mxu0 %v6231
    %6422 = vmatpush.bf16.msra.mxu0 %v6225
    %6423 = vmatpush.bf16.msra.mxu0 %v6219
    %6424 = vmatpush.bf16.msra.mxu0 %v6213
    %6425 = vmatpush.bf16.msra.mxu0 %v6207
    %6426 = vmatpush.bf16.msra.mxu0 %v6201
    %6427 = vmatpush.bf16.msra.mxu0 %v6195
    %6428 = vmatpush.bf16.msra.mxu0 %v6189
    %6429 = vmatmul.bf16.gmra.mxu0 %v5739
    %v6430 = vpop.f32.mrf.mxu0
    %v6431 = vadd.f32 %v6418, %v6430
    %v6432 = vpop.f32.mrf.mxu0
    %6433 = vdwg.mxu0
    %6434 = vmatpush.bf16.msra.mxu0 %v6184
    %6435 = vmatpush.bf16.msra.mxu0 %v6178
    %6436 = vmatpush.bf16.msra.mxu0 %v6172
    %6437 = vmatpush.bf16.msra.mxu0 %v6166
    %6438 = vmatpush.bf16.msra.mxu0 %v6160
    %6439 = vmatpush.bf16.msra.mxu0 %v6154
    %6440 = vmatpush.bf16.msra.mxu0 %v6148
    %6441 = vmatpush.bf16.msra.mxu0 %v6142
    %6442 = vmatmul.bf16.gmra.mxu0 %v5738
    %v6443 = vpop.f32.mrf.mxu0
    %v6444 = vadd.f32 %v5842, %v6443
    %v6445 = vpop.f32.mrf.mxu0
    %6446 = vdwg.mxu0
    %6447 = vmatpush.bf16.msra.mxu0 %v6232
    %6448 = vmatpush.bf16.msra.mxu0 %v6226
    %6449 = vmatpush.bf16.msra.mxu0 %v6220
    %6450 = vmatpush.bf16.msra.mxu0 %v6214
    %6451 = vmatpush.bf16.msra.mxu0 %v6208
    %6452 = vmatpush.bf16.msra.mxu0 %v6202
    %6453 = vmatpush.bf16.msra.mxu0 %v6196
    %6454 = vmatpush.bf16.msra.mxu0 %v6190
    %6455 = vmatmul.bf16.gmra.mxu0 %v5739
    %v6456 = vpop.f32.mrf.mxu0
    %v6457 = vadd.f32 %v6444, %v6456
    %v6458 = vpop.f32.mrf.mxu0
    %6459 = vdwg.mxu0
    %6460 = vmatpush.bf16.msra.mxu0 %v6185
    %6461 = vmatpush.bf16.msra.mxu0 %v6179
    %6462 = vmatpush.bf16.msra.mxu0 %v6173
    %6463 = vmatpush.bf16.msra.mxu0 %v6167
    %6464 = vmatpush.bf16.msra.mxu0 %v6161
    %6465 = vmatpush.bf16.msra.mxu0 %v6155
    %6466 = vmatpush.bf16.msra.mxu0 %v6149
    %6467 = vmatpush.bf16.msra.mxu0 %v6143
    %6468 = vmatmul.bf16.gmra.mxu0 %v5738
    %v6469 = vpop.f32.mrf.mxu0
    %v6470 = vadd.f32 %v5843, %v6469
    %v6471 = vpop.f32.mrf.mxu0
    %6472 = vdwg.mxu0
    %6473 = vmatpush.bf16.msra.mxu0 %v6233
    %6474 = vmatpush.bf16.msra.mxu0 %v6227
    %6475 = vmatpush.bf16.msra.mxu0 %v6221
    %6476 = vmatpush.bf16.msra.mxu0 %v6215
    %6477 = vmatpush.bf16.msra.mxu0 %v6209
    %6478 = vmatpush.bf16.msra.mxu0 %v6203
    %6479 = vmatpush.bf16.msra.mxu0 %v6197
    %6480 = vmatpush.bf16.msra.mxu0 %v6191
    %6481 = vmatmul.bf16.gmra.mxu0 %v5739
    %v6482 = vpop.f32.mrf.mxu0
    %v6483 = vadd.f32 %v6470, %v6482
    %v6484 = vpop.f32.mrf.mxu0
    %6485 = vdwg.mxu0
    %v6486 = vld [vmem:[%s3902] sm:$0xff]
    %v6487 = vld [vmem:[%s3902 + $0x8] sm:$0xff]
    %v6488 = vld [vmem:[%s3902 + $0x10] sm:$0xff]
    %v6489 = vld [vmem:[%s3898 + $0x18] sm:$0xff]
    %v6490 = vld [vmem:[%s3898 + $0x20] sm:$0xff]
    %v6491 = vld [vmem:[%s3898 + $0x28] sm:$0xff]
    %v6492 = vadd.f32 %v6486, %v6353
    %v6493 = vxor.u32 %v6492, 2147483648
    %v6494 = vmul.f32 %v6493, 1.442695
    %v6495 = vpow.pop %v6494
    %v6496 = vadd.f32 %v6495, 1.0
    %v6497 = vrcp.pop %v6496
    %v6498 = vmul.f32 %v6496, %v6497
    %v6499 = vsub.f32 1.0, %v6498
    %v6500 = vmul.f32 %v6497, %v6499
    %v6501 = vadd.f32 %v6497, %v6500
    %vm6502 = vweird.f32 %v6496
    %vm6503 = vweird.f32 %v6497
    %vm6504 = vmor %vm6502, %vm6503
    %v6505 = vsel %vm6504, %v6497, %v6501
    %v6506 = vand.u32 2147483647, %v6496
    %vm6507 = vcmp.eq.f32.partialorder %v6506, 8.507059e+37
    %v6508 = vand.u32 %v6496, 2147483648
    %v6509 = vor.u32 1.1754944e-38, %v6508
    %v6510 = vsel %vm6507, %v6509, %v6505
    %v6511 = vmul.f32 1.0, %v6510
    %v6512 = vadd.f32 %v6487, %v6379
    %v6513 = vxor.u32 %v6512, 2147483648
    %v6514 = vmul.f32 %v6513, 1.442695
    %v6515 = vpow.pop %v6514
    %v6516 = vadd.f32 %v6515, 1.0
    %v6517 = vrcp.pop %v6516
    %v6518 = vmul.f32 %v6516, %v6517
    %v6519 = vsub.f32 1.0, %v6518
    %v6520 = vmul.f32 %v6517, %v6519
    %v6521 = vadd.f32 %v6517, %v6520
    %vm6522 = vweird.f32 %v6516
    %vm6523 = vweird.f32 %v6517
    %vm6524 = vmor %vm6522, %vm6523
    %v6525 = vsel %vm6524, %v6517, %v6521
    %v6526 = vand.u32 2147483647, %v6516
    %vm6527 = vcmp.eq.f32.partialorder %v6526, 8.507059e+37
    %v6528 = vand.u32 %v6516, 2147483648
    %v6529 = vor.u32 1.1754944e-38, %v6528
    %v6530 = vsel %vm6527, %v6529, %v6525
    %v6531 = vmul.f32 1.0, %v6530
    %v6532 = vmul.f32 %v6511, %v6405
    %v6533 = vadd.f32 %v6488, %v6532
    %v6534 = vtanh.pop %v6533
    %v6535 = vsub.f32 %v5736, %v6534
    %v6536 = vmul.f32 %v6531, %v6535
    %v6537 = vadd.f32 %v6534, %v6536
    %v6538 = vadd.f32 %v6489, %v6431
    %v6539 = vxor.u32 %v6538, 2147483648
    %v6540 = vmul.f32 %v6539, 1.442695
    %v6541 = vpow.pop %v6540
    %v6542 = vadd.f32 %v6541, 1.0
    %v6543 = vrcp.pop %v6542
    %v6544 = vmul.f32 %v6542, %v6543
    %v6545 = vsub.f32 1.0, %v6544
    %v6546 = vmul.f32 %v6543, %v6545
    %v6547 = vadd.f32 %v6543, %v6546
    %vm6548 = vweird.f32 %v6542
    %vm6549 = vweird.f32 %v6543
    %vm6550 = vmor %vm6548, %vm6549
    %v6551 = vsel %vm6550, %v6543, %v6547
    %v6552 = vand.u32 2147483647, %v6542
    %vm6553 = vcmp.eq.f32.partialorder %v6552, 8.507059e+37
    %v6554 = vand.u32 %v6542, 2147483648
    %v6555 = vor.u32 1.1754944e-38, %v6554
    %v6556 = vsel %vm6553, %v6555, %v6551
    %v6557 = vmul.f32 1.0, %v6556
    %v6558 = vadd.f32 %v6490, %v6457
    %v6559 = vxor.u32 %v6558, 2147483648
    %v6560 = vmul.f32 %v6559, 1.442695
    %v6561 = vpow.pop %v6560
    %v6562 = vadd.f32 %v6561, 1.0
    %v6563 = vrcp.pop %v6562
    %v6564 = vmul.f32 %v6562, %v6563
    %v6565 = vsub.f32 1.0, %v6564
    %v6566 = vmul.f32 %v6563, %v6565
    %v6567 = vadd.f32 %v6563, %v6566
    %vm6568 = vweird.f32 %v6562
    %vm6569 = vweird.f32 %v6563
    %vm6570 = vmor %vm6568, %vm6569
    %v6571 = vsel %vm6570, %v6563, %v6567
    %v6572 = vand.u32 2147483647, %v6562
    %vm6573 = vcmp.eq.f32.partialorder %v6572, 8.507059e+37
    %v6574 = vand.u32 %v6562, 2147483648
    %v6575 = vor.u32 1.1754944e-38, %v6574
    %v6576 = vsel %vm6573, %v6575, %v6571
    %v6577 = vmul.f32 1.0, %v6576
    %v6578 = vmul.f32 %v6557, %v6483
    %v6579 = vadd.f32 %v6491, %v6578
    %v6580 = vtanh.pop %v6579
    %v6581 = vsub.f32 %v5737, %v6580
    %v6582 = vmul.f32 %v6577, %v6581
    %v6583 = vadd.f32 %v6580, %v6582
    %v6584 = vsel %vm4012, %v6537, 0.0
    %6585 = vst [vmem:[%s4014] sm:$0xff] %v6584
    %v6586 = vsel %vm4004, %v6583, 0.0
    %6587 = vst [vmem:[%s4006 + $0x8] sm:$0xff] %v6586
    %v6588 = vsel %vm4012, %v6537, %v5736
    %v6589 = vsel %vm4004, %v6583, %v5737
    %v6590 = vpack.c.bf16 %v6588, %v6588
    %v6591 = vpack.c.bf16 %v6589, %v6589
    %v6592 = vld [vmem:[#allocation8] sm:$0xff]
    %v6593 = vld [vmem:[#allocation8 + $0x8] sm:$0xff]
    %v6594 = vld [vmem:[#allocation8 + $0x10] sm:$0xff]
    %v6595 = vld [vmem:[#allocation8 + $0x18] sm:$0xff]
    %v6596 = vld [vmem:[#allocation8 + $0x20] sm:$0xff]
    %v6597 = vld [vmem:[#allocation8 + $0x28] sm:$0xff]
    %v6598 = vld [vmem:[#allocation8 + $0x30] sm:$0xff]
    %v6599 = vld [vmem:[#allocation8 + $0x38] sm:$0xff]
    %v6600 = vld [vmem:[#allocation8 + $0x40] sm:$0xff]
    %v6601 = vld [vmem:[#allocation8 + $0x48] sm:$0xff]
    %v6602 = vld [vmem:[#allocation8 + $0x50] sm:$0xff]
    %v6603 = vld [vmem:[#allocation8 + $0x58] sm:$0xff]
    %v6604 = vld [vmem:[#allocation8 + $0x60] sm:$0xff]
    %v6605 = vld [vmem:[#allocation8 + $0x68] sm:$0xff]
    %v6606 = vld [vmem:[#allocation8 + $0x70] sm:$0xff]
    %v6607 = vld [vmem:[#allocation8 + $0x78] sm:$0xff]
    %v6608 = vld [vmem:[#allocation8 + $0x80] sm:$0xff]
    %v6609 = vld [vmem:[#allocation8 + $0x88] sm:$0xff]
    %v6610 = vld [vmem:[#allocation8 + $0x90] sm:$0xff]
    %v6611 = vld [vmem:[#allocation8 + $0x98] sm:$0xff]
    %v6612 = vld [vmem:[#allocation8 + $0xa0] sm:$0xff]
    %v6613 = vld [vmem:[#allocation8 + $0xa8] sm:$0xff]
    %v6614 = vld [vmem:[#allocation8 + $0xb0] sm:$0xff]
    %v6615 = vld [vmem:[#allocation8 + $0xb8] sm:$0xff]
    %v6616 = vld [vmem:[#allocation8 + $0xc0] sm:$0xff]
    %v6617 = vld [vmem:[#allocation8 + $0xc8] sm:$0xff]
    %v6618 = vld [vmem:[#allocation8 + $0xd0] sm:$0xff]
    %v6619 = vld [vmem:[#allocation8 + $0xd8] sm:$0xff]
    %v6620 = vld [vmem:[#allocation8 + $0xe0] sm:$0xff]
    %v6621 = vld [vmem:[#allocation8 + $0xe8] sm:$0xff]
    %v6622 = vld [vmem:[#allocation8 + $0xf0] sm:$0xff]
    %v6623 = vld [vmem:[#allocation8 + $0xf8] sm:$0xff]
    %v6624 = vld [vmem:[#allocation8 + $0x100] sm:$0xff]
    %v6625 = vld [vmem:[#allocation8 + $0x108] sm:$0xff]
    %v6626 = vld [vmem:[#allocation8 + $0x110] sm:$0xff]
    %v6627 = vld [vmem:[#allocation8 + $0x118] sm:$0xff]
    %v6628 = vld [vmem:[#allocation8 + $0x120] sm:$0xff]
    %v6629 = vld [vmem:[#allocation8 + $0x128] sm:$0xff]
    %v6630 = vld [vmem:[#allocation8 + $0x130] sm:$0xff]
    %v6631 = vld [vmem:[#allocation8 + $0x138] sm:$0xff]
    %v6632 = vld [vmem:[#allocation8 + $0x140] sm:$0xff]
    %v6633 = vld [vmem:[#allocation8 + $0x148] sm:$0xff]
    %v6634 = vld [vmem:[#allocation8 + $0x150] sm:$0xff]
    %v6635 = vld [vmem:[#allocation8 + $0x158] sm:$0xff]
    %v6636 = vld [vmem:[#allocation8 + $0x160] sm:$0xff]
    %v6637 = vld [vmem:[#allocation8 + $0x168] sm:$0xff]
    %v6638 = vld [vmem:[#allocation8 + $0x170] sm:$0xff]
    %v6639 = vld [vmem:[#allocation8 + $0x178] sm:$0xff]
    %v6640 = vld [vmem:[#allocation8 + $0x180] sm:$0xff]
    %v6641 = vld [vmem:[#allocation8 + $0x188] sm:$0xff]
    %v6642 = vld [vmem:[#allocation8 + $0x190] sm:$0xff]
    %v6643 = vld [vmem:[#allocation8 + $0x198] sm:$0xff]
    %v6644 = vld [vmem:[#allocation8 + $0x1a0] sm:$0xff]
    %v6645 = vld [vmem:[#allocation8 + $0x1a8] sm:$0xff]
    %v6646 = vld [vmem:[#allocation8 + $0x1b0] sm:$0xff]
    %v6647 = vld [vmem:[#allocation8 + $0x1b8] sm:$0xff]
    %v6648 = vld [vmem:[#allocation8 + $0x1c0] sm:$0xff]
    %v6649 = vld [vmem:[#allocation8 + $0x1c8] sm:$0xff]
    %v6650 = vld [vmem:[#allocation8 + $0x1d0] sm:$0xff]
    %v6651 = vld [vmem:[#allocation8 + $0x1d8] sm:$0xff]
    %v6652 = vld [vmem:[#allocation8 + $0x1e0] sm:$0xff]
    %v6653 = vld [vmem:[#allocation8 + $0x1e8] sm:$0xff]
    %v6654 = vld [vmem:[#allocation8 + $0x1f0] sm:$0xff]
    %v6655 = vld [vmem:[#allocation8 + $0x1f8] sm:$0xff]
    %v6656 = vld [vmem:[#allocation8 + $0x200] sm:$0xff]
    %v6657 = vld [vmem:[#allocation8 + $0x208] sm:$0xff]
    %v6658 = vld [vmem:[#allocation8 + $0x210] sm:$0xff]
    %v6659 = vld [vmem:[#allocation8 + $0x218] sm:$0xff]
    %v6660 = vld [vmem:[#allocation8 + $0x220] sm:$0xff]
    %v6661 = vld [vmem:[#allocation8 + $0x228] sm:$0xff]
    %v6662 = vld [vmem:[#allocation8 + $0x230] sm:$0xff]
    %v6663 = vld [vmem:[#allocation8 + $0x238] sm:$0xff]
    %v6664 = vld [vmem:[#allocation8 + $0x240] sm:$0xff]
    %v6665 = vld [vmem:[#allocation8 + $0x248] sm:$0xff]
    %v6666 = vld [vmem:[#allocation8 + $0x250] sm:$0xff]
    %v6667 = vld [vmem:[#allocation8 + $0x258] sm:$0xff]
    %v6668 = vld [vmem:[#allocation8 + $0x260] sm:$0xff]
    %v6669 = vld [vmem:[#allocation8 + $0x268] sm:$0xff]
    %v6670 = vld [vmem:[#allocation8 + $0x270] sm:$0xff]
    %v6671 = vld [vmem:[#allocation8 + $0x278] sm:$0xff]
    %v6672 = vld [vmem:[#allocation8 + $0x280] sm:$0xff]
    %v6673 = vld [vmem:[#allocation8 + $0x288] sm:$0xff]
    %v6674 = vld [vmem:[#allocation8 + $0x290] sm:$0xff]
    %v6675 = vld [vmem:[#allocation8 + $0x298] sm:$0xff]
    %v6676 = vld [vmem:[#allocation8 + $0x2a0] sm:$0xff]
    %v6677 = vld [vmem:[#allocation8 + $0x2a8] sm:$0xff]
    %v6678 = vld [vmem:[#allocation8 + $0x2b0] sm:$0xff]
    %v6679 = vld [vmem:[#allocation8 + $0x2b8] sm:$0xff]
    %v6680 = vld [vmem:[#allocation8 + $0x2c0] sm:$0xff]
    %v6681 = vld [vmem:[#allocation8 + $0x2c8] sm:$0xff]
    %v6682 = vld [vmem:[#allocation8 + $0x2d0] sm:$0xff]
    %v6683 = vld [vmem:[#allocation8 + $0x2d8] sm:$0xff]
    %v6684 = vld [vmem:[#allocation8 + $0x2e0] sm:$0xff]
    %v6685 = vld [vmem:[#allocation8 + $0x2e8] sm:$0xff]
    %v6686 = vld [vmem:[#allocation8 + $0x2f0] sm:$0xff]
    %v6687 = vld [vmem:[#allocation8 + $0x2f8] sm:$0xff]
    %v6688 = vld [vmem:[%s5] sm:$0x3f]
    %v6690 = vperm.slane %v6688, 0
    %v6691 = vperm.slane %v6688, 1
    %v6692 = vperm.slane %v6688, 2
    %v6693 = vperm.slane %v6688, 3
    %v6694 = vperm.slane %v6688, 4
    %v6695 = vperm.slane %v6688, 5
    %v6798 = vunpack.c.l.b16 %v6592
    %v6799 = vunpack.c.h.b16 %v6592
    %v6800 = vunpack.c.l.b16 %v6593
    %v6801 = vunpack.c.h.b16 %v6593
    %v6802 = vunpack.c.l.b16 %v6594
    %v6803 = vunpack.c.h.b16 %v6594
    %v6804 = vunpack.c.l.b16 %v6595
    %v6805 = vunpack.c.h.b16 %v6595
    %v6806 = vunpack.c.l.b16 %v6596
    %v6807 = vunpack.c.h.b16 %v6596
    %v6808 = vunpack.c.l.b16 %v6597
    %v6809 = vunpack.c.h.b16 %v6597
    %v6810 = vunpack.c.l.b16 %v6598
    %v6811 = vunpack.c.h.b16 %v6598
    %v6812 = vunpack.c.l.b16 %v6599
    %v6813 = vunpack.c.h.b16 %v6599
    %v6814 = vunpack.c.l.b16 %v6600
    %v6815 = vunpack.c.h.b16 %v6600
    %v6816 = vunpack.c.l.b16 %v6601
    %v6817 = vunpack.c.h.b16 %v6601
    %v6818 = vunpack.c.l.b16 %v6602
    %v6819 = vunpack.c.h.b16 %v6602
    %v6820 = vunpack.c.l.b16 %v6603
    %v6821 = vunpack.c.h.b16 %v6603
    %v6822 = vunpack.c.l.b16 %v6604
    %v6823 = vunpack.c.h.b16 %v6604
    %v6824 = vunpack.c.l.b16 %v6605
    %v6825 = vunpack.c.h.b16 %v6605
    %v6826 = vunpack.c.l.b16 %v6606
    %v6827 = vunpack.c.h.b16 %v6606
    %v6828 = vunpack.c.l.b16 %v6607
    %v6829 = vunpack.c.h.b16 %v6607
    %v6830 = vunpack.c.l.b16 %v6608
    %v6831 = vunpack.c.h.b16 %v6608
    %v6832 = vunpack.c.l.b16 %v6609
    %v6833 = vunpack.c.h.b16 %v6609
    %v6834 = vunpack.c.l.b16 %v6610
    %v6835 = vunpack.c.h.b16 %v6610
    %v6836 = vunpack.c.l.b16 %v6611
    %v6837 = vunpack.c.h.b16 %v6611
    %v6838 = vunpack.c.l.b16 %v6612
    %v6839 = vunpack.c.h.b16 %v6612
    %v6840 = vunpack.c.l.b16 %v6613
    %v6841 = vunpack.c.h.b16 %v6613
    %v6842 = vunpack.c.l.b16 %v6614
    %v6843 = vunpack.c.h.b16 %v6614
    %v6844 = vunpack.c.l.b16 %v6615
    %v6845 = vunpack.c.h.b16 %v6615
    %v6846 = vunpack.c.l.b16 %v6616
    %v6847 = vunpack.c.h.b16 %v6616
    %v6848 = vunpack.c.l.b16 %v6617
    %v6849 = vunpack.c.h.b16 %v6617
    %v6850 = vunpack.c.l.b16 %v6618
    %v6851 = vunpack.c.h.b16 %v6618
    %v6852 = vunpack.c.l.b16 %v6619
    %v6853 = vunpack.c.h.b16 %v6619
    %v6854 = vunpack.c.l.b16 %v6620
    %v6855 = vunpack.c.h.b16 %v6620
    %v6856 = vunpack.c.l.b16 %v6621
    %v6857 = vunpack.c.h.b16 %v6621
    %v6858 = vunpack.c.l.b16 %v6622
    %v6859 = vunpack.c.h.b16 %v6622
    %v6860 = vunpack.c.l.b16 %v6623
    %v6861 = vunpack.c.h.b16 %v6623
    %v6862 = vunpack.c.l.b16 %v6624
    %v6863 = vunpack.c.h.b16 %v6624
    %v6864 = vunpack.c.l.b16 %v6625
    %v6865 = vunpack.c.h.b16 %v6625
    %v6866 = vunpack.c.l.b16 %v6626
    %v6867 = vunpack.c.h.b16 %v6626
    %v6868 = vunpack.c.l.b16 %v6627
    %v6869 = vunpack.c.h.b16 %v6627
    %v6870 = vunpack.c.l.b16 %v6628
    %v6871 = vunpack.c.h.b16 %v6628
    %v6872 = vunpack.c.l.b16 %v6629
    %v6873 = vunpack.c.h.b16 %v6629
    %v6874 = vunpack.c.l.b16 %v6630
    %v6875 = vunpack.c.h.b16 %v6630
    %v6876 = vunpack.c.l.b16 %v6631
    %v6877 = vunpack.c.h.b16 %v6631
    %v6878 = vunpack.c.l.b16 %v6632
    %v6879 = vunpack.c.h.b16 %v6632
    %v6880 = vunpack.c.l.b16 %v6633
    %v6881 = vunpack.c.h.b16 %v6633
    %v6882 = vunpack.c.l.b16 %v6634
    %v6883 = vunpack.c.h.b16 %v6634
    %v6884 = vunpack.c.l.b16 %v6635
    %v6885 = vunpack.c.h.b16 %v6635
    %v6886 = vunpack.c.l.b16 %v6636
    %v6887 = vunpack.c.h.b16 %v6636
    %v6888 = vunpack.c.l.b16 %v6637
    %v6889 = vunpack.c.h.b16 %v6637
    %v6890 = vunpack.c.l.b16 %v6638
    %v6891 = vunpack.c.h.b16 %v6638
    %v6892 = vunpack.c.l.b16 %v6639
    %v6893 = vunpack.c.h.b16 %v6639
    %v6894 = vunpack.c.l.b16 %v6640
    %v6895 = vunpack.c.h.b16 %v6640
    %v6896 = vunpack.c.l.b16 %v6641
    %v6897 = vunpack.c.h.b16 %v6641
    %v6898 = vunpack.c.l.b16 %v6642
    %v6899 = vunpack.c.h.b16 %v6642
    %v6900 = vunpack.c.l.b16 %v6643
    %v6901 = vunpack.c.h.b16 %v6643
    %v6902 = vunpack.c.l.b16 %v6644
    %v6903 = vunpack.c.h.b16 %v6644
    %v6904 = vunpack.c.l.b16 %v6645
    %v6905 = vunpack.c.h.b16 %v6645
    %v6906 = vunpack.c.l.b16 %v6646
    %v6907 = vunpack.c.h.b16 %v6646
    %v6908 = vunpack.c.l.b16 %v6647
    %v6909 = vunpack.c.h.b16 %v6647
    %v6910 = vunpack.c.l.b16 %v6648
    %v6911 = vunpack.c.h.b16 %v6648
    %v6912 = vunpack.c.l.b16 %v6649
    %v6913 = vunpack.c.h.b16 %v6649
    %v6914 = vunpack.c.l.b16 %v6650
    %v6915 = vunpack.c.h.b16 %v6650
    %v6916 = vunpack.c.l.b16 %v6651
    %v6917 = vunpack.c.h.b16 %v6651
    %v6918 = vunpack.c.l.b16 %v6652
    %v6919 = vunpack.c.h.b16 %v6652
    %v6920 = vunpack.c.l.b16 %v6653
    %v6921 = vunpack.c.h.b16 %v6653
    %v6922 = vunpack.c.l.b16 %v6654
    %v6923 = vunpack.c.h.b16 %v6654
    %v6924 = vunpack.c.l.b16 %v6655
    %v6925 = vunpack.c.h.b16 %v6655
    %v6926 = vunpack.c.l.b16 %v6656
    %v6927 = vunpack.c.h.b16 %v6656
    %v6928 = vunpack.c.l.b16 %v6657
    %v6929 = vunpack.c.h.b16 %v6657
    %v6930 = vunpack.c.l.b16 %v6658
    %v6931 = vunpack.c.h.b16 %v6658
    %v6932 = vunpack.c.l.b16 %v6659
    %v6933 = vunpack.c.h.b16 %v6659
    %v6934 = vunpack.c.l.b16 %v6660
    %v6935 = vunpack.c.h.b16 %v6660
    %v6936 = vunpack.c.l.b16 %v6661
    %v6937 = vunpack.c.h.b16 %v6661
    %v6938 = vunpack.c.l.b16 %v6662
    %v6939 = vunpack.c.h.b16 %v6662
    %v6940 = vunpack.c.l.b16 %v6663
    %v6941 = vunpack.c.h.b16 %v6663
    %v6942 = vunpack.c.l.b16 %v6664
    %v6943 = vunpack.c.h.b16 %v6664
    %v6944 = vunpack.c.l.b16 %v6665
    %v6945 = vunpack.c.h.b16 %v6665
    %v6946 = vunpack.c.l.b16 %v6666
    %v6947 = vunpack.c.h.b16 %v6666
    %v6948 = vunpack.c.l.b16 %v6667
    %v6949 = vunpack.c.h.b16 %v6667
    %v6950 = vunpack.c.l.b16 %v6668
    %v6951 = vunpack.c.h.b16 %v6668
    %v6952 = vunpack.c.l.b16 %v6669
    %v6953 = vunpack.c.h.b16 %v6669
    %v6954 = vunpack.c.l.b16 %v6670
    %v6955 = vunpack.c.h.b16 %v6670
    %v6956 = vunpack.c.l.b16 %v6671
    %v6957 = vunpack.c.h.b16 %v6671
    %v6958 = vunpack.c.l.b16 %v6672
    %v6959 = vunpack.c.h.b16 %v6672
    %v6960 = vunpack.c.l.b16 %v6673
    %v6961 = vunpack.c.h.b16 %v6673
    %v6962 = vunpack.c.l.b16 %v6674
    %v6963 = vunpack.c.h.b16 %v6674
    %v6964 = vunpack.c.l.b16 %v6675
    %v6965 = vunpack.c.h.b16 %v6675
    %v6966 = vunpack.c.l.b16 %v6676
    %v6967 = vunpack.c.h.b16 %v6676
    %v6968 = vunpack.c.l.b16 %v6677
    %v6969 = vunpack.c.h.b16 %v6677
    %v6970 = vunpack.c.l.b16 %v6678
    %v6971 = vunpack.c.h.b16 %v6678
    %v6972 = vunpack.c.l.b16 %v6679
    %v6973 = vunpack.c.h.b16 %v6679
    %v6974 = vunpack.c.l.b16 %v6680
    %v6975 = vunpack.c.h.b16 %v6680
    %v6976 = vunpack.c.l.b16 %v6681
    %v6977 = vunpack.c.h.b16 %v6681
    %v6978 = vunpack.c.l.b16 %v6682
    %v6979 = vunpack.c.h.b16 %v6682
    %v6980 = vunpack.c.l.b16 %v6683
    %v6981 = vunpack.c.h.b16 %v6683
    %v6982 = vunpack.c.l.b16 %v6684
    %v6983 = vunpack.c.h.b16 %v6684
    %v6984 = vunpack.c.l.b16 %v6685
    %v6985 = vunpack.c.h.b16 %v6685
    %v6986 = vunpack.c.l.b16 %v6686
    %v6987 = vunpack.c.h.b16 %v6686
    %v6988 = vunpack.c.l.b16 %v6687
    %v6989 = vunpack.c.h.b16 %v6687
    %v6990 = vpack.c.b16 %v6804, %v6798
    %v6991 = vpack.c.b16 %v6805, %v6799
    %v6992 = vpack.c.b16 %v6806, %v6800
    %v6993 = vpack.c.b16 %v6807, %v6801
    %v6994 = vpack.c.b16 %v6808, %v6802
    %v6995 = vpack.c.b16 %v6809, %v6803
    %v6996 = vpack.c.b16 %v6816, %v6810
    %v6997 = vpack.c.b16 %v6817, %v6811
    %v6998 = vpack.c.b16 %v6818, %v6812
    %v6999 = vpack.c.b16 %v6819, %v6813
    %v7000 = vpack.c.b16 %v6820, %v6814
    %v7001 = vpack.c.b16 %v6821, %v6815
    %v7002 = vpack.c.b16 %v6828, %v6822
    %v7003 = vpack.c.b16 %v6829, %v6823
    %v7004 = vpack.c.b16 %v6830, %v6824
    %v7005 = vpack.c.b16 %v6831, %v6825
    %v7006 = vpack.c.b16 %v6832, %v6826
    %v7007 = vpack.c.b16 %v6833, %v6827
    %v7008 = vpack.c.b16 %v6840, %v6834
    %v7009 = vpack.c.b16 %v6841, %v6835
    %v7010 = vpack.c.b16 %v6842, %v6836
    %v7011 = vpack.c.b16 %v6843, %v6837
    %v7012 = vpack.c.b16 %v6844, %v6838
    %v7013 = vpack.c.b16 %v6845, %v6839
    %v7014 = vpack.c.b16 %v6852, %v6846
    %v7015 = vpack.c.b16 %v6853, %v6847
    %v7016 = vpack.c.b16 %v6854, %v6848
    %v7017 = vpack.c.b16 %v6855, %v6849
    %v7018 = vpack.c.b16 %v6856, %v6850
    %v7019 = vpack.c.b16 %v6857, %v6851
    %v7020 = vpack.c.b16 %v6864, %v6858
    %v7021 = vpack.c.b16 %v6865, %v6859
    %v7022 = vpack.c.b16 %v6866, %v6860
    %v7023 = vpack.c.b16 %v6867, %v6861
    %v7024 = vpack.c.b16 %v6868, %v6862
    %v7025 = vpack.c.b16 %v6869, %v6863
    %v7026 = vpack.c.b16 %v6876, %v6870
    %v7027 = vpack.c.b16 %v6877, %v6871
    %v7028 = vpack.c.b16 %v6878, %v6872
    %v7029 = vpack.c.b16 %v6879, %v6873
    %v7030 = vpack.c.b16 %v6880, %v6874
    %v7031 = vpack.c.b16 %v6881, %v6875
    %v7032 = vpack.c.b16 %v6888, %v6882
    %v7033 = vpack.c.b16 %v6889, %v6883
    %v7034 = vpack.c.b16 %v6890, %v6884
    %v7035 = vpack.c.b16 %v6891, %v6885
    %v7036 = vpack.c.b16 %v6892, %v6886
    %v7037 = vpack.c.b16 %v6893, %v6887
    %v7038 = vpack.c.b16 %v6900, %v6894
    %v7039 = vpack.c.b16 %v6901, %v6895
    %v7040 = vpack.c.b16 %v6902, %v6896
    %v7041 = vpack.c.b16 %v6903, %v6897
    %v7042 = vpack.c.b16 %v6904, %v6898
    %v7043 = vpack.c.b16 %v6905, %v6899
    %v7044 = vpack.c.b16 %v6912, %v6906
    %v7045 = vpack.c.b16 %v6913, %v6907
    %v7046 = vpack.c.b16 %v6914, %v6908
    %v7047 = vpack.c.b16 %v6915, %v6909
    %v7048 = vpack.c.b16 %v6916, %v6910
    %v7049 = vpack.c.b16 %v6917, %v6911
    %v7050 = vpack.c.b16 %v6924, %v6918
    %v7051 = vpack.c.b16 %v6925, %v6919
    %v7052 = vpack.c.b16 %v6926, %v6920
    %v7053 = vpack.c.b16 %v6927, %v6921
    %v7054 = vpack.c.b16 %v6928, %v6922
    %v7055 = vpack.c.b16 %v6929, %v6923
    %v7056 = vpack.c.b16 %v6936, %v6930
    %v7057 = vpack.c.b16 %v6937, %v6931
    %v7058 = vpack.c.b16 %v6938, %v6932
    %v7059 = vpack.c.b16 %v6939, %v6933
    %v7060 = vpack.c.b16 %v6940, %v6934
    %v7061 = vpack.c.b16 %v6941, %v6935
    %v7062 = vpack.c.b16 %v6948, %v6942
    %v7063 = vpack.c.b16 %v6949, %v6943
    %v7064 = vpack.c.b16 %v6950, %v6944
    %v7065 = vpack.c.b16 %v6951, %v6945
    %v7066 = vpack.c.b16 %v6952, %v6946
    %v7067 = vpack.c.b16 %v6953, %v6947
    %v7068 = vpack.c.b16 %v6960, %v6954
    %v7069 = vpack.c.b16 %v6961, %v6955
    %v7070 = vpack.c.b16 %v6962, %v6956
    %v7071 = vpack.c.b16 %v6963, %v6957
    %v7072 = vpack.c.b16 %v6964, %v6958
    %v7073 = vpack.c.b16 %v6965, %v6959
    %v7074 = vpack.c.b16 %v6972, %v6966
    %v7075 = vpack.c.b16 %v6973, %v6967
    %v7076 = vpack.c.b16 %v6974, %v6968
    %v7077 = vpack.c.b16 %v6975, %v6969
    %v7078 = vpack.c.b16 %v6976, %v6970
    %v7079 = vpack.c.b16 %v6977, %v6971
    %v7080 = vpack.c.b16 %v6984, %v6978
    %v7081 = vpack.c.b16 %v6985, %v6979
    %v7082 = vpack.c.b16 %v6986, %v6980
    %v7083 = vpack.c.b16 %v6987, %v6981
    %v7084 = vpack.c.b16 %v6988, %v6982
    %v7085 = vpack.c.b16 %v6989, %v6983
    %7182 = vmatpush.bf16.msra.mxu0 %v7032
    %7183 = vmatpush.bf16.msra.mxu0 %v7026
    %7184 = vmatpush.bf16.msra.mxu0 %v7020
    %7185 = vmatpush.bf16.msra.mxu0 %v7014
    %7186 = vmatpush.bf16.msra.mxu0 %v7008
    %7187 = vmatpush.bf16.msra.mxu0 %v7002
    %7188 = vmatpush.bf16.msra.mxu0 %v6996
    %7189 = vmatpush.bf16.msra.mxu0 %v6990
    %7190 = vmatmul.bf16.gmra.mxu0 %v6590
    %v7191 = vpop.f32.mrf.mxu0
    %v7192 = vadd.f32 %v6690, %v7191
    %v7193 = vpop.f32.mrf.mxu0
    %7194 = vdwg.mxu0
    %7195 = vmatpush.bf16.msra.mxu0 %v7080
    %7196 = vmatpush.bf16.msra.mxu0 %v7074
    %7197 = vmatpush.bf16.msra.mxu0 %v7068
    %7198 = vmatpush.bf16.msra.mxu0 %v7062
    %7199 = vmatpush.bf16.msra.mxu0 %v7056
    %7200 = vmatpush.bf16.msra.mxu0 %v7050
    %7201 = vmatpush.bf16.msra.mxu0 %v7044
    %7202 = vmatpush.bf16.msra.mxu0 %v7038
    %7203 = vmatmul.bf16.gmra.mxu0 %v6591
    %v7204 = vpop.f32.mrf.mxu0
    %v7205 = vadd.f32 %v7192, %v7204
    %v7206 = vpop.f32.mrf.mxu0
    %7207 = vdwg.mxu0
    %7208 = vmatpush.bf16.msra.mxu0 %v7033
    %7209 = vmatpush.bf16.msra.mxu0 %v7027
    %7210 = vmatpush.bf16.msra.mxu0 %v7021
    %7211 = vmatpush.bf16.msra.mxu0 %v7015
    %7212 = vmatpush.bf16.msra.mxu0 %v7009
    %7213 = vmatpush.bf16.msra.mxu0 %v7003
    %7214 = vmatpush.bf16.msra.mxu0 %v6997
    %7215 = vmatpush.bf16.msra.mxu0 %v6991
    %7216 = vmatmul.bf16.gmra.mxu0 %v6590
    %v7217 = vpop.f32.mrf.mxu0
    %v7218 = vadd.f32 %v6691, %v7217
    %v7219 = vpop.f32.mrf.mxu0
    %7220 = vdwg.mxu0
    %7221 = vmatpush.bf16.msra.mxu0 %v7081
    %7222 = vmatpush.bf16.msra.mxu0 %v7075
    %7223 = vmatpush.bf16.msra.mxu0 %v7069
    %7224 = vmatpush.bf16.msra.mxu0 %v7063
    %7225 = vmatpush.bf16.msra.mxu0 %v7057
    %7226 = vmatpush.bf16.msra.mxu0 %v7051
    %7227 = vmatpush.bf16.msra.mxu0 %v7045
    %7228 = vmatpush.bf16.msra.mxu0 %v7039
    %7229 = vmatmul.bf16.gmra.mxu0 %v6591
    %v7230 = vpop.f32.mrf.mxu0
    %v7231 = vadd.f32 %v7218, %v7230
    %v7232 = vpop.f32.mrf.mxu0
    %7233 = vdwg.mxu0
    %7234 = vmatpush.bf16.msra.mxu0 %v7034
    %7235 = vmatpush.bf16.msra.mxu0 %v7028
    %7236 = vmatpush.bf16.msra.mxu0 %v7022
    %7237 = vmatpush.bf16.msra.mxu0 %v7016
    %7238 = vmatpush.bf16.msra.mxu0 %v7010
    %7239 = vmatpush.bf16.msra.mxu0 %v7004
    %7240 = vmatpush.bf16.msra.mxu0 %v6998
    %7241 = vmatpush.bf16.msra.mxu0 %v6992
    %7242 = vmatmul.bf16.gmra.mxu0 %v6590
    %v7243 = vpop.f32.mrf.mxu0
    %v7244 = vadd.f32 %v6692, %v7243
    %v7245 = vpop.f32.mrf.mxu0
    %7246 = vdwg.mxu0
    %7247 = vmatpush.bf16.msra.mxu0 %v7082
    %7248 = vmatpush.bf16.msra.mxu0 %v7076
    %7249 = vmatpush.bf16.msra.mxu0 %v7070
    %7250 = vmatpush.bf16.msra.mxu0 %v7064
    %7251 = vmatpush.bf16.msra.mxu0 %v7058
    %7252 = vmatpush.bf16.msra.mxu0 %v7052
    %7253 = vmatpush.bf16.msra.mxu0 %v7046
    %7254 = vmatpush.bf16.msra.mxu0 %v7040
    %7255 = vmatmul.bf16.gmra.mxu0 %v6591
    %v7256 = vpop.f32.mrf.mxu0
    %v7257 = vadd.f32 %v7244, %v7256
    %v7258 = vpop.f32.mrf.mxu0
    %7259 = vdwg.mxu0
    %7260 = vmatpush.bf16.msra.mxu0 %v7035
    %7261 = vmatpush.bf16.msra.mxu0 %v7029
    %7262 = vmatpush.bf16.msra.mxu0 %v7023
    %7263 = vmatpush.bf16.msra.mxu0 %v7017
    %7264 = vmatpush.bf16.msra.mxu0 %v7011
    %7265 = vmatpush.bf16.msra.mxu0 %v7005
    %7266 = vmatpush.bf16.msra.mxu0 %v6999
    %7267 = vmatpush.bf16.msra.mxu0 %v6993
    %7268 = vmatmul.bf16.gmra.mxu0 %v6590
    %v7269 = vpop.f32.mrf.mxu0
    %v7270 = vadd.f32 %v6693, %v7269
    %v7271 = vpop.f32.mrf.mxu0
    %7272 = vdwg.mxu0
    %7273 = vmatpush.bf16.msra.mxu0 %v7083
    %7274 = vmatpush.bf16.msra.mxu0 %v7077
    %7275 = vmatpush.bf16.msra.mxu0 %v7071
    %7276 = vmatpush.bf16.msra.mxu0 %v7065
    %7277 = vmatpush.bf16.msra.mxu0 %v7059
    %7278 = vmatpush.bf16.msra.mxu0 %v7053
    %7279 = vmatpush.bf16.msra.mxu0 %v7047
    %7280 = vmatpush.bf16.msra.mxu0 %v7041
    %7281 = vmatmul.bf16.gmra.mxu0 %v6591
    %v7282 = vpop.f32.mrf.mxu0
    %v7283 = vadd.f32 %v7270, %v7282
    %v7284 = vpop.f32.mrf.mxu0
    %7285 = vdwg.mxu0
    %7286 = vmatpush.bf16.msra.mxu0 %v7036
    %7287 = vmatpush.bf16.msra.mxu0 %v7030
    %7288 = vmatpush.bf16.msra.mxu0 %v7024
    %7289 = vmatpush.bf16.msra.mxu0 %v7018
    %7290 = vmatpush.bf16.msra.mxu0 %v7012
    %7291 = vmatpush.bf16.msra.mxu0 %v7006
    %7292 = vmatpush.bf16.msra.mxu0 %v7000
    %7293 = vmatpush.bf16.msra.mxu0 %v6994
    %7294 = vmatmul.bf16.gmra.mxu0 %v6590
    %v7295 = vpop.f32.mrf.mxu0
    %v7296 = vadd.f32 %v6694, %v7295
    %v7297 = vpop.f32.mrf.mxu0
    %7298 = vdwg.mxu0
    %7299 = vmatpush.bf16.msra.mxu0 %v7084
    %7300 = vmatpush.bf16.msra.mxu0 %v7078
    %7301 = vmatpush.bf16.msra.mxu0 %v7072
    %7302 = vmatpush.bf16.msra.mxu0 %v7066
    %7303 = vmatpush.bf16.msra.mxu0 %v7060
    %7304 = vmatpush.bf16.msra.mxu0 %v7054
    %7305 = vmatpush.bf16.msra.mxu0 %v7048
    %7306 = vmatpush.bf16.msra.mxu0 %v7042
    %7307 = vmatmul.bf16.gmra.mxu0 %v6591
    %v7308 = vpop.f32.mrf.mxu0
    %v7309 = vadd.f32 %v7296, %v7308
    %v7310 = vpop.f32.mrf.mxu0
    %7311 = vdwg.mxu0
    %7312 = vmatpush.bf16.msra.mxu0 %v7037
    %7313 = vmatpush.bf16.msra.mxu0 %v7031
    %7314 = vmatpush.bf16.msra.mxu0 %v7025
    %7315 = vmatpush.bf16.msra.mxu0 %v7019
    %7316 = vmatpush.bf16.msra.mxu0 %v7013
    %7317 = vmatpush.bf16.msra.mxu0 %v7007
    %7318 = vmatpush.bf16.msra.mxu0 %v7001
    %7319 = vmatpush.bf16.msra.mxu0 %v6995
    %7320 = vmatmul.bf16.gmra.mxu0 %v6590
    %v7321 = vpop.f32.mrf.mxu0
    %v7322 = vadd.f32 %v6695, %v7321
    %v7323 = vpop.f32.mrf.mxu0
    %7324 = vdwg.mxu0
    %7325 = vmatpush.bf16.msra.mxu0 %v7085
    %7326 = vmatpush.bf16.msra.mxu0 %v7079
    %7327 = vmatpush.bf16.msra.mxu0 %v7073
    %7328 = vmatpush.bf16.msra.mxu0 %v7067
    %7329 = vmatpush.bf16.msra.mxu0 %v7061
    %7330 = vmatpush.bf16.msra.mxu0 %v7055
    %7331 = vmatpush.bf16.msra.mxu0 %v7049
    %7332 = vmatpush.bf16.msra.mxu0 %v7043
    %7333 = vmatmul.bf16.gmra.mxu0 %v6591
    %v7334 = vpop.f32.mrf.mxu0
    %v7335 = vadd.f32 %v7322, %v7334
    %v7336 = vpop.f32.mrf.mxu0
    %7337 = vdwg.mxu0
    %v7338 = vld [vmem:[%s3034] sm:$0xff]
    %v7339 = vld [vmem:[%s3034 + $0x8] sm:$0xff]
    %v7340 = vld [vmem:[%s3034 + $0x10] sm:$0xff]
    %v7341 = vld [vmem:[%s3030 + $0x18] sm:$0xff]
    %v7342 = vld [vmem:[%s3030 + $0x20] sm:$0xff]
    %v7343 = vld [vmem:[%s3030 + $0x28] sm:$0xff]
    %v7344 = vadd.f32 %v7338, %v7205
    %v7345 = vxor.u32 %v7344, 2147483648
    %v7346 = vmul.f32 %v7345, 1.442695
    %v7347 = vpow.pop %v7346
    %v7348 = vadd.f32 %v7347, 1.0
    %v7349 = vrcp.pop %v7348
    %v7350 = vmul.f32 %v7348, %v7349
    %v7351 = vsub.f32 1.0, %v7350
    %v7352 = vmul.f32 %v7349, %v7351
    %v7353 = vadd.f32 %v7349, %v7352
    %vm7354 = vweird.f32 %v7348
    %vm7355 = vweird.f32 %v7349
    %vm7356 = vmor %vm7354, %vm7355
    %v7357 = vsel %vm7356, %v7349, %v7353
    %v7358 = vand.u32 2147483647, %v7348
    %vm7359 = vcmp.eq.f32.partialorder %v7358, 8.507059e+37
    %v7360 = vand.u32 %v7348, 2147483648
    %v7361 = vor.u32 1.1754944e-38, %v7360
    %v7362 = vsel %vm7359, %v7361, %v7357
    %v7363 = vmul.f32 1.0, %v7362
    %v7364 = vadd.f32 %v7339, %v7231
    %v7365 = vxor.u32 %v7364, 2147483648
    %v7366 = vmul.f32 %v7365, 1.442695
    %v7367 = vpow.pop %v7366
    %v7368 = vadd.f32 %v7367, 1.0
    %v7369 = vrcp.pop %v7368
    %v7370 = vmul.f32 %v7368, %v7369
    %v7371 = vsub.f32 1.0, %v7370
    %v7372 = vmul.f32 %v7369, %v7371
    %v7373 = vadd.f32 %v7369, %v7372
    %vm7374 = vweird.f32 %v7368
    %vm7375 = vweird.f32 %v7369
    %vm7376 = vmor %vm7374, %vm7375
    %v7377 = vsel %vm7376, %v7369, %v7373
    %v7378 = vand.u32 2147483647, %v7368
    %vm7379 = vcmp.eq.f32.partialorder %v7378, 8.507059e+37
    %v7380 = vand.u32 %v7368, 2147483648
    %v7381 = vor.u32 1.1754944e-38, %v7380
    %v7382 = vsel %vm7379, %v7381, %v7377
    %v7383 = vmul.f32 1.0, %v7382
    %v7384 = vmul.f32 %v7363, %v7257
    %v7385 = vadd.f32 %v7340, %v7384
    %v7386 = vtanh.pop %v7385
    %v7387 = vsub.f32 %v6588, %v7386
    %v7388 = vmul.f32 %v7383, %v7387
    %v7389 = vadd.f32 %v7386, %v7388
    %v7390 = vadd.f32 %v7341, %v7283
    %v7391 = vxor.u32 %v7390, 2147483648
    %v7392 = vmul.f32 %v7391, 1.442695
    %v7393 = vpow.pop %v7392
    %v7394 = vadd.f32 %v7393, 1.0
    %v7395 = vrcp.pop %v7394
    %v7396 = vmul.f32 %v7394, %v7395
    %v7397 = vsub.f32 1.0, %v7396
    %v7398 = vmul.f32 %v7395, %v7397
    %v7399 = vadd.f32 %v7395, %v7398
    %vm7400 = vweird.f32 %v7394
    %vm7401 = vweird.f32 %v7395
    %vm7402 = vmor %vm7400, %vm7401
    %v7403 = vsel %vm7402, %v7395, %v7399
    %v7404 = vand.u32 2147483647, %v7394
    %vm7405 = vcmp.eq.f32.partialorder %v7404, 8.507059e+37
    %v7406 = vand.u32 %v7394, 2147483648
    %v7407 = vor.u32 1.1754944e-38, %v7406
    %v7408 = vsel %vm7405, %v7407, %v7403
    %v7409 = vmul.f32 1.0, %v7408
    %v7410 = vadd.f32 %v7342, %v7309
    %v7411 = vxor.u32 %v7410, 2147483648
    %v7412 = vmul.f32 %v7411, 1.442695
    %v7413 = vpow.pop %v7412
    %v7414 = vadd.f32 %v7413, 1.0
    %v7415 = vrcp.pop %v7414
    %v7416 = vmul.f32 %v7414, %v7415
    %v7417 = vsub.f32 1.0, %v7416
    %v7418 = vmul.f32 %v7415, %v7417
    %v7419 = vadd.f32 %v7415, %v7418
    %vm7420 = vweird.f32 %v7414
    %vm7421 = vweird.f32 %v7415
    %vm7422 = vmor %vm7420, %vm7421
    %v7423 = vsel %vm7422, %v7415, %v7419
    %v7424 = vand.u32 2147483647, %v7414
    %vm7425 = vcmp.eq.f32.partialorder %v7424, 8.507059e+37
    %v7426 = vand.u32 %v7414, 2147483648
    %v7427 = vor.u32 1.1754944e-38, %v7426
    %v7428 = vsel %vm7425, %v7427, %v7423
    %v7429 = vmul.f32 1.0, %v7428
    %v7430 = vmul.f32 %v7409, %v7335
    %v7431 = vadd.f32 %v7343, %v7430
    %v7432 = vtanh.pop %v7431
    %v7433 = vsub.f32 %v6589, %v7432
    %v7434 = vmul.f32 %v7429, %v7433
    %v7435 = vadd.f32 %v7432, %v7434
    %v7436 = vsel %vm3144, %v7389, 0.0
    %7437 = vst [vmem:[%s3146] sm:$0xff] %v7436
    %v7438 = vsel %vm3136, %v7435, 0.0
    %7439 = vst [vmem:[%s3138 + $0x8] sm:$0xff] %v7438
    %v7440 = vsel %vm3144, %v7389, %v6588
    %v7441 = vsel %vm3136, %v7435, %v6589
    %v7442 = vpack.c.bf16 %v7440, %v7440
    %v7443 = vpack.c.bf16 %v7441, %v7441
    %v7444 = vld [vmem:[#allocation8] sm:$0xff]
    %v7445 = vld [vmem:[#allocation8 + $0x8] sm:$0xff]
    %v7446 = vld [vmem:[#allocation8 + $0x10] sm:$0xff]
    %v7447 = vld [vmem:[#allocation8 + $0x18] sm:$0xff]
    %v7448 = vld [vmem:[#allocation8 + $0x20] sm:$0xff]
    %v7449 = vld [vmem:[#allocation8 + $0x28] sm:$0xff]
    %v7450 = vld [vmem:[#allocation8 + $0x30] sm:$0xff]
    %v7451 = vld [vmem:[#allocation8 + $0x38] sm:$0xff]
    %v7452 = vld [vmem:[#allocation8 + $0x40] sm:$0xff]
    %v7453 = vld [vmem:[#allocation8 + $0x48] sm:$0xff]
    %v7454 = vld [vmem:[#allocation8 + $0x50] sm:$0xff]
    %v7455 = vld [vmem:[#allocation8 + $0x58] sm:$0xff]
    %v7456 = vld [vmem:[#allocation8 + $0x60] sm:$0xff]
    %v7457 = vld [vmem:[#allocation8 + $0x68] sm:$0xff]
    %v7458 = vld [vmem:[#allocation8 + $0x70] sm:$0xff]
    %v7459 = vld [vmem:[#allocation8 + $0x78] sm:$0xff]
    %v7460 = vld [vmem:[#allocation8 + $0x80] sm:$0xff]
    %v7461 = vld [vmem:[#allocation8 + $0x88] sm:$0xff]
    %v7462 = vld [vmem:[#allocation8 + $0x90] sm:$0xff]
    %v7463 = vld [vmem:[#allocation8 + $0x98] sm:$0xff]
    %v7464 = vld [vmem:[#allocation8 + $0xa0] sm:$0xff]
    %v7465 = vld [vmem:[#allocation8 + $0xa8] sm:$0xff]
    %v7466 = vld [vmem:[#allocation8 + $0xb0] sm:$0xff]
    %v7467 = vld [vmem:[#allocation8 + $0xb8] sm:$0xff]
    %v7468 = vld [vmem:[#allocation8 + $0xc0] sm:$0xff]
    %v7469 = vld [vmem:[#allocation8 + $0xc8] sm:$0xff]
    %v7470 = vld [vmem:[#allocation8 + $0xd0] sm:$0xff]
    %v7471 = vld [vmem:[#allocation8 + $0xd8] sm:$0xff]
    %v7472 = vld [vmem:[#allocation8 + $0xe0] sm:$0xff]
    %v7473 = vld [vmem:[#allocation8 + $0xe8] sm:$0xff]
    %v7474 = vld [vmem:[#allocation8 + $0xf0] sm:$0xff]
    %v7475 = vld [vmem:[#allocation8 + $0xf8] sm:$0xff]
    %v7476 = vld [vmem:[#allocation8 + $0x100] sm:$0xff]
    %v7477 = vld [vmem:[#allocation8 + $0x108] sm:$0xff]
    %v7478 = vld [vmem:[#allocation8 + $0x110] sm:$0xff]
    %v7479 = vld [vmem:[#allocation8 + $0x118] sm:$0xff]
    %v7480 = vld [vmem:[#allocation8 + $0x120] sm:$0xff]
    %v7481 = vld [vmem:[#allocation8 + $0x128] sm:$0xff]
    %v7482 = vld [vmem:[#allocation8 + $0x130] sm:$0xff]
    %v7483 = vld [vmem:[#allocation8 + $0x138] sm:$0xff]
    %v7484 = vld [vmem:[#allocation8 + $0x140] sm:$0xff]
    %v7485 = vld [vmem:[#allocation8 + $0x148] sm:$0xff]
    %v7486 = vld [vmem:[#allocation8 + $0x150] sm:$0xff]
    %v7487 = vld [vmem:[#allocation8 + $0x158] sm:$0xff]
    %v7488 = vld [vmem:[#allocation8 + $0x160] sm:$0xff]
    %v7489 = vld [vmem:[#allocation8 + $0x168] sm:$0xff]
    %v7490 = vld [vmem:[#allocation8 + $0x170] sm:$0xff]
    %v7491 = vld [vmem:[#allocation8 + $0x178] sm:$0xff]
    %v7492 = vld [vmem:[#allocation8 + $0x180] sm:$0xff]
    %v7493 = vld [vmem:[#allocation8 + $0x188] sm:$0xff]
    %v7494 = vld [vmem:[#allocation8 + $0x190] sm:$0xff]
    %v7495 = vld [vmem:[#allocation8 + $0x198] sm:$0xff]
    %v7496 = vld [vmem:[#allocation8 + $0x1a0] sm:$0xff]
    %v7497 = vld [vmem:[#allocation8 + $0x1a8] sm:$0xff]
    %v7498 = vld [vmem:[#allocation8 + $0x1b0] sm:$0xff]
    %v7499 = vld [vmem:[#allocation8 + $0x1b8] sm:$0xff]
    %v7500 = vld [vmem:[#allocation8 + $0x1c0] sm:$0xff]
    %v7501 = vld [vmem:[#allocation8 + $0x1c8] sm:$0xff]
    %v7502 = vld [vmem:[#allocation8 + $0x1d0] sm:$0xff]
    %v7503 = vld [vmem:[#allocation8 + $0x1d8] sm:$0xff]
    %v7504 = vld [vmem:[#allocation8 + $0x1e0] sm:$0xff]
    %v7505 = vld [vmem:[#allocation8 + $0x1e8] sm:$0xff]
    %v7506 = vld [vmem:[#allocation8 + $0x1f0] sm:$0xff]
    %v7507 = vld [vmem:[#allocation8 + $0x1f8] sm:$0xff]
    %v7508 = vld [vmem:[#allocation8 + $0x200] sm:$0xff]
    %v7509 = vld [vmem:[#allocation8 + $0x208] sm:$0xff]
    %v7510 = vld [vmem:[#allocation8 + $0x210] sm:$0xff]
    %v7511 = vld [vmem:[#allocation8 + $0x218] sm:$0xff]
    %v7512 = vld [vmem:[#allocation8 + $0x220] sm:$0xff]
    %v7513 = vld [vmem:[#allocation8 + $0x228] sm:$0xff]
    %v7514 = vld [vmem:[#allocation8 + $0x230] sm:$0xff]
    %v7515 = vld [vmem:[#allocation8 + $0x238] sm:$0xff]
    %v7516 = vld [vmem:[#allocation8 + $0x240] sm:$0xff]
    %v7517 = vld [vmem:[#allocation8 + $0x248] sm:$0xff]
    %v7518 = vld [vmem:[#allocation8 + $0x250] sm:$0xff]
    %v7519 = vld [vmem:[#allocation8 + $0x258] sm:$0xff]
    %v7520 = vld [vmem:[#allocation8 + $0x260] sm:$0xff]
    %v7521 = vld [vmem:[#allocation8 + $0x268] sm:$0xff]
    %v7522 = vld [vmem:[#allocation8 + $0x270] sm:$0xff]
    %v7523 = vld [vmem:[#allocation8 + $0x278] sm:$0xff]
    %v7524 = vld [vmem:[#allocation8 + $0x280] sm:$0xff]
    %v7525 = vld [vmem:[#allocation8 + $0x288] sm:$0xff]
    %v7526 = vld [vmem:[#allocation8 + $0x290] sm:$0xff]
    %v7527 = vld [vmem:[#allocation8 + $0x298] sm:$0xff]
    %v7528 = vld [vmem:[#allocation8 + $0x2a0] sm:$0xff]
    %v7529 = vld [vmem:[#allocation8 + $0x2a8] sm:$0xff]
    %v7530 = vld [vmem:[#allocation8 + $0x2b0] sm:$0xff]
    %v7531 = vld [vmem:[#allocation8 + $0x2b8] sm:$0xff]
    %v7532 = vld [vmem:[#allocation8 + $0x2c0] sm:$0xff]
    %v7533 = vld [vmem:[#allocation8 + $0x2c8] sm:$0xff]
    %v7534 = vld [vmem:[#allocation8 + $0x2d0] sm:$0xff]
    %v7535 = vld [vmem:[#allocation8 + $0x2d8] sm:$0xff]
    %v7536 = vld [vmem:[#allocation8 + $0x2e0] sm:$0xff]
    %v7537 = vld [vmem:[#allocation8 + $0x2e8] sm:$0xff]
    %v7538 = vld [vmem:[#allocation8 + $0x2f0] sm:$0xff]
    %v7539 = vld [vmem:[#allocation8 + $0x2f8] sm:$0xff]
    %v7540 = vld [vmem:[%s5] sm:$0x3f]
    %v7542 = vperm.slane %v7540, 0
    %v7543 = vperm.slane %v7540, 1
    %v7544 = vperm.slane %v7540, 2
    %v7545 = vperm.slane %v7540, 3
    %v7546 = vperm.slane %v7540, 4
    %v7547 = vperm.slane %v7540, 5
    %v7650 = vunpack.c.l.b16 %v7444
    %v7651 = vunpack.c.h.b16 %v7444
    %v7652 = vunpack.c.l.b16 %v7445
    %v7653 = vunpack.c.h.b16 %v7445
    %v7654 = vunpack.c.l.b16 %v7446
    %v7655 = vunpack.c.h.b16 %v7446
    %v7656 = vunpack.c.l.b16 %v7447
    %v7657 = vunpack.c.h.b16 %v7447
    %v7658 = vunpack.c.l.b16 %v7448
    %v7659 = vunpack.c.h.b16 %v7448
    %v7660 = vunpack.c.l.b16 %v7449
    %v7661 = vunpack.c.h.b16 %v7449
    %v7662 = vunpack.c.l.b16 %v7450
    %v7663 = vunpack.c.h.b16 %v7450
    %v7664 = vunpack.c.l.b16 %v7451
    %v7665 = vunpack.c.h.b16 %v7451
    %v7666 = vunpack.c.l.b16 %v7452
    %v7667 = vunpack.c.h.b16 %v7452
    %v7668 = vunpack.c.l.b16 %v7453
    %v7669 = vunpack.c.h.b16 %v7453
    %v7670 = vunpack.c.l.b16 %v7454
    %v7671 = vunpack.c.h.b16 %v7454
    %v7672 = vunpack.c.l.b16 %v7455
    %v7673 = vunpack.c.h.b16 %v7455
    %v7674 = vunpack.c.l.b16 %v7456
    %v7675 = vunpack.c.h.b16 %v7456
    %v7676 = vunpack.c.l.b16 %v7457
    %v7677 = vunpack.c.h.b16 %v7457
    %v7678 = vunpack.c.l.b16 %v7458
    %v7679 = vunpack.c.h.b16 %v7458
    %v7680 = vunpack.c.l.b16 %v7459
    %v7681 = vunpack.c.h.b16 %v7459
    %v7682 = vunpack.c.l.b16 %v7460
    %v7683 = vunpack.c.h.b16 %v7460
    %v7684 = vunpack.c.l.b16 %v7461
    %v7685 = vunpack.c.h.b16 %v7461
    %v7686 = vunpack.c.l.b16 %v7462
    %v7687 = vunpack.c.h.b16 %v7462
    %v7688 = vunpack.c.l.b16 %v7463
    %v7689 = vunpack.c.h.b16 %v7463
    %v7690 = vunpack.c.l.b16 %v7464
    %v7691 = vunpack.c.h.b16 %v7464
    %v7692 = vunpack.c.l.b16 %v7465
    %v7693 = vunpack.c.h.b16 %v7465
    %v7694 = vunpack.c.l.b16 %v7466
    %v7695 = vunpack.c.h.b16 %v7466
    %v7696 = vunpack.c.l.b16 %v7467
    %v7697 = vunpack.c.h.b16 %v7467
    %v7698 = vunpack.c.l.b16 %v7468
    %v7699 = vunpack.c.h.b16 %v7468
    %v7700 = vunpack.c.l.b16 %v7469
    %v7701 = vunpack.c.h.b16 %v7469
    %v7702 = vunpack.c.l.b16 %v7470
    %v7703 = vunpack.c.h.b16 %v7470
    %v7704 = vunpack.c.l.b16 %v7471
    %v7705 = vunpack.c.h.b16 %v7471
    %v7706 = vunpack.c.l.b16 %v7472
    %v7707 = vunpack.c.h.b16 %v7472
    %v7708 = vunpack.c.l.b16 %v7473
    %v7709 = vunpack.c.h.b16 %v7473
    %v7710 = vunpack.c.l.b16 %v7474
    %v7711 = vunpack.c.h.b16 %v7474
    %v7712 = vunpack.c.l.b16 %v7475
    %v7713 = vunpack.c.h.b16 %v7475
    %v7714 = vunpack.c.l.b16 %v7476
    %v7715 = vunpack.c.h.b16 %v7476
    %v7716 = vunpack.c.l.b16 %v7477
    %v7717 = vunpack.c.h.b16 %v7477
    %v7718 = vunpack.c.l.b16 %v7478
    %v7719 = vunpack.c.h.b16 %v7478
    %v7720 = vunpack.c.l.b16 %v7479
    %v7721 = vunpack.c.h.b16 %v7479
    %v7722 = vunpack.c.l.b16 %v7480
    %v7723 = vunpack.c.h.b16 %v7480
    %v7724 = vunpack.c.l.b16 %v7481
    %v7725 = vunpack.c.h.b16 %v7481
    %v7726 = vunpack.c.l.b16 %v7482
    %v7727 = vunpack.c.h.b16 %v7482
    %v7728 = vunpack.c.l.b16 %v7483
    %v7729 = vunpack.c.h.b16 %v7483
    %v7730 = vunpack.c.l.b16 %v7484
    %v7731 = vunpack.c.h.b16 %v7484
    %v7732 = vunpack.c.l.b16 %v7485
    %v7733 = vunpack.c.h.b16 %v7485
    %v7734 = vunpack.c.l.b16 %v7486
    %v7735 = vunpack.c.h.b16 %v7486
    %v7736 = vunpack.c.l.b16 %v7487
    %v7737 = vunpack.c.h.b16 %v7487
    %v7738 = vunpack.c.l.b16 %v7488
    %v7739 = vunpack.c.h.b16 %v7488
    %v7740 = vunpack.c.l.b16 %v7489
    %v7741 = vunpack.c.h.b16 %v7489
    %v7742 = vunpack.c.l.b16 %v7490
    %v7743 = vunpack.c.h.b16 %v7490
    %v7744 = vunpack.c.l.b16 %v7491
    %v7745 = vunpack.c.h.b16 %v7491
    %v7746 = vunpack.c.l.b16 %v7492
    %v7747 = vunpack.c.h.b16 %v7492
    %v7748 = vunpack.c.l.b16 %v7493
    %v7749 = vunpack.c.h.b16 %v7493
    %v7750 = vunpack.c.l.b16 %v7494
    %v7751 = vunpack.c.h.b16 %v7494
    %v7752 = vunpack.c.l.b16 %v7495
    %v7753 = vunpack.c.h.b16 %v7495
    %v7754 = vunpack.c.l.b16 %v7496
    %v7755 = vunpack.c.h.b16 %v7496
    %v7756 = vunpack.c.l.b16 %v7497
    %v7757 = vunpack.c.h.b16 %v7497
    %v7758 = vunpack.c.l.b16 %v7498
    %v7759 = vunpack.c.h.b16 %v7498
    %v7760 = vunpack.c.l.b16 %v7499
    %v7761 = vunpack.c.h.b16 %v7499
    %v7762 = vunpack.c.l.b16 %v7500
    %v7763 = vunpack.c.h.b16 %v7500
    %v7764 = vunpack.c.l.b16 %v7501
    %v7765 = vunpack.c.h.b16 %v7501
    %v7766 = vunpack.c.l.b16 %v7502
    %v7767 = vunpack.c.h.b16 %v7502
    %v7768 = vunpack.c.l.b16 %v7503
    %v7769 = vunpack.c.h.b16 %v7503
    %v7770 = vunpack.c.l.b16 %v7504
    %v7771 = vunpack.c.h.b16 %v7504
    %v7772 = vunpack.c.l.b16 %v7505
    %v7773 = vunpack.c.h.b16 %v7505
    %v7774 = vunpack.c.l.b16 %v7506
    %v7775 = vunpack.c.h.b16 %v7506
    %v7776 = vunpack.c.l.b16 %v7507
    %v7777 = vunpack.c.h.b16 %v7507
    %v7778 = vunpack.c.l.b16 %v7508
    %v7779 = vunpack.c.h.b16 %v7508
    %v7780 = vunpack.c.l.b16 %v7509
    %v7781 = vunpack.c.h.b16 %v7509
    %v7782 = vunpack.c.l.b16 %v7510
    %v7783 = vunpack.c.h.b16 %v7510
    %v7784 = vunpack.c.l.b16 %v7511
    %v7785 = vunpack.c.h.b16 %v7511
    %v7786 = vunpack.c.l.b16 %v7512
    %v7787 = vunpack.c.h.b16 %v7512
    %v7788 = vunpack.c.l.b16 %v7513
    %v7789 = vunpack.c.h.b16 %v7513
    %v7790 = vunpack.c.l.b16 %v7514
    %v7791 = vunpack.c.h.b16 %v7514
    %v7792 = vunpack.c.l.b16 %v7515
    %v7793 = vunpack.c.h.b16 %v7515
    %v7794 = vunpack.c.l.b16 %v7516
    %v7795 = vunpack.c.h.b16 %v7516
    %v7796 = vunpack.c.l.b16 %v7517
    %v7797 = vunpack.c.h.b16 %v7517
    %v7798 = vunpack.c.l.b16 %v7518
    %v7799 = vunpack.c.h.b16 %v7518
    %v7800 = vunpack.c.l.b16 %v7519
    %v7801 = vunpack.c.h.b16 %v7519
    %v7802 = vunpack.c.l.b16 %v7520
    %v7803 = vunpack.c.h.b16 %v7520
    %v7804 = vunpack.c.l.b16 %v7521
    %v7805 = vunpack.c.h.b16 %v7521
    %v7806 = vunpack.c.l.b16 %v7522
    %v7807 = vunpack.c.h.b16 %v7522
    %v7808 = vunpack.c.l.b16 %v7523
    %v7809 = vunpack.c.h.b16 %v7523
    %v7810 = vunpack.c.l.b16 %v7524
    %v7811 = vunpack.c.h.b16 %v7524
    %v7812 = vunpack.c.l.b16 %v7525
    %v7813 = vunpack.c.h.b16 %v7525
    %v7814 = vunpack.c.l.b16 %v7526
    %v7815 = vunpack.c.h.b16 %v7526
    %v7816 = vunpack.c.l.b16 %v7527
    %v7817 = vunpack.c.h.b16 %v7527
    %v7818 = vunpack.c.l.b16 %v7528
    %v7819 = vunpack.c.h.b16 %v7528
    %v7820 = vunpack.c.l.b16 %v7529
    %v7821 = vunpack.c.h.b16 %v7529
    %v7822 = vunpack.c.l.b16 %v7530
    %v7823 = vunpack.c.h.b16 %v7530
    %v7824 = vunpack.c.l.b16 %v7531
    %v7825 = vunpack.c.h.b16 %v7531
    %v7826 = vunpack.c.l.b16 %v7532
    %v7827 = vunpack.c.h.b16 %v7532
    %v7828 = vunpack.c.l.b16 %v7533
    %v7829 = vunpack.c.h.b16 %v7533
    %v7830 = vunpack.c.l.b16 %v7534
    %v7831 = vunpack.c.h.b16 %v7534
    %v7832 = vunpack.c.l.b16 %v7535
    %v7833 = vunpack.c.h.b16 %v7535
    %v7834 = vunpack.c.l.b16 %v7536
    %v7835 = vunpack.c.h.b16 %v7536
    %v7836 = vunpack.c.l.b16 %v7537
    %v7837 = vunpack.c.h.b16 %v7537
    %v7838 = vunpack.c.l.b16 %v7538
    %v7839 = vunpack.c.h.b16 %v7538
    %v7840 = vunpack.c.l.b16 %v7539
    %v7841 = vunpack.c.h.b16 %v7539
    %v7842 = vpack.c.b16 %v7656, %v7650
    %v7843 = vpack.c.b16 %v7657, %v7651
    %v7844 = vpack.c.b16 %v7658, %v7652
    %v7845 = vpack.c.b16 %v7659, %v7653
    %v7846 = vpack.c.b16 %v7660, %v7654
    %v7847 = vpack.c.b16 %v7661, %v7655
    %v7848 = vpack.c.b16 %v7668, %v7662
    %v7849 = vpack.c.b16 %v7669, %v7663
    %v7850 = vpack.c.b16 %v7670, %v7664
    %v7851 = vpack.c.b16 %v7671, %v7665
    %v7852 = vpack.c.b16 %v7672, %v7666
    %v7853 = vpack.c.b16 %v7673, %v7667
    %v7854 = vpack.c.b16 %v7680, %v7674
    %v7855 = vpack.c.b16 %v7681, %v7675
    %v7856 = vpack.c.b16 %v7682, %v7676
    %v7857 = vpack.c.b16 %v7683, %v7677
    %v7858 = vpack.c.b16 %v7684, %v7678
    %v7859 = vpack.c.b16 %v7685, %v7679
    %v7860 = vpack.c.b16 %v7692, %v7686
    %v7861 = vpack.c.b16 %v7693, %v7687
    %v7862 = vpack.c.b16 %v7694, %v7688
    %v7863 = vpack.c.b16 %v7695, %v7689
    %v7864 = vpack.c.b16 %v7696, %v7690
    %v7865 = vpack.c.b16 %v7697, %v7691
    %v7866 = vpack.c.b16 %v7704, %v7698
    %v7867 = vpack.c.b16 %v7705, %v7699
    %v7868 = vpack.c.b16 %v7706, %v7700
    %v7869 = vpack.c.b16 %v7707, %v7701
    %v7870 = vpack.c.b16 %v7708, %v7702
    %v7871 = vpack.c.b16 %v7709, %v7703
    %v7872 = vpack.c.b16 %v7716, %v7710
    %v7873 = vpack.c.b16 %v7717, %v7711
    %v7874 = vpack.c.b16 %v7718, %v7712
    %v7875 = vpack.c.b16 %v7719, %v7713
    %v7876 = vpack.c.b16 %v7720, %v7714
    %v7877 = vpack.c.b16 %v7721, %v7715
    %v7878 = vpack.c.b16 %v7728, %v7722
    %v7879 = vpack.c.b16 %v7729, %v7723
    %v7880 = vpack.c.b16 %v7730, %v7724
    %v7881 = vpack.c.b16 %v7731, %v7725
    %v7882 = vpack.c.b16 %v7732, %v7726
    %v7883 = vpack.c.b16 %v7733, %v7727
    %v7884 = vpack.c.b16 %v7740, %v7734
    %v7885 = vpack.c.b16 %v7741, %v7735
    %v7886 = vpack.c.b16 %v7742, %v7736
    %v7887 = vpack.c.b16 %v7743, %v7737
    %v7888 = vpack.c.b16 %v7744, %v7738
    %v7889 = vpack.c.b16 %v7745, %v7739
    %v7890 = vpack.c.b16 %v7752, %v7746
    %v7891 = vpack.c.b16 %v7753, %v7747
    %v7892 = vpack.c.b16 %v7754, %v7748
    %v7893 = vpack.c.b16 %v7755, %v7749
    %v7894 = vpack.c.b16 %v7756, %v7750
    %v7895 = vpack.c.b16 %v7757, %v7751
    %v7896 = vpack.c.b16 %v7764, %v7758
    %v7897 = vpack.c.b16 %v7765, %v7759
    %v7898 = vpack.c.b16 %v7766, %v7760
    %v7899 = vpack.c.b16 %v7767, %v7761
    %v7900 = vpack.c.b16 %v7768, %v7762
    %v7901 = vpack.c.b16 %v7769, %v7763
    %v7902 = vpack.c.b16 %v7776, %v7770
    %v7903 = vpack.c.b16 %v7777, %v7771
    %v7904 = vpack.c.b16 %v7778, %v7772
    %v7905 = vpack.c.b16 %v7779, %v7773
    %v7906 = vpack.c.b16 %v7780, %v7774
    %v7907 = vpack.c.b16 %v7781, %v7775
    %v7908 = vpack.c.b16 %v7788, %v7782
    %v7909 = vpack.c.b16 %v7789, %v7783
    %v7910 = vpack.c.b16 %v7790, %v7784
    %v7911 = vpack.c.b16 %v7791, %v7785
    %v7912 = vpack.c.b16 %v7792, %v7786
    %v7913 = vpack.c.b16 %v7793, %v7787
    %v7914 = vpack.c.b16 %v7800, %v7794
    %v7915 = vpack.c.b16 %v7801, %v7795
    %v7916 = vpack.c.b16 %v7802, %v7796
    %v7917 = vpack.c.b16 %v7803, %v7797
    %v7918 = vpack.c.b16 %v7804, %v7798
    %v7919 = vpack.c.b16 %v7805, %v7799
    %v7920 = vpack.c.b16 %v7812, %v7806
    %v7921 = vpack.c.b16 %v7813, %v7807
    %v7922 = vpack.c.b16 %v7814, %v7808
    %v7923 = vpack.c.b16 %v7815, %v7809
    %v7924 = vpack.c.b16 %v7816, %v7810
    %v7925 = vpack.c.b16 %v7817, %v7811
    %v7926 = vpack.c.b16 %v7824, %v7818
    %v7927 = vpack.c.b16 %v7825, %v7819
    %v7928 = vpack.c.b16 %v7826, %v7820
    %v7929 = vpack.c.b16 %v7827, %v7821
    %v7930 = vpack.c.b16 %v7828, %v7822
    %v7931 = vpack.c.b16 %v7829, %v7823
    %v7932 = vpack.c.b16 %v7836, %v7830
    %v7933 = vpack.c.b16 %v7837, %v7831
    %v7934 = vpack.c.b16 %v7838, %v7832
    %v7935 = vpack.c.b16 %v7839, %v7833
    %v7936 = vpack.c.b16 %v7840, %v7834
    %v7937 = vpack.c.b16 %v7841, %v7835
    %8034 = vmatpush.bf16.msra.mxu0 %v7884
    %8035 = vmatpush.bf16.msra.mxu0 %v7878
    %8036 = vmatpush.bf16.msra.mxu0 %v7872
    %8037 = vmatpush.bf16.msra.mxu0 %v7866
    %8038 = vmatpush.bf16.msra.mxu0 %v7860
    %8039 = vmatpush.bf16.msra.mxu0 %v7854
    %8040 = vmatpush.bf16.msra.mxu0 %v7848
    %8041 = vmatpush.bf16.msra.mxu0 %v7842
    %8042 = vmatmul.bf16.gmra.mxu0 %v7442
    %v8043 = vpop.f32.mrf.mxu0
    %v8044 = vadd.f32 %v7542, %v8043
    %v8045 = vpop.f32.mrf.mxu0
    %8046 = vdwg.mxu0
    %8047 = vmatpush.bf16.msra.mxu0 %v7932
    %8048 = vmatpush.bf16.msra.mxu0 %v7926
    %8049 = vmatpush.bf16.msra.mxu0 %v7920
    %8050 = vmatpush.bf16.msra.mxu0 %v7914
    %8051 = vmatpush.bf16.msra.mxu0 %v7908
    %8052 = vmatpush.bf16.msra.mxu0 %v7902
    %8053 = vmatpush.bf16.msra.mxu0 %v7896
    %8054 = vmatpush.bf16.msra.mxu0 %v7890
    %8055 = vmatmul.bf16.gmra.mxu0 %v7443
    %v8056 = vpop.f32.mrf.mxu0
    %v8057 = vadd.f32 %v8044, %v8056
    %v8058 = vpop.f32.mrf.mxu0
    %8059 = vdwg.mxu0
    %8060 = vmatpush.bf16.msra.mxu0 %v7885
    %8061 = vmatpush.bf16.msra.mxu0 %v7879
    %8062 = vmatpush.bf16.msra.mxu0 %v7873
    %8063 = vmatpush.bf16.msra.mxu0 %v7867
    %8064 = vmatpush.bf16.msra.mxu0 %v7861
    %8065 = vmatpush.bf16.msra.mxu0 %v7855
    %8066 = vmatpush.bf16.msra.mxu0 %v7849
    %8067 = vmatpush.bf16.msra.mxu0 %v7843
    %8068 = vmatmul.bf16.gmra.mxu0 %v7442
    %v8069 = vpop.f32.mrf.mxu0
    %v8070 = vadd.f32 %v7543, %v8069
    %v8071 = vpop.f32.mrf.mxu0
    %8072 = vdwg.mxu0
    %8073 = vmatpush.bf16.msra.mxu0 %v7933
    %8074 = vmatpush.bf16.msra.mxu0 %v7927
    %8075 = vmatpush.bf16.msra.mxu0 %v7921
    %8076 = vmatpush.bf16.msra.mxu0 %v7915
    %8077 = vmatpush.bf16.msra.mxu0 %v7909
    %8078 = vmatpush.bf16.msra.mxu0 %v7903
    %8079 = vmatpush.bf16.msra.mxu0 %v7897
    %8080 = vmatpush.bf16.msra.mxu0 %v7891
    %8081 = vmatmul.bf16.gmra.mxu0 %v7443
    %v8082 = vpop.f32.mrf.mxu0
    %v8083 = vadd.f32 %v8070, %v8082
    %v8084 = vpop.f32.mrf.mxu0
    %8085 = vdwg.mxu0
    %8086 = vmatpush.bf16.msra.mxu0 %v7886
    %8087 = vmatpush.bf16.msra.mxu0 %v7880
    %8088 = vmatpush.bf16.msra.mxu0 %v7874
    %8089 = vmatpush.bf16.msra.mxu0 %v7868
    %8090 = vmatpush.bf16.msra.mxu0 %v7862
    %8091 = vmatpush.bf16.msra.mxu0 %v7856
    %8092 = vmatpush.bf16.msra.mxu0 %v7850
    %8093 = vmatpush.bf16.msra.mxu0 %v7844
    %8094 = vmatmul.bf16.gmra.mxu0 %v7442
    %v8095 = vpop.f32.mrf.mxu0
    %v8096 = vadd.f32 %v7544, %v8095
    %v8097 = vpop.f32.mrf.mxu0
    %8098 = vdwg.mxu0
    %8099 = vmatpush.bf16.msra.mxu0 %v7934
    %8100 = vmatpush.bf16.msra.mxu0 %v7928
    %8101 = vmatpush.bf16.msra.mxu0 %v7922
    %8102 = vmatpush.bf16.msra.mxu0 %v7916
    %8103 = vmatpush.bf16.msra.mxu0 %v7910
    %8104 = vmatpush.bf16.msra.mxu0 %v7904
    %8105 = vmatpush.bf16.msra.mxu0 %v7898
    %8106 = vmatpush.bf16.msra.mxu0 %v7892
    %8107 = vmatmul.bf16.gmra.mxu0 %v7443
    %v8108 = vpop.f32.mrf.mxu0
    %v8109 = vadd.f32 %v8096, %v8108
    %v8110 = vpop.f32.mrf.mxu0
    %8111 = vdwg.mxu0
    %8112 = vmatpush.bf16.msra.mxu0 %v7887
    %8113 = vmatpush.bf16.msra.mxu0 %v7881
    %8114 = vmatpush.bf16.msra.mxu0 %v7875
    %8115 = vmatpush.bf16.msra.mxu0 %v7869
    %8116 = vmatpush.bf16.msra.mxu0 %v7863
    %8117 = vmatpush.bf16.msra.mxu0 %v7857
    %8118 = vmatpush.bf16.msra.mxu0 %v7851
    %8119 = vmatpush.bf16.msra.mxu0 %v7845
    %8120 = vmatmul.bf16.gmra.mxu0 %v7442
    %v8121 = vpop.f32.mrf.mxu0
    %v8122 = vadd.f32 %v7545, %v8121
    %v8123 = vpop.f32.mrf.mxu0
    %8124 = vdwg.mxu0
    %8125 = vmatpush.bf16.msra.mxu0 %v7935
    %8126 = vmatpush.bf16.msra.mxu0 %v7929
    %8127 = vmatpush.bf16.msra.mxu0 %v7923
    %8128 = vmatpush.bf16.msra.mxu0 %v7917
    %8129 = vmatpush.bf16.msra.mxu0 %v7911
    %8130 = vmatpush.bf16.msra.mxu0 %v7905
    %8131 = vmatpush.bf16.msra.mxu0 %v7899
    %8132 = vmatpush.bf16.msra.mxu0 %v7893
    %8133 = vmatmul.bf16.gmra.mxu0 %v7443
    %v8134 = vpop.f32.mrf.mxu0
    %v8135 = vadd.f32 %v8122, %v8134
    %v8136 = vpop.f32.mrf.mxu0
    %8137 = vdwg.mxu0
    %8138 = vmatpush.bf16.msra.mxu0 %v7888
    %8139 = vmatpush.bf16.msra.mxu0 %v7882
    %8140 = vmatpush.bf16.msra.mxu0 %v7876
    %8141 = vmatpush.bf16.msra.mxu0 %v7870
    %8142 = vmatpush.bf16.msra.mxu0 %v7864
    %8143 = vmatpush.bf16.msra.mxu0 %v7858
    %8144 = vmatpush.bf16.msra.mxu0 %v7852
    %8145 = vmatpush.bf16.msra.mxu0 %v7846
    %8146 = vmatmul.bf16.gmra.mxu0 %v7442
    %v8147 = vpop.f32.mrf.mxu0
    %v8148 = vadd.f32 %v7546, %v8147
    %v8149 = vpop.f32.mrf.mxu0
    %8150 = vdwg.mxu0
    %8151 = vmatpush.bf16.msra.mxu0 %v7936
    %8152 = vmatpush.bf16.msra.mxu0 %v7930
    %8153 = vmatpush.bf16.msra.mxu0 %v7924
    %8154 = vmatpush.bf16.msra.mxu0 %v7918
    %8155 = vmatpush.bf16.msra.mxu0 %v7912
    %8156 = vmatpush.bf16.msra.mxu0 %v7906
    %8157 = vmatpush.bf16.msra.mxu0 %v7900
    %8158 = vmatpush.bf16.msra.mxu0 %v7894
    %8159 = vmatmul.bf16.gmra.mxu0 %v7443
    %v8160 = vpop.f32.mrf.mxu0
    %v8161 = vadd.f32 %v8148, %v8160
    %v8162 = vpop.f32.mrf.mxu0
    %8163 = vdwg.mxu0
    %8164 = vmatpush.bf16.msra.mxu0 %v7889
    %8165 = vmatpush.bf16.msra.mxu0 %v7883
    %8166 = vmatpush.bf16.msra.mxu0 %v7877
    %8167 = vmatpush.bf16.msra.mxu0 %v7871
    %8168 = vmatpush.bf16.msra.mxu0 %v7865
    %8169 = vmatpush.bf16.msra.mxu0 %v7859
    %8170 = vmatpush.bf16.msra.mxu0 %v7853
    %8171 = vmatpush.bf16.msra.mxu0 %v7847
    %8172 = vmatmul.bf16.gmra.mxu0 %v7442
    %v8173 = vpop.f32.mrf.mxu0
    %v8174 = vadd.f32 %v7547, %v8173
    %v8175 = vpop.f32.mrf.mxu0
    %8176 = vdwg.mxu0
    %8177 = vmatpush.bf16.msra.mxu0 %v7937
    %8178 = vmatpush.bf16.msra.mxu0 %v7931
    %8179 = vmatpush.bf16.msra.mxu0 %v7925
    %8180 = vmatpush.bf16.msra.mxu0 %v7919
    %8181 = vmatpush.bf16.msra.mxu0 %v7913
    %8182 = vmatpush.bf16.msra.mxu0 %v7907
    %8183 = vmatpush.bf16.msra.mxu0 %v7901
    %8184 = vmatpush.bf16.msra.mxu0 %v7895
    %8185 = vmatmul.bf16.gmra.mxu0 %v7443
    %v8186 = vpop.f32.mrf.mxu0
    %v8187 = vadd.f32 %v8174, %v8186
    %v8188 = vpop.f32.mrf.mxu0
    %8189 = vdwg.mxu0
    %v8190 = vld [vmem:[%s2166] sm:$0xff]
    %v8191 = vld [vmem:[%s2166 + $0x8] sm:$0xff]
    %v8192 = vld [vmem:[%s2166 + $0x10] sm:$0xff]
    %v8193 = vld [vmem:[%s2162 + $0x18] sm:$0xff]
    %v8194 = vld [vmem:[%s2162 + $0x20] sm:$0xff]
    %v8195 = vld [vmem:[%s2162 + $0x28] sm:$0xff]
    %v8196 = vadd.f32 %v8190, %v8057
    %v8197 = vxor.u32 %v8196, 2147483648
    %v8198 = vmul.f32 %v8197, 1.442695
    %v8199 = vpow.pop %v8198
    %v8200 = vadd.f32 %v8199, 1.0
    %v8201 = vrcp.pop %v8200
    %v8202 = vmul.f32 %v8200, %v8201
    %v8203 = vsub.f32 1.0, %v8202
    %v8204 = vmul.f32 %v8201, %v8203
    %v8205 = vadd.f32 %v8201, %v8204
    %vm8206 = vweird.f32 %v8200
    %vm8207 = vweird.f32 %v8201
    %vm8208 = vmor %vm8206, %vm8207
    %v8209 = vsel %vm8208, %v8201, %v8205
    %v8210 = vand.u32 2147483647, %v8200
    %vm8211 = vcmp.eq.f32.partialorder %v8210, 8.507059e+37
    %v8212 = vand.u32 %v8200, 2147483648
    %v8213 = vor.u32 1.1754944e-38, %v8212
    %v8214 = vsel %vm8211, %v8213, %v8209
    %v8215 = vmul.f32 1.0, %v8214
    %v8216 = vadd.f32 %v8191, %v8083
    %v8217 = vxor.u32 %v8216, 2147483648
    %v8218 = vmul.f32 %v8217, 1.442695
    %v8219 = vpow.pop %v8218
    %v8220 = vadd.f32 %v8219, 1.0
    %v8221 = vrcp.pop %v8220
    %v8222 = vmul.f32 %v8220, %v8221
    %v8223 = vsub.f32 1.0, %v8222
    %v8224 = vmul.f32 %v8221, %v8223
    %v8225 = vadd.f32 %v8221, %v8224
    %vm8226 = vweird.f32 %v8220
    %vm8227 = vweird.f32 %v8221
    %vm8228 = vmor %vm8226, %vm8227
    %v8229 = vsel %vm8228, %v8221, %v8225
    %v8230 = vand.u32 2147483647, %v8220
    %vm8231 = vcmp.eq.f32.partialorder %v8230, 8.507059e+37
    %v8232 = vand.u32 %v8220, 2147483648
    %v8233 = vor.u32 1.1754944e-38, %v8232
    %v8234 = vsel %vm8231, %v8233, %v8229
    %v8235 = vmul.f32 1.0, %v8234
    %v8236 = vmul.f32 %v8215, %v8109
    %v8237 = vadd.f32 %v8192, %v8236
    %v8238 = vtanh.pop %v8237
    %v8239 = vsub.f32 %v7440, %v8238
    %v8240 = vmul.f32 %v8235, %v8239
    %v8241 = vadd.f32 %v8238, %v8240
    %v8242 = vadd.f32 %v8193, %v8135
    %v8243 = vxor.u32 %v8242, 2147483648
    %v8244 = vmul.f32 %v8243, 1.442695
    %v8245 = vpow.pop %v8244
    %v8246 = vadd.f32 %v8245, 1.0
    %v8247 = vrcp.pop %v8246
    %v8248 = vmul.f32 %v8246, %v8247
    %v8249 = vsub.f32 1.0, %v8248
    %v8250 = vmul.f32 %v8247, %v8249
    %v8251 = vadd.f32 %v8247, %v8250
    %vm8252 = vweird.f32 %v8246
    %vm8253 = vweird.f32 %v8247
    %vm8254 = vmor %vm8252, %vm8253
    %v8255 = vsel %vm8254, %v8247, %v8251
    %v8256 = vand.u32 2147483647, %v8246
    %vm8257 = vcmp.eq.f32.partialorder %v8256, 8.507059e+37
    %v8258 = vand.u32 %v8246, 2147483648
    %v8259 = vor.u32 1.1754944e-38, %v8258
    %v8260 = vsel %vm8257, %v8259, %v8255
    %v8261 = vmul.f32 1.0, %v8260
    %v8262 = vadd.f32 %v8194, %v8161
    %v8263 = vxor.u32 %v8262, 2147483648
    %v8264 = vmul.f32 %v8263, 1.442695
    %v8265 = vpow.pop %v8264
    %v8266 = vadd.f32 %v8265, 1.0
    %v8267 = vrcp.pop %v8266
    %v8268 = vmul.f32 %v8266, %v8267
    %v8269 = vsub.f32 1.0, %v8268
    %v8270 = vmul.f32 %v8267, %v8269
    %v8271 = vadd.f32 %v8267, %v8270
    %vm8272 = vweird.f32 %v8266
    %vm8273 = vweird.f32 %v8267
    %vm8274 = vmor %vm8272, %vm8273
    %v8275 = vsel %vm8274, %v8267, %v8271
    %v8276 = vand.u32 2147483647, %v8266
    %vm8277 = vcmp.eq.f32.partialorder %v8276, 8.507059e+37
    %v8278 = vand.u32 %v8266, 2147483648
    %v8279 = vor.u32 1.1754944e-38, %v8278
    %v8280 = vsel %vm8277, %v8279, %v8275
    %v8281 = vmul.f32 1.0, %v8280
    %v8282 = vmul.f32 %v8261, %v8187
    %v8283 = vadd.f32 %v8195, %v8282
    %v8284 = vtanh.pop %v8283
    %v8285 = vsub.f32 %v7441, %v8284
    %v8286 = vmul.f32 %v8281, %v8285
    %v8287 = vadd.f32 %v8284, %v8286
    %v8288 = vsel %vm2276, %v8241, 0.0
    %8289 = vst [vmem:[%s2278] sm:$0xff] %v8288
    %v8290 = vsel %vm2268, %v8287, 0.0
    %8291 = vst [vmem:[%s2270 + $0x8] sm:$0xff] %v8290
    %v8292 = vsel %vm2276, %v8241, %v7440
    %v8293 = vsel %vm2268, %v8287, %v7441
    %v8294 = vpack.c.bf16 %v8292, %v8292
    %v8295 = vpack.c.bf16 %v8293, %v8293
    %v8296 = vld [vmem:[#allocation8] sm:$0xff]
    %v8297 = vld [vmem:[#allocation8 + $0x8] sm:$0xff]
    %v8298 = vld [vmem:[#allocation8 + $0x10] sm:$0xff]
    %v8299 = vld [vmem:[#allocation8 + $0x18] sm:$0xff]
    %v8300 = vld [vmem:[#allocation8 + $0x20] sm:$0xff]
    %v8301 = vld [vmem:[#allocation8 + $0x28] sm:$0xff]
    %v8302 = vld [vmem:[#allocation8 + $0x30] sm:$0xff]
    %v8303 = vld [vmem:[#allocation8 + $0x38] sm:$0xff]
    %v8304 = vld [vmem:[#allocation8 + $0x40] sm:$0xff]
    %v8305 = vld [vmem:[#allocation8 + $0x48] sm:$0xff]
    %v8306 = vld [vmem:[#allocation8 + $0x50] sm:$0xff]
    %v8307 = vld [vmem:[#allocation8 + $0x58] sm:$0xff]
    %v8308 = vld [vmem:[#allocation8 + $0x60] sm:$0xff]
    %v8309 = vld [vmem:[#allocation8 + $0x68] sm:$0xff]
    %v8310 = vld [vmem:[#allocation8 + $0x70] sm:$0xff]
    %v8311 = vld [vmem:[#allocation8 + $0x78] sm:$0xff]
    %v8312 = vld [vmem:[#allocation8 + $0x80] sm:$0xff]
    %v8313 = vld [vmem:[#allocation8 + $0x88] sm:$0xff]
    %v8314 = vld [vmem:[#allocation8 + $0x90] sm:$0xff]
    %v8315 = vld [vmem:[#allocation8 + $0x98] sm:$0xff]
    %v8316 = vld [vmem:[#allocation8 + $0xa0] sm:$0xff]
    %v8317 = vld [vmem:[#allocation8 + $0xa8] sm:$0xff]
    %v8318 = vld [vmem:[#allocation8 + $0xb0] sm:$0xff]
    %v8319 = vld [vmem:[#allocation8 + $0xb8] sm:$0xff]
    %v8320 = vld [vmem:[#allocation8 + $0xc0] sm:$0xff]
    %v8321 = vld [vmem:[#allocation8 + $0xc8] sm:$0xff]
    %v8322 = vld [vmem:[#allocation8 + $0xd0] sm:$0xff]
    %v8323 = vld [vmem:[#allocation8 + $0xd8] sm:$0xff]
    %v8324 = vld [vmem:[#allocation8 + $0xe0] sm:$0xff]
    %v8325 = vld [vmem:[#allocation8 + $0xe8] sm:$0xff]
    %v8326 = vld [vmem:[#allocation8 + $0xf0] sm:$0xff]
    %v8327 = vld [vmem:[#allocation8 + $0xf8] sm:$0xff]
    %v8328 = vld [vmem:[#allocation8 + $0x100] sm:$0xff]
    %v8329 = vld [vmem:[#allocation8 + $0x108] sm:$0xff]
    %v8330 = vld [vmem:[#allocation8 + $0x110] sm:$0xff]
    %v8331 = vld [vmem:[#allocation8 + $0x118] sm:$0xff]
    %v8332 = vld [vmem:[#allocation8 + $0x120] sm:$0xff]
    %v8333 = vld [vmem:[#allocation8 + $0x128] sm:$0xff]
    %v8334 = vld [vmem:[#allocation8 + $0x130] sm:$0xff]
    %v8335 = vld [vmem:[#allocation8 + $0x138] sm:$0xff]
    %v8336 = vld [vmem:[#allocation8 + $0x140] sm:$0xff]
    %v8337 = vld [vmem:[#allocation8 + $0x148] sm:$0xff]
    %v8338 = vld [vmem:[#allocation8 + $0x150] sm:$0xff]
    %v8339 = vld [vmem:[#allocation8 + $0x158] sm:$0xff]
    %v8340 = vld [vmem:[#allocation8 + $0x160] sm:$0xff]
    %v8341 = vld [vmem:[#allocation8 + $0x168] sm:$0xff]
    %v8342 = vld [vmem:[#allocation8 + $0x170] sm:$0xff]
    %v8343 = vld [vmem:[#allocation8 + $0x178] sm:$0xff]
    %v8344 = vld [vmem:[#allocation8 + $0x180] sm:$0xff]
    %v8345 = vld [vmem:[#allocation8 + $0x188] sm:$0xff]
    %v8346 = vld [vmem:[#allocation8 + $0x190] sm:$0xff]
    %v8347 = vld [vmem:[#allocation8 + $0x198] sm:$0xff]
    %v8348 = vld [vmem:[#allocation8 + $0x1a0] sm:$0xff]
    %v8349 = vld [vmem:[#allocation8 + $0x1a8] sm:$0xff]
    %v8350 = vld [vmem:[#allocation8 + $0x1b0] sm:$0xff]
    %v8351 = vld [vmem:[#allocation8 + $0x1b8] sm:$0xff]
    %v8352 = vld [vmem:[#allocation8 + $0x1c0] sm:$0xff]
    %v8353 = vld [vmem:[#allocation8 + $0x1c8] sm:$0xff]
    %v8354 = vld [vmem:[#allocation8 + $0x1d0] sm:$0xff]
    %v8355 = vld [vmem:[#allocation8 + $0x1d8] sm:$0xff]
    %v8356 = vld [vmem:[#allocation8 + $0x1e0] sm:$0xff]
    %v8357 = vld [vmem:[#allocation8 + $0x1e8] sm:$0xff]
    %v8358 = vld [vmem:[#allocation8 + $0x1f0] sm:$0xff]
    %v8359 = vld [vmem:[#allocation8 + $0x1f8] sm:$0xff]
    %v8360 = vld [vmem:[#allocation8 + $0x200] sm:$0xff]
    %v8361 = vld [vmem:[#allocation8 + $0x208] sm:$0xff]
    %v8362 = vld [vmem:[#allocation8 + $0x210] sm:$0xff]
    %v8363 = vld [vmem:[#allocation8 + $0x218] sm:$0xff]
    %v8364 = vld [vmem:[#allocation8 + $0x220] sm:$0xff]
    %v8365 = vld [vmem:[#allocation8 + $0x228] sm:$0xff]
    %v8366 = vld [vmem:[#allocation8 + $0x230] sm:$0xff]
    %v8367 = vld [vmem:[#allocation8 + $0x238] sm:$0xff]
    %v8368 = vld [vmem:[#allocation8 + $0x240] sm:$0xff]
    %v8369 = vld [vmem:[#allocation8 + $0x248] sm:$0xff]
    %v8370 = vld [vmem:[#allocation8 + $0x250] sm:$0xff]
    %v8371 = vld [vmem:[#allocation8 + $0x258] sm:$0xff]
    %v8372 = vld [vmem:[#allocation8 + $0x260] sm:$0xff]
    %v8373 = vld [vmem:[#allocation8 + $0x268] sm:$0xff]
    %v8374 = vld [vmem:[#allocation8 + $0x270] sm:$0xff]
    %v8375 = vld [vmem:[#allocation8 + $0x278] sm:$0xff]
    %v8376 = vld [vmem:[#allocation8 + $0x280] sm:$0xff]
    %v8377 = vld [vmem:[#allocation8 + $0x288] sm:$0xff]
    %v8378 = vld [vmem:[#allocation8 + $0x290] sm:$0xff]
    %v8379 = vld [vmem:[#allocation8 + $0x298] sm:$0xff]
    %v8380 = vld [vmem:[#allocation8 + $0x2a0] sm:$0xff]
    %v8381 = vld [vmem:[#allocation8 + $0x2a8] sm:$0xff]
    %v8382 = vld [vmem:[#allocation8 + $0x2b0] sm:$0xff]
    %v8383 = vld [vmem:[#allocation8 + $0x2b8] sm:$0xff]
    %v8384 = vld [vmem:[#allocation8 + $0x2c0] sm:$0xff]
    %v8385 = vld [vmem:[#allocation8 + $0x2c8] sm:$0xff]
    %v8386 = vld [vmem:[#allocation8 + $0x2d0] sm:$0xff]
    %v8387 = vld [vmem:[#allocation8 + $0x2d8] sm:$0xff]
    %v8388 = vld [vmem:[#allocation8 + $0x2e0] sm:$0xff]
    %v8389 = vld [vmem:[#allocation8 + $0x2e8] sm:$0xff]
    %v8390 = vld [vmem:[#allocation8 + $0x2f0] sm:$0xff]
    %v8391 = vld [vmem:[#allocation8 + $0x2f8] sm:$0xff]
    %v8392 = vld [vmem:[%s5] sm:$0x3f]
    %v8394 = vperm.slane %v8392, 0
    %v8395 = vperm.slane %v8392, 1
    %v8396 = vperm.slane %v8392, 2
    %v8397 = vperm.slane %v8392, 3
    %v8398 = vperm.slane %v8392, 4
    %v8399 = vperm.slane %v8392, 5
    %v8502 = vunpack.c.l.b16 %v8296
    %v8503 = vunpack.c.h.b16 %v8296
    %v8504 = vunpack.c.l.b16 %v8297
    %v8505 = vunpack.c.h.b16 %v8297
    %v8506 = vunpack.c.l.b16 %v8298
    %v8507 = vunpack.c.h.b16 %v8298
    %v8508 = vunpack.c.l.b16 %v8299
    %v8509 = vunpack.c.h.b16 %v8299
    %v8510 = vunpack.c.l.b16 %v8300
    %v8511 = vunpack.c.h.b16 %v8300
    %v8512 = vunpack.c.l.b16 %v8301
    %v8513 = vunpack.c.h.b16 %v8301
    %v8514 = vunpack.c.l.b16 %v8302
    %v8515 = vunpack.c.h.b16 %v8302
    %v8516 = vunpack.c.l.b16 %v8303
    %v8517 = vunpack.c.h.b16 %v8303
    %v8518 = vunpack.c.l.b16 %v8304
    %v8519 = vunpack.c.h.b16 %v8304
    %v8520 = vunpack.c.l.b16 %v8305
    %v8521 = vunpack.c.h.b16 %v8305
    %v8522 = vunpack.c.l.b16 %v8306
    %v8523 = vunpack.c.h.b16 %v8306
    %v8524 = vunpack.c.l.b16 %v8307
    %v8525 = vunpack.c.h.b16 %v8307
    %v8526 = vunpack.c.l.b16 %v8308
    %v8527 = vunpack.c.h.b16 %v8308
    %v8528 = vunpack.c.l.b16 %v8309
    %v8529 = vunpack.c.h.b16 %v8309
    %v8530 = vunpack.c.l.b16 %v8310
    %v8531 = vunpack.c.h.b16 %v8310
    %v8532 = vunpack.c.l.b16 %v8311
    %v8533 = vunpack.c.h.b16 %v8311
    %v8534 = vunpack.c.l.b16 %v8312
    %v8535 = vunpack.c.h.b16 %v8312
    %v8536 = vunpack.c.l.b16 %v8313
    %v8537 = vunpack.c.h.b16 %v8313
    %v8538 = vunpack.c.l.b16 %v8314
    %v8539 = vunpack.c.h.b16 %v8314
    %v8540 = vunpack.c.l.b16 %v8315
    %v8541 = vunpack.c.h.b16 %v8315
    %v8542 = vunpack.c.l.b16 %v8316
    %v8543 = vunpack.c.h.b16 %v8316
    %v8544 = vunpack.c.l.b16 %v8317
    %v8545 = vunpack.c.h.b16 %v8317
    %v8546 = vunpack.c.l.b16 %v8318
    %v8547 = vunpack.c.h.b16 %v8318
    %v8548 = vunpack.c.l.b16 %v8319
    %v8549 = vunpack.c.h.b16 %v8319
    %v8550 = vunpack.c.l.b16 %v8320
    %v8551 = vunpack.c.h.b16 %v8320
    %v8552 = vunpack.c.l.b16 %v8321
    %v8553 = vunpack.c.h.b16 %v8321
    %v8554 = vunpack.c.l.b16 %v8322
    %v8555 = vunpack.c.h.b16 %v8322
    %v8556 = vunpack.c.l.b16 %v8323
    %v8557 = vunpack.c.h.b16 %v8323
    %v8558 = vunpack.c.l.b16 %v8324
    %v8559 = vunpack.c.h.b16 %v8324
    %v8560 = vunpack.c.l.b16 %v8325
    %v8561 = vunpack.c.h.b16 %v8325
    %v8562 = vunpack.c.l.b16 %v8326
    %v8563 = vunpack.c.h.b16 %v8326
    %v8564 = vunpack.c.l.b16 %v8327
    %v8565 = vunpack.c.h.b16 %v8327
    %v8566 = vunpack.c.l.b16 %v8328
    %v8567 = vunpack.c.h.b16 %v8328
    %v8568 = vunpack.c.l.b16 %v8329
    %v8569 = vunpack.c.h.b16 %v8329
    %v8570 = vunpack.c.l.b16 %v8330
    %v8571 = vunpack.c.h.b16 %v8330
    %v8572 = vunpack.c.l.b16 %v8331
    %v8573 = vunpack.c.h.b16 %v8331
    %v8574 = vunpack.c.l.b16 %v8332
    %v8575 = vunpack.c.h.b16 %v8332
    %v8576 = vunpack.c.l.b16 %v8333
    %v8577 = vunpack.c.h.b16 %v8333
    %v8578 = vunpack.c.l.b16 %v8334
    %v8579 = vunpack.c.h.b16 %v8334
    %v8580 = vunpack.c.l.b16 %v8335
    %v8581 = vunpack.c.h.b16 %v8335
    %v8582 = vunpack.c.l.b16 %v8336
    %v8583 = vunpack.c.h.b16 %v8336
    %v8584 = vunpack.c.l.b16 %v8337
    %v8585 = vunpack.c.h.b16 %v8337
    %v8586 = vunpack.c.l.b16 %v8338
    %v8587 = vunpack.c.h.b16 %v8338
    %v8588 = vunpack.c.l.b16 %v8339
    %v8589 = vunpack.c.h.b16 %v8339
    %v8590 = vunpack.c.l.b16 %v8340
    %v8591 = vunpack.c.h.b16 %v8340
    %v8592 = vunpack.c.l.b16 %v8341
    %v8593 = vunpack.c.h.b16 %v8341
    %v8594 = vunpack.c.l.b16 %v8342
    %v8595 = vunpack.c.h.b16 %v8342
    %v8596 = vunpack.c.l.b16 %v8343
    %v8597 = vunpack.c.h.b16 %v8343
    %v8598 = vunpack.c.l.b16 %v8344
    %v8599 = vunpack.c.h.b16 %v8344
    %v8600 = vunpack.c.l.b16 %v8345
    %v8601 = vunpack.c.h.b16 %v8345
    %v8602 = vunpack.c.l.b16 %v8346
    %v8603 = vunpack.c.h.b16 %v8346
    %v8604 = vunpack.c.l.b16 %v8347
    %v8605 = vunpack.c.h.b16 %v8347
    %v8606 = vunpack.c.l.b16 %v8348
    %v8607 = vunpack.c.h.b16 %v8348
    %v8608 = vunpack.c.l.b16 %v8349
    %v8609 = vunpack.c.h.b16 %v8349
    %v8610 = vunpack.c.l.b16 %v8350
    %v8611 = vunpack.c.h.b16 %v8350
    %v8612 = vunpack.c.l.b16 %v8351
    %v8613 = vunpack.c.h.b16 %v8351
    %v8614 = vunpack.c.l.b16 %v8352
    %v8615 = vunpack.c.h.b16 %v8352
    %v8616 = vunpack.c.l.b16 %v8353
    %v8617 = vunpack.c.h.b16 %v8353
    %v8618 = vunpack.c.l.b16 %v8354
    %v8619 = vunpack.c.h.b16 %v8354
    %v8620 = vunpack.c.l.b16 %v8355
    %v8621 = vunpack.c.h.b16 %v8355
    %v8622 = vunpack.c.l.b16 %v8356
    %v8623 = vunpack.c.h.b16 %v8356
    %v8624 = vunpack.c.l.b16 %v8357
    %v8625 = vunpack.c.h.b16 %v8357
    %v8626 = vunpack.c.l.b16 %v8358
    %v8627 = vunpack.c.h.b16 %v8358
    %v8628 = vunpack.c.l.b16 %v8359
    %v8629 = vunpack.c.h.b16 %v8359
    %v8630 = vunpack.c.l.b16 %v8360
    %v8631 = vunpack.c.h.b16 %v8360
    %v8632 = vunpack.c.l.b16 %v8361
    %v8633 = vunpack.c.h.b16 %v8361
    %v8634 = vunpack.c.l.b16 %v8362
    %v8635 = vunpack.c.h.b16 %v8362
    %v8636 = vunpack.c.l.b16 %v8363
    %v8637 = vunpack.c.h.b16 %v8363
    %v8638 = vunpack.c.l.b16 %v8364
    %v8639 = vunpack.c.h.b16 %v8364
    %v8640 = vunpack.c.l.b16 %v8365
    %v8641 = vunpack.c.h.b16 %v8365
    %v8642 = vunpack.c.l.b16 %v8366
    %v8643 = vunpack.c.h.b16 %v8366
    %v8644 = vunpack.c.l.b16 %v8367
    %v8645 = vunpack.c.h.b16 %v8367
    %v8646 = vunpack.c.l.b16 %v8368
    %v8647 = vunpack.c.h.b16 %v8368
    %v8648 = vunpack.c.l.b16 %v8369
    %v8649 = vunpack.c.h.b16 %v8369
    %v8650 = vunpack.c.l.b16 %v8370
    %v8651 = vunpack.c.h.b16 %v8370
    %v8652 = vunpack.c.l.b16 %v8371
    %v8653 = vunpack.c.h.b16 %v8371
    %v8654 = vunpack.c.l.b16 %v8372
    %v8655 = vunpack.c.h.b16 %v8372
    %v8656 = vunpack.c.l.b16 %v8373
    %v8657 = vunpack.c.h.b16 %v8373
    %v8658 = vunpack.c.l.b16 %v8374
    %v8659 = vunpack.c.h.b16 %v8374
    %v8660 = vunpack.c.l.b16 %v8375
    %v8661 = vunpack.c.h.b16 %v8375
    %v8662 = vunpack.c.l.b16 %v8376
    %v8663 = vunpack.c.h.b16 %v8376
    %v8664 = vunpack.c.l.b16 %v8377
    %v8665 = vunpack.c.h.b16 %v8377
    %v8666 = vunpack.c.l.b16 %v8378
    %v8667 = vunpack.c.h.b16 %v8378
    %v8668 = vunpack.c.l.b16 %v8379
    %v8669 = vunpack.c.h.b16 %v8379
    %v8670 = vunpack.c.l.b16 %v8380
    %v8671 = vunpack.c.h.b16 %v8380
    %v8672 = vunpack.c.l.b16 %v8381
    %v8673 = vunpack.c.h.b16 %v8381
    %v8674 = vunpack.c.l.b16 %v8382
    %v8675 = vunpack.c.h.b16 %v8382
    %v8676 = vunpack.c.l.b16 %v8383
    %v8677 = vunpack.c.h.b16 %v8383
    %v8678 = vunpack.c.l.b16 %v8384
    %v8679 = vunpack.c.h.b16 %v8384
    %v8680 = vunpack.c.l.b16 %v8385
    %v8681 = vunpack.c.h.b16 %v8385
    %v8682 = vunpack.c.l.b16 %v8386
    %v8683 = vunpack.c.h.b16 %v8386
    %v8684 = vunpack.c.l.b16 %v8387
    %v8685 = vunpack.c.h.b16 %v8387
    %v8686 = vunpack.c.l.b16 %v8388
    %v8687 = vunpack.c.h.b16 %v8388
    %v8688 = vunpack.c.l.b16 %v8389
    %v8689 = vunpack.c.h.b16 %v8389
    %v8690 = vunpack.c.l.b16 %v8390
    %v8691 = vunpack.c.h.b16 %v8390
    %v8692 = vunpack.c.l.b16 %v8391
    %v8693 = vunpack.c.h.b16 %v8391
    %v8694 = vpack.c.b16 %v8508, %v8502
    %v8695 = vpack.c.b16 %v8509, %v8503
    %v8696 = vpack.c.b16 %v8510, %v8504
    %v8697 = vpack.c.b16 %v8511, %v8505
    %v8698 = vpack.c.b16 %v8512, %v8506
    %v8699 = vpack.c.b16 %v8513, %v8507
    %v8700 = vpack.c.b16 %v8520, %v8514
    %v8701 = vpack.c.b16 %v8521, %v8515
    %v8702 = vpack.c.b16 %v8522, %v8516
    %v8703 = vpack.c.b16 %v8523, %v8517
    %v8704 = vpack.c.b16 %v8524, %v8518
    %v8705 = vpack.c.b16 %v8525, %v8519
    %v8706 = vpack.c.b16 %v8532, %v8526
    %v8707 = vpack.c.b16 %v8533, %v8527
    %v8708 = vpack.c.b16 %v8534, %v8528
    %v8709 = vpack.c.b16 %v8535, %v8529
    %v8710 = vpack.c.b16 %v8536, %v8530
    %v8711 = vpack.c.b16 %v8537, %v8531
    %v8712 = vpack.c.b16 %v8544, %v8538
    %v8713 = vpack.c.b16 %v8545, %v8539
    %v8714 = vpack.c.b16 %v8546, %v8540
    %v8715 = vpack.c.b16 %v8547, %v8541
    %v8716 = vpack.c.b16 %v8548, %v8542
    %v8717 = vpack.c.b16 %v8549, %v8543
    %v8718 = vpack.c.b16 %v8556, %v8550
    %v8719 = vpack.c.b16 %v8557, %v8551
    %v8720 = vpack.c.b16 %v8558, %v8552
    %v8721 = vpack.c.b16 %v8559, %v8553
    %v8722 = vpack.c.b16 %v8560, %v8554
    %v8723 = vpack.c.b16 %v8561, %v8555
    %v8724 = vpack.c.b16 %v8568, %v8562
    %v8725 = vpack.c.b16 %v8569, %v8563
    %v8726 = vpack.c.b16 %v8570, %v8564
    %v8727 = vpack.c.b16 %v8571, %v8565
    %v8728 = vpack.c.b16 %v8572, %v8566
    %v8729 = vpack.c.b16 %v8573, %v8567
    %v8730 = vpack.c.b16 %v8580, %v8574
    %v8731 = vpack.c.b16 %v8581, %v8575
    %v8732 = vpack.c.b16 %v8582, %v8576
    %v8733 = vpack.c.b16 %v8583, %v8577
    %v8734 = vpack.c.b16 %v8584, %v8578
    %v8735 = vpack.c.b16 %v8585, %v8579
    %v8736 = vpack.c.b16 %v8592, %v8586
    %v8737 = vpack.c.b16 %v8593, %v8587
    %v8738 = vpack.c.b16 %v8594, %v8588
    %v8739 = vpack.c.b16 %v8595, %v8589
    %v8740 = vpack.c.b16 %v8596, %v8590
    %v8741 = vpack.c.b16 %v8597, %v8591
    %v8742 = vpack.c.b16 %v8604, %v8598
    %v8743 = vpack.c.b16 %v8605, %v8599
    %v8744 = vpack.c.b16 %v8606, %v8600
    %v8745 = vpack.c.b16 %v8607, %v8601
    %v8746 = vpack.c.b16 %v8608, %v8602
    %v8747 = vpack.c.b16 %v8609, %v8603
    %v8748 = vpack.c.b16 %v8616, %v8610
    %v8749 = vpack.c.b16 %v8617, %v8611
    %v8750 = vpack.c.b16 %v8618, %v8612
    %v8751 = vpack.c.b16 %v8619, %v8613
    %v8752 = vpack.c.b16 %v8620, %v8614
    %v8753 = vpack.c.b16 %v8621, %v8615
    %v8754 = vpack.c.b16 %v8628, %v8622
    %v8755 = vpack.c.b16 %v8629, %v8623
    %v8756 = vpack.c.b16 %v8630, %v8624
    %v8757 = vpack.c.b16 %v8631, %v8625
    %v8758 = vpack.c.b16 %v8632, %v8626
    %v8759 = vpack.c.b16 %v8633, %v8627
    %v8760 = vpack.c.b16 %v8640, %v8634
    %v8761 = vpack.c.b16 %v8641, %v8635
    %v8762 = vpack.c.b16 %v8642, %v8636
    %v8763 = vpack.c.b16 %v8643, %v8637
    %v8764 = vpack.c.b16 %v8644, %v8638
    %v8765 = vpack.c.b16 %v8645, %v8639
    %v8766 = vpack.c.b16 %v8652, %v8646
    %v8767 = vpack.c.b16 %v8653, %v8647
    %v8768 = vpack.c.b16 %v8654, %v8648
    %v8769 = vpack.c.b16 %v8655, %v8649
    %v8770 = vpack.c.b16 %v8656, %v8650
    %v8771 = vpack.c.b16 %v8657, %v8651
    %v8772 = vpack.c.b16 %v8664, %v8658
    %v8773 = vpack.c.b16 %v8665, %v8659
    %v8774 = vpack.c.b16 %v8666, %v8660
    %v8775 = vpack.c.b16 %v8667, %v8661
    %v8776 = vpack.c.b16 %v8668, %v8662
    %v8777 = vpack.c.b16 %v8669, %v8663
    %v8778 = vpack.c.b16 %v8676, %v8670
    %v8779 = vpack.c.b16 %v8677, %v8671
    %v8780 = vpack.c.b16 %v8678, %v8672
    %v8781 = vpack.c.b16 %v8679, %v8673
    %v8782 = vpack.c.b16 %v8680, %v8674
    %v8783 = vpack.c.b16 %v8681, %v8675
    %v8784 = vpack.c.b16 %v8688, %v8682
    %v8785 = vpack.c.b16 %v8689, %v8683
    %v8786 = vpack.c.b16 %v8690, %v8684
    %v8787 = vpack.c.b16 %v8691, %v8685
    %v8788 = vpack.c.b16 %v8692, %v8686
    %v8789 = vpack.c.b16 %v8693, %v8687
    %8886 = vmatpush.bf16.msra.mxu0 %v8736
    %8887 = vmatpush.bf16.msra.mxu0 %v8730
    %8888 = vmatpush.bf16.msra.mxu0 %v8724
    %8889 = vmatpush.bf16.msra.mxu0 %v8718
    %8890 = vmatpush.bf16.msra.mxu0 %v8712
    %8891 = vmatpush.bf16.msra.mxu0 %v8706
    %8892 = vmatpush.bf16.msra.mxu0 %v8700
    %8893 = vmatpush.bf16.msra.mxu0 %v8694
    %8894 = vmatmul.bf16.gmra.mxu0 %v8294
    %v8895 = vpop.f32.mrf.mxu0
    %v8896 = vadd.f32 %v8394, %v8895
    %v8897 = vpop.f32.mrf.mxu0
    %8898 = vdwg.mxu0
    %8899 = vmatpush.bf16.msra.mxu0 %v8784
    %8900 = vmatpush.bf16.msra.mxu0 %v8778
    %8901 = vmatpush.bf16.msra.mxu0 %v8772
    %8902 = vmatpush.bf16.msra.mxu0 %v8766
    %8903 = vmatpush.bf16.msra.mxu0 %v8760
    %8904 = vmatpush.bf16.msra.mxu0 %v8754
    %8905 = vmatpush.bf16.msra.mxu0 %v8748
    %8906 = vmatpush.bf16.msra.mxu0 %v8742
    %8907 = vmatmul.bf16.gmra.mxu0 %v8295
    %v8908 = vpop.f32.mrf.mxu0
    %v8909 = vadd.f32 %v8896, %v8908
    %v8910 = vpop.f32.mrf.mxu0
    %8911 = vdwg.mxu0
    %8912 = vmatpush.bf16.msra.mxu0 %v8737
    %8913 = vmatpush.bf16.msra.mxu0 %v8731
    %8914 = vmatpush.bf16.msra.mxu0 %v8725
    %8915 = vmatpush.bf16.msra.mxu0 %v8719
    %8916 = vmatpush.bf16.msra.mxu0 %v8713
    %8917 = vmatpush.bf16.msra.mxu0 %v8707
    %8918 = vmatpush.bf16.msra.mxu0 %v8701
    %8919 = vmatpush.bf16.msra.mxu0 %v8695
    %8920 = vmatmul.bf16.gmra.mxu0 %v8294
    %v8921 = vpop.f32.mrf.mxu0
    %v8922 = vadd.f32 %v8395, %v8921
    %v8923 = vpop.f32.mrf.mxu0
    %8924 = vdwg.mxu0
    %8925 = vmatpush.bf16.msra.mxu0 %v8785
    %8926 = vmatpush.bf16.msra.mxu0 %v8779
    %8927 = vmatpush.bf16.msra.mxu0 %v8773
    %8928 = vmatpush.bf16.msra.mxu0 %v8767
    %8929 = vmatpush.bf16.msra.mxu0 %v8761
    %8930 = vmatpush.bf16.msra.mxu0 %v8755
    %8931 = vmatpush.bf16.msra.mxu0 %v8749
    %8932 = vmatpush.bf16.msra.mxu0 %v8743
    %8933 = vmatmul.bf16.gmra.mxu0 %v8295
    %v8934 = vpop.f32.mrf.mxu0
    %v8935 = vadd.f32 %v8922, %v8934
    %v8936 = vpop.f32.mrf.mxu0
    %8937 = vdwg.mxu0
    %8938 = vmatpush.bf16.msra.mxu0 %v8738
    %8939 = vmatpush.bf16.msra.mxu0 %v8732
    %8940 = vmatpush.bf16.msra.mxu0 %v8726
    %8941 = vmatpush.bf16.msra.mxu0 %v8720
    %8942 = vmatpush.bf16.msra.mxu0 %v8714
    %8943 = vmatpush.bf16.msra.mxu0 %v8708
    %8944 = vmatpush.bf16.msra.mxu0 %v8702
    %8945 = vmatpush.bf16.msra.mxu0 %v8696
    %8946 = vmatmul.bf16.gmra.mxu0 %v8294
    %v8947 = vpop.f32.mrf.mxu0
    %v8948 = vadd.f32 %v8396, %v8947
    %v8949 = vpop.f32.mrf.mxu0
    %8950 = vdwg.mxu0
    %8951 = vmatpush.bf16.msra.mxu0 %v8786
    %8952 = vmatpush.bf16.msra.mxu0 %v8780
    %8953 = vmatpush.bf16.msra.mxu0 %v8774
    %8954 = vmatpush.bf16.msra.mxu0 %v8768
    %8955 = vmatpush.bf16.msra.mxu0 %v8762
    %8956 = vmatpush.bf16.msra.mxu0 %v8756
    %8957 = vmatpush.bf16.msra.mxu0 %v8750
    %8958 = vmatpush.bf16.msra.mxu0 %v8744
    %8959 = vmatmul.bf16.gmra.mxu0 %v8295
    %v8960 = vpop.f32.mrf.mxu0
    %v8961 = vadd.f32 %v8948, %v8960
    %v8962 = vpop.f32.mrf.mxu0
    %8963 = vdwg.mxu0
    %8964 = vmatpush.bf16.msra.mxu0 %v8739
    %8965 = vmatpush.bf16.msra.mxu0 %v8733
    %8966 = vmatpush.bf16.msra.mxu0 %v8727
    %8967 = vmatpush.bf16.msra.mxu0 %v8721
    %8968 = vmatpush.bf16.msra.mxu0 %v8715
    %8969 = vmatpush.bf16.msra.mxu0 %v8709
    %8970 = vmatpush.bf16.msra.mxu0 %v8703
    %8971 = vmatpush.bf16.msra.mxu0 %v8697
    %8972 = vmatmul.bf16.gmra.mxu0 %v8294
    %v8973 = vpop.f32.mrf.mxu0
    %v8974 = vadd.f32 %v8397, %v8973
    %v8975 = vpop.f32.mrf.mxu0
    %8976 = vdwg.mxu0
    %8977 = vmatpush.bf16.msra.mxu0 %v8787
    %8978 = vmatpush.bf16.msra.mxu0 %v8781
    %8979 = vmatpush.bf16.msra.mxu0 %v8775
    %8980 = vmatpush.bf16.msra.mxu0 %v8769
    %8981 = vmatpush.bf16.msra.mxu0 %v8763
    %8982 = vmatpush.bf16.msra.mxu0 %v8757
    %8983 = vmatpush.bf16.msra.mxu0 %v8751
    %8984 = vmatpush.bf16.msra.mxu0 %v8745
    %8985 = vmatmul.bf16.gmra.mxu0 %v8295
    %v8986 = vpop.f32.mrf.mxu0
    %v8987 = vadd.f32 %v8974, %v8986
    %v8988 = vpop.f32.mrf.mxu0
    %8989 = vdwg.mxu0
    %8990 = vmatpush.bf16.msra.mxu0 %v8740
    %8991 = vmatpush.bf16.msra.mxu0 %v8734
    %8992 = vmatpush.bf16.msra.mxu0 %v8728
    %8993 = vmatpush.bf16.msra.mxu0 %v8722
    %8994 = vmatpush.bf16.msra.mxu0 %v8716
    %8995 = vmatpush.bf16.msra.mxu0 %v8710
    %8996 = vmatpush.bf16.msra.mxu0 %v8704
    %8997 = vmatpush.bf16.msra.mxu0 %v8698
    %8998 = vmatmul.bf16.gmra.mxu0 %v8294
    %v8999 = vpop.f32.mrf.mxu0
    %v9000 = vadd.f32 %v8398, %v8999
    %v9001 = vpop.f32.mrf.mxu0
    %9002 = vdwg.mxu0
    %9003 = vmatpush.bf16.msra.mxu0 %v8788
    %9004 = vmatpush.bf16.msra.mxu0 %v8782
    %9005 = vmatpush.bf16.msra.mxu0 %v8776
    %9006 = vmatpush.bf16.msra.mxu0 %v8770
    %9007 = vmatpush.bf16.msra.mxu0 %v8764
    %9008 = vmatpush.bf16.msra.mxu0 %v8758
    %9009 = vmatpush.bf16.msra.mxu0 %v8752
    %9010 = vmatpush.bf16.msra.mxu0 %v8746
    %9011 = vmatmul.bf16.gmra.mxu0 %v8295
    %v9012 = vpop.f32.mrf.mxu0
    %v9013 = vadd.f32 %v9000, %v9012
    %v9014 = vpop.f32.mrf.mxu0
    %9015 = vdwg.mxu0
    %9016 = vmatpush.bf16.msra.mxu0 %v8741
    %9017 = vmatpush.bf16.msra.mxu0 %v8735
    %9018 = vmatpush.bf16.msra.mxu0 %v8729
    %9019 = vmatpush.bf16.msra.mxu0 %v8723
    %9020 = vmatpush.bf16.msra.mxu0 %v8717
    %9021 = vmatpush.bf16.msra.mxu0 %v8711
    %9022 = vmatpush.bf16.msra.mxu0 %v8705
    %9023 = vmatpush.bf16.msra.mxu0 %v8699
    %9024 = vmatmul.bf16.gmra.mxu0 %v8294
    %v9025 = vpop.f32.mrf.mxu0
    %v9026 = vadd.f32 %v8399, %v9025
    %v9027 = vpop.f32.mrf.mxu0
    %9028 = vdwg.mxu0
    %9029 = vmatpush.bf16.msra.mxu0 %v8789
    %9030 = vmatpush.bf16.msra.mxu0 %v8783
    %9031 = vmatpush.bf16.msra.mxu0 %v8777
    %9032 = vmatpush.bf16.msra.mxu0 %v8771
    %9033 = vmatpush.bf16.msra.mxu0 %v8765
    %9034 = vmatpush.bf16.msra.mxu0 %v8759
    %9035 = vmatpush.bf16.msra.mxu0 %v8753
    %9036 = vmatpush.bf16.msra.mxu0 %v8747
    %9037 = vmatmul.bf16.gmra.mxu0 %v8295
    %v9038 = vpop.f32.mrf.mxu0
    %v9039 = vadd.f32 %v9026, %v9038
    %v9040 = vpop.f32.mrf.mxu0
    %9041 = vdwg.mxu0
    %v9042 = vld [vmem:[%s1301] sm:$0xff]
    %v9043 = vld [vmem:[%s1301 + $0x8] sm:$0xff]
    %v9044 = vld [vmem:[%s1301 + $0x10] sm:$0xff]
    %v9045 = vld [vmem:[#allocation2 + $0x18] sm:$0xff]
    %v9046 = vld [vmem:[#allocation2 + $0x20] sm:$0xff]
    %v9047 = vld [vmem:[#allocation2 + $0x28] sm:$0xff]
    %v9048 = vadd.f32 %v9042, %v8909
    %v9049 = vxor.u32 %v9048, 2147483648
    %v9050 = vmul.f32 %v9049, 1.442695
    %v9051 = vpow.pop %v9050
    %v9052 = vadd.f32 %v9051, 1.0
    %v9053 = vrcp.pop %v9052
    %v9054 = vmul.f32 %v9052, %v9053
    %v9055 = vsub.f32 1.0, %v9054
    %v9056 = vmul.f32 %v9053, %v9055
    %v9057 = vadd.f32 %v9053, %v9056
    %vm9058 = vweird.f32 %v9052
    %vm9059 = vweird.f32 %v9053
    %vm9060 = vmor %vm9058, %vm9059
    %v9061 = vsel %vm9060, %v9053, %v9057
    %v9062 = vand.u32 2147483647, %v9052
    %vm9063 = vcmp.eq.f32.partialorder %v9062, 8.507059e+37
    %v9064 = vand.u32 %v9052, 2147483648
    %v9065 = vor.u32 1.1754944e-38, %v9064
    %v9066 = vsel %vm9063, %v9065, %v9061
    %v9067 = vmul.f32 1.0, %v9066
    %v9068 = vadd.f32 %v9043, %v8935
    %v9069 = vxor.u32 %v9068, 2147483648
    %v9070 = vmul.f32 %v9069, 1.442695
    %v9071 = vpow.pop %v9070
    %v9072 = vadd.f32 %v9071, 1.0
    %v9073 = vrcp.pop %v9072
    %v9074 = vmul.f32 %v9072, %v9073
    %v9075 = vsub.f32 1.0, %v9074
    %v9076 = vmul.f32 %v9073, %v9075
    %v9077 = vadd.f32 %v9073, %v9076
    %vm9078 = vweird.f32 %v9072
    %vm9079 = vweird.f32 %v9073
    %vm9080 = vmor %vm9078, %vm9079
    %v9081 = vsel %vm9080, %v9073, %v9077
    %v9082 = vand.u32 2147483647, %v9072
    %vm9083 = vcmp.eq.f32.partialorder %v9082, 8.507059e+37
    %v9084 = vand.u32 %v9072, 2147483648
    %v9085 = vor.u32 1.1754944e-38, %v9084
    %v9086 = vsel %vm9083, %v9085, %v9081
    %v9087 = vmul.f32 1.0, %v9086
    %v9088 = vmul.f32 %v9067, %v8961
    %v9089 = vadd.f32 %v9044, %v9088
    %v9090 = vtanh.pop %v9089
    %v9091 = vsub.f32 %v8292, %v9090
    %v9092 = vmul.f32 %v9087, %v9091
    %v9093 = vadd.f32 %v9090, %v9092
    %v9094 = vadd.f32 %v9045, %v8987
    %v9095 = vxor.u32 %v9094, 2147483648
    %v9096 = vmul.f32 %v9095, 1.442695
    %v9097 = vpow.pop %v9096
    %v9098 = vadd.f32 %v9097, 1.0
    %v9099 = vrcp.pop %v9098
    %v9100 = vmul.f32 %v9098, %v9099
    %v9101 = vsub.f32 1.0, %v9100
    %v9102 = vmul.f32 %v9099, %v9101
    %v9103 = vadd.f32 %v9099, %v9102
    %vm9104 = vweird.f32 %v9098
    %vm9105 = vweird.f32 %v9099
    %vm9106 = vmor %vm9104, %vm9105
    %v9107 = vsel %vm9106, %v9099, %v9103
    %v9108 = vand.u32 2147483647, %v9098
    %vm9109 = vcmp.eq.f32.partialorder %v9108, 8.507059e+37
    %v9110 = vand.u32 %v9098, 2147483648
    %v9111 = vor.u32 1.1754944e-38, %v9110
    %v9112 = vsel %vm9109, %v9111, %v9107
    %v9113 = vmul.f32 1.0, %v9112
    %v9114 = vadd.f32 %v9046, %v9013
    %v9115 = vxor.u32 %v9114, 2147483648
    %v9116 = vmul.f32 %v9115, 1.442695
    %v9117 = vpow.pop %v9116
    %v9118 = vadd.f32 %v9117, 1.0
    %v9119 = vrcp.pop %v9118
    %v9120 = vmul.f32 %v9118, %v9119
    %v9121 = vsub.f32 1.0, %v9120
    %v9122 = vmul.f32 %v9119, %v9121
    %v9123 = vadd.f32 %v9119, %v9122
    %vm9124 = vweird.f32 %v9118
    %vm9125 = vweird.f32 %v9119
    %vm9126 = vmor %vm9124, %vm9125
    %v9127 = vsel %vm9126, %v9119, %v9123
    %v9128 = vand.u32 2147483647, %v9118
    %vm9129 = vcmp.eq.f32.partialorder %v9128, 8.507059e+37
    %v9130 = vand.u32 %v9118, 2147483648
    %v9131 = vor.u32 1.1754944e-38, %v9130
    %v9132 = vsel %vm9129, %v9131, %v9127
    %v9133 = vmul.f32 1.0, %v9132
    %v9134 = vmul.f32 %v9113, %v9039
    %v9135 = vadd.f32 %v9047, %v9134
    %v9136 = vtanh.pop %v9135
    %v9137 = vsub.f32 %v8293, %v9136
    %v9138 = vmul.f32 %v9133, %v9137
    %v9139 = vadd.f32 %v9136, %v9138
    %v9140 = vsel %vm1410, %v9093, 0.0
    %9141 = vst [vmem:[%s1412] sm:$0xff] %v9140
    %v9142 = vsel %vm1403, %v9139, 0.0
    %9143 = vst [vmem:[#allocation11 + $0x8] sm:$0xff] %v9142
    %v9144 = vsel %vm1410, %v9093, %v8292
    %v9145 = vsel %vm1403, %v9139, %v8293
    %v9146 = vld [vmem:[#allocation9] sm:$0xff]
    %v9147 = vld [vmem:[#allocation9 + $0x8] sm:$0xff]
    %v9148 = vld [vmem:[#allocation9 + $0x10] sm:$0xff]
    %v9149 = vld [vmem:[#allocation9 + $0x18] sm:$0xff]
    %v9150 = vld [vmem:[#allocation9 + $0x20] sm:$0xff]
    %v9151 = vld [vmem:[#allocation9 + $0x28] sm:$0xff]
    %v9152 = vld [vmem:[#allocation9 + $0x30] sm:$0xff]
    %v9153 = vld [vmem:[#allocation9 + $0x38] sm:$0xff]
    %v9154 = vld [vmem:[#allocation9 + $0x40] sm:$0xff]
    %v9155 = vld [vmem:[#allocation9 + $0x48] sm:$0xff]
    %v9156 = vld [vmem:[#allocation9 + $0x50] sm:$0xff]
    %v9157 = vld [vmem:[#allocation9 + $0x58] sm:$0xff]
    %v9158 = vld [vmem:[#allocation9 + $0x60] sm:$0xff]
    %v9159 = vld [vmem:[#allocation9 + $0x68] sm:$0xff]
    %v9160 = vld [vmem:[#allocation9 + $0x70] sm:$0xff]
    %v9161 = vld [vmem:[#allocation9 + $0x78] sm:$0xff]
    %v9162 = vld [vmem:[#allocation9 + $0x80] sm:$0xff]
    %v9163 = vld [vmem:[#allocation9 + $0x88] sm:$0xff]
    %v9164 = vld [vmem:[#allocation9 + $0x90] sm:$0xff]
    %v9165 = vld [vmem:[#allocation9 + $0x98] sm:$0xff]
    %v9166 = vld [vmem:[#allocation9 + $0xa0] sm:$0xff]
    %v9167 = vld [vmem:[#allocation9 + $0xa8] sm:$0xff]
    %v9168 = vld [vmem:[#allocation9 + $0xb0] sm:$0xff]
    %v9169 = vld [vmem:[#allocation9 + $0xb8] sm:$0xff]
    %v9170 = vld [vmem:[#allocation9 + $0xc0] sm:$0xff]
    %v9171 = vld [vmem:[#allocation9 + $0xc8] sm:$0xff]
    %v9172 = vld [vmem:[#allocation9 + $0xd0] sm:$0xff]
    %v9173 = vld [vmem:[#allocation9 + $0xd8] sm:$0xff]
    %v9174 = vld [vmem:[#allocation9 + $0xe0] sm:$0xff]
    %v9175 = vld [vmem:[#allocation9 + $0xe8] sm:$0xff]
    %v9176 = vld [vmem:[#allocation9 + $0xf0] sm:$0xff]
    %v9177 = vld [vmem:[#allocation9 + $0xf8] sm:$0xff]
    %v9178 = vld [vmem:[%s7] sm:$0x1]
    %v9180 = vperm.slane %v9178, 0
    %9182 = vmatpush.msra.mxu0 %v9161
    %9183 = vmatpush.msra.mxu0 %v9160
    %9184 = vmatpush.msra.mxu0 %v9159
    %9185 = vmatpush.msra.mxu0 %v9158
    %9186 = vmatpush.msra.mxu0 %v9157
    %9187 = vmatpush.msra.mxu0 %v9156
    %9188 = vmatpush.msra.mxu0 %v9155
    %9189 = vmatpush.msra.mxu0 %v9154
    %9190 = vmatpush.msra.mxu0 %v9153
    %9191 = vmatpush.msra.mxu0 %v9152
    %9192 = vmatpush.msra.mxu0 %v9151
    %9193 = vmatpush.msra.mxu0 %v9150
    %9194 = vmatpush.msra.mxu0 %v9149
    %9195 = vmatpush.msra.mxu0 %v9148
    %9196 = vmatpush.msra.mxu0 %v9147
    %9197 = vmatpush.msra.mxu0 %v9146
    %9198 = vmatmul.f32.gmra.mxu0 %v9144
    %v9199 = vpop.f32.mrf.mxu0
    %v9200 = vadd.f32 %v9180, %v9199
    %9201 = vdwg.mxu0
    %9202 = vmatpush.msra.mxu0 %v9177
    %9203 = vmatpush.msra.mxu0 %v9176
    %9204 = vmatpush.msra.mxu0 %v9175
    %9205 = vmatpush.msra.mxu0 %v9174
    %9206 = vmatpush.msra.mxu0 %v9173
    %9207 = vmatpush.msra.mxu0 %v9172
    %9208 = vmatpush.msra.mxu0 %v9171
    %9209 = vmatpush.msra.mxu0 %v9170
    %9210 = vmatpush.msra.mxu0 %v9169
    %9211 = vmatpush.msra.mxu0 %v9168
    %9212 = vmatpush.msra.mxu0 %v9167
    %9213 = vmatpush.msra.mxu0 %v9166
    %9214 = vmatpush.msra.mxu0 %v9165
    %9215 = vmatpush.msra.mxu0 %v9164
    %9216 = vmatpush.msra.mxu0 %v9163
    %9217 = vmatpush.msra.mxu0 %v9162
    %9218 = vmatmul.f32.gmra.mxu0 %v9145
    %v9219 = vpop.f32.mrf.mxu0
    %v9220 = vadd.f32 %v9200, %v9219
    %9221 = vdwg.mxu0
    %v9222 = vtanh.pop %v9220
    %9223 = vst [vmem:[#allocation12] sm:$0xff] %v9222
    // Predicated region
    $region50: #{tpu_custom_call.1} parent=1 // pred_check
      _
    $region51: #{tpu_custom_call.1} parent=1 // pred_check_branch
      %9225 = sbr.rel (0) target = $region53
    $region52: #{tpu_custom_call.1} parent=1 // pred_region
      %9227 = vsyncadd [#allocation5], 0
      %s9228 = sshll.u32 [#allocation11], 4
      %s9229 = int_to_ptr.vmem [resolvable:$true] %s9228
      %s9230 = sshll.u32 %s8, 4
      %s9231 = int_to_ptr.hbm [resolvable:$true] %s9230
      %9236 = dma.vmem_to_hbm [thread:$0]  %s9229, 2560, %s9231, [#allocation5], 256, 256, 16
    $region53: #{tpu_custom_call.1} parent=1 // pred_fallthru
      _
    // Predicated region
    $region54: #{tpu_custom_call.1} parent=1 // pred_check
      _
    $region55: #{tpu_custom_call.1} parent=1 // pred_check_branch
      %9238 = sbr.rel (0) target = $region57
    $region56: #{tpu_custom_call.1} parent=1 // pred_region
      %9240 = vsyncadd [#allocation13], 0
      %s9242 = sshll.u32 [#allocation12], 4
      %s9243 = int_to_ptr.vmem [resolvable:$true] %s9242
      %s9244 = sshll.u32 %s9, 4
      %s9245 = int_to_ptr.hbm [resolvable:$true] %s9244
      %9247 = dma.vmem_to_hbm [thread:$0]  %s9243, 128, %s9245, [#allocation13]
    $region57: #{tpu_custom_call.1} parent=1 // pred_fallthru
      _
    // Predicated region
    $region58: #{tpu_custom_call.1} parent=1 // pred_check
      _
    $region59: #{tpu_custom_call.1} parent=1 // pred_check_branch
      %9249 = sbr.rel (0) target = $region61
    $region60: #{tpu_custom_call.1} parent=1 // pred_region
      %9251 = dma.done [#allocation5], 2560
    $region61: #{tpu_custom_call.1} parent=1 // pred_fallthru
      _
    // Predicated region
    $region62: #{tpu_custom_call.1} parent=1 // pred_check
      _
    $region63: #{tpu_custom_call.1} parent=1 // pred_check_branch
      %9253 = sbr.rel (0) target = $region65
    $region64: #{tpu_custom_call.1} parent=1 // pred_region
      %9255 = dma.done [#allocation13], 128
    $region65: #{tpu_custom_call.1} parent=1 // pred_fallthru
      _
    %9256 = vsyncpa [#allocation4], 1
    %9257 = vsyncpa [#allocation7], 1
    %9258 = vsyncpa [#allocation10], 1
    %9259 = vsyncpa [#allocation5], 1
    %9260 = vsyncpa [#allocation13], 1

</llo_original>
